<compile_context>
chip_gen: v5e
topology: v5e:2x2
jax: 0.10.0
libtpu: 0.0.40
codegen_flags: <defaults>
</compile_context>

<pallas_src>
import numpy as np
import jax
import jax.numpy as jnp
from jax.experimental import pallas as pl
from jax.experimental.pallas import tpu as pltpu


# ----------------------------------------------------------------------------
# Module configuration (mirrors MLP.__init__ arguments).
# ----------------------------------------------------------------------------
SPARSE_COL = [0, 1, 2]
DENSE_COL = list(range(3, 17))
SPARSE_COL_SIZE = [100, 50, 20]
EMBEDDING_SIZE = [int(6 * pow(s, 0.25)) for s in SPARSE_COL_SIZE]     # [18, 15, 12]
TOTAL_EMBEDDING_SIZE = int(np.sum(EMBEDDING_SIZE)) + len(DENSE_COL)   # 45 + 14 = 59

N_SPARSE = len(SPARSE_COL)
N_DENSE = len(DENSE_COL)
N_FEATURES = N_SPARSE + N_DENSE          # 17
HIDDEN = 128
ONEHOT_K = 128                           # packed-row width for the folded-table blocks
TABLE2_ROW = SPARSE_COL_SIZE[0]          # table2 packed right after table0 in block A

assert SPARSE_COL_SIZE[0] + SPARSE_COL_SIZE[2] <= ONEHOT_K
assert SPARSE_COL_SIZE[1] <= ONEHOT_K


# ----------------------------------------------------------------------------
# Pallas kernel: fused embedding-lookup + 3-layer MLP (relu -> relu -> sigmoid),
# computed transposed (batch on the lane axis).
# ----------------------------------------------------------------------------
def _mlp_kernel(feat_ref, ma_ref, mb_ref, w1f_ref, b1_ref, w2t_ref, b2_ref,
                w3_ref, b3_ref, o_ref):
    tb = feat_ref.shape[1]
    feat = feat_ref[...]                                       # (17, TB) f32, batch on lanes
    id0 = feat[0:1, :].astype(jnp.int32)                       # (1, TB)
    id1 = feat[1:2, :].astype(jnp.int32)
    id2 = feat[2:3, :].astype(jnp.int32)

    # ---- layer 1: fused embedding lookup + Linear(59 -> 128), transposed -------
    # h1 = MA^T @ multihot(id0, 100+id2) + MB^T @ onehot(id1) + W1F @ feat
    rows = jax.lax.broadcasted_iota(jnp.int32, (ONEHOT_K, tb), 0)
    rhs_a = ((rows == id0) | (rows == (id2 + TABLE2_ROW))).astype(jnp.bfloat16)
    rhs_b = (rows == id1).astype(jnp.bfloat16)
    h1 = jnp.dot(ma_ref[...], rhs_a, preferred_element_type=jnp.float32)
    h1 = h1 + jnp.dot(mb_ref[...], rhs_b, preferred_element_type=jnp.float32)
    h1 = h1 + jnp.dot(w1f_ref[...], feat.astype(jnp.bfloat16),
                      preferred_element_type=jnp.float32)       # dense cols (ids hit 0 wts)
    h1 = jnp.maximum(h1 + b1_ref[...], 0.0)                      # (128, TB)

    # ---- layer 2: Linear(128 -> 128) + relu -------------------------------------
    h2 = jnp.dot(w2t_ref[...], h1.astype(jnp.bfloat16),
                 preferred_element_type=jnp.float32)
    h2 = jnp.maximum(h2 + b2_ref[...], 0.0)                      # (128, TB)

    # ---- layer 3: Linear(128 -> 1) + sigmoid, lane-dense (1, TB) output ---------
    z = jnp.dot(w3_ref[...], h2.astype(jnp.bfloat16),
                preferred_element_type=jnp.float32)              # (8, TB); row 0 real
    o_ref[...] = jax.nn.sigmoid(z[0:1, :] + b3_ref[0, 0])        # (1, TB)


def _fused_mlp(feat_t, kparams, *, block_rows):
    """feat_t: (17, Bpad) f32 (batch on lanes) -> (1, Bpad) f32 sigmoid outputs."""
    assert block_rows % 128 == 0, "block_rows must be a multiple of 128 (lane-dense)"
    n_feat, bpad = feat_t.shape
    ntiles = bpad // block_rows

    def resident(shape):
        ndim = len(shape)
        return pl.BlockSpec(shape, lambda i, _n=ndim: (0,) * _n)

    in_specs = [
        pl.BlockSpec((n_feat, block_rows), lambda i: (0, i)),    # streamed feature block
        resident((HIDDEN, ONEHOT_K)),                            # packed tables 0+2 (bf16)
        resident((HIDDEN, ONEHOT_K)),                            # packed table 1 (bf16)
        resident((HIDDEN, N_FEATURES)),                          # W1 dense rows (K=17)
        resident((HIDDEN, 1)),                                   # b1
        resident((HIDDEN, HIDDEN)),                              # W2^T
        resident((HIDDEN, 1)),                                   # b2
        resident((8, HIDDEN)),                                   # W3^T in row 0
        pl.BlockSpec((1, 1), lambda i: (0, 0),
                     memory_space=pltpu.MemorySpace.SMEM),       # b3 scalar via SMEM
    ]
    out_specs = pl.BlockSpec((1, block_rows), lambda i: (0, i))

    macs_per_row = (2 * HIDDEN * ONEHOT_K + HIDDEN * N_FEATURES
                    + HIDDEN * HIDDEN + 8 * HIDDEN)
    weight_bytes = sum(int(np.prod(v.shape)) * v.dtype.itemsize
                       for v in kparams.values())
    cost = pl.CostEstimate(
        flops=2 * macs_per_row * bpad,
        transcendentals=bpad,
        bytes_accessed=bpad * (N_FEATURES * 4 + 4) + weight_bytes,
    )

    # Streamed blocks + in-kernel temporaries are ~4-6 KB/row; scale the scoped-VMEM
    # limit with the tile size and cap well under v7x's 64 MiB physical VMEM.
    vmem_limit = int(min(block_rows * 8192 + (8 << 20), 56 << 20))

    out = pl.pallas_call(
        _mlp_kernel,
        out_shape=jax.ShapeDtypeStruct((1, bpad), jnp.float32),
        grid=(ntiles,),          # pick block_rows so ntiles >= 2 on v7x for TC balance
        in_specs=in_specs,
        out_specs=out_specs,
        compiler_params=pltpu.CompilerParams(
            dimension_semantics=("parallel",),
            vmem_limit_bytes=vmem_limit),
        cost_estimate=cost,
    )(feat_t, kparams["ma"], kparams["mb"], kparams["w1f"], kparams["b1"],
      kparams["w2t"], kparams["b2"], kparams["w3"], kparams["b3"])
    return out


# ----------------------------------------------------------------------------
# Parameters (raw, PyTorch-like) and kernel-side preparation (fold/pack/cast).
# ----------------------------------------------------------------------------
def init_params(key):
    keys = jax.random.split(key, 6 + len(SPARSE_COL_SIZE))
    emb_tables = [
        jax.random.normal(keys[i], (cs, es), dtype=jnp.float32) * 0.25
        for i, (cs, es) in enumerate(zip(SPARSE_COL_SIZE, EMBEDDING_SIZE))
    ]
    d_in = TOTAL_EMBEDDING_SIZE
    k1, k2, k3, kb1, kb2, kb3 = keys[-6:]
    return {
        "emb": emb_tables,
        "w1": jax.random.normal(k1, (d_in, HIDDEN), jnp.float32) * 0.12,
        "b1": jax.random.normal(kb1, (1, HIDDEN), jnp.float32) * 0.05,
        "w2": jax.random.normal(k2, (HIDDEN, HIDDEN), jnp.float32) * 0.12,
        "b2": jax.random.normal(kb2, (1, HIDDEN), jnp.float32) * 0.05,
        "w3": jax.random.normal(k3, (HIDDEN, 1), jnp.float32) * 0.12,
        "b3": jax.random.normal(kb3, (1, 1), jnp.float32) * 0.05,
    }


def _prepare_kernel_params(params):
    """Fold emb_i @ W1-rows, pack tables {0,2} and {1} into 128-row blocks, cast."""
    w1 = params["w1"]                                          # (59, 128) f32
    offs = np.concatenate([[0], np.cumsum(EMBEDDING_SIZE)])    # [0, 18, 33, 45]
    m = [params["emb"][i] @ w1[int(offs[i]):int(offs[i + 1]), :]
         for i in range(N_SPARSE)]                             # (cs_i, 128) each

    # Block A: table0 at rows [0,100), table2 at rows [100,120).  Block B: table1 rows [0,50).
    blk_a = jnp.zeros((ONEHOT_K, HIDDEN), jnp.float32)
    blk_a = blk_a.at[:SPARSE_COL_SIZE[0], :].set(m[0])
    blk_a = blk_a.at[TABLE2_ROW:TABLE2_ROW + SPARSE_COL_SIZE[2], :].set(m[2])
    blk_b = jnp.zeros((ONEHOT_K, HIDDEN), jnp.float32)
    blk_b = blk_b.at[:SPARSE_COL_SIZE[1], :].set(m[1])

    # Dense rows of W1 applied straight to the raw (17, TB) feature block:
    # columns 0..2 (the id columns) get zero weights, columns 3..16 get W1[45:59].
    w1f = jnp.zeros((HIDDEN, N_FEATURES), jnp.float32)
    w1f = w1f.at[:, N_SPARSE:].set(w1[int(offs[-1]):, :].T)

    w3p = jnp.zeros((8, HIDDEN), jnp.float32).at[0, :].set(params["w3"][:, 0])

    return {
        "ma": blk_a.T.astype(jnp.bfloat16),          # (128 hidden, 128 packed rows)
        "mb": blk_b.T.astype(jnp.bfloat16),
        "w1f": w1f.astype(jnp.bfloat16),             # (128, 17)
        "b1": params["b1"].reshape(HIDDEN, 1),
        "w2t": params["w2"].T.astype(jnp.bfloat16),  # (128, 128)
        "b2": params["b2"].reshape(HIDDEN, 1),
        "w3": w3p.astype(jnp.bfloat16),              # (8, 128)
        "b3": params["b3"].reshape(1, 1),
    }


# ----------------------------------------------------------------------------
# Forward pass (mirrors MLP.forward).
# ----------------------------------------------------------------------------
def mlp_forward(params, feature, *, block_rows=2048):
    feature = feature.reshape(-1, N_FEATURES)          # feature.view(-1, 17)
    batch = feature.shape[0]
    ntiles = pl.cdiv(batch, block_rows)
    bpad = ntiles * block_rows

    feat = feature.astype(jnp.float32)
    if bpad != batch:
        feat = jnp.pad(feat, ((0, bpad - batch), (0, 0)))
    feat_t = feat.T                                    # (17, Bpad): batch on the lane axis

    kparams = _prepare_kernel_params(params)
    out = _fused_mlp(feat_t, kparams, block_rows=block_rows)   # (1, Bpad)
    return out[0, :batch]                              # output.view(-1)


# ----------------------------------------------------------------------------
# Pure-JAX f32 reference (no Pallas) for a sanity check.
# ----------------------------------------------------------------------------
def mlp_forward_ref(params, feature):
    feature = feature.reshape(-1, N_FEATURES)
    sparse_feature = feature[:, jnp.array(SPARSE_COL)].astype(jnp.int32)
    dense_feature = feature[:, jnp.array(DENSE_COL)]
    embs = [jnp.take(params["emb"][i], sparse_feature[:, i], axis=0)
            for i in range(N_SPARSE)]
    x = jnp.concatenate(embs + [dense_feature], axis=1)
    h1 = jnp.maximum(x @ params["w1"] + params["b1"], 0.0)
    h2 = jnp.maximum(h1 @ params["w2"] + params["b2"], 0.0)
    z = h2 @ params["w3"] + params["b3"]
    return jax.nn.sigmoid(z).reshape(-1)


if __name__ == "__main__":
    key = jax.random.PRNGKey(0)
    pkey, skey, dkey = jax.random.split(key, 3)
    params = init_params(pkey)

    # Deliberately not a multiple of block_rows (exercises padding); with the default
    # block_rows=2048 this gives a 2-tile grid (both v7x TensorCores get a tile).
    batch = 2500
    sparse_vals = jnp.stack(
        [jax.random.randint(jax.random.fold_in(skey, i), (batch,), 0, SPARSE_COL_SIZE[i])
         for i in range(N_SPARSE)],
        axis=1,
    ).astype(jnp.float32)                                        # (batch, 3)
    dense_vals = jax.random.normal(dkey, (batch, N_DENSE), dtype=jnp.float32)
    feature = jnp.concatenate([sparse_vals, dense_vals], axis=1)  # (batch, 17)

    fwd = jax.jit(mlp_forward)                # default block_rows=2048 -> grid=(2,)
    out = jax.block_until_ready(fwd(params, feature))
    assert out.shape == (batch,)

    ref = mlp_forward_ref(params, feature)
    np.testing.assert_allclose(np.asarray(out), np.asarray(ref), rtol=3e-2, atol=1e-2)

    print("KERNEL_OK")
</pallas_src>

<mosaic_0001>
module attributes {stable_mosaic.version = 11 : i64} {
  func.func @_mlp_kernel(%arg0: i32, %arg1: memref<17x2048xf32, #tpu.memory_space<vmem>>, %arg2: memref<128x128xbf16, #tpu.memory_space<vmem>>, %arg3: memref<128x128xbf16, #tpu.memory_space<vmem>>, %arg4: memref<128x17xbf16, #tpu.memory_space<vmem>>, %arg5: memref<128x1xf32, #tpu.memory_space<vmem>>, %arg6: memref<128x128xbf16, #tpu.memory_space<vmem>>, %arg7: memref<128x1xf32, #tpu.memory_space<vmem>>, %arg8: memref<8x128xbf16, #tpu.memory_space<vmem>>, %arg9: memref<1x1xf32, #tpu.memory_space<smem>>, %arg10: memref<1x2048xf32, #tpu.memory_space<vmem>>) attributes {dimension_semantics = [#tpu.dimension_semantics<parallel>], iteration_bounds = array<i64: 2>, scalar_prefetch = 0 : i64, scratch_operands = 0 : i64, tpu.core_type = #tpu.core_type<tc>, window_params = [{transform_indices = @transform_0, window_bounds = array<i64: 17, 2048>}, {pipeline_mode = #tpu.pipeline_mode<synchronous>, transform_indices = @transform_1, window_bounds = array<i64: 128, 128>}, {pipeline_mode = #tpu.pipeline_mode<synchronous>, transform_indices = @transform_2, window_bounds = array<i64: 128, 128>}, {pipeline_mode = #tpu.pipeline_mode<synchronous>, transform_indices = @transform_3, window_bounds = array<i64: 128, 17>}, {pipeline_mode = #tpu.pipeline_mode<synchronous>, transform_indices = @transform_4, window_bounds = array<i64: 128, 1>}, {pipeline_mode = #tpu.pipeline_mode<synchronous>, transform_indices = @transform_5, window_bounds = array<i64: 128, 128>}, {pipeline_mode = #tpu.pipeline_mode<synchronous>, transform_indices = @transform_6, window_bounds = array<i64: 128, 1>}, {pipeline_mode = #tpu.pipeline_mode<synchronous>, transform_indices = @transform_7, window_bounds = array<i64: 8, 128>}, {transform_indices = @transform_8, window_bounds = array<i64: 1, 1>}, {transform_indices = @transform_9, window_bounds = array<i64: 1, 2048>}]} {
    %c0 = arith.constant 0 : index
    %c0_0 = arith.constant 0 : index
    %0 = vector.load %arg1[%c0, %c0_0] : memref<17x2048xf32, #tpu.memory_space<vmem>>, vector<17x2048xf32>
    %1 = vector.extract_strided_slice %0 {offsets = [0, 0], sizes = [1, 2048], strides = [1, 1]} : vector<17x2048xf32> to vector<1x2048xf32>
    %2 = arith.fptosi %1 : vector<1x2048xf32> to vector<1x2048xi32>
    %3 = vector.extract_strided_slice %0 {offsets = [1, 0], sizes = [1, 2048], strides = [1, 1]} : vector<17x2048xf32> to vector<1x2048xf32>
    %4 = arith.fptosi %3 : vector<1x2048xf32> to vector<1x2048xi32>
    %5 = vector.extract_strided_slice %0 {offsets = [2, 0], sizes = [1, 2048], strides = [1, 1]} : vector<17x2048xf32> to vector<1x2048xf32>
    %6 = arith.fptosi %5 : vector<1x2048xf32> to vector<1x2048xi32>
    %7 = tpu.iota {dimensions = array<i32: 0>} : vector<128x2048xi32>
    %8 = vector.broadcast %2 : vector<1x2048xi32> to vector<128x2048xi32>
    %9 = arith.cmpi eq, %7, %8 : vector<128x2048xi32>
    %c100_i32 = arith.constant 100 : i32
    %10 = vector.broadcast %c100_i32 : i32 to vector<1x2048xi32>
    %11 = arith.addi %6, %10 : vector<1x2048xi32>
    %12 = vector.broadcast %11 : vector<1x2048xi32> to vector<128x2048xi32>
    %13 = arith.cmpi eq, %7, %12 : vector<128x2048xi32>
    %14 = arith.ori %9, %13 : vector<128x2048xi1>
    %15 = arith.extui %14 : vector<128x2048xi1> to vector<128x2048xi32>
    %16 = arith.sitofp %15 : vector<128x2048xi32> to vector<128x2048xf32>
    %17 = arith.truncf %16 : vector<128x2048xf32> to vector<128x2048xbf16>
    %18 = vector.broadcast %4 : vector<1x2048xi32> to vector<128x2048xi32>
    %19 = arith.cmpi eq, %7, %18 : vector<128x2048xi32>
    %20 = arith.extui %19 : vector<128x2048xi1> to vector<128x2048xi32>
    %21 = arith.sitofp %20 : vector<128x2048xi32> to vector<128x2048xf32>
    %22 = arith.truncf %21 : vector<128x2048xf32> to vector<128x2048xbf16>
    %c0_1 = arith.constant 0 : index
    %c0_2 = arith.constant 0 : index
    %23 = vector.load %arg2[%c0_1, %c0_2] : memref<128x128xbf16, #tpu.memory_space<vmem>>, vector<128x128xbf16>
    %cst = arith.constant dense<0.000000e+00> : vector<128x2048xf32>
    %24 = tpu.matmul %23, %17, %cst {dimension_numbers = #tpu.dot_dimension_numbers<[1], [0], [0], [1], [0, 0, 1, 1], [], []>} : vector<128x128xbf16>, vector<128x2048xbf16>, vector<128x2048xf32> -> vector<128x2048xf32>
    %c0_3 = arith.constant 0 : index
    %c0_4 = arith.constant 0 : index
    %25 = vector.load %arg3[%c0_3, %c0_4] : memref<128x128xbf16, #tpu.memory_space<vmem>>, vector<128x128xbf16>
    %cst_5 = arith.constant dense<0.000000e+00> : vector<128x2048xf32>
    %26 = tpu.matmul %25, %22, %cst_5 {dimension_numbers = #tpu.dot_dimension_numbers<[1], [0], [0], [1], [0, 0, 1, 1], [], []>} : vector<128x128xbf16>, vector<128x2048xbf16>, vector<128x2048xf32> -> vector<128x2048xf32>
    %27 = arith.addf %24, %26 : vector<128x2048xf32>
    %c0_6 = arith.constant 0 : index
    %c0_7 = arith.constant 0 : index
    %28 = vector.load %arg4[%c0_6, %c0_7] : memref<128x17xbf16, #tpu.memory_space<vmem>>, vector<128x17xbf16>
    %29 = arith.truncf %0 : vector<17x2048xf32> to vector<17x2048xbf16>
    %cst_8 = arith.constant dense<0.000000e+00> : vector<128x2048xf32>
    %30 = tpu.matmul %28, %29, %cst_8 {dimension_numbers = #tpu.dot_dimension_numbers<[1], [0], [0], [1], [0, 0, 1, 1], [], []>} : vector<128x17xbf16>, vector<17x2048xbf16>, vector<128x2048xf32> -> vector<128x2048xf32>
    %31 = arith.addf %27, %30 : vector<128x2048xf32>
    %c0_9 = arith.constant 0 : index
    %c0_10 = arith.constant 0 : index
    %32 = vector.load %arg5[%c0_9, %c0_10] : memref<128x1xf32, #tpu.memory_space<vmem>>, vector<128x1xf32>
    %33 = vector.broadcast %32 : vector<128x1xf32> to vector<128x2048xf32>
    %34 = arith.addf %31, %33 : vector<128x2048xf32>
    %cst_11 = arith.constant 0.000000e+00 : f32
    %35 = vector.broadcast %cst_11 : f32 to vector<128x2048xf32>
    %36 = arith.maximumf %34, %35 : vector<128x2048xf32>
    %c0_12 = arith.constant 0 : index
    %c0_13 = arith.constant 0 : index
    %37 = vector.load %arg6[%c0_12, %c0_13] : memref<128x128xbf16, #tpu.memory_space<vmem>>, vector<128x128xbf16>
    %38 = arith.truncf %36 : vector<128x2048xf32> to vector<128x2048xbf16>
    %cst_14 = arith.constant dense<0.000000e+00> : vector<128x2048xf32>
    %39 = tpu.matmul %37, %38, %cst_14 {dimension_numbers = #tpu.dot_dimension_numbers<[1], [0], [0], [1], [0, 0, 1, 1], [], []>} : vector<128x128xbf16>, vector<128x2048xbf16>, vector<128x2048xf32> -> vector<128x2048xf32>
    %c0_15 = arith.constant 0 : index
    %c0_16 = arith.constant 0 : index
    %40 = vector.load %arg7[%c0_15, %c0_16] : memref<128x1xf32, #tpu.memory_space<vmem>>, vector<128x1xf32>
    %41 = vector.broadcast %40 : vector<128x1xf32> to vector<128x2048xf32>
    %42 = arith.addf %39, %41 : vector<128x2048xf32>
    %cst_17 = arith.constant 0.000000e+00 : f32
    %43 = vector.broadcast %cst_17 : f32 to vector<128x2048xf32>
    %44 = arith.maximumf %42, %43 : vector<128x2048xf32>
    %c0_18 = arith.constant 0 : index
    %c0_19 = arith.constant 0 : index
    %45 = vector.load %arg8[%c0_18, %c0_19] : memref<8x128xbf16, #tpu.memory_space<vmem>>, vector<8x128xbf16>
    %46 = arith.truncf %44 : vector<128x2048xf32> to vector<128x2048xbf16>
    %cst_20 = arith.constant dense<0.000000e+00> : vector<8x2048xf32>
    %47 = tpu.matmul %45, %46, %cst_20 {dimension_numbers = #tpu.dot_dimension_numbers<[1], [0], [0], [1], [0, 0, 1, 1], [], []>} : vector<8x128xbf16>, vector<128x2048xbf16>, vector<8x2048xf32> -> vector<8x2048xf32>
    %48 = vector.extract_strided_slice %47 {offsets = [0, 0], sizes = [1, 2048], strides = [1, 1]} : vector<8x2048xf32> to vector<1x2048xf32>
    %c0_21 = arith.constant 0 : index
    %c0_22 = arith.constant 0 : index
    %49 = memref.load %arg9[%c0_21, %c0_22] : memref<1x1xf32, #tpu.memory_space<smem>>
    %50 = vector.broadcast %49 : f32 to vector<1x2048xf32>
    %51 = arith.addf %48, %50 : vector<1x2048xf32>
    %52 = arith.negf %51 : vector<1x2048xf32>
    %53 = math.exp %52 : vector<1x2048xf32>
    %cst_23 = arith.constant 1.000000e+00 : f32
    %54 = vector.broadcast %cst_23 : f32 to vector<1x2048xf32>
    %55 = arith.addf %54, %53 : vector<1x2048xf32>
    %56 = arith.divf %54, %55 : vector<1x2048xf32>
    %c0_24 = arith.constant 0 : index
    %c0_25 = arith.constant 0 : index
    %57 = vector.load %arg10[%c0_24, %c0_25] : memref<1x2048xf32, #tpu.memory_space<vmem>>, vector<1x2048xf32>
    tpu.vector_store %arg10[%c0_24, %c0_25], %56 {strides = array<i32>} : memref<1x2048xf32, #tpu.memory_space<vmem>>, vector<1x2048xf32>,
    return
  }
  func.func @transform_0(%arg0: i32) -> (i32, i32) {
    %c0_i32 = arith.constant 0 : i32
    %c0_i32_0 = arith.constant 0 : i32
    return %c0_i32, %arg0 : i32, i32
  }
  func.func @transform_1(%arg0: i32) -> (i32, i32) {
    %c0_i32 = arith.constant 0 : i32
    %c0_i32_0 = arith.constant 0 : i32
    %c0_i32_1 = arith.constant 0 : i32
    return %c0_i32, %c0_i32_0 : i32, i32
  }
  func.func @transform_2(%arg0: i32) -> (i32, i32) {
    %c0_i32 = arith.constant 0 : i32
    %c0_i32_0 = arith.constant 0 : i32
    %c0_i32_1 = arith.constant 0 : i32
    return %c0_i32, %c0_i32_0 : i32, i32
  }
  func.func @transform_3(%arg0: i32) -> (i32, i32) {
    %c0_i32 = arith.constant 0 : i32
    %c0_i32_0 = arith.constant 0 : i32
    %c0_i32_1 = arith.constant 0 : i32
    return %c0_i32, %c0_i32_0 : i32, i32
  }
  func.func @transform_4(%arg0: i32) -> (i32, i32) {
    %c0_i32 = arith.constant 0 : i32
    %c0_i32_0 = arith.constant 0 : i32
    %c0_i32_1 = arith.constant 0 : i32
    return %c0_i32, %c0_i32_0 : i32, i32
  }
  func.func @transform_5(%arg0: i32) -> (i32, i32) {
    %c0_i32 = arith.constant 0 : i32
    %c0_i32_0 = arith.constant 0 : i32
    %c0_i32_1 = arith.constant 0 : i32
    return %c0_i32, %c0_i32_0 : i32, i32
  }
  func.func @transform_6(%arg0: i32) -> (i32, i32) {
    %c0_i32 = arith.constant 0 : i32
    %c0_i32_0 = arith.constant 0 : i32
    %c0_i32_1 = arith.constant 0 : i32
    return %c0_i32, %c0_i32_0 : i32, i32
  }
  func.func @transform_7(%arg0: i32) -> (i32, i32) {
    %c0_i32 = arith.constant 0 : i32
    %c0_i32_0 = arith.constant 0 : i32
    %c0_i32_1 = arith.constant 0 : i32
    return %c0_i32, %c0_i32_0 : i32, i32
  }
  func.func @transform_8(%arg0: i32) -> (i32, i32) {
    %c0_i32 = arith.constant 0 : i32
    %c0_i32_0 = arith.constant 0 : i32
    %c0_i32_1 = arith.constant 0 : i32
    return %c0_i32, %c0_i32_0 : i32, i32
  }
  func.func @transform_9(%arg0: i32) -> (i32, i32) {
    %c0_i32 = arith.constant 0 : i32
    %c0_i32_0 = arith.constant 0 : i32
    return %c0_i32, %arg0 : i32, i32
  }
}

</mosaic_0001>

<llo_original>
// kernel: mlp_forward.1
$region0: #{mlp_forward.1}
  #allocation0 [shape = 'u32[]', space=smem, size = 0x4, offset = 0x4, fixed_abs, tag = 'smem constant byte address 0x4 - core index']
  #allocation1 [shape = 'u32[72,128]{1,0:T(1,128)}', space=vmem, size = 0x9000, scoped, tag = 'internal scratch']
  #allocation2 [shape = 'f32[1,1]{1,0:T(1,128)S(6)}', space=smem, size = 0x200, scoped, tag = 'scoped memory for mlp_forward.1']
  %s0 = inlined_call_operand.vmem [shape: f32[17,4096], index: 0, kind: input, shape index: {}]
  %s1 = inlined_call_operand.vmem [shape: bf16[128,128], index: 1, kind: input, shape index: {}]
  %s2 = inlined_call_operand.vmem [shape: bf16[128,128], index: 2, kind: input, shape index: {}]
  %s3 = inlined_call_operand.vmem [shape: bf16[128,17], index: 3, kind: input, shape index: {}]
  %s4 = inlined_call_operand.vmem [shape: f32[128,1], index: 4, kind: input, shape index: {}]
  %s5 = inlined_call_operand.vmem [shape: bf16[128,128], index: 5, kind: input, shape index: {}]
  %s6 = inlined_call_operand.vmem [shape: f32[128,1], index: 6, kind: input, shape index: {}]
  %s7 = inlined_call_operand.vmem [shape: bf16[8,128], index: 7, kind: input, shape index: {}]
  %s8 = inlined_call_operand.<no memory space> [shape: f32[1,1], index: 8, kind: input, shape index: {}]
  %s9 = inlined_call_operand.vmem [shape: f32[1,4096], index: 9, kind: output, shape index: {}]
  %s10 = sld [smem:[#allocation0]]
  $region92: #{mlp_forward.1} parent=0
    _
  %s12 = ssub.s32 1, %s10
  %s13 = scalar_select 0, %s12, %s10
  %14 = sst [smem:[#allocation2]] %s8
  $region1: #{mlp_forward.1} parent=0
    #allocation3 [shape = 'u8[393216]{0}', space=vmem, size = 0x60000, scoped, tag = 'input window, operand 0']
    loop: start=0, step=1, limit=4
    $region2: #{mlp_forward.1} parent=1 // loop_pre_header
      _
    $region3: #{mlp_forward.1} parent=1 // loop_header
      %s16 = sphi 0, %s20
      %p17 = scmp.ge.s32.totalorder %s16, 4
      %s26 = sphi 0, %s28
      %s29 = sphi 0, %s26
      %s30 = sphi 0, %s29
      %s46 = sphi 0, %s30
      %s50 = sphi 0, %s50
      %s52 = sphi 0, %s50
      %s53 = sphi 0, %s52
      %s67 = sphi 0, %s53
      %s71 = sphi 0, %s71
      %s73 = sphi 0, %s71
      %s74 = sphi 0, %s73
      %s88 = sphi 0, %s74
      %s92 = sphi 0, %s92
      %s94 = sphi 0, %s92
      %s95 = sphi 0, %s94
      %s109 = sphi 0, %s95
      %s113 = sphi 0, %s113
      %s115 = sphi 0, %s113
      %s116 = sphi 0, %s115
      %s130 = sphi 0, %s116
      %s134 = sphi 0, %s134
      %s136 = sphi 0, %s134
      %s137 = sphi 0, %s136
      %s151 = sphi 0, %s137
      %s155 = sphi 0, %s155
      %s157 = sphi 0, %s155
      %s158 = sphi 0, %s157
      %s172 = sphi 0, %s158
      %s176 = sphi 0, %s176
      %s178 = sphi 0, %s176
      %s179 = sphi 0, %s178
      %s193 = sphi 0, %s179
      %s197 = sphi 0, %s197
      %s199 = sphi 0, %s197
      %s200 = sphi 0, %s199
      %s214 = sphi 0, %s200
      %s220 = sphi 0, %s222
      %s223 = sphi 0, %s220
      %s224 = sphi 0, %s223
      %s240 = sphi 0, %s224
    $region4: #{mlp_forward.1} parent=1 // loop_header_branch
      %19 = sbr.rel (%p17) target = $region8
    $region5: #{mlp_forward.1} parent=1 // loop_body
      %s21 = ssub.s32 %s16, 1
      %s22 = ssub.s32 %s16, 2
      %s23 = sadd.s32 %s16, 1
      %s24 = ssub.s32 %s16, %s23
      %p25 = scmp.eq.s32.totalorder %s24, 0
      %s27 = sadd.s32 %s26, 1
      %s28 = scalar_select %p25, %s26, %s27
      %p31 = pneg %p25
      %p32 = scmp.eq.s32.totalorder %s16, 1
      %p33 = por %p31, %p32
      %p34 = scmp.ne.s32.totalorder %s26, %s29
      %p35 = scmp.eq.s32.totalorder %s16, 0
      %p36 = por %p34, %p35
      %p37 = scmp.ne.s32.totalorder %s26, %s29
      %p38 = scmp.eq.s32.totalorder %s21, 1
      %p39 = por %p37, %p38
      %p40 = scmp.ne.s32.totalorder %s29, %s30
      %p41 = scmp.eq.s32.totalorder %s21, 0
      %p42 = por %p40, %p41
      %p43 = scmp.ne.s32.totalorder %s29, %s30
      %p44 = scmp.eq.s32.totalorder %s22, 1
      %p45 = por %p43, %p44
      %p47 = scmp.ne.s32.totalorder %s30, %s46
      %p48 = scmp.eq.s32.totalorder %s22, 0
      %p49 = por %p47, %p48
      %s51 = sadd.s32 %s50, 1
      %p54 = scmp.eq.s32.totalorder %s16, 1
      %p55 = scmp.ne.s32.totalorder %s50, %s52
      %p56 = scmp.eq.s32.totalorder %s16, 0
      %p57 = por %p55, %p56
      %p58 = scmp.ne.s32.totalorder %s50, %s52
      %p59 = scmp.eq.s32.totalorder %s21, 1
      %p60 = por %p58, %p59
      %p61 = scmp.ne.s32.totalorder %s52, %s53
      %p62 = scmp.eq.s32.totalorder %s21, 0
      %p63 = por %p61, %p62
      %p64 = scmp.ne.s32.totalorder %s52, %s53
      %p65 = scmp.eq.s32.totalorder %s22, 1
      %p66 = por %p64, %p65
      %p68 = scmp.ne.s32.totalorder %s53, %s67
      %p69 = scmp.eq.s32.totalorder %s22, 0
      %p70 = por %p68, %p69
      %s72 = sadd.s32 %s71, 1
      %p75 = scmp.eq.s32.totalorder %s16, 1
      %p76 = scmp.ne.s32.totalorder %s71, %s73
      %p77 = scmp.eq.s32.totalorder %s16, 0
      %p78 = por %p76, %p77
      %p79 = scmp.ne.s32.totalorder %s71, %s73
      %p80 = scmp.eq.s32.totalorder %s21, 1
      %p81 = por %p79, %p80
      %p82 = scmp.ne.s32.totalorder %s73, %s74
      %p83 = scmp.eq.s32.totalorder %s21, 0
      %p84 = por %p82, %p83
      %p85 = scmp.ne.s32.totalorder %s73, %s74
      %p86 = scmp.eq.s32.totalorder %s22, 1
      %p87 = por %p85, %p86
      %p89 = scmp.ne.s32.totalorder %s74, %s88
      %p90 = scmp.eq.s32.totalorder %s22, 0
      %p91 = por %p89, %p90
      %s93 = sadd.s32 %s92, 1
      %p96 = scmp.eq.s32.totalorder %s16, 1
      %p97 = scmp.ne.s32.totalorder %s92, %s94
      %p98 = scmp.eq.s32.totalorder %s16, 0
      %p99 = por %p97, %p98
      %p100 = scmp.ne.s32.totalorder %s92, %s94
      %p101 = scmp.eq.s32.totalorder %s21, 1
      %p102 = por %p100, %p101
      %p103 = scmp.ne.s32.totalorder %s94, %s95
      %p104 = scmp.eq.s32.totalorder %s21, 0
      %p105 = por %p103, %p104
      %p106 = scmp.ne.s32.totalorder %s94, %s95
      %p107 = scmp.eq.s32.totalorder %s22, 1
      %p108 = por %p106, %p107
      %p110 = scmp.ne.s32.totalorder %s95, %s109
      %p111 = scmp.eq.s32.totalorder %s22, 0
      %p112 = por %p110, %p111
      %s114 = sadd.s32 %s113, 1
      %p117 = scmp.eq.s32.totalorder %s16, 1
      %p118 = scmp.ne.s32.totalorder %s113, %s115
      %p119 = scmp.eq.s32.totalorder %s16, 0
      %p120 = por %p118, %p119
      %p121 = scmp.ne.s32.totalorder %s113, %s115
      %p122 = scmp.eq.s32.totalorder %s21, 1
      %p123 = por %p121, %p122
      %p124 = scmp.ne.s32.totalorder %s115, %s116
      %p125 = scmp.eq.s32.totalorder %s21, 0
      %p126 = por %p124, %p125
      %p127 = scmp.ne.s32.totalorder %s115, %s116
      %p128 = scmp.eq.s32.totalorder %s22, 1
      %p129 = por %p127, %p128
      %p131 = scmp.ne.s32.totalorder %s116, %s130
      %p132 = scmp.eq.s32.totalorder %s22, 0
      %p133 = por %p131, %p132
      %s135 = sadd.s32 %s134, 1
      %p138 = scmp.eq.s32.totalorder %s16, 1
      %p139 = scmp.ne.s32.totalorder %s134, %s136
      %p140 = scmp.eq.s32.totalorder %s16, 0
      %p141 = por %p139, %p140
      %p142 = scmp.ne.s32.totalorder %s134, %s136
      %p143 = scmp.eq.s32.totalorder %s21, 1
      %p144 = por %p142, %p143
      %p145 = scmp.ne.s32.totalorder %s136, %s137
      %p146 = scmp.eq.s32.totalorder %s21, 0
      %p147 = por %p145, %p146
      %p148 = scmp.ne.s32.totalorder %s136, %s137
      %p149 = scmp.eq.s32.totalorder %s22, 1
      %p150 = por %p148, %p149
      %p152 = scmp.ne.s32.totalorder %s137, %s151
      %p153 = scmp.eq.s32.totalorder %s22, 0
      %p154 = por %p152, %p153
      %s156 = sadd.s32 %s155, 1
      %p159 = scmp.eq.s32.totalorder %s16, 1
      %p160 = scmp.ne.s32.totalorder %s155, %s157
      %p161 = scmp.eq.s32.totalorder %s16, 0
      %p162 = por %p160, %p161
      %p163 = scmp.ne.s32.totalorder %s155, %s157
      %p164 = scmp.eq.s32.totalorder %s21, 1
      %p165 = por %p163, %p164
      %p166 = scmp.ne.s32.totalorder %s157, %s158
      %p167 = scmp.eq.s32.totalorder %s21, 0
      %p168 = por %p166, %p167
      %p169 = scmp.ne.s32.totalorder %s157, %s158
      %p170 = scmp.eq.s32.totalorder %s22, 1
      %p171 = por %p169, %p170
      %p173 = scmp.ne.s32.totalorder %s158, %s172
      %p174 = scmp.eq.s32.totalorder %s22, 0
      %p175 = por %p173, %p174
      %s177 = sadd.s32 %s176, 1
      %p180 = scmp.eq.s32.totalorder %s16, 1
      %p181 = scmp.ne.s32.totalorder %s176, %s178
      %p182 = scmp.eq.s32.totalorder %s16, 0
      %p183 = por %p181, %p182
      %p184 = scmp.ne.s32.totalorder %s176, %s178
      %p185 = scmp.eq.s32.totalorder %s21, 1
      %p186 = por %p184, %p185
      %p187 = scmp.ne.s32.totalorder %s178, %s179
      %p188 = scmp.eq.s32.totalorder %s21, 0
      %p189 = por %p187, %p188
      %p190 = scmp.ne.s32.totalorder %s178, %s179
      %p191 = scmp.eq.s32.totalorder %s22, 1
      %p192 = por %p190, %p191
      %p194 = scmp.ne.s32.totalorder %s179, %s193
      %p195 = scmp.eq.s32.totalorder %s22, 0
      %p196 = por %p194, %p195
      %s198 = sadd.s32 %s197, 1
      %p201 = scmp.eq.s32.totalorder %s16, 1
      %p202 = scmp.ne.s32.totalorder %s197, %s199
      %p203 = scmp.eq.s32.totalorder %s16, 0
      %p204 = por %p202, %p203
      %p205 = scmp.ne.s32.totalorder %s197, %s199
      %p206 = scmp.eq.s32.totalorder %s21, 1
      %p207 = por %p205, %p206
      %p208 = scmp.ne.s32.totalorder %s199, %s200
      %p209 = scmp.eq.s32.totalorder %s21, 0
      %p210 = por %p208, %p209
      %p211 = scmp.ne.s32.totalorder %s199, %s200
      %p212 = scmp.eq.s32.totalorder %s22, 1
      %p213 = por %p211, %p212
      %p215 = scmp.ne.s32.totalorder %s200, %s214
      %p216 = scmp.eq.s32.totalorder %s22, 0
      %p217 = por %p215, %p216
      %s218 = ssub.s32 %s16, %s23
      %p219 = scmp.eq.s32.totalorder %s218, 0
      %s221 = sadd.s32 %s220, 1
      %s222 = scalar_select %p219, %s220, %s221
      %p225 = pneg %p219
      %p226 = scmp.eq.s32.totalorder %s16, 1
      %p227 = por %p225, %p226
      %p228 = scmp.ne.s32.totalorder %s220, %s223
      %p229 = scmp.eq.s32.totalorder %s16, 0
      %p230 = por %p228, %p229
      %p231 = scmp.ne.s32.totalorder %s220, %s223
      %p232 = scmp.eq.s32.totalorder %s21, 1
      %p233 = por %p231, %p232
      %p234 = scmp.ne.s32.totalorder %s223, %s224
      %p235 = scmp.eq.s32.totalorder %s21, 0
      %p236 = por %p234, %p235
      %p237 = scmp.ne.s32.totalorder %s223, %s224
      %p238 = scmp.eq.s32.totalorder %s22, 1
      %p239 = por %p237, %p238
      %p241 = scmp.ne.s32.totalorder %s224, %s240
      %p242 = scmp.eq.s32.totalorder %s22, 0
      %p243 = por %p241, %p242
      %p244 = scmp.le.s32.totalorder 1, %s16
      %p245 = scmp.lt.s32.totalorder %s16, 3
      %p246 = pnand %p244, %p245
      %p247 = pneg %p246
      // Predicated region
      $region9: #{mlp_forward.1} parent=5 // pred_check
        _
      $region10: #{mlp_forward.1} parent=5 // pred_check_branch
        %249 = sbr.rel (%p246) target = $region12
      $region11: #{mlp_forward.1} parent=5 // pred_region
        %s250 = ssub.s32 %s16, 1
        // Predicated region
        $region13: #{mlp_forward.1} parent=11 // pred_check
          %p251 = pneg %p63
        $region14: #{mlp_forward.1} parent=11 // pred_check_branch
          %253 = sbr.rel (%p251) target = $region16
        $region15: #{mlp_forward.1} parent=11 // pred_region
          _
        $region16: #{mlp_forward.1} parent=11 // pred_fallthru
          _
        // Predicated region
        $region17: #{mlp_forward.1} parent=11 // pred_check
          %p254 = pneg %p84
        $region18: #{mlp_forward.1} parent=11 // pred_check_branch
          %256 = sbr.rel (%p254) target = $region20
        $region19: #{mlp_forward.1} parent=11 // pred_region
          _
        $region20: #{mlp_forward.1} parent=11 // pred_fallthru
          _
        // Predicated region
        $region21: #{mlp_forward.1} parent=11 // pred_check
          %p257 = pneg %p105
        $region22: #{mlp_forward.1} parent=11 // pred_check_branch
          %259 = sbr.rel (%p257) target = $region24
        $region23: #{mlp_forward.1} parent=11 // pred_region
          _
        $region24: #{mlp_forward.1} parent=11 // pred_fallthru
          _
        // Predicated region
        $region25: #{mlp_forward.1} parent=11 // pred_check
          %p260 = pneg %p126
        $region26: #{mlp_forward.1} parent=11 // pred_check_branch
          %262 = sbr.rel (%p260) target = $region28
        $region27: #{mlp_forward.1} parent=11 // pred_region
          _
        $region28: #{mlp_forward.1} parent=11 // pred_fallthru
          _
        // Predicated region
        $region29: #{mlp_forward.1} parent=11 // pred_check
          %p263 = pneg %p147
        $region30: #{mlp_forward.1} parent=11 // pred_check_branch
          %265 = sbr.rel (%p263) target = $region32
        $region31: #{mlp_forward.1} parent=11 // pred_region
          _
        $region32: #{mlp_forward.1} parent=11 // pred_fallthru
          _
        // Predicated region
        $region33: #{mlp_forward.1} parent=11 // pred_check
          %p266 = pneg %p168
        $region34: #{mlp_forward.1} parent=11 // pred_check_branch
          %268 = sbr.rel (%p266) target = $region36
        $region35: #{mlp_forward.1} parent=11 // pred_region
          _
        $region36: #{mlp_forward.1} parent=11 // pred_fallthru
          _
        // Predicated region
        $region37: #{mlp_forward.1} parent=11 // pred_check
          %p269 = pneg %p189
        $region38: #{mlp_forward.1} parent=11 // pred_check_branch
          %271 = sbr.rel (%p269) target = $region40
        $region39: #{mlp_forward.1} parent=11 // pred_region
          _
        $region40: #{mlp_forward.1} parent=11 // pred_fallthru
          _
        // Predicated region
        $region41: #{mlp_forward.1} parent=11 // pred_check
          %p272 = pneg %p210
        $region42: #{mlp_forward.1} parent=11 // pred_check_branch
          %274 = sbr.rel (%p272) target = $region44
        $region43: #{mlp_forward.1} parent=11 // pred_region
          _
        $region44: #{mlp_forward.1} parent=11 // pred_fallthru
          _
      $region12: #{mlp_forward.1} parent=5 // pred_fallthru
        _
      %p275 = scmp.lt.s32.totalorder %s16, 2
      // Predicated region
      $region45: #{mlp_forward.1} parent=5 // pred_check
        %p276 = pneg %p275
      $region46: #{mlp_forward.1} parent=5 // pred_check_branch
        %278 = sbr.rel (%p276) target = $region48
      $region47: #{mlp_forward.1} parent=5 // pred_region
        // Predicated region
        $region49: #{mlp_forward.1} parent=47 // pred_check
          %p279 = pneg %p36
        $region50: #{mlp_forward.1} parent=47 // pred_check_branch
          %281 = sbr.rel (%p279) target = $region52
        $region51: #{mlp_forward.1} parent=47 // pred_region
          %s282 = sand.u32 %s26, 1
          %s283 = sand.u32 %s26, 1
          %s284 = smul.addr %s283, 384
          %s285 = scalar_lea.vmem [#allocation3], %s284
          %s286 = smul.u32 16, %s16
          %s287 = smul.addr %s286, 8
          %s288 = scalar_lea.vmem %s0, %s287
          // Predicated region
          $region53: #{mlp_forward.1} parent=51 // pred_check
            _
          $region54: #{mlp_forward.1} parent=51 // pred_check_branch
            %290 = sbr.rel (0) target = $region56
          $region55: #{mlp_forward.1} parent=51 // pred_region
            // Predicated region
            $region57: #{mlp_forward.1} parent=55 // pred_check
              _
            $region58: #{mlp_forward.1} parent=55 // pred_check_branch
              %292 = sbr.rel (0) target = $region60
            $region59: #{mlp_forward.1} parent=55 // pred_region
              loop: start=0, step=1, limit=1
              $region61: #{mlp_forward.1} parent=59 // loop_pre_header
                _
              $region62: #{mlp_forward.1} parent=59 // loop_header
                %s294 = sphi 0, %s298
                %p295 = scmp.ge.s32.totalorder %s294, 1
                %s299 = sphi %s288, %s288
                %s300 = sphi %s285, %s285
              $region63: #{mlp_forward.1} parent=59 // loop_header_branch
                %297 = sbr.rel (%p295) target = $region67
              $region64: #{mlp_forward.1} parent=59 // loop_body
                %v301 = vld [vmem:[%s299] sm:$0xff]
                %302 = vst [vmem:[%s300] sm:$0xff] %v301
                %v303 = vld [vmem:[%s299 + $0x8] sm:$0xff]
                %304 = vst [vmem:[%s300 + $0x8] sm:$0xff] %v303
                %v305 = vld [vmem:[%s299 + $0x10] sm:$0xff]
                %306 = vst [vmem:[%s300 + $0x10] sm:$0xff] %v305
                %v307 = vld [vmem:[%s299 + $0x18] sm:$0xff]
                %308 = vst [vmem:[%s300 + $0x18] sm:$0xff] %v307
                %v309 = vld [vmem:[%s299 + $0x20] sm:$0xff]
                %310 = vst [vmem:[%s300 + $0x20] sm:$0xff] %v309
                %v311 = vld [vmem:[%s299 + $0x28] sm:$0xff]
                %312 = vst [vmem:[%s300 + $0x28] sm:$0xff] %v311
                %v313 = vld [vmem:[%s299 + $0x30] sm:$0xff]
                %314 = vst [vmem:[%s300 + $0x30] sm:$0xff] %v313
                %v315 = vld [vmem:[%s299 + $0x38] sm:$0xff]
                %316 = vst [vmem:[%s300 + $0x38] sm:$0xff] %v315
                %v317 = vld [vmem:[%s299 + $0x40] sm:$0xff]
                %318 = vst [vmem:[%s300 + $0x40] sm:$0xff] %v317
                %v319 = vld [vmem:[%s299 + $0x48] sm:$0xff]
                %320 = vst [vmem:[%s300 + $0x48] sm:$0xff] %v319
                %v321 = vld [vmem:[%s299 + $0x50] sm:$0xff]
                %322 = vst [vmem:[%s300 + $0x50] sm:$0xff] %v321
                %v323 = vld [vmem:[%s299 + $0x58] sm:$0xff]
                %324 = vst [vmem:[%s300 + $0x58] sm:$0xff] %v323
                %v325 = vld [vmem:[%s299 + $0x60] sm:$0xff]
                %326 = vst [vmem:[%s300 + $0x60] sm:$0xff] %v325
                %v327 = vld [vmem:[%s299 + $0x68] sm:$0xff]
                %328 = vst [vmem:[%s300 + $0x68] sm:$0xff] %v327
                %v329 = vld [vmem:[%s299 + $0x70] sm:$0xff]
                %330 = vst [vmem:[%s300 + $0x70] sm:$0xff] %v329
                %v331 = vld [vmem:[%s299 + $0x78] sm:$0xff]
                %332 = vst [vmem:[%s300 + $0x78] sm:$0xff] %v331
                %v333 = vld [vmem:[%s299 + $0x100] sm:$0xff]
                %334 = vst [vmem:[%s300 + $0x80] sm:$0xff] %v333
                %v335 = vld [vmem:[%s299 + $0x108] sm:$0xff]
                %336 = vst [vmem:[%s300 + $0x88] sm:$0xff] %v335
                %v337 = vld [vmem:[%s299 + $0x110] sm:$0xff]
                %338 = vst [vmem:[%s300 + $0x90] sm:$0xff] %v337
                %v339 = vld [vmem:[%s299 + $0x118] sm:$0xff]
                %340 = vst [vmem:[%s300 + $0x98] sm:$0xff] %v339
                %v341 = vld [vmem:[%s299 + $0x120] sm:$0xff]
                %342 = vst [vmem:[%s300 + $0xa0] sm:$0xff] %v341
                %v343 = vld [vmem:[%s299 + $0x128] sm:$0xff]
                %344 = vst [vmem:[%s300 + $0xa8] sm:$0xff] %v343
                %v345 = vld [vmem:[%s299 + $0x130] sm:$0xff]
                %346 = vst [vmem:[%s300 + $0xb0] sm:$0xff] %v345
                %v347 = vld [vmem:[%s299 + $0x138] sm:$0xff]
                %348 = vst [vmem:[%s300 + $0xb8] sm:$0xff] %v347
                %v349 = vld [vmem:[%s299 + $0x140] sm:$0xff]
                %350 = vst [vmem:[%s300 + $0xc0] sm:$0xff] %v349
                %v351 = vld [vmem:[%s299 + $0x148] sm:$0xff]
                %352 = vst [vmem:[%s300 + $0xc8] sm:$0xff] %v351
                %v353 = vld [vmem:[%s299 + $0x150] sm:$0xff]
                %354 = vst [vmem:[%s300 + $0xd0] sm:$0xff] %v353
                %v355 = vld [vmem:[%s299 + $0x158] sm:$0xff]
                %356 = vst [vmem:[%s300 + $0xd8] sm:$0xff] %v355
                %v357 = vld [vmem:[%s299 + $0x160] sm:$0xff]
                %358 = vst [vmem:[%s300 + $0xe0] sm:$0xff] %v357
                %v359 = vld [vmem:[%s299 + $0x168] sm:$0xff]
                %360 = vst [vmem:[%s300 + $0xe8] sm:$0xff] %v359
                %v361 = vld [vmem:[%s299 + $0x170] sm:$0xff]
                %362 = vst [vmem:[%s300 + $0xf0] sm:$0xff] %v361
                %v363 = vld [vmem:[%s299 + $0x178] sm:$0xff]
                %364 = vst [vmem:[%s300 + $0xf8] sm:$0xff] %v363
                %v365 = vld [vmem:[%s299 + $0x200] sm:$0xff]
                %366 = vst [vmem:[%s300 + $0x100] sm:$0xff] %v365
                %v367 = vld [vmem:[%s299 + $0x208] sm:$0xff]
                %368 = vst [vmem:[%s300 + $0x108] sm:$0xff] %v367
                %v369 = vld [vmem:[%s299 + $0x210] sm:$0xff]
                %370 = vst [vmem:[%s300 + $0x110] sm:$0xff] %v369
                %v371 = vld [vmem:[%s299 + $0x218] sm:$0xff]
                %372 = vst [vmem:[%s300 + $0x118] sm:$0xff] %v371
                %v373 = vld [vmem:[%s299 + $0x220] sm:$0xff]
                %374 = vst [vmem:[%s300 + $0x120] sm:$0xff] %v373
                %v375 = vld [vmem:[%s299 + $0x228] sm:$0xff]
                %376 = vst [vmem:[%s300 + $0x128] sm:$0xff] %v375
                %v377 = vld [vmem:[%s299 + $0x230] sm:$0xff]
                %378 = vst [vmem:[%s300 + $0x130] sm:$0xff] %v377
                %v379 = vld [vmem:[%s299 + $0x238] sm:$0xff]
                %380 = vst [vmem:[%s300 + $0x138] sm:$0xff] %v379
                %v381 = vld [vmem:[%s299 + $0x240] sm:$0xff]
                %382 = vst [vmem:[%s300 + $0x140] sm:$0xff] %v381
                %v383 = vld [vmem:[%s299 + $0x248] sm:$0xff]
                %384 = vst [vmem:[%s300 + $0x148] sm:$0xff] %v383
                %v385 = vld [vmem:[%s299 + $0x250] sm:$0xff]
                %386 = vst [vmem:[%s300 + $0x150] sm:$0xff] %v385
                %v387 = vld [vmem:[%s299 + $0x258] sm:$0xff]
                %388 = vst [vmem:[%s300 + $0x158] sm:$0xff] %v387
                %v389 = vld [vmem:[%s299 + $0x260] sm:$0xff]
                %390 = vst [vmem:[%s300 + $0x160] sm:$0xff] %v389
                %v391 = vld [vmem:[%s299 + $0x268] sm:$0xff]
                %392 = vst [vmem:[%s300 + $0x168] sm:$0xff] %v391
                %v393 = vld [vmem:[%s299 + $0x270] sm:$0xff]
                %394 = vst [vmem:[%s300 + $0x170] sm:$0xff] %v393
                %v395 = vld [vmem:[%s299 + $0x278] sm:$0xff]
                %396 = vst [vmem:[%s300 + $0x178] sm:$0xff] %v395
              $region65: #{mlp_forward.1} parent=59 // loop_footer
                %s298 = sadd.s32 1, %s294
              $region66: #{mlp_forward.1} parent=59 // loop_footer_branch
                %293 = sbr.rel target = $region62
              $region67: #{mlp_forward.1} parent=59 // loop_exit
                _
            $region60: #{mlp_forward.1} parent=55 // pred_fallthru
              _
            // Predicated region
            $region68: #{mlp_forward.1} parent=55 // pred_check
              _
            $region69: #{mlp_forward.1} parent=55 // pred_check_branch
              %398 = sbr.rel target = $region71
            $region70: #{mlp_forward.1} parent=55 // pred_region
              _
            $region71: #{mlp_forward.1} parent=55 // pred_fallthru
              _
          $region56: #{mlp_forward.1} parent=51 // pred_fallthru
            _
          %399 = vnop
        $region52: #{mlp_forward.1} parent=47 // pred_fallthru
          _
      $region48: #{mlp_forward.1} parent=5 // pred_fallthru
        _
      %p400 = scmp.le.s32.totalorder 1, %s16
      %p401 = scmp.lt.s32.totalorder %s16, 3
      %p402 = pnand %p400, %p401
      %p403 = pneg %p402
      // Predicated region
      $region72: #{mlp_forward.1} parent=5 // pred_check
        _
      $region73: #{mlp_forward.1} parent=5 // pred_check_branch
        %405 = sbr.rel (%p402) target = $region75
      $region74: #{mlp_forward.1} parent=5 // pred_region
        %s406 = ssub.s32 %s16, 1
        %s407 = sand.u32 %s29, 1
        %s408 = sand.u32 %s29, 1
        %s409 = smul.addr %s408, 384
        %s410 = scalar_lea.vmem [#allocation3], %s409
        // Predicated region
        $region76: #{mlp_forward.1} parent=74 // pred_check
          %p411 = pneg %p42
        $region77: #{mlp_forward.1} parent=74 // pred_check_branch
          %413 = sbr.rel (%p411) target = $region79
        $region78: #{mlp_forward.1} parent=74 // pred_region
          _
        $region79: #{mlp_forward.1} parent=74 // pred_fallthru
          _
        %s414 = sand.u32 %s29, 1
        %s415 = sand.u32 %s29, 1
        %s416 = smul.addr %s415, 384
        %s417 = scalar_lea.vmem [#allocation3], %s416
        %p418 = pneg %p42
        %p419 = pneg %p39
        %p420 = pneg %p63
        %p421 = pneg %p60
        %p422 = pneg %p84
        %p423 = pneg %p81
        %p424 = pneg %p105
        %p425 = pneg %p102
        %p426 = pneg %p126
        %p427 = pneg %p123
        %p428 = pneg %p147
        %p429 = pneg %p144
        %p430 = pneg %p168
        %p431 = pneg %p165
        %p432 = pneg %p189
        %p433 = pneg %p186
        %p434 = pneg %p210
        %p435 = pneg %p207
        %p436 = pneg %p236
        %p437 = pneg %p233
        %s438 = smul.u32 16, %s21
        %p439 = scmp.lt.s32.totalorder %s438, 31
        %s440 = scalar_select %p439, %s438, 31
        %s441 = scalar_lea.vmem %s9, %s440
        %s442 = smul.u32 16, %s21
        %s443 = smul.u32 16, %s21
        %p444 = scmp.lt.s32.totalorder %s443, 31
        %s445 = scalar_select %p444, %s443, 31
        %s446 = scalar_lea.vmem %s9, %s445
        %s447 = smul.u32 16, %s21
        %v449 = vld [vmem:[%s410] sm:$0xff]
        %v450 = vld [vmem:[%s410 + $0x8] sm:$0xff]
        %v451 = vld [vmem:[%s410 + $0x10] sm:$0xff]
        %v452 = vld [vmem:[%s410 + $0x18] sm:$0xff]
        %v453 = vld [vmem:[%s410 + $0x20] sm:$0xff]
        %v454 = vld [vmem:[%s410 + $0x28] sm:$0xff]
        %v455 = vld [vmem:[%s410 + $0x30] sm:$0xff]
        %v456 = vld [vmem:[%s410 + $0x38] sm:$0xff]
        %v457 = vld [vmem:[%s410 + $0x40] sm:$0xff]
        %v458 = vld [vmem:[%s410 + $0x48] sm:$0xff]
        %v459 = vld [vmem:[%s410 + $0x50] sm:$0xff]
        %v460 = vld [vmem:[%s410 + $0x58] sm:$0xff]
        %v461 = vld [vmem:[%s410 + $0x60] sm:$0xff]
        %v462 = vld [vmem:[%s410 + $0x68] sm:$0xff]
        %v463 = vld [vmem:[%s410 + $0x70] sm:$0xff]
        %v464 = vld [vmem:[%s410 + $0x78] sm:$0xff]
        %v465 = vld [vmem:[%s410 + $0x80] sm:$0xff]
        %v466 = vld [vmem:[%s410 + $0x88] sm:$0xff]
        %v467 = vld [vmem:[%s410 + $0x90] sm:$0xff]
        %v468 = vld [vmem:[%s410 + $0x98] sm:$0xff]
        %v469 = vld [vmem:[%s410 + $0xa0] sm:$0xff]
        %v470 = vld [vmem:[%s410 + $0xa8] sm:$0xff]
        %v471 = vld [vmem:[%s410 + $0xb0] sm:$0xff]
        %v472 = vld [vmem:[%s410 + $0xb8] sm:$0xff]
        %v473 = vld [vmem:[%s410 + $0xc0] sm:$0xff]
        %v474 = vld [vmem:[%s410 + $0xc8] sm:$0xff]
        %v475 = vld [vmem:[%s410 + $0xd0] sm:$0xff]
        %v476 = vld [vmem:[%s410 + $0xd8] sm:$0xff]
        %v477 = vld [vmem:[%s410 + $0xe0] sm:$0xff]
        %v478 = vld [vmem:[%s410 + $0xe8] sm:$0xff]
        %v479 = vld [vmem:[%s410 + $0xf0] sm:$0xff]
        %v480 = vld [vmem:[%s410 + $0xf8] sm:$0xff]
        %v481 = vld [vmem:[%s410 + $0x100] sm:$0x1]
        %v482 = vld [vmem:[%s410 + $0x108] sm:$0x1]
        %v483 = vld [vmem:[%s410 + $0x110] sm:$0x1]
        %v484 = vld [vmem:[%s410 + $0x118] sm:$0x1]
        %v485 = vld [vmem:[%s410 + $0x120] sm:$0x1]
        %v486 = vld [vmem:[%s410 + $0x128] sm:$0x1]
        %v487 = vld [vmem:[%s410 + $0x130] sm:$0x1]
        %v488 = vld [vmem:[%s410 + $0x138] sm:$0x1]
        %v489 = vld [vmem:[%s410 + $0x140] sm:$0x1]
        %v490 = vld [vmem:[%s410 + $0x148] sm:$0x1]
        %v491 = vld [vmem:[%s410 + $0x150] sm:$0x1]
        %v492 = vld [vmem:[%s410 + $0x158] sm:$0x1]
        %v493 = vld [vmem:[%s410 + $0x160] sm:$0x1]
        %v494 = vld [vmem:[%s410 + $0x168] sm:$0x1]
        %v495 = vld [vmem:[%s410 + $0x170] sm:$0x1]
        %v496 = vld [vmem:[%s410 + $0x178] sm:$0x1]
        %v497 = vcvt.f32.s32.to.zero.pseudo %v449
        %v498 = vcvt.f32.s32.to.zero.pseudo %v450
        %v499 = vcvt.f32.s32.to.zero.pseudo %v451
        %v500 = vcvt.f32.s32.to.zero.pseudo %v452
        %v501 = vcvt.f32.s32.to.zero.pseudo %v453
        %v502 = vcvt.f32.s32.to.zero.pseudo %v454
        %v503 = vcvt.f32.s32.to.zero.pseudo %v455
        %v504 = vcvt.f32.s32.to.zero.pseudo %v456
        %v505 = vcvt.f32.s32.to.zero.pseudo %v457
        %v506 = vcvt.f32.s32.to.zero.pseudo %v458
        %v507 = vcvt.f32.s32.to.zero.pseudo %v459
        %v508 = vcvt.f32.s32.to.zero.pseudo %v460
        %v509 = vcvt.f32.s32.to.zero.pseudo %v461
        %v510 = vcvt.f32.s32.to.zero.pseudo %v462
        %v511 = vcvt.f32.s32.to.zero.pseudo %v463
        %v512 = vcvt.f32.s32.to.zero.pseudo %v464
        %v513 = vlaneseq
        %v514 = vshrl.u32 %v513, 7
        %v515 = vadd.s32 %v514, 8
        %v516 = vadd.s32 %v514, 16
        %v517 = vadd.s32 %v514, 24
        %v518 = vadd.s32 %v514, 32
        %v519 = vadd.s32 %v514, 40
        %v520 = vadd.s32 %v514, 48
        %v521 = vadd.s32 %v514, 56
        %v522 = vadd.s32 %v514, 64
        %v523 = vadd.s32 %v514, 72
        %v524 = vadd.s32 %v514, 80
        %v525 = vadd.s32 %v514, 88
        %v526 = vadd.s32 %v514, 96
        %v527 = vadd.s32 %v514, 104
        %v528 = vadd.s32 %v514, 112
        %v529 = vadd.s32 %v514, 120
        %v530 = vperm.slane %v497, 0
        %v531 = vperm.slane %v498, 0
        %v532 = vperm.slane %v499, 0
        %v533 = vperm.slane %v500, 0
        %v534 = vperm.slane %v501, 0
        %v535 = vperm.slane %v502, 0
        %v536 = vperm.slane %v503, 0
        %v537 = vperm.slane %v504, 0
        %v538 = vperm.slane %v505, 0
        %v539 = vperm.slane %v506, 0
        %v540 = vperm.slane %v507, 0
        %v541 = vperm.slane %v508, 0
        %v542 = vperm.slane %v509, 0
        %v543 = vperm.slane %v510, 0
        %v544 = vperm.slane %v511, 0
        %v545 = vperm.slane %v512, 0
        %vm546 = vcmp.eq.s32.totalorder %v514, %v530
        %vm547 = vcmp.eq.s32.totalorder %v514, %v531
        %vm548 = vcmp.eq.s32.totalorder %v514, %v532
        %vm549 = vcmp.eq.s32.totalorder %v514, %v533
        %vm550 = vcmp.eq.s32.totalorder %v514, %v534
        %vm551 = vcmp.eq.s32.totalorder %v514, %v535
        %vm552 = vcmp.eq.s32.totalorder %v514, %v536
        %vm553 = vcmp.eq.s32.totalorder %v514, %v537
        %vm554 = vcmp.eq.s32.totalorder %v514, %v538
        %vm555 = vcmp.eq.s32.totalorder %v514, %v539
        %vm556 = vcmp.eq.s32.totalorder %v514, %v540
        %vm557 = vcmp.eq.s32.totalorder %v514, %v541
        %vm558 = vcmp.eq.s32.totalorder %v514, %v542
        %vm559 = vcmp.eq.s32.totalorder %v514, %v543
        %vm560 = vcmp.eq.s32.totalorder %v514, %v544
        %vm561 = vcmp.eq.s32.totalorder %v514, %v545
        %vm562 = vcmp.eq.s32.totalorder %v515, %v530
        %vm563 = vcmp.eq.s32.totalorder %v515, %v531
        %vm564 = vcmp.eq.s32.totalorder %v515, %v532
        %vm565 = vcmp.eq.s32.totalorder %v515, %v533
        %vm566 = vcmp.eq.s32.totalorder %v515, %v534
        %vm567 = vcmp.eq.s32.totalorder %v515, %v535
        %vm568 = vcmp.eq.s32.totalorder %v515, %v536
        %vm569 = vcmp.eq.s32.totalorder %v515, %v537
        %vm570 = vcmp.eq.s32.totalorder %v515, %v538
        %vm571 = vcmp.eq.s32.totalorder %v515, %v539
        %vm572 = vcmp.eq.s32.totalorder %v515, %v540
        %vm573 = vcmp.eq.s32.totalorder %v515, %v541
        %vm574 = vcmp.eq.s32.totalorder %v515, %v542
        %vm575 = vcmp.eq.s32.totalorder %v515, %v543
        %vm576 = vcmp.eq.s32.totalorder %v515, %v544
        %vm577 = vcmp.eq.s32.totalorder %v515, %v545
        %vm578 = vcmp.eq.s32.totalorder %v516, %v530
        %vm579 = vcmp.eq.s32.totalorder %v516, %v531
        %vm580 = vcmp.eq.s32.totalorder %v516, %v532
        %vm581 = vcmp.eq.s32.totalorder %v516, %v533
        %vm582 = vcmp.eq.s32.totalorder %v516, %v534
        %vm583 = vcmp.eq.s32.totalorder %v516, %v535
        %vm584 = vcmp.eq.s32.totalorder %v516, %v536
        %vm585 = vcmp.eq.s32.totalorder %v516, %v537
        %vm586 = vcmp.eq.s32.totalorder %v516, %v538
        %vm587 = vcmp.eq.s32.totalorder %v516, %v539
        %vm588 = vcmp.eq.s32.totalorder %v516, %v540
        %vm589 = vcmp.eq.s32.totalorder %v516, %v541
        %vm590 = vcmp.eq.s32.totalorder %v516, %v542
        %vm591 = vcmp.eq.s32.totalorder %v516, %v543
        %vm592 = vcmp.eq.s32.totalorder %v516, %v544
        %vm593 = vcmp.eq.s32.totalorder %v516, %v545
        %vm594 = vcmp.eq.s32.totalorder %v517, %v530
        %vm595 = vcmp.eq.s32.totalorder %v517, %v531
        %vm596 = vcmp.eq.s32.totalorder %v517, %v532
        %vm597 = vcmp.eq.s32.totalorder %v517, %v533
        %vm598 = vcmp.eq.s32.totalorder %v517, %v534
        %vm599 = vcmp.eq.s32.totalorder %v517, %v535
        %vm600 = vcmp.eq.s32.totalorder %v517, %v536
        %vm601 = vcmp.eq.s32.totalorder %v517, %v537
        %vm602 = vcmp.eq.s32.totalorder %v517, %v538
        %vm603 = vcmp.eq.s32.totalorder %v517, %v539
        %vm604 = vcmp.eq.s32.totalorder %v517, %v540
        %vm605 = vcmp.eq.s32.totalorder %v517, %v541
        %vm606 = vcmp.eq.s32.totalorder %v517, %v542
        %vm607 = vcmp.eq.s32.totalorder %v517, %v543
        %vm608 = vcmp.eq.s32.totalorder %v517, %v544
        %vm609 = vcmp.eq.s32.totalorder %v517, %v545
        %vm610 = vcmp.eq.s32.totalorder %v518, %v530
        %vm611 = vcmp.eq.s32.totalorder %v518, %v531
        %vm612 = vcmp.eq.s32.totalorder %v518, %v532
        %vm613 = vcmp.eq.s32.totalorder %v518, %v533
        %vm614 = vcmp.eq.s32.totalorder %v518, %v534
        %vm615 = vcmp.eq.s32.totalorder %v518, %v535
        %vm616 = vcmp.eq.s32.totalorder %v518, %v536
        %vm617 = vcmp.eq.s32.totalorder %v518, %v537
        %vm618 = vcmp.eq.s32.totalorder %v518, %v538
        %vm619 = vcmp.eq.s32.totalorder %v518, %v539
        %vm620 = vcmp.eq.s32.totalorder %v518, %v540
        %vm621 = vcmp.eq.s32.totalorder %v518, %v541
        %vm622 = vcmp.eq.s32.totalorder %v518, %v542
        %vm623 = vcmp.eq.s32.totalorder %v518, %v543
        %vm624 = vcmp.eq.s32.totalorder %v518, %v544
        %vm625 = vcmp.eq.s32.totalorder %v518, %v545
        %vm626 = vcmp.eq.s32.totalorder %v519, %v530
        %vm627 = vcmp.eq.s32.totalorder %v519, %v531
        %vm628 = vcmp.eq.s32.totalorder %v519, %v532
        %vm629 = vcmp.eq.s32.totalorder %v519, %v533
        %vm630 = vcmp.eq.s32.totalorder %v519, %v534
        %vm631 = vcmp.eq.s32.totalorder %v519, %v535
        %vm632 = vcmp.eq.s32.totalorder %v519, %v536
        %vm633 = vcmp.eq.s32.totalorder %v519, %v537
        %vm634 = vcmp.eq.s32.totalorder %v519, %v538
        %vm635 = vcmp.eq.s32.totalorder %v519, %v539
        %vm636 = vcmp.eq.s32.totalorder %v519, %v540
        %vm637 = vcmp.eq.s32.totalorder %v519, %v541
        %vm638 = vcmp.eq.s32.totalorder %v519, %v542
        %vm639 = vcmp.eq.s32.totalorder %v519, %v543
        %vm640 = vcmp.eq.s32.totalorder %v519, %v544
        %vm641 = vcmp.eq.s32.totalorder %v519, %v545
        %vm642 = vcmp.eq.s32.totalorder %v520, %v530
        %vm643 = vcmp.eq.s32.totalorder %v520, %v531
        %vm644 = vcmp.eq.s32.totalorder %v520, %v532
        %vm645 = vcmp.eq.s32.totalorder %v520, %v533
        %vm646 = vcmp.eq.s32.totalorder %v520, %v534
        %vm647 = vcmp.eq.s32.totalorder %v520, %v535
        %vm648 = vcmp.eq.s32.totalorder %v520, %v536
        %vm649 = vcmp.eq.s32.totalorder %v520, %v537
        %vm650 = vcmp.eq.s32.totalorder %v520, %v538
        %vm651 = vcmp.eq.s32.totalorder %v520, %v539
        %vm652 = vcmp.eq.s32.totalorder %v520, %v540
        %vm653 = vcmp.eq.s32.totalorder %v520, %v541
        %vm654 = vcmp.eq.s32.totalorder %v520, %v542
        %vm655 = vcmp.eq.s32.totalorder %v520, %v543
        %vm656 = vcmp.eq.s32.totalorder %v520, %v544
        %vm657 = vcmp.eq.s32.totalorder %v520, %v545
        %vm658 = vcmp.eq.s32.totalorder %v521, %v530
        %vm659 = vcmp.eq.s32.totalorder %v521, %v531
        %vm660 = vcmp.eq.s32.totalorder %v521, %v532
        %vm661 = vcmp.eq.s32.totalorder %v521, %v533
        %vm662 = vcmp.eq.s32.totalorder %v521, %v534
        %vm663 = vcmp.eq.s32.totalorder %v521, %v535
        %vm664 = vcmp.eq.s32.totalorder %v521, %v536
        %vm665 = vcmp.eq.s32.totalorder %v521, %v537
        %vm666 = vcmp.eq.s32.totalorder %v521, %v538
        %vm667 = vcmp.eq.s32.totalorder %v521, %v539
        %vm668 = vcmp.eq.s32.totalorder %v521, %v540
        %vm669 = vcmp.eq.s32.totalorder %v521, %v541
        %vm670 = vcmp.eq.s32.totalorder %v521, %v542
        %vm671 = vcmp.eq.s32.totalorder %v521, %v543
        %vm672 = vcmp.eq.s32.totalorder %v521, %v544
        %vm673 = vcmp.eq.s32.totalorder %v521, %v545
        %vm674 = vcmp.eq.s32.totalorder %v522, %v530
        %vm675 = vcmp.eq.s32.totalorder %v522, %v531
        %vm676 = vcmp.eq.s32.totalorder %v522, %v532
        %vm677 = vcmp.eq.s32.totalorder %v522, %v533
        %vm678 = vcmp.eq.s32.totalorder %v522, %v534
        %vm679 = vcmp.eq.s32.totalorder %v522, %v535
        %vm680 = vcmp.eq.s32.totalorder %v522, %v536
        %vm681 = vcmp.eq.s32.totalorder %v522, %v537
        %vm682 = vcmp.eq.s32.totalorder %v522, %v538
        %vm683 = vcmp.eq.s32.totalorder %v522, %v539
        %vm684 = vcmp.eq.s32.totalorder %v522, %v540
        %vm685 = vcmp.eq.s32.totalorder %v522, %v541
        %vm686 = vcmp.eq.s32.totalorder %v522, %v542
        %vm687 = vcmp.eq.s32.totalorder %v522, %v543
        %vm688 = vcmp.eq.s32.totalorder %v522, %v544
        %vm689 = vcmp.eq.s32.totalorder %v522, %v545
        %vm690 = vcmp.eq.s32.totalorder %v523, %v530
        %vm691 = vcmp.eq.s32.totalorder %v523, %v531
        %vm692 = vcmp.eq.s32.totalorder %v523, %v532
        %vm693 = vcmp.eq.s32.totalorder %v523, %v533
        %vm694 = vcmp.eq.s32.totalorder %v523, %v534
        %vm695 = vcmp.eq.s32.totalorder %v523, %v535
        %vm696 = vcmp.eq.s32.totalorder %v523, %v536
        %vm697 = vcmp.eq.s32.totalorder %v523, %v537
        %vm698 = vcmp.eq.s32.totalorder %v523, %v538
        %vm699 = vcmp.eq.s32.totalorder %v523, %v539
        %vm700 = vcmp.eq.s32.totalorder %v523, %v540
        %vm701 = vcmp.eq.s32.totalorder %v523, %v541
        %vm702 = vcmp.eq.s32.totalorder %v523, %v542
        %vm703 = vcmp.eq.s32.totalorder %v523, %v543
        %vm704 = vcmp.eq.s32.totalorder %v523, %v544
        %vm705 = vcmp.eq.s32.totalorder %v523, %v545
        %vm706 = vcmp.eq.s32.totalorder %v524, %v530
        %vm707 = vcmp.eq.s32.totalorder %v524, %v531
        %vm708 = vcmp.eq.s32.totalorder %v524, %v532
        %vm709 = vcmp.eq.s32.totalorder %v524, %v533
        %vm710 = vcmp.eq.s32.totalorder %v524, %v534
        %vm711 = vcmp.eq.s32.totalorder %v524, %v535
        %vm712 = vcmp.eq.s32.totalorder %v524, %v536
        %vm713 = vcmp.eq.s32.totalorder %v524, %v537
        %vm714 = vcmp.eq.s32.totalorder %v524, %v538
        %vm715 = vcmp.eq.s32.totalorder %v524, %v539
        %vm716 = vcmp.eq.s32.totalorder %v524, %v540
        %vm717 = vcmp.eq.s32.totalorder %v524, %v541
        %vm718 = vcmp.eq.s32.totalorder %v524, %v542
        %vm719 = vcmp.eq.s32.totalorder %v524, %v543
        %vm720 = vcmp.eq.s32.totalorder %v524, %v544
        %vm721 = vcmp.eq.s32.totalorder %v524, %v545
        %vm722 = vcmp.eq.s32.totalorder %v525, %v530
        %vm723 = vcmp.eq.s32.totalorder %v525, %v531
        %vm724 = vcmp.eq.s32.totalorder %v525, %v532
        %vm725 = vcmp.eq.s32.totalorder %v525, %v533
        %vm726 = vcmp.eq.s32.totalorder %v525, %v534
        %vm727 = vcmp.eq.s32.totalorder %v525, %v535
        %vm728 = vcmp.eq.s32.totalorder %v525, %v536
        %vm729 = vcmp.eq.s32.totalorder %v525, %v537
        %vm730 = vcmp.eq.s32.totalorder %v525, %v538
        %vm731 = vcmp.eq.s32.totalorder %v525, %v539
        %vm732 = vcmp.eq.s32.totalorder %v525, %v540
        %vm733 = vcmp.eq.s32.totalorder %v525, %v541
        %vm734 = vcmp.eq.s32.totalorder %v525, %v542
        %vm735 = vcmp.eq.s32.totalorder %v525, %v543
        %vm736 = vcmp.eq.s32.totalorder %v525, %v544
        %vm737 = vcmp.eq.s32.totalorder %v525, %v545
        %vm738 = vcmp.eq.s32.totalorder %v526, %v530
        %vm739 = vcmp.eq.s32.totalorder %v526, %v531
        %vm740 = vcmp.eq.s32.totalorder %v526, %v532
        %vm741 = vcmp.eq.s32.totalorder %v526, %v533
        %vm742 = vcmp.eq.s32.totalorder %v526, %v534
        %vm743 = vcmp.eq.s32.totalorder %v526, %v535
        %vm744 = vcmp.eq.s32.totalorder %v526, %v536
        %vm745 = vcmp.eq.s32.totalorder %v526, %v537
        %vm746 = vcmp.eq.s32.totalorder %v526, %v538
        %vm747 = vcmp.eq.s32.totalorder %v526, %v539
        %vm748 = vcmp.eq.s32.totalorder %v526, %v540
        %vm749 = vcmp.eq.s32.totalorder %v526, %v541
        %vm750 = vcmp.eq.s32.totalorder %v526, %v542
        %vm751 = vcmp.eq.s32.totalorder %v526, %v543
        %vm752 = vcmp.eq.s32.totalorder %v526, %v544
        %vm753 = vcmp.eq.s32.totalorder %v526, %v545
        %vm754 = vcmp.eq.s32.totalorder %v527, %v530
        %vm755 = vcmp.eq.s32.totalorder %v527, %v531
        %vm756 = vcmp.eq.s32.totalorder %v527, %v532
        %vm757 = vcmp.eq.s32.totalorder %v527, %v533
        %vm758 = vcmp.eq.s32.totalorder %v527, %v534
        %vm759 = vcmp.eq.s32.totalorder %v527, %v535
        %vm760 = vcmp.eq.s32.totalorder %v527, %v536
        %vm761 = vcmp.eq.s32.totalorder %v527, %v537
        %vm762 = vcmp.eq.s32.totalorder %v527, %v538
        %vm763 = vcmp.eq.s32.totalorder %v527, %v539
        %vm764 = vcmp.eq.s32.totalorder %v527, %v540
        %vm765 = vcmp.eq.s32.totalorder %v527, %v541
        %vm766 = vcmp.eq.s32.totalorder %v527, %v542
        %vm767 = vcmp.eq.s32.totalorder %v527, %v543
        %vm768 = vcmp.eq.s32.totalorder %v527, %v544
        %vm769 = vcmp.eq.s32.totalorder %v527, %v545
        %vm770 = vcmp.eq.s32.totalorder %v528, %v530
        %vm771 = vcmp.eq.s32.totalorder %v528, %v531
        %vm772 = vcmp.eq.s32.totalorder %v528, %v532
        %vm773 = vcmp.eq.s32.totalorder %v528, %v533
        %vm774 = vcmp.eq.s32.totalorder %v528, %v534
        %vm775 = vcmp.eq.s32.totalorder %v528, %v535
        %vm776 = vcmp.eq.s32.totalorder %v528, %v536
        %vm777 = vcmp.eq.s32.totalorder %v528, %v537
        %vm778 = vcmp.eq.s32.totalorder %v528, %v538
        %vm779 = vcmp.eq.s32.totalorder %v528, %v539
        %vm780 = vcmp.eq.s32.totalorder %v528, %v540
        %vm781 = vcmp.eq.s32.totalorder %v528, %v541
        %vm782 = vcmp.eq.s32.totalorder %v528, %v542
        %vm783 = vcmp.eq.s32.totalorder %v528, %v543
        %vm784 = vcmp.eq.s32.totalorder %v528, %v544
        %vm785 = vcmp.eq.s32.totalorder %v528, %v545
        %vm786 = vcmp.eq.s32.totalorder %v529, %v530
        %vm787 = vcmp.eq.s32.totalorder %v529, %v531
        %vm788 = vcmp.eq.s32.totalorder %v529, %v532
        %vm789 = vcmp.eq.s32.totalorder %v529, %v533
        %vm790 = vcmp.eq.s32.totalorder %v529, %v534
        %vm791 = vcmp.eq.s32.totalorder %v529, %v535
        %vm792 = vcmp.eq.s32.totalorder %v529, %v536
        %vm793 = vcmp.eq.s32.totalorder %v529, %v537
        %vm794 = vcmp.eq.s32.totalorder %v529, %v538
        %vm795 = vcmp.eq.s32.totalorder %v529, %v539
        %vm796 = vcmp.eq.s32.totalorder %v529, %v540
        %vm797 = vcmp.eq.s32.totalorder %v529, %v541
        %vm798 = vcmp.eq.s32.totalorder %v529, %v542
        %vm799 = vcmp.eq.s32.totalorder %v529, %v543
        %vm800 = vcmp.eq.s32.totalorder %v529, %v544
        %vm801 = vcmp.eq.s32.totalorder %v529, %v545
        %v802 = vadd.s32 %v497, 100
        %v803 = vadd.s32 %v498, 100
        %v804 = vadd.s32 %v499, 100
        %v805 = vadd.s32 %v500, 100
        %v806 = vadd.s32 %v501, 100
        %v807 = vadd.s32 %v502, 100
        %v808 = vadd.s32 %v503, 100
        %v809 = vadd.s32 %v504, 100
        %v810 = vadd.s32 %v505, 100
        %v811 = vadd.s32 %v506, 100
        %v812 = vadd.s32 %v507, 100
        %v813 = vadd.s32 %v508, 100
        %v814 = vadd.s32 %v509, 100
        %v815 = vadd.s32 %v510, 100
        %v816 = vadd.s32 %v511, 100
        %v817 = vadd.s32 %v512, 100
        %v818 = vperm.slane %v802, 2
        %v819 = vperm.slane %v803, 2
        %v820 = vperm.slane %v804, 2
        %v821 = vperm.slane %v805, 2
        %v822 = vperm.slane %v806, 2
        %v823 = vperm.slane %v807, 2
        %v824 = vperm.slane %v808, 2
        %v825 = vperm.slane %v809, 2
        %v826 = vperm.slane %v810, 2
        %v827 = vperm.slane %v811, 2
        %v828 = vperm.slane %v812, 2
        %v829 = vperm.slane %v813, 2
        %v830 = vperm.slane %v814, 2
        %v831 = vperm.slane %v815, 2
        %v832 = vperm.slane %v816, 2
        %v833 = vperm.slane %v817, 2
        %vm834 = vcmp.eq.s32.totalorder %v514, %v818
        %vm835 = vcmp.eq.s32.totalorder %v514, %v819
        %vm836 = vcmp.eq.s32.totalorder %v514, %v820
        %vm837 = vcmp.eq.s32.totalorder %v514, %v821
        %vm838 = vcmp.eq.s32.totalorder %v514, %v822
        %vm839 = vcmp.eq.s32.totalorder %v514, %v823
        %vm840 = vcmp.eq.s32.totalorder %v514, %v824
        %vm841 = vcmp.eq.s32.totalorder %v514, %v825
        %vm842 = vcmp.eq.s32.totalorder %v514, %v826
        %vm843 = vcmp.eq.s32.totalorder %v514, %v827
        %vm844 = vcmp.eq.s32.totalorder %v514, %v828
        %vm845 = vcmp.eq.s32.totalorder %v514, %v829
        %vm846 = vcmp.eq.s32.totalorder %v514, %v830
        %vm847 = vcmp.eq.s32.totalorder %v514, %v831
        %vm848 = vcmp.eq.s32.totalorder %v514, %v832
        %vm849 = vcmp.eq.s32.totalorder %v514, %v833
        %vm850 = vcmp.eq.s32.totalorder %v515, %v818
        %vm851 = vcmp.eq.s32.totalorder %v515, %v819
        %vm852 = vcmp.eq.s32.totalorder %v515, %v820
        %vm853 = vcmp.eq.s32.totalorder %v515, %v821
        %vm854 = vcmp.eq.s32.totalorder %v515, %v822
        %vm855 = vcmp.eq.s32.totalorder %v515, %v823
        %vm856 = vcmp.eq.s32.totalorder %v515, %v824
        %vm857 = vcmp.eq.s32.totalorder %v515, %v825
        %vm858 = vcmp.eq.s32.totalorder %v515, %v826
        %vm859 = vcmp.eq.s32.totalorder %v515, %v827
        %vm860 = vcmp.eq.s32.totalorder %v515, %v828
        %vm861 = vcmp.eq.s32.totalorder %v515, %v829
        %vm862 = vcmp.eq.s32.totalorder %v515, %v830
        %vm863 = vcmp.eq.s32.totalorder %v515, %v831
        %vm864 = vcmp.eq.s32.totalorder %v515, %v832
        %vm865 = vcmp.eq.s32.totalorder %v515, %v833
        %vm866 = vcmp.eq.s32.totalorder %v516, %v818
        %vm867 = vcmp.eq.s32.totalorder %v516, %v819
        %vm868 = vcmp.eq.s32.totalorder %v516, %v820
        %vm869 = vcmp.eq.s32.totalorder %v516, %v821
        %vm870 = vcmp.eq.s32.totalorder %v516, %v822
        %vm871 = vcmp.eq.s32.totalorder %v516, %v823
        %vm872 = vcmp.eq.s32.totalorder %v516, %v824
        %vm873 = vcmp.eq.s32.totalorder %v516, %v825
        %vm874 = vcmp.eq.s32.totalorder %v516, %v826
        %vm875 = vcmp.eq.s32.totalorder %v516, %v827
        %vm876 = vcmp.eq.s32.totalorder %v516, %v828
        %vm877 = vcmp.eq.s32.totalorder %v516, %v829
        %vm878 = vcmp.eq.s32.totalorder %v516, %v830
        %vm879 = vcmp.eq.s32.totalorder %v516, %v831
        %vm880 = vcmp.eq.s32.totalorder %v516, %v832
        %vm881 = vcmp.eq.s32.totalorder %v516, %v833
        %vm882 = vcmp.eq.s32.totalorder %v517, %v818
        %vm883 = vcmp.eq.s32.totalorder %v517, %v819
        %vm884 = vcmp.eq.s32.totalorder %v517, %v820
        %vm885 = vcmp.eq.s32.totalorder %v517, %v821
        %vm886 = vcmp.eq.s32.totalorder %v517, %v822
        %vm887 = vcmp.eq.s32.totalorder %v517, %v823
        %vm888 = vcmp.eq.s32.totalorder %v517, %v824
        %vm889 = vcmp.eq.s32.totalorder %v517, %v825
        %vm890 = vcmp.eq.s32.totalorder %v517, %v826
        %vm891 = vcmp.eq.s32.totalorder %v517, %v827
        %vm892 = vcmp.eq.s32.totalorder %v517, %v828
        %vm893 = vcmp.eq.s32.totalorder %v517, %v829
        %vm894 = vcmp.eq.s32.totalorder %v517, %v830
        %vm895 = vcmp.eq.s32.totalorder %v517, %v831
        %vm896 = vcmp.eq.s32.totalorder %v517, %v832
        %vm897 = vcmp.eq.s32.totalorder %v517, %v833
        %vm898 = vcmp.eq.s32.totalorder %v518, %v818
        %vm899 = vcmp.eq.s32.totalorder %v518, %v819
        %vm900 = vcmp.eq.s32.totalorder %v518, %v820
        %vm901 = vcmp.eq.s32.totalorder %v518, %v821
        %vm902 = vcmp.eq.s32.totalorder %v518, %v822
        %vm903 = vcmp.eq.s32.totalorder %v518, %v823
        %vm904 = vcmp.eq.s32.totalorder %v518, %v824
        %vm905 = vcmp.eq.s32.totalorder %v518, %v825
        %vm906 = vcmp.eq.s32.totalorder %v518, %v826
        %vm907 = vcmp.eq.s32.totalorder %v518, %v827
        %vm908 = vcmp.eq.s32.totalorder %v518, %v828
        %vm909 = vcmp.eq.s32.totalorder %v518, %v829
        %vm910 = vcmp.eq.s32.totalorder %v518, %v830
        %vm911 = vcmp.eq.s32.totalorder %v518, %v831
        %vm912 = vcmp.eq.s32.totalorder %v518, %v832
        %vm913 = vcmp.eq.s32.totalorder %v518, %v833
        %vm914 = vcmp.eq.s32.totalorder %v519, %v818
        %vm915 = vcmp.eq.s32.totalorder %v519, %v819
        %vm916 = vcmp.eq.s32.totalorder %v519, %v820
        %vm917 = vcmp.eq.s32.totalorder %v519, %v821
        %vm918 = vcmp.eq.s32.totalorder %v519, %v822
        %vm919 = vcmp.eq.s32.totalorder %v519, %v823
        %vm920 = vcmp.eq.s32.totalorder %v519, %v824
        %vm921 = vcmp.eq.s32.totalorder %v519, %v825
        %vm922 = vcmp.eq.s32.totalorder %v519, %v826
        %vm923 = vcmp.eq.s32.totalorder %v519, %v827
        %vm924 = vcmp.eq.s32.totalorder %v519, %v828
        %vm925 = vcmp.eq.s32.totalorder %v519, %v829
        %vm926 = vcmp.eq.s32.totalorder %v519, %v830
        %vm927 = vcmp.eq.s32.totalorder %v519, %v831
        %vm928 = vcmp.eq.s32.totalorder %v519, %v832
        %vm929 = vcmp.eq.s32.totalorder %v519, %v833
        %vm930 = vcmp.eq.s32.totalorder %v520, %v818
        %vm931 = vcmp.eq.s32.totalorder %v520, %v819
        %vm932 = vcmp.eq.s32.totalorder %v520, %v820
        %vm933 = vcmp.eq.s32.totalorder %v520, %v821
        %vm934 = vcmp.eq.s32.totalorder %v520, %v822
        %vm935 = vcmp.eq.s32.totalorder %v520, %v823
        %vm936 = vcmp.eq.s32.totalorder %v520, %v824
        %vm937 = vcmp.eq.s32.totalorder %v520, %v825
        %vm938 = vcmp.eq.s32.totalorder %v520, %v826
        %vm939 = vcmp.eq.s32.totalorder %v520, %v827
        %vm940 = vcmp.eq.s32.totalorder %v520, %v828
        %vm941 = vcmp.eq.s32.totalorder %v520, %v829
        %vm942 = vcmp.eq.s32.totalorder %v520, %v830
        %vm943 = vcmp.eq.s32.totalorder %v520, %v831
        %vm944 = vcmp.eq.s32.totalorder %v520, %v832
        %vm945 = vcmp.eq.s32.totalorder %v520, %v833
        %vm946 = vcmp.eq.s32.totalorder %v521, %v818
        %vm947 = vcmp.eq.s32.totalorder %v521, %v819
        %vm948 = vcmp.eq.s32.totalorder %v521, %v820
        %vm949 = vcmp.eq.s32.totalorder %v521, %v821
        %vm950 = vcmp.eq.s32.totalorder %v521, %v822
        %vm951 = vcmp.eq.s32.totalorder %v521, %v823
        %vm952 = vcmp.eq.s32.totalorder %v521, %v824
        %vm953 = vcmp.eq.s32.totalorder %v521, %v825
        %vm954 = vcmp.eq.s32.totalorder %v521, %v826
        %vm955 = vcmp.eq.s32.totalorder %v521, %v827
        %vm956 = vcmp.eq.s32.totalorder %v521, %v828
        %vm957 = vcmp.eq.s32.totalorder %v521, %v829
        %vm958 = vcmp.eq.s32.totalorder %v521, %v830
        %vm959 = vcmp.eq.s32.totalorder %v521, %v831
        %vm960 = vcmp.eq.s32.totalorder %v521, %v832
        %vm961 = vcmp.eq.s32.totalorder %v521, %v833
        %vm962 = vcmp.eq.s32.totalorder %v522, %v818
        %vm963 = vcmp.eq.s32.totalorder %v522, %v819
        %vm964 = vcmp.eq.s32.totalorder %v522, %v820
        %vm965 = vcmp.eq.s32.totalorder %v522, %v821
        %vm966 = vcmp.eq.s32.totalorder %v522, %v822
        %vm967 = vcmp.eq.s32.totalorder %v522, %v823
        %vm968 = vcmp.eq.s32.totalorder %v522, %v824
        %vm969 = vcmp.eq.s32.totalorder %v522, %v825
        %vm970 = vcmp.eq.s32.totalorder %v522, %v826
        %vm971 = vcmp.eq.s32.totalorder %v522, %v827
        %vm972 = vcmp.eq.s32.totalorder %v522, %v828
        %vm973 = vcmp.eq.s32.totalorder %v522, %v829
        %vm974 = vcmp.eq.s32.totalorder %v522, %v830
        %vm975 = vcmp.eq.s32.totalorder %v522, %v831
        %vm976 = vcmp.eq.s32.totalorder %v522, %v832
        %vm977 = vcmp.eq.s32.totalorder %v522, %v833
        %vm978 = vcmp.eq.s32.totalorder %v523, %v818
        %vm979 = vcmp.eq.s32.totalorder %v523, %v819
        %vm980 = vcmp.eq.s32.totalorder %v523, %v820
        %vm981 = vcmp.eq.s32.totalorder %v523, %v821
        %vm982 = vcmp.eq.s32.totalorder %v523, %v822
        %vm983 = vcmp.eq.s32.totalorder %v523, %v823
        %vm984 = vcmp.eq.s32.totalorder %v523, %v824
        %vm985 = vcmp.eq.s32.totalorder %v523, %v825
        %vm986 = vcmp.eq.s32.totalorder %v523, %v826
        %vm987 = vcmp.eq.s32.totalorder %v523, %v827
        %vm988 = vcmp.eq.s32.totalorder %v523, %v828
        %vm989 = vcmp.eq.s32.totalorder %v523, %v829
        %vm990 = vcmp.eq.s32.totalorder %v523, %v830
        %vm991 = vcmp.eq.s32.totalorder %v523, %v831
        %vm992 = vcmp.eq.s32.totalorder %v523, %v832
        %vm993 = vcmp.eq.s32.totalorder %v523, %v833
        %vm994 = vcmp.eq.s32.totalorder %v524, %v818
        %vm995 = vcmp.eq.s32.totalorder %v524, %v819
        %vm996 = vcmp.eq.s32.totalorder %v524, %v820
        %vm997 = vcmp.eq.s32.totalorder %v524, %v821
        %vm998 = vcmp.eq.s32.totalorder %v524, %v822
        %vm999 = vcmp.eq.s32.totalorder %v524, %v823
        %vm1000 = vcmp.eq.s32.totalorder %v524, %v824
        %vm1001 = vcmp.eq.s32.totalorder %v524, %v825
        %vm1002 = vcmp.eq.s32.totalorder %v524, %v826
        %vm1003 = vcmp.eq.s32.totalorder %v524, %v827
        %vm1004 = vcmp.eq.s32.totalorder %v524, %v828
        %vm1005 = vcmp.eq.s32.totalorder %v524, %v829
        %vm1006 = vcmp.eq.s32.totalorder %v524, %v830
        %vm1007 = vcmp.eq.s32.totalorder %v524, %v831
        %vm1008 = vcmp.eq.s32.totalorder %v524, %v832
        %vm1009 = vcmp.eq.s32.totalorder %v524, %v833
        %vm1010 = vcmp.eq.s32.totalorder %v525, %v818
        %vm1011 = vcmp.eq.s32.totalorder %v525, %v819
        %vm1012 = vcmp.eq.s32.totalorder %v525, %v820
        %vm1013 = vcmp.eq.s32.totalorder %v525, %v821
        %vm1014 = vcmp.eq.s32.totalorder %v525, %v822
        %vm1015 = vcmp.eq.s32.totalorder %v525, %v823
        %vm1016 = vcmp.eq.s32.totalorder %v525, %v824
        %vm1017 = vcmp.eq.s32.totalorder %v525, %v825
        %vm1018 = vcmp.eq.s32.totalorder %v525, %v826
        %vm1019 = vcmp.eq.s32.totalorder %v525, %v827
        %vm1020 = vcmp.eq.s32.totalorder %v525, %v828
        %vm1021 = vcmp.eq.s32.totalorder %v525, %v829
        %vm1022 = vcmp.eq.s32.totalorder %v525, %v830
        %vm1023 = vcmp.eq.s32.totalorder %v525, %v831
        %vm1024 = vcmp.eq.s32.totalorder %v525, %v832
        %vm1025 = vcmp.eq.s32.totalorder %v525, %v833
        %vm1026 = vcmp.eq.s32.totalorder %v526, %v818
        %vm1027 = vcmp.eq.s32.totalorder %v526, %v819
        %vm1028 = vcmp.eq.s32.totalorder %v526, %v820
        %vm1029 = vcmp.eq.s32.totalorder %v526, %v821
        %vm1030 = vcmp.eq.s32.totalorder %v526, %v822
        %vm1031 = vcmp.eq.s32.totalorder %v526, %v823
        %vm1032 = vcmp.eq.s32.totalorder %v526, %v824
        %vm1033 = vcmp.eq.s32.totalorder %v526, %v825
        %vm1034 = vcmp.eq.s32.totalorder %v526, %v826
        %vm1035 = vcmp.eq.s32.totalorder %v526, %v827
        %vm1036 = vcmp.eq.s32.totalorder %v526, %v828
        %vm1037 = vcmp.eq.s32.totalorder %v526, %v829
        %vm1038 = vcmp.eq.s32.totalorder %v526, %v830
        %vm1039 = vcmp.eq.s32.totalorder %v526, %v831
        %vm1040 = vcmp.eq.s32.totalorder %v526, %v832
        %vm1041 = vcmp.eq.s32.totalorder %v526, %v833
        %vm1042 = vcmp.eq.s32.totalorder %v527, %v818
        %vm1043 = vcmp.eq.s32.totalorder %v527, %v819
        %vm1044 = vcmp.eq.s32.totalorder %v527, %v820
        %vm1045 = vcmp.eq.s32.totalorder %v527, %v821
        %vm1046 = vcmp.eq.s32.totalorder %v527, %v822
        %vm1047 = vcmp.eq.s32.totalorder %v527, %v823
        %vm1048 = vcmp.eq.s32.totalorder %v527, %v824
        %vm1049 = vcmp.eq.s32.totalorder %v527, %v825
        %vm1050 = vcmp.eq.s32.totalorder %v527, %v826
        %vm1051 = vcmp.eq.s32.totalorder %v527, %v827
        %vm1052 = vcmp.eq.s32.totalorder %v527, %v828
        %vm1053 = vcmp.eq.s32.totalorder %v527, %v829
        %vm1054 = vcmp.eq.s32.totalorder %v527, %v830
        %vm1055 = vcmp.eq.s32.totalorder %v527, %v831
        %vm1056 = vcmp.eq.s32.totalorder %v527, %v832
        %vm1057 = vcmp.eq.s32.totalorder %v527, %v833
        %vm1058 = vcmp.eq.s32.totalorder %v528, %v818
        %vm1059 = vcmp.eq.s32.totalorder %v528, %v819
        %vm1060 = vcmp.eq.s32.totalorder %v528, %v820
        %vm1061 = vcmp.eq.s32.totalorder %v528, %v821
        %vm1062 = vcmp.eq.s32.totalorder %v528, %v822
        %vm1063 = vcmp.eq.s32.totalorder %v528, %v823
        %vm1064 = vcmp.eq.s32.totalorder %v528, %v824
        %vm1065 = vcmp.eq.s32.totalorder %v528, %v825
        %vm1066 = vcmp.eq.s32.totalorder %v528, %v826
        %vm1067 = vcmp.eq.s32.totalorder %v528, %v827
        %vm1068 = vcmp.eq.s32.totalorder %v528, %v828
        %vm1069 = vcmp.eq.s32.totalorder %v528, %v829
        %vm1070 = vcmp.eq.s32.totalorder %v528, %v830
        %vm1071 = vcmp.eq.s32.totalorder %v528, %v831
        %vm1072 = vcmp.eq.s32.totalorder %v528, %v832
        %vm1073 = vcmp.eq.s32.totalorder %v528, %v833
        %vm1074 = vcmp.eq.s32.totalorder %v529, %v818
        %vm1075 = vcmp.eq.s32.totalorder %v529, %v819
        %vm1076 = vcmp.eq.s32.totalorder %v529, %v820
        %vm1077 = vcmp.eq.s32.totalorder %v529, %v821
        %vm1078 = vcmp.eq.s32.totalorder %v529, %v822
        %vm1079 = vcmp.eq.s32.totalorder %v529, %v823
        %vm1080 = vcmp.eq.s32.totalorder %v529, %v824
        %vm1081 = vcmp.eq.s32.totalorder %v529, %v825
        %vm1082 = vcmp.eq.s32.totalorder %v529, %v826
        %vm1083 = vcmp.eq.s32.totalorder %v529, %v827
        %vm1084 = vcmp.eq.s32.totalorder %v529, %v828
        %vm1085 = vcmp.eq.s32.totalorder %v529, %v829
        %vm1086 = vcmp.eq.s32.totalorder %v529, %v830
        %vm1087 = vcmp.eq.s32.totalorder %v529, %v831
        %vm1088 = vcmp.eq.s32.totalorder %v529, %v832
        %vm1089 = vcmp.eq.s32.totalorder %v529, %v833
        %vm1090 = vmor %vm546, %vm834
        %vm1091 = vmor %vm547, %vm835
        %vm1092 = vmor %vm548, %vm836
        %vm1093 = vmor %vm549, %vm837
        %vm1094 = vmor %vm550, %vm838
        %vm1095 = vmor %vm551, %vm839
        %vm1096 = vmor %vm552, %vm840
        %vm1097 = vmor %vm553, %vm841
        %vm1098 = vmor %vm554, %vm842
        %vm1099 = vmor %vm555, %vm843
        %vm1100 = vmor %vm556, %vm844
        %vm1101 = vmor %vm557, %vm845
        %vm1102 = vmor %vm558, %vm846
        %vm1103 = vmor %vm559, %vm847
        %vm1104 = vmor %vm560, %vm848
        %vm1105 = vmor %vm561, %vm849
        %vm1106 = vmor %vm562, %vm850
        %vm1107 = vmor %vm563, %vm851
        %vm1108 = vmor %vm564, %vm852
        %vm1109 = vmor %vm565, %vm853
        %vm1110 = vmor %vm566, %vm854
        %vm1111 = vmor %vm567, %vm855
        %vm1112 = vmor %vm568, %vm856
        %vm1113 = vmor %vm569, %vm857
        %vm1114 = vmor %vm570, %vm858
        %vm1115 = vmor %vm571, %vm859
        %vm1116 = vmor %vm572, %vm860
        %vm1117 = vmor %vm573, %vm861
        %vm1118 = vmor %vm574, %vm862
        %vm1119 = vmor %vm575, %vm863
        %vm1120 = vmor %vm576, %vm864
        %vm1121 = vmor %vm577, %vm865
        %vm1122 = vmor %vm578, %vm866
        %vm1123 = vmor %vm579, %vm867
        %vm1124 = vmor %vm580, %vm868
        %vm1125 = vmor %vm581, %vm869
        %vm1126 = vmor %vm582, %vm870
        %vm1127 = vmor %vm583, %vm871
        %vm1128 = vmor %vm584, %vm872
        %vm1129 = vmor %vm585, %vm873
        %vm1130 = vmor %vm586, %vm874
        %vm1131 = vmor %vm587, %vm875
        %vm1132 = vmor %vm588, %vm876
        %vm1133 = vmor %vm589, %vm877
        %vm1134 = vmor %vm590, %vm878
        %vm1135 = vmor %vm591, %vm879
        %vm1136 = vmor %vm592, %vm880
        %vm1137 = vmor %vm593, %vm881
        %vm1138 = vmor %vm594, %vm882
        %vm1139 = vmor %vm595, %vm883
        %vm1140 = vmor %vm596, %vm884
        %vm1141 = vmor %vm597, %vm885
        %vm1142 = vmor %vm598, %vm886
        %vm1143 = vmor %vm599, %vm887
        %vm1144 = vmor %vm600, %vm888
        %vm1145 = vmor %vm601, %vm889
        %vm1146 = vmor %vm602, %vm890
        %vm1147 = vmor %vm603, %vm891
        %vm1148 = vmor %vm604, %vm892
        %vm1149 = vmor %vm605, %vm893
        %vm1150 = vmor %vm606, %vm894
        %vm1151 = vmor %vm607, %vm895
        %vm1152 = vmor %vm608, %vm896
        %vm1153 = vmor %vm609, %vm897
        %vm1154 = vmor %vm610, %vm898
        %vm1155 = vmor %vm611, %vm899
        %vm1156 = vmor %vm612, %vm900
        %vm1157 = vmor %vm613, %vm901
        %vm1158 = vmor %vm614, %vm902
        %vm1159 = vmor %vm615, %vm903
        %vm1160 = vmor %vm616, %vm904
        %vm1161 = vmor %vm617, %vm905
        %vm1162 = vmor %vm618, %vm906
        %vm1163 = vmor %vm619, %vm907
        %vm1164 = vmor %vm620, %vm908
        %vm1165 = vmor %vm621, %vm909
        %vm1166 = vmor %vm622, %vm910
        %vm1167 = vmor %vm623, %vm911
        %vm1168 = vmor %vm624, %vm912
        %vm1169 = vmor %vm625, %vm913
        %vm1170 = vmor %vm626, %vm914
        %vm1171 = vmor %vm627, %vm915
        %vm1172 = vmor %vm628, %vm916
        %vm1173 = vmor %vm629, %vm917
        %vm1174 = vmor %vm630, %vm918
        %vm1175 = vmor %vm631, %vm919
        %vm1176 = vmor %vm632, %vm920
        %vm1177 = vmor %vm633, %vm921
        %vm1178 = vmor %vm634, %vm922
        %vm1179 = vmor %vm635, %vm923
        %vm1180 = vmor %vm636, %vm924
        %vm1181 = vmor %vm637, %vm925
        %vm1182 = vmor %vm638, %vm926
        %vm1183 = vmor %vm639, %vm927
        %vm1184 = vmor %vm640, %vm928
        %vm1185 = vmor %vm641, %vm929
        %vm1186 = vmor %vm642, %vm930
        %vm1187 = vmor %vm643, %vm931
        %vm1188 = vmor %vm644, %vm932
        %vm1189 = vmor %vm645, %vm933
        %vm1190 = vmor %vm646, %vm934
        %vm1191 = vmor %vm647, %vm935
        %vm1192 = vmor %vm648, %vm936
        %vm1193 = vmor %vm649, %vm937
        %vm1194 = vmor %vm650, %vm938
        %vm1195 = vmor %vm651, %vm939
        %vm1196 = vmor %vm652, %vm940
        %vm1197 = vmor %vm653, %vm941
        %vm1198 = vmor %vm654, %vm942
        %vm1199 = vmor %vm655, %vm943
        %vm1200 = vmor %vm656, %vm944
        %vm1201 = vmor %vm657, %vm945
        %vm1202 = vmor %vm658, %vm946
        %vm1203 = vmor %vm659, %vm947
        %vm1204 = vmor %vm660, %vm948
        %vm1205 = vmor %vm661, %vm949
        %vm1206 = vmor %vm662, %vm950
        %vm1207 = vmor %vm663, %vm951
        %vm1208 = vmor %vm664, %vm952
        %vm1209 = vmor %vm665, %vm953
        %vm1210 = vmor %vm666, %vm954
        %vm1211 = vmor %vm667, %vm955
        %vm1212 = vmor %vm668, %vm956
        %vm1213 = vmor %vm669, %vm957
        %vm1214 = vmor %vm670, %vm958
        %vm1215 = vmor %vm671, %vm959
        %vm1216 = vmor %vm672, %vm960
        %vm1217 = vmor %vm673, %vm961
        %vm1218 = vmor %vm674, %vm962
        %vm1219 = vmor %vm675, %vm963
        %vm1220 = vmor %vm676, %vm964
        %vm1221 = vmor %vm677, %vm965
        %vm1222 = vmor %vm678, %vm966
        %vm1223 = vmor %vm679, %vm967
        %vm1224 = vmor %vm680, %vm968
        %vm1225 = vmor %vm681, %vm969
        %vm1226 = vmor %vm682, %vm970
        %vm1227 = vmor %vm683, %vm971
        %vm1228 = vmor %vm684, %vm972
        %vm1229 = vmor %vm685, %vm973
        %vm1230 = vmor %vm686, %vm974
        %vm1231 = vmor %vm687, %vm975
        %vm1232 = vmor %vm688, %vm976
        %vm1233 = vmor %vm689, %vm977
        %vm1234 = vmor %vm690, %vm978
        %vm1235 = vmor %vm691, %vm979
        %vm1236 = vmor %vm692, %vm980
        %vm1237 = vmor %vm693, %vm981
        %vm1238 = vmor %vm694, %vm982
        %vm1239 = vmor %vm695, %vm983
        %vm1240 = vmor %vm696, %vm984
        %vm1241 = vmor %vm697, %vm985
        %vm1242 = vmor %vm698, %vm986
        %vm1243 = vmor %vm699, %vm987
        %vm1244 = vmor %vm700, %vm988
        %vm1245 = vmor %vm701, %vm989
        %vm1246 = vmor %vm702, %vm990
        %vm1247 = vmor %vm703, %vm991
        %vm1248 = vmor %vm704, %vm992
        %vm1249 = vmor %vm705, %vm993
        %vm1250 = vmor %vm706, %vm994
        %vm1251 = vmor %vm707, %vm995
        %vm1252 = vmor %vm708, %vm996
        %vm1253 = vmor %vm709, %vm997
        %vm1254 = vmor %vm710, %vm998
        %vm1255 = vmor %vm711, %vm999
        %vm1256 = vmor %vm712, %vm1000
        %vm1257 = vmor %vm713, %vm1001
        %vm1258 = vmor %vm714, %vm1002
        %vm1259 = vmor %vm715, %vm1003
        %vm1260 = vmor %vm716, %vm1004
        %vm1261 = vmor %vm717, %vm1005
        %vm1262 = vmor %vm718, %vm1006
        %vm1263 = vmor %vm719, %vm1007
        %vm1264 = vmor %vm720, %vm1008
        %vm1265 = vmor %vm721, %vm1009
        %vm1266 = vmor %vm722, %vm1010
        %vm1267 = vmor %vm723, %vm1011
        %vm1268 = vmor %vm724, %vm1012
        %vm1269 = vmor %vm725, %vm1013
        %vm1270 = vmor %vm726, %vm1014
        %vm1271 = vmor %vm727, %vm1015
        %vm1272 = vmor %vm728, %vm1016
        %vm1273 = vmor %vm729, %vm1017
        %vm1274 = vmor %vm730, %vm1018
        %vm1275 = vmor %vm731, %vm1019
        %vm1276 = vmor %vm732, %vm1020
        %vm1277 = vmor %vm733, %vm1021
        %vm1278 = vmor %vm734, %vm1022
        %vm1279 = vmor %vm735, %vm1023
        %vm1280 = vmor %vm736, %vm1024
        %vm1281 = vmor %vm737, %vm1025
        %vm1282 = vmor %vm738, %vm1026
        %vm1283 = vmor %vm739, %vm1027
        %vm1284 = vmor %vm740, %vm1028
        %vm1285 = vmor %vm741, %vm1029
        %vm1286 = vmor %vm742, %vm1030
        %vm1287 = vmor %vm743, %vm1031
        %vm1288 = vmor %vm744, %vm1032
        %vm1289 = vmor %vm745, %vm1033
        %vm1290 = vmor %vm746, %vm1034
        %vm1291 = vmor %vm747, %vm1035
        %vm1292 = vmor %vm748, %vm1036
        %vm1293 = vmor %vm749, %vm1037
        %vm1294 = vmor %vm750, %vm1038
        %vm1295 = vmor %vm751, %vm1039
        %vm1296 = vmor %vm752, %vm1040
        %vm1297 = vmor %vm753, %vm1041
        %vm1298 = vmor %vm754, %vm1042
        %vm1299 = vmor %vm755, %vm1043
        %vm1300 = vmor %vm756, %vm1044
        %vm1301 = vmor %vm757, %vm1045
        %vm1302 = vmor %vm758, %vm1046
        %vm1303 = vmor %vm759, %vm1047
        %vm1304 = vmor %vm760, %vm1048
        %vm1305 = vmor %vm761, %vm1049
        %vm1306 = vmor %vm762, %vm1050
        %vm1307 = vmor %vm763, %vm1051
        %vm1308 = vmor %vm764, %vm1052
        %vm1309 = vmor %vm765, %vm1053
        %vm1310 = vmor %vm766, %vm1054
        %vm1311 = vmor %vm767, %vm1055
        %vm1312 = vmor %vm768, %vm1056
        %vm1313 = vmor %vm769, %vm1057
        %vm1314 = vmor %vm770, %vm1058
        %vm1315 = vmor %vm771, %vm1059
        %vm1316 = vmor %vm772, %vm1060
        %vm1317 = vmor %vm773, %vm1061
        %vm1318 = vmor %vm774, %vm1062
        %vm1319 = vmor %vm775, %vm1063
        %vm1320 = vmor %vm776, %vm1064
        %vm1321 = vmor %vm777, %vm1065
        %vm1322 = vmor %vm778, %vm1066
        %vm1323 = vmor %vm779, %vm1067
        %vm1324 = vmor %vm780, %vm1068
        %vm1325 = vmor %vm781, %vm1069
        %vm1326 = vmor %vm782, %vm1070
        %vm1327 = vmor %vm783, %vm1071
        %vm1328 = vmor %vm784, %vm1072
        %vm1329 = vmor %vm785, %vm1073
        %vm1330 = vmor %vm786, %vm1074
        %vm1331 = vmor %vm787, %vm1075
        %vm1332 = vmor %vm788, %vm1076
        %vm1333 = vmor %vm789, %vm1077
        %vm1334 = vmor %vm790, %vm1078
        %vm1335 = vmor %vm791, %vm1079
        %vm1336 = vmor %vm792, %vm1080
        %vm1337 = vmor %vm793, %vm1081
        %vm1338 = vmor %vm794, %vm1082
        %vm1339 = vmor %vm795, %vm1083
        %vm1340 = vmor %vm796, %vm1084
        %vm1341 = vmor %vm797, %vm1085
        %vm1342 = vmor %vm798, %vm1086
        %vm1343 = vmor %vm799, %vm1087
        %vm1344 = vmor %vm800, %vm1088
        %vm1345 = vmor %vm801, %vm1089
        %v1346 = vsel %vm1090, 1, 0
        %v1347 = vsel %vm1091, 1, 0
        %v1348 = vsel %vm1092, 1, 0
        %v1349 = vsel %vm1093, 1, 0
        %v1350 = vsel %vm1094, 1, 0
        %v1351 = vsel %vm1095, 1, 0
        %v1352 = vsel %vm1096, 1, 0
        %v1353 = vsel %vm1097, 1, 0
        %v1354 = vsel %vm1098, 1, 0
        %v1355 = vsel %vm1099, 1, 0
        %v1356 = vsel %vm1100, 1, 0
        %v1357 = vsel %vm1101, 1, 0
        %v1358 = vsel %vm1102, 1, 0
        %v1359 = vsel %vm1103, 1, 0
        %v1360 = vsel %vm1104, 1, 0
        %v1361 = vsel %vm1105, 1, 0
        %v1362 = vsel %vm1106, 1, 0
        %v1363 = vsel %vm1107, 1, 0
        %v1364 = vsel %vm1108, 1, 0
        %v1365 = vsel %vm1109, 1, 0
        %v1366 = vsel %vm1110, 1, 0
        %v1367 = vsel %vm1111, 1, 0
        %v1368 = vsel %vm1112, 1, 0
        %v1369 = vsel %vm1113, 1, 0
        %v1370 = vsel %vm1114, 1, 0
        %v1371 = vsel %vm1115, 1, 0
        %v1372 = vsel %vm1116, 1, 0
        %v1373 = vsel %vm1117, 1, 0
        %v1374 = vsel %vm1118, 1, 0
        %v1375 = vsel %vm1119, 1, 0
        %v1376 = vsel %vm1120, 1, 0
        %v1377 = vsel %vm1121, 1, 0
        %v1378 = vsel %vm1122, 1, 0
        %v1379 = vsel %vm1123, 1, 0
        %v1380 = vsel %vm1124, 1, 0
        %v1381 = vsel %vm1125, 1, 0
        %v1382 = vsel %vm1126, 1, 0
        %v1383 = vsel %vm1127, 1, 0
        %v1384 = vsel %vm1128, 1, 0
        %v1385 = vsel %vm1129, 1, 0
        %v1386 = vsel %vm1130, 1, 0
        %v1387 = vsel %vm1131, 1, 0
        %v1388 = vsel %vm1132, 1, 0
        %v1389 = vsel %vm1133, 1, 0
        %v1390 = vsel %vm1134, 1, 0
        %v1391 = vsel %vm1135, 1, 0
        %v1392 = vsel %vm1136, 1, 0
        %v1393 = vsel %vm1137, 1, 0
        %v1394 = vsel %vm1138, 1, 0
        %v1395 = vsel %vm1139, 1, 0
        %v1396 = vsel %vm1140, 1, 0
        %v1397 = vsel %vm1141, 1, 0
        %v1398 = vsel %vm1142, 1, 0
        %v1399 = vsel %vm1143, 1, 0
        %v1400 = vsel %vm1144, 1, 0
        %v1401 = vsel %vm1145, 1, 0
        %v1402 = vsel %vm1146, 1, 0
        %v1403 = vsel %vm1147, 1, 0
        %v1404 = vsel %vm1148, 1, 0
        %v1405 = vsel %vm1149, 1, 0
        %v1406 = vsel %vm1150, 1, 0
        %v1407 = vsel %vm1151, 1, 0
        %v1408 = vsel %vm1152, 1, 0
        %v1409 = vsel %vm1153, 1, 0
        %v1410 = vsel %vm1154, 1, 0
        %v1411 = vsel %vm1155, 1, 0
        %v1412 = vsel %vm1156, 1, 0
        %v1413 = vsel %vm1157, 1, 0
        %v1414 = vsel %vm1158, 1, 0
        %v1415 = vsel %vm1159, 1, 0
        %v1416 = vsel %vm1160, 1, 0
        %v1417 = vsel %vm1161, 1, 0
        %v1418 = vsel %vm1162, 1, 0
        %v1419 = vsel %vm1163, 1, 0
        %v1420 = vsel %vm1164, 1, 0
        %v1421 = vsel %vm1165, 1, 0
        %v1422 = vsel %vm1166, 1, 0
        %v1423 = vsel %vm1167, 1, 0
        %v1424 = vsel %vm1168, 1, 0
        %v1425 = vsel %vm1169, 1, 0
        %v1426 = vsel %vm1170, 1, 0
        %v1427 = vsel %vm1171, 1, 0
        %v1428 = vsel %vm1172, 1, 0
        %v1429 = vsel %vm1173, 1, 0
        %v1430 = vsel %vm1174, 1, 0
        %v1431 = vsel %vm1175, 1, 0
        %v1432 = vsel %vm1176, 1, 0
        %v1433 = vsel %vm1177, 1, 0
        %v1434 = vsel %vm1178, 1, 0
        %v1435 = vsel %vm1179, 1, 0
        %v1436 = vsel %vm1180, 1, 0
        %v1437 = vsel %vm1181, 1, 0
        %v1438 = vsel %vm1182, 1, 0
        %v1439 = vsel %vm1183, 1, 0
        %v1440 = vsel %vm1184, 1, 0
        %v1441 = vsel %vm1185, 1, 0
        %v1442 = vsel %vm1186, 1, 0
        %v1443 = vsel %vm1187, 1, 0
        %v1444 = vsel %vm1188, 1, 0
        %v1445 = vsel %vm1189, 1, 0
        %v1446 = vsel %vm1190, 1, 0
        %v1447 = vsel %vm1191, 1, 0
        %v1448 = vsel %vm1192, 1, 0
        %v1449 = vsel %vm1193, 1, 0
        %v1450 = vsel %vm1194, 1, 0
        %v1451 = vsel %vm1195, 1, 0
        %v1452 = vsel %vm1196, 1, 0
        %v1453 = vsel %vm1197, 1, 0
        %v1454 = vsel %vm1198, 1, 0
        %v1455 = vsel %vm1199, 1, 0
        %v1456 = vsel %vm1200, 1, 0
        %v1457 = vsel %vm1201, 1, 0
        %v1458 = vsel %vm1202, 1, 0
        %v1459 = vsel %vm1203, 1, 0
        %v1460 = vsel %vm1204, 1, 0
        %v1461 = vsel %vm1205, 1, 0
        %v1462 = vsel %vm1206, 1, 0
        %v1463 = vsel %vm1207, 1, 0
        %v1464 = vsel %vm1208, 1, 0
        %v1465 = vsel %vm1209, 1, 0
        %v1466 = vsel %vm1210, 1, 0
        %v1467 = vsel %vm1211, 1, 0
        %v1468 = vsel %vm1212, 1, 0
        %v1469 = vsel %vm1213, 1, 0
        %v1470 = vsel %vm1214, 1, 0
        %v1471 = vsel %vm1215, 1, 0
        %v1472 = vsel %vm1216, 1, 0
        %v1473 = vsel %vm1217, 1, 0
        %v1474 = vsel %vm1218, 1, 0
        %v1475 = vsel %vm1219, 1, 0
        %v1476 = vsel %vm1220, 1, 0
        %v1477 = vsel %vm1221, 1, 0
        %v1478 = vsel %vm1222, 1, 0
        %v1479 = vsel %vm1223, 1, 0
        %v1480 = vsel %vm1224, 1, 0
        %v1481 = vsel %vm1225, 1, 0
        %v1482 = vsel %vm1226, 1, 0
        %v1483 = vsel %vm1227, 1, 0
        %v1484 = vsel %vm1228, 1, 0
        %v1485 = vsel %vm1229, 1, 0
        %v1486 = vsel %vm1230, 1, 0
        %v1487 = vsel %vm1231, 1, 0
        %v1488 = vsel %vm1232, 1, 0
        %v1489 = vsel %vm1233, 1, 0
        %v1490 = vsel %vm1234, 1, 0
        %v1491 = vsel %vm1235, 1, 0
        %v1492 = vsel %vm1236, 1, 0
        %v1493 = vsel %vm1237, 1, 0
        %v1494 = vsel %vm1238, 1, 0
        %v1495 = vsel %vm1239, 1, 0
        %v1496 = vsel %vm1240, 1, 0
        %v1497 = vsel %vm1241, 1, 0
        %v1498 = vsel %vm1242, 1, 0
        %v1499 = vsel %vm1243, 1, 0
        %v1500 = vsel %vm1244, 1, 0
        %v1501 = vsel %vm1245, 1, 0
        %v1502 = vsel %vm1246, 1, 0
        %v1503 = vsel %vm1247, 1, 0
        %v1504 = vsel %vm1248, 1, 0
        %v1505 = vsel %vm1249, 1, 0
        %v1506 = vsel %vm1250, 1, 0
        %v1507 = vsel %vm1251, 1, 0
        %v1508 = vsel %vm1252, 1, 0
        %v1509 = vsel %vm1253, 1, 0
        %v1510 = vsel %vm1254, 1, 0
        %v1511 = vsel %vm1255, 1, 0
        %v1512 = vsel %vm1256, 1, 0
        %v1513 = vsel %vm1257, 1, 0
        %v1514 = vsel %vm1258, 1, 0
        %v1515 = vsel %vm1259, 1, 0
        %v1516 = vsel %vm1260, 1, 0
        %v1517 = vsel %vm1261, 1, 0
        %v1518 = vsel %vm1262, 1, 0
        %v1519 = vsel %vm1263, 1, 0
        %v1520 = vsel %vm1264, 1, 0
        %v1521 = vsel %vm1265, 1, 0
        %v1522 = vsel %vm1266, 1, 0
        %v1523 = vsel %vm1267, 1, 0
        %v1524 = vsel %vm1268, 1, 0
        %v1525 = vsel %vm1269, 1, 0
        %v1526 = vsel %vm1270, 1, 0
        %v1527 = vsel %vm1271, 1, 0
        %v1528 = vsel %vm1272, 1, 0
        %v1529 = vsel %vm1273, 1, 0
        %v1530 = vsel %vm1274, 1, 0
        %v1531 = vsel %vm1275, 1, 0
        %v1532 = vsel %vm1276, 1, 0
        %v1533 = vsel %vm1277, 1, 0
        %v1534 = vsel %vm1278, 1, 0
        %v1535 = vsel %vm1279, 1, 0
        %v1536 = vsel %vm1280, 1, 0
        %v1537 = vsel %vm1281, 1, 0
        %v1538 = vsel %vm1282, 1, 0
        %v1539 = vsel %vm1283, 1, 0
        %v1540 = vsel %vm1284, 1, 0
        %v1541 = vsel %vm1285, 1, 0
        %v1542 = vsel %vm1286, 1, 0
        %v1543 = vsel %vm1287, 1, 0
        %v1544 = vsel %vm1288, 1, 0
        %v1545 = vsel %vm1289, 1, 0
        %v1546 = vsel %vm1290, 1, 0
        %v1547 = vsel %vm1291, 1, 0
        %v1548 = vsel %vm1292, 1, 0
        %v1549 = vsel %vm1293, 1, 0
        %v1550 = vsel %vm1294, 1, 0
        %v1551 = vsel %vm1295, 1, 0
        %v1552 = vsel %vm1296, 1, 0
        %v1553 = vsel %vm1297, 1, 0
        %v1554 = vsel %vm1298, 1, 0
        %v1555 = vsel %vm1299, 1, 0
        %v1556 = vsel %vm1300, 1, 0
        %v1557 = vsel %vm1301, 1, 0
        %v1558 = vsel %vm1302, 1, 0
        %v1559 = vsel %vm1303, 1, 0
        %v1560 = vsel %vm1304, 1, 0
        %v1561 = vsel %vm1305, 1, 0
        %v1562 = vsel %vm1306, 1, 0
        %v1563 = vsel %vm1307, 1, 0
        %v1564 = vsel %vm1308, 1, 0
        %v1565 = vsel %vm1309, 1, 0
        %v1566 = vsel %vm1310, 1, 0
        %v1567 = vsel %vm1311, 1, 0
        %v1568 = vsel %vm1312, 1, 0
        %v1569 = vsel %vm1313, 1, 0
        %v1570 = vsel %vm1314, 1, 0
        %v1571 = vsel %vm1315, 1, 0
        %v1572 = vsel %vm1316, 1, 0
        %v1573 = vsel %vm1317, 1, 0
        %v1574 = vsel %vm1318, 1, 0
        %v1575 = vsel %vm1319, 1, 0
        %v1576 = vsel %vm1320, 1, 0
        %v1577 = vsel %vm1321, 1, 0
        %v1578 = vsel %vm1322, 1, 0
        %v1579 = vsel %vm1323, 1, 0
        %v1580 = vsel %vm1324, 1, 0
        %v1581 = vsel %vm1325, 1, 0
        %v1582 = vsel %vm1326, 1, 0
        %v1583 = vsel %vm1327, 1, 0
        %v1584 = vsel %vm1328, 1, 0
        %v1585 = vsel %vm1329, 1, 0
        %v1586 = vsel %vm1330, 1, 0
        %v1587 = vsel %vm1331, 1, 0
        %v1588 = vsel %vm1332, 1, 0
        %v1589 = vsel %vm1333, 1, 0
        %v1590 = vsel %vm1334, 1, 0
        %v1591 = vsel %vm1335, 1, 0
        %v1592 = vsel %vm1336, 1, 0
        %v1593 = vsel %vm1337, 1, 0
        %v1594 = vsel %vm1338, 1, 0
        %v1595 = vsel %vm1339, 1, 0
        %v1596 = vsel %vm1340, 1, 0
        %v1597 = vsel %vm1341, 1, 0
        %v1598 = vsel %vm1342, 1, 0
        %v1599 = vsel %vm1343, 1, 0
        %v1600 = vsel %vm1344, 1, 0
        %v1601 = vsel %vm1345, 1, 0
        %v1602 = vcvt.s32.f32 %v1346
        %v1603 = vcvt.s32.f32 %v1347
        %v1604 = vcvt.s32.f32 %v1348
        %v1605 = vcvt.s32.f32 %v1349
        %v1606 = vcvt.s32.f32 %v1350
        %v1607 = vcvt.s32.f32 %v1351
        %v1608 = vcvt.s32.f32 %v1352
        %v1609 = vcvt.s32.f32 %v1353
        %v1610 = vcvt.s32.f32 %v1354
        %v1611 = vcvt.s32.f32 %v1355
        %v1612 = vcvt.s32.f32 %v1356
        %v1613 = vcvt.s32.f32 %v1357
        %v1614 = vcvt.s32.f32 %v1358
        %v1615 = vcvt.s32.f32 %v1359
        %v1616 = vcvt.s32.f32 %v1360
        %v1617 = vcvt.s32.f32 %v1361
        %v1618 = vcvt.s32.f32 %v1362
        %v1619 = vcvt.s32.f32 %v1363
        %v1620 = vcvt.s32.f32 %v1364
        %v1621 = vcvt.s32.f32 %v1365
        %v1622 = vcvt.s32.f32 %v1366
        %v1623 = vcvt.s32.f32 %v1367
        %v1624 = vcvt.s32.f32 %v1368
        %v1625 = vcvt.s32.f32 %v1369
        %v1626 = vcvt.s32.f32 %v1370
        %v1627 = vcvt.s32.f32 %v1371
        %v1628 = vcvt.s32.f32 %v1372
        %v1629 = vcvt.s32.f32 %v1373
        %v1630 = vcvt.s32.f32 %v1374
        %v1631 = vcvt.s32.f32 %v1375
        %v1632 = vcvt.s32.f32 %v1376
        %v1633 = vcvt.s32.f32 %v1377
        %v1634 = vcvt.s32.f32 %v1378
        %v1635 = vcvt.s32.f32 %v1379
        %v1636 = vcvt.s32.f32 %v1380
        %v1637 = vcvt.s32.f32 %v1381
        %v1638 = vcvt.s32.f32 %v1382
        %v1639 = vcvt.s32.f32 %v1383
        %v1640 = vcvt.s32.f32 %v1384
        %v1641 = vcvt.s32.f32 %v1385
        %v1642 = vcvt.s32.f32 %v1386
        %v1643 = vcvt.s32.f32 %v1387
        %v1644 = vcvt.s32.f32 %v1388
        %v1645 = vcvt.s32.f32 %v1389
        %v1646 = vcvt.s32.f32 %v1390
        %v1647 = vcvt.s32.f32 %v1391
        %v1648 = vcvt.s32.f32 %v1392
        %v1649 = vcvt.s32.f32 %v1393
        %v1650 = vcvt.s32.f32 %v1394
        %v1651 = vcvt.s32.f32 %v1395
        %v1652 = vcvt.s32.f32 %v1396
        %v1653 = vcvt.s32.f32 %v1397
        %v1654 = vcvt.s32.f32 %v1398
        %v1655 = vcvt.s32.f32 %v1399
        %v1656 = vcvt.s32.f32 %v1400
        %v1657 = vcvt.s32.f32 %v1401
        %v1658 = vcvt.s32.f32 %v1402
        %v1659 = vcvt.s32.f32 %v1403
        %v1660 = vcvt.s32.f32 %v1404
        %v1661 = vcvt.s32.f32 %v1405
        %v1662 = vcvt.s32.f32 %v1406
        %v1663 = vcvt.s32.f32 %v1407
        %v1664 = vcvt.s32.f32 %v1408
        %v1665 = vcvt.s32.f32 %v1409
        %v1666 = vcvt.s32.f32 %v1410
        %v1667 = vcvt.s32.f32 %v1411
        %v1668 = vcvt.s32.f32 %v1412
        %v1669 = vcvt.s32.f32 %v1413
        %v1670 = vcvt.s32.f32 %v1414
        %v1671 = vcvt.s32.f32 %v1415
        %v1672 = vcvt.s32.f32 %v1416
        %v1673 = vcvt.s32.f32 %v1417
        %v1674 = vcvt.s32.f32 %v1418
        %v1675 = vcvt.s32.f32 %v1419
        %v1676 = vcvt.s32.f32 %v1420
        %v1677 = vcvt.s32.f32 %v1421
        %v1678 = vcvt.s32.f32 %v1422
        %v1679 = vcvt.s32.f32 %v1423
        %v1680 = vcvt.s32.f32 %v1424
        %v1681 = vcvt.s32.f32 %v1425
        %v1682 = vcvt.s32.f32 %v1426
        %v1683 = vcvt.s32.f32 %v1427
        %v1684 = vcvt.s32.f32 %v1428
        %v1685 = vcvt.s32.f32 %v1429
        %v1686 = vcvt.s32.f32 %v1430
        %v1687 = vcvt.s32.f32 %v1431
        %v1688 = vcvt.s32.f32 %v1432
        %v1689 = vcvt.s32.f32 %v1433
        %v1690 = vcvt.s32.f32 %v1434
        %v1691 = vcvt.s32.f32 %v1435
        %v1692 = vcvt.s32.f32 %v1436
        %v1693 = vcvt.s32.f32 %v1437
        %v1694 = vcvt.s32.f32 %v1438
        %v1695 = vcvt.s32.f32 %v1439
        %v1696 = vcvt.s32.f32 %v1440
        %v1697 = vcvt.s32.f32 %v1441
        %v1698 = vcvt.s32.f32 %v1442
        %v1699 = vcvt.s32.f32 %v1443
        %v1700 = vcvt.s32.f32 %v1444
        %v1701 = vcvt.s32.f32 %v1445
        %v1702 = vcvt.s32.f32 %v1446
        %v1703 = vcvt.s32.f32 %v1447
        %v1704 = vcvt.s32.f32 %v1448
        %v1705 = vcvt.s32.f32 %v1449
        %v1706 = vcvt.s32.f32 %v1450
        %v1707 = vcvt.s32.f32 %v1451
        %v1708 = vcvt.s32.f32 %v1452
        %v1709 = vcvt.s32.f32 %v1453
        %v1710 = vcvt.s32.f32 %v1454
        %v1711 = vcvt.s32.f32 %v1455
        %v1712 = vcvt.s32.f32 %v1456
        %v1713 = vcvt.s32.f32 %v1457
        %v1714 = vcvt.s32.f32 %v1458
        %v1715 = vcvt.s32.f32 %v1459
        %v1716 = vcvt.s32.f32 %v1460
        %v1717 = vcvt.s32.f32 %v1461
        %v1718 = vcvt.s32.f32 %v1462
        %v1719 = vcvt.s32.f32 %v1463
        %v1720 = vcvt.s32.f32 %v1464
        %v1721 = vcvt.s32.f32 %v1465
        %v1722 = vcvt.s32.f32 %v1466
        %v1723 = vcvt.s32.f32 %v1467
        %v1724 = vcvt.s32.f32 %v1468
        %v1725 = vcvt.s32.f32 %v1469
        %v1726 = vcvt.s32.f32 %v1470
        %v1727 = vcvt.s32.f32 %v1471
        %v1728 = vcvt.s32.f32 %v1472
        %v1729 = vcvt.s32.f32 %v1473
        %v1730 = vcvt.s32.f32 %v1474
        %v1731 = vcvt.s32.f32 %v1475
        %v1732 = vcvt.s32.f32 %v1476
        %v1733 = vcvt.s32.f32 %v1477
        %v1734 = vcvt.s32.f32 %v1478
        %v1735 = vcvt.s32.f32 %v1479
        %v1736 = vcvt.s32.f32 %v1480
        %v1737 = vcvt.s32.f32 %v1481
        %v1738 = vcvt.s32.f32 %v1482
        %v1739 = vcvt.s32.f32 %v1483
        %v1740 = vcvt.s32.f32 %v1484
        %v1741 = vcvt.s32.f32 %v1485
        %v1742 = vcvt.s32.f32 %v1486
        %v1743 = vcvt.s32.f32 %v1487
        %v1744 = vcvt.s32.f32 %v1488
        %v1745 = vcvt.s32.f32 %v1489
        %v1746 = vcvt.s32.f32 %v1490
        %v1747 = vcvt.s32.f32 %v1491
        %v1748 = vcvt.s32.f32 %v1492
        %v1749 = vcvt.s32.f32 %v1493
        %v1750 = vcvt.s32.f32 %v1494
        %v1751 = vcvt.s32.f32 %v1495
        %v1752 = vcvt.s32.f32 %v1496
        %v1753 = vcvt.s32.f32 %v1497
        %v1754 = vcvt.s32.f32 %v1498
        %v1755 = vcvt.s32.f32 %v1499
        %v1756 = vcvt.s32.f32 %v1500
        %v1757 = vcvt.s32.f32 %v1501
        %v1758 = vcvt.s32.f32 %v1502
        %v1759 = vcvt.s32.f32 %v1503
        %v1760 = vcvt.s32.f32 %v1504
        %v1761 = vcvt.s32.f32 %v1505
        %v1762 = vcvt.s32.f32 %v1506
        %v1763 = vcvt.s32.f32 %v1507
        %v1764 = vcvt.s32.f32 %v1508
        %v1765 = vcvt.s32.f32 %v1509
        %v1766 = vcvt.s32.f32 %v1510
        %v1767 = vcvt.s32.f32 %v1511
        %v1768 = vcvt.s32.f32 %v1512
        %v1769 = vcvt.s32.f32 %v1513
        %v1770 = vcvt.s32.f32 %v1514
        %v1771 = vcvt.s32.f32 %v1515
        %v1772 = vcvt.s32.f32 %v1516
        %v1773 = vcvt.s32.f32 %v1517
        %v1774 = vcvt.s32.f32 %v1518
        %v1775 = vcvt.s32.f32 %v1519
        %v1776 = vcvt.s32.f32 %v1520
        %v1777 = vcvt.s32.f32 %v1521
        %v1778 = vcvt.s32.f32 %v1522
        %v1779 = vcvt.s32.f32 %v1523
        %v1780 = vcvt.s32.f32 %v1524
        %v1781 = vcvt.s32.f32 %v1525
        %v1782 = vcvt.s32.f32 %v1526
        %v1783 = vcvt.s32.f32 %v1527
        %v1784 = vcvt.s32.f32 %v1528
        %v1785 = vcvt.s32.f32 %v1529
        %v1786 = vcvt.s32.f32 %v1530
        %v1787 = vcvt.s32.f32 %v1531
        %v1788 = vcvt.s32.f32 %v1532
        %v1789 = vcvt.s32.f32 %v1533
        %v1790 = vcvt.s32.f32 %v1534
        %v1791 = vcvt.s32.f32 %v1535
        %v1792 = vcvt.s32.f32 %v1536
        %v1793 = vcvt.s32.f32 %v1537
        %v1794 = vcvt.s32.f32 %v1538
        %v1795 = vcvt.s32.f32 %v1539
        %v1796 = vcvt.s32.f32 %v1540
        %v1797 = vcvt.s32.f32 %v1541
        %v1798 = vcvt.s32.f32 %v1542
        %v1799 = vcvt.s32.f32 %v1543
        %v1800 = vcvt.s32.f32 %v1544
        %v1801 = vcvt.s32.f32 %v1545
        %v1802 = vcvt.s32.f32 %v1546
        %v1803 = vcvt.s32.f32 %v1547
        %v1804 = vcvt.s32.f32 %v1548
        %v1805 = vcvt.s32.f32 %v1549
        %v1806 = vcvt.s32.f32 %v1550
        %v1807 = vcvt.s32.f32 %v1551
        %v1808 = vcvt.s32.f32 %v1552
        %v1809 = vcvt.s32.f32 %v1553
        %v1810 = vcvt.s32.f32 %v1554
        %v1811 = vcvt.s32.f32 %v1555
        %v1812 = vcvt.s32.f32 %v1556
        %v1813 = vcvt.s32.f32 %v1557
        %v1814 = vcvt.s32.f32 %v1558
        %v1815 = vcvt.s32.f32 %v1559
        %v1816 = vcvt.s32.f32 %v1560
        %v1817 = vcvt.s32.f32 %v1561
        %v1818 = vcvt.s32.f32 %v1562
        %v1819 = vcvt.s32.f32 %v1563
        %v1820 = vcvt.s32.f32 %v1564
        %v1821 = vcvt.s32.f32 %v1565
        %v1822 = vcvt.s32.f32 %v1566
        %v1823 = vcvt.s32.f32 %v1567
        %v1824 = vcvt.s32.f32 %v1568
        %v1825 = vcvt.s32.f32 %v1569
        %v1826 = vcvt.s32.f32 %v1570
        %v1827 = vcvt.s32.f32 %v1571
        %v1828 = vcvt.s32.f32 %v1572
        %v1829 = vcvt.s32.f32 %v1573
        %v1830 = vcvt.s32.f32 %v1574
        %v1831 = vcvt.s32.f32 %v1575
        %v1832 = vcvt.s32.f32 %v1576
        %v1833 = vcvt.s32.f32 %v1577
        %v1834 = vcvt.s32.f32 %v1578
        %v1835 = vcvt.s32.f32 %v1579
        %v1836 = vcvt.s32.f32 %v1580
        %v1837 = vcvt.s32.f32 %v1581
        %v1838 = vcvt.s32.f32 %v1582
        %v1839 = vcvt.s32.f32 %v1583
        %v1840 = vcvt.s32.f32 %v1584
        %v1841 = vcvt.s32.f32 %v1585
        %v1842 = vcvt.s32.f32 %v1586
        %v1843 = vcvt.s32.f32 %v1587
        %v1844 = vcvt.s32.f32 %v1588
        %v1845 = vcvt.s32.f32 %v1589
        %v1846 = vcvt.s32.f32 %v1590
        %v1847 = vcvt.s32.f32 %v1591
        %v1848 = vcvt.s32.f32 %v1592
        %v1849 = vcvt.s32.f32 %v1593
        %v1850 = vcvt.s32.f32 %v1594
        %v1851 = vcvt.s32.f32 %v1595
        %v1852 = vcvt.s32.f32 %v1596
        %v1853 = vcvt.s32.f32 %v1597
        %v1854 = vcvt.s32.f32 %v1598
        %v1855 = vcvt.s32.f32 %v1599
        %v1856 = vcvt.s32.f32 %v1600
        %v1857 = vcvt.s32.f32 %v1601
        %v1858 = vpack.c.bf16 %v1618, %v1602
        %v1859 = vpack.c.bf16 %v1619, %v1603
        %v1860 = vpack.c.bf16 %v1620, %v1604
        %v1861 = vpack.c.bf16 %v1621, %v1605
        %v1862 = vpack.c.bf16 %v1622, %v1606
        %v1863 = vpack.c.bf16 %v1623, %v1607
        %v1864 = vpack.c.bf16 %v1624, %v1608
        %v1865 = vpack.c.bf16 %v1625, %v1609
        %v1866 = vpack.c.bf16 %v1626, %v1610
        %v1867 = vpack.c.bf16 %v1627, %v1611
        %v1868 = vpack.c.bf16 %v1628, %v1612
        %v1869 = vpack.c.bf16 %v1629, %v1613
        %v1870 = vpack.c.bf16 %v1630, %v1614
        %v1871 = vpack.c.bf16 %v1631, %v1615
        %v1872 = vpack.c.bf16 %v1632, %v1616
        %v1873 = vpack.c.bf16 %v1633, %v1617
        %v1874 = vpack.c.bf16 %v1650, %v1634
        %v1875 = vpack.c.bf16 %v1651, %v1635
        %v1876 = vpack.c.bf16 %v1652, %v1636
        %v1877 = vpack.c.bf16 %v1653, %v1637
        %v1878 = vpack.c.bf16 %v1654, %v1638
        %v1879 = vpack.c.bf16 %v1655, %v1639
        %v1880 = vpack.c.bf16 %v1656, %v1640
        %v1881 = vpack.c.bf16 %v1657, %v1641
        %v1882 = vpack.c.bf16 %v1658, %v1642
        %v1883 = vpack.c.bf16 %v1659, %v1643
        %v1884 = vpack.c.bf16 %v1660, %v1644
        %v1885 = vpack.c.bf16 %v1661, %v1645
        %v1886 = vpack.c.bf16 %v1662, %v1646
        %v1887 = vpack.c.bf16 %v1663, %v1647
        %v1888 = vpack.c.bf16 %v1664, %v1648
        %v1889 = vpack.c.bf16 %v1665, %v1649
        %v1890 = vpack.c.bf16 %v1682, %v1666
        %v1891 = vpack.c.bf16 %v1683, %v1667
        %v1892 = vpack.c.bf16 %v1684, %v1668
        %v1893 = vpack.c.bf16 %v1685, %v1669
        %v1894 = vpack.c.bf16 %v1686, %v1670
        %v1895 = vpack.c.bf16 %v1687, %v1671
        %v1896 = vpack.c.bf16 %v1688, %v1672
        %v1897 = vpack.c.bf16 %v1689, %v1673
        %v1898 = vpack.c.bf16 %v1690, %v1674
        %v1899 = vpack.c.bf16 %v1691, %v1675
        %v1900 = vpack.c.bf16 %v1692, %v1676
        %v1901 = vpack.c.bf16 %v1693, %v1677
        %v1902 = vpack.c.bf16 %v1694, %v1678
        %v1903 = vpack.c.bf16 %v1695, %v1679
        %v1904 = vpack.c.bf16 %v1696, %v1680
        %v1905 = vpack.c.bf16 %v1697, %v1681
        %v1906 = vpack.c.bf16 %v1714, %v1698
        %v1907 = vpack.c.bf16 %v1715, %v1699
        %v1908 = vpack.c.bf16 %v1716, %v1700
        %v1909 = vpack.c.bf16 %v1717, %v1701
        %v1910 = vpack.c.bf16 %v1718, %v1702
        %v1911 = vpack.c.bf16 %v1719, %v1703
        %v1912 = vpack.c.bf16 %v1720, %v1704
        %v1913 = vpack.c.bf16 %v1721, %v1705
        %v1914 = vpack.c.bf16 %v1722, %v1706
        %v1915 = vpack.c.bf16 %v1723, %v1707
        %v1916 = vpack.c.bf16 %v1724, %v1708
        %v1917 = vpack.c.bf16 %v1725, %v1709
        %v1918 = vpack.c.bf16 %v1726, %v1710
        %v1919 = vpack.c.bf16 %v1727, %v1711
        %v1920 = vpack.c.bf16 %v1728, %v1712
        %v1921 = vpack.c.bf16 %v1729, %v1713
        %v1922 = vpack.c.bf16 %v1746, %v1730
        %v1923 = vpack.c.bf16 %v1747, %v1731
        %v1924 = vpack.c.bf16 %v1748, %v1732
        %v1925 = vpack.c.bf16 %v1749, %v1733
        %v1926 = vpack.c.bf16 %v1750, %v1734
        %v1927 = vpack.c.bf16 %v1751, %v1735
        %v1928 = vpack.c.bf16 %v1752, %v1736
        %v1929 = vpack.c.bf16 %v1753, %v1737
        %v1930 = vpack.c.bf16 %v1754, %v1738
        %v1931 = vpack.c.bf16 %v1755, %v1739
        %v1932 = vpack.c.bf16 %v1756, %v1740
        %v1933 = vpack.c.bf16 %v1757, %v1741
        %v1934 = vpack.c.bf16 %v1758, %v1742
        %v1935 = vpack.c.bf16 %v1759, %v1743
        %v1936 = vpack.c.bf16 %v1760, %v1744
        %v1937 = vpack.c.bf16 %v1761, %v1745
        %v1938 = vpack.c.bf16 %v1778, %v1762
        %v1939 = vpack.c.bf16 %v1779, %v1763
        %v1940 = vpack.c.bf16 %v1780, %v1764
        %v1941 = vpack.c.bf16 %v1781, %v1765
        %v1942 = vpack.c.bf16 %v1782, %v1766
        %v1943 = vpack.c.bf16 %v1783, %v1767
        %v1944 = vpack.c.bf16 %v1784, %v1768
        %v1945 = vpack.c.bf16 %v1785, %v1769
        %v1946 = vpack.c.bf16 %v1786, %v1770
        %v1947 = vpack.c.bf16 %v1787, %v1771
        %v1948 = vpack.c.bf16 %v1788, %v1772
        %v1949 = vpack.c.bf16 %v1789, %v1773
        %v1950 = vpack.c.bf16 %v1790, %v1774
        %v1951 = vpack.c.bf16 %v1791, %v1775
        %v1952 = vpack.c.bf16 %v1792, %v1776
        %v1953 = vpack.c.bf16 %v1793, %v1777
        %v1954 = vpack.c.bf16 %v1810, %v1794
        %v1955 = vpack.c.bf16 %v1811, %v1795
        %v1956 = vpack.c.bf16 %v1812, %v1796
        %v1957 = vpack.c.bf16 %v1813, %v1797
        %v1958 = vpack.c.bf16 %v1814, %v1798
        %v1959 = vpack.c.bf16 %v1815, %v1799
        %v1960 = vpack.c.bf16 %v1816, %v1800
        %v1961 = vpack.c.bf16 %v1817, %v1801
        %v1962 = vpack.c.bf16 %v1818, %v1802
        %v1963 = vpack.c.bf16 %v1819, %v1803
        %v1964 = vpack.c.bf16 %v1820, %v1804
        %v1965 = vpack.c.bf16 %v1821, %v1805
        %v1966 = vpack.c.bf16 %v1822, %v1806
        %v1967 = vpack.c.bf16 %v1823, %v1807
        %v1968 = vpack.c.bf16 %v1824, %v1808
        %v1969 = vpack.c.bf16 %v1825, %v1809
        %v1970 = vpack.c.bf16 %v1842, %v1826
        %v1971 = vpack.c.bf16 %v1843, %v1827
        %v1972 = vpack.c.bf16 %v1844, %v1828
        %v1973 = vpack.c.bf16 %v1845, %v1829
        %v1974 = vpack.c.bf16 %v1846, %v1830
        %v1975 = vpack.c.bf16 %v1847, %v1831
        %v1976 = vpack.c.bf16 %v1848, %v1832
        %v1977 = vpack.c.bf16 %v1849, %v1833
        %v1978 = vpack.c.bf16 %v1850, %v1834
        %v1979 = vpack.c.bf16 %v1851, %v1835
        %v1980 = vpack.c.bf16 %v1852, %v1836
        %v1981 = vpack.c.bf16 %v1853, %v1837
        %v1982 = vpack.c.bf16 %v1854, %v1838
        %v1983 = vpack.c.bf16 %v1855, %v1839
        %v1984 = vpack.c.bf16 %v1856, %v1840
        %v1985 = vpack.c.bf16 %v1857, %v1841
        %v1986 = vperm.slane %v497, 1
        %v1987 = vperm.slane %v498, 1
        %v1988 = vperm.slane %v499, 1
        %v1989 = vperm.slane %v500, 1
        %v1990 = vperm.slane %v501, 1
        %v1991 = vperm.slane %v502, 1
        %v1992 = vperm.slane %v503, 1
        %v1993 = vperm.slane %v504, 1
        %v1994 = vperm.slane %v505, 1
        %v1995 = vperm.slane %v506, 1
        %v1996 = vperm.slane %v507, 1
        %v1997 = vperm.slane %v508, 1
        %v1998 = vperm.slane %v509, 1
        %v1999 = vperm.slane %v510, 1
        %v2000 = vperm.slane %v511, 1
        %v2001 = vperm.slane %v512, 1
        %vm2002 = vcmp.eq.s32.totalorder %v514, %v1986
        %vm2003 = vcmp.eq.s32.totalorder %v514, %v1987
        %vm2004 = vcmp.eq.s32.totalorder %v514, %v1988
        %vm2005 = vcmp.eq.s32.totalorder %v514, %v1989
        %vm2006 = vcmp.eq.s32.totalorder %v514, %v1990
        %vm2007 = vcmp.eq.s32.totalorder %v514, %v1991
        %vm2008 = vcmp.eq.s32.totalorder %v514, %v1992
        %vm2009 = vcmp.eq.s32.totalorder %v514, %v1993
        %vm2010 = vcmp.eq.s32.totalorder %v514, %v1994
        %vm2011 = vcmp.eq.s32.totalorder %v514, %v1995
        %vm2012 = vcmp.eq.s32.totalorder %v514, %v1996
        %vm2013 = vcmp.eq.s32.totalorder %v514, %v1997
        %vm2014 = vcmp.eq.s32.totalorder %v514, %v1998
        %vm2015 = vcmp.eq.s32.totalorder %v514, %v1999
        %vm2016 = vcmp.eq.s32.totalorder %v514, %v2000
        %vm2017 = vcmp.eq.s32.totalorder %v514, %v2001
        %vm2018 = vcmp.eq.s32.totalorder %v515, %v1986
        %vm2019 = vcmp.eq.s32.totalorder %v515, %v1987
        %vm2020 = vcmp.eq.s32.totalorder %v515, %v1988
        %vm2021 = vcmp.eq.s32.totalorder %v515, %v1989
        %vm2022 = vcmp.eq.s32.totalorder %v515, %v1990
        %vm2023 = vcmp.eq.s32.totalorder %v515, %v1991
        %vm2024 = vcmp.eq.s32.totalorder %v515, %v1992
        %vm2025 = vcmp.eq.s32.totalorder %v515, %v1993
        %vm2026 = vcmp.eq.s32.totalorder %v515, %v1994
        %vm2027 = vcmp.eq.s32.totalorder %v515, %v1995
        %vm2028 = vcmp.eq.s32.totalorder %v515, %v1996
        %vm2029 = vcmp.eq.s32.totalorder %v515, %v1997
        %vm2030 = vcmp.eq.s32.totalorder %v515, %v1998
        %vm2031 = vcmp.eq.s32.totalorder %v515, %v1999
        %vm2032 = vcmp.eq.s32.totalorder %v515, %v2000
        %vm2033 = vcmp.eq.s32.totalorder %v515, %v2001
        %vm2034 = vcmp.eq.s32.totalorder %v516, %v1986
        %vm2035 = vcmp.eq.s32.totalorder %v516, %v1987
        %vm2036 = vcmp.eq.s32.totalorder %v516, %v1988
        %vm2037 = vcmp.eq.s32.totalorder %v516, %v1989
        %vm2038 = vcmp.eq.s32.totalorder %v516, %v1990
        %vm2039 = vcmp.eq.s32.totalorder %v516, %v1991
        %vm2040 = vcmp.eq.s32.totalorder %v516, %v1992
        %vm2041 = vcmp.eq.s32.totalorder %v516, %v1993
        %vm2042 = vcmp.eq.s32.totalorder %v516, %v1994
        %vm2043 = vcmp.eq.s32.totalorder %v516, %v1995
        %vm2044 = vcmp.eq.s32.totalorder %v516, %v1996
        %vm2045 = vcmp.eq.s32.totalorder %v516, %v1997
        %vm2046 = vcmp.eq.s32.totalorder %v516, %v1998
        %vm2047 = vcmp.eq.s32.totalorder %v516, %v1999
        %vm2048 = vcmp.eq.s32.totalorder %v516, %v2000
        %vm2049 = vcmp.eq.s32.totalorder %v516, %v2001
        %vm2050 = vcmp.eq.s32.totalorder %v517, %v1986
        %vm2051 = vcmp.eq.s32.totalorder %v517, %v1987
        %vm2052 = vcmp.eq.s32.totalorder %v517, %v1988
        %vm2053 = vcmp.eq.s32.totalorder %v517, %v1989
        %vm2054 = vcmp.eq.s32.totalorder %v517, %v1990
        %vm2055 = vcmp.eq.s32.totalorder %v517, %v1991
        %vm2056 = vcmp.eq.s32.totalorder %v517, %v1992
        %vm2057 = vcmp.eq.s32.totalorder %v517, %v1993
        %vm2058 = vcmp.eq.s32.totalorder %v517, %v1994
        %vm2059 = vcmp.eq.s32.totalorder %v517, %v1995
        %vm2060 = vcmp.eq.s32.totalorder %v517, %v1996
        %vm2061 = vcmp.eq.s32.totalorder %v517, %v1997
        %vm2062 = vcmp.eq.s32.totalorder %v517, %v1998
        %vm2063 = vcmp.eq.s32.totalorder %v517, %v1999
        %vm2064 = vcmp.eq.s32.totalorder %v517, %v2000
        %vm2065 = vcmp.eq.s32.totalorder %v517, %v2001
        %vm2066 = vcmp.eq.s32.totalorder %v518, %v1986
        %vm2067 = vcmp.eq.s32.totalorder %v518, %v1987
        %vm2068 = vcmp.eq.s32.totalorder %v518, %v1988
        %vm2069 = vcmp.eq.s32.totalorder %v518, %v1989
        %vm2070 = vcmp.eq.s32.totalorder %v518, %v1990
        %vm2071 = vcmp.eq.s32.totalorder %v518, %v1991
        %vm2072 = vcmp.eq.s32.totalorder %v518, %v1992
        %vm2073 = vcmp.eq.s32.totalorder %v518, %v1993
        %vm2074 = vcmp.eq.s32.totalorder %v518, %v1994
        %vm2075 = vcmp.eq.s32.totalorder %v518, %v1995
        %vm2076 = vcmp.eq.s32.totalorder %v518, %v1996
        %vm2077 = vcmp.eq.s32.totalorder %v518, %v1997
        %vm2078 = vcmp.eq.s32.totalorder %v518, %v1998
        %vm2079 = vcmp.eq.s32.totalorder %v518, %v1999
        %vm2080 = vcmp.eq.s32.totalorder %v518, %v2000
        %vm2081 = vcmp.eq.s32.totalorder %v518, %v2001
        %vm2082 = vcmp.eq.s32.totalorder %v519, %v1986
        %vm2083 = vcmp.eq.s32.totalorder %v519, %v1987
        %vm2084 = vcmp.eq.s32.totalorder %v519, %v1988
        %vm2085 = vcmp.eq.s32.totalorder %v519, %v1989
        %vm2086 = vcmp.eq.s32.totalorder %v519, %v1990
        %vm2087 = vcmp.eq.s32.totalorder %v519, %v1991
        %vm2088 = vcmp.eq.s32.totalorder %v519, %v1992
        %vm2089 = vcmp.eq.s32.totalorder %v519, %v1993
        %vm2090 = vcmp.eq.s32.totalorder %v519, %v1994
        %vm2091 = vcmp.eq.s32.totalorder %v519, %v1995
        %vm2092 = vcmp.eq.s32.totalorder %v519, %v1996
        %vm2093 = vcmp.eq.s32.totalorder %v519, %v1997
        %vm2094 = vcmp.eq.s32.totalorder %v519, %v1998
        %vm2095 = vcmp.eq.s32.totalorder %v519, %v1999
        %vm2096 = vcmp.eq.s32.totalorder %v519, %v2000
        %vm2097 = vcmp.eq.s32.totalorder %v519, %v2001
        %vm2098 = vcmp.eq.s32.totalorder %v520, %v1986
        %vm2099 = vcmp.eq.s32.totalorder %v520, %v1987
        %vm2100 = vcmp.eq.s32.totalorder %v520, %v1988
        %vm2101 = vcmp.eq.s32.totalorder %v520, %v1989
        %vm2102 = vcmp.eq.s32.totalorder %v520, %v1990
        %vm2103 = vcmp.eq.s32.totalorder %v520, %v1991
        %vm2104 = vcmp.eq.s32.totalorder %v520, %v1992
        %vm2105 = vcmp.eq.s32.totalorder %v520, %v1993
        %vm2106 = vcmp.eq.s32.totalorder %v520, %v1994
        %vm2107 = vcmp.eq.s32.totalorder %v520, %v1995
        %vm2108 = vcmp.eq.s32.totalorder %v520, %v1996
        %vm2109 = vcmp.eq.s32.totalorder %v520, %v1997
        %vm2110 = vcmp.eq.s32.totalorder %v520, %v1998
        %vm2111 = vcmp.eq.s32.totalorder %v520, %v1999
        %vm2112 = vcmp.eq.s32.totalorder %v520, %v2000
        %vm2113 = vcmp.eq.s32.totalorder %v520, %v2001
        %vm2114 = vcmp.eq.s32.totalorder %v521, %v1986
        %vm2115 = vcmp.eq.s32.totalorder %v521, %v1987
        %vm2116 = vcmp.eq.s32.totalorder %v521, %v1988
        %vm2117 = vcmp.eq.s32.totalorder %v521, %v1989
        %vm2118 = vcmp.eq.s32.totalorder %v521, %v1990
        %vm2119 = vcmp.eq.s32.totalorder %v521, %v1991
        %vm2120 = vcmp.eq.s32.totalorder %v521, %v1992
        %vm2121 = vcmp.eq.s32.totalorder %v521, %v1993
        %vm2122 = vcmp.eq.s32.totalorder %v521, %v1994
        %vm2123 = vcmp.eq.s32.totalorder %v521, %v1995
        %vm2124 = vcmp.eq.s32.totalorder %v521, %v1996
        %vm2125 = vcmp.eq.s32.totalorder %v521, %v1997
        %vm2126 = vcmp.eq.s32.totalorder %v521, %v1998
        %vm2127 = vcmp.eq.s32.totalorder %v521, %v1999
        %vm2128 = vcmp.eq.s32.totalorder %v521, %v2000
        %vm2129 = vcmp.eq.s32.totalorder %v521, %v2001
        %vm2130 = vcmp.eq.s32.totalorder %v522, %v1986
        %vm2131 = vcmp.eq.s32.totalorder %v522, %v1987
        %vm2132 = vcmp.eq.s32.totalorder %v522, %v1988
        %vm2133 = vcmp.eq.s32.totalorder %v522, %v1989
        %vm2134 = vcmp.eq.s32.totalorder %v522, %v1990
        %vm2135 = vcmp.eq.s32.totalorder %v522, %v1991
        %vm2136 = vcmp.eq.s32.totalorder %v522, %v1992
        %vm2137 = vcmp.eq.s32.totalorder %v522, %v1993
        %vm2138 = vcmp.eq.s32.totalorder %v522, %v1994
        %vm2139 = vcmp.eq.s32.totalorder %v522, %v1995
        %vm2140 = vcmp.eq.s32.totalorder %v522, %v1996
        %vm2141 = vcmp.eq.s32.totalorder %v522, %v1997
        %vm2142 = vcmp.eq.s32.totalorder %v522, %v1998
        %vm2143 = vcmp.eq.s32.totalorder %v522, %v1999
        %vm2144 = vcmp.eq.s32.totalorder %v522, %v2000
        %vm2145 = vcmp.eq.s32.totalorder %v522, %v2001
        %vm2146 = vcmp.eq.s32.totalorder %v523, %v1986
        %vm2147 = vcmp.eq.s32.totalorder %v523, %v1987
        %vm2148 = vcmp.eq.s32.totalorder %v523, %v1988
        %vm2149 = vcmp.eq.s32.totalorder %v523, %v1989
        %vm2150 = vcmp.eq.s32.totalorder %v523, %v1990
        %vm2151 = vcmp.eq.s32.totalorder %v523, %v1991
        %vm2152 = vcmp.eq.s32.totalorder %v523, %v1992
        %vm2153 = vcmp.eq.s32.totalorder %v523, %v1993
        %vm2154 = vcmp.eq.s32.totalorder %v523, %v1994
        %vm2155 = vcmp.eq.s32.totalorder %v523, %v1995
        %vm2156 = vcmp.eq.s32.totalorder %v523, %v1996
        %vm2157 = vcmp.eq.s32.totalorder %v523, %v1997
        %vm2158 = vcmp.eq.s32.totalorder %v523, %v1998
        %vm2159 = vcmp.eq.s32.totalorder %v523, %v1999
        %vm2160 = vcmp.eq.s32.totalorder %v523, %v2000
        %vm2161 = vcmp.eq.s32.totalorder %v523, %v2001
        %vm2162 = vcmp.eq.s32.totalorder %v524, %v1986
        %vm2163 = vcmp.eq.s32.totalorder %v524, %v1987
        %vm2164 = vcmp.eq.s32.totalorder %v524, %v1988
        %vm2165 = vcmp.eq.s32.totalorder %v524, %v1989
        %vm2166 = vcmp.eq.s32.totalorder %v524, %v1990
        %vm2167 = vcmp.eq.s32.totalorder %v524, %v1991
        %vm2168 = vcmp.eq.s32.totalorder %v524, %v1992
        %vm2169 = vcmp.eq.s32.totalorder %v524, %v1993
        %vm2170 = vcmp.eq.s32.totalorder %v524, %v1994
        %vm2171 = vcmp.eq.s32.totalorder %v524, %v1995
        %vm2172 = vcmp.eq.s32.totalorder %v524, %v1996
        %vm2173 = vcmp.eq.s32.totalorder %v524, %v1997
        %vm2174 = vcmp.eq.s32.totalorder %v524, %v1998
        %vm2175 = vcmp.eq.s32.totalorder %v524, %v1999
        %vm2176 = vcmp.eq.s32.totalorder %v524, %v2000
        %vm2177 = vcmp.eq.s32.totalorder %v524, %v2001
        %vm2178 = vcmp.eq.s32.totalorder %v525, %v1986
        %vm2179 = vcmp.eq.s32.totalorder %v525, %v1987
        %vm2180 = vcmp.eq.s32.totalorder %v525, %v1988
        %vm2181 = vcmp.eq.s32.totalorder %v525, %v1989
        %vm2182 = vcmp.eq.s32.totalorder %v525, %v1990
        %vm2183 = vcmp.eq.s32.totalorder %v525, %v1991
        %vm2184 = vcmp.eq.s32.totalorder %v525, %v1992
        %vm2185 = vcmp.eq.s32.totalorder %v525, %v1993
        %vm2186 = vcmp.eq.s32.totalorder %v525, %v1994
        %vm2187 = vcmp.eq.s32.totalorder %v525, %v1995
        %vm2188 = vcmp.eq.s32.totalorder %v525, %v1996
        %vm2189 = vcmp.eq.s32.totalorder %v525, %v1997
        %vm2190 = vcmp.eq.s32.totalorder %v525, %v1998
        %vm2191 = vcmp.eq.s32.totalorder %v525, %v1999
        %vm2192 = vcmp.eq.s32.totalorder %v525, %v2000
        %vm2193 = vcmp.eq.s32.totalorder %v525, %v2001
        %vm2194 = vcmp.eq.s32.totalorder %v526, %v1986
        %vm2195 = vcmp.eq.s32.totalorder %v526, %v1987
        %vm2196 = vcmp.eq.s32.totalorder %v526, %v1988
        %vm2197 = vcmp.eq.s32.totalorder %v526, %v1989
        %vm2198 = vcmp.eq.s32.totalorder %v526, %v1990
        %vm2199 = vcmp.eq.s32.totalorder %v526, %v1991
        %vm2200 = vcmp.eq.s32.totalorder %v526, %v1992
        %vm2201 = vcmp.eq.s32.totalorder %v526, %v1993
        %vm2202 = vcmp.eq.s32.totalorder %v526, %v1994
        %vm2203 = vcmp.eq.s32.totalorder %v526, %v1995
        %vm2204 = vcmp.eq.s32.totalorder %v526, %v1996
        %vm2205 = vcmp.eq.s32.totalorder %v526, %v1997
        %vm2206 = vcmp.eq.s32.totalorder %v526, %v1998
        %vm2207 = vcmp.eq.s32.totalorder %v526, %v1999
        %vm2208 = vcmp.eq.s32.totalorder %v526, %v2000
        %vm2209 = vcmp.eq.s32.totalorder %v526, %v2001
        %vm2210 = vcmp.eq.s32.totalorder %v527, %v1986
        %vm2211 = vcmp.eq.s32.totalorder %v527, %v1987
        %vm2212 = vcmp.eq.s32.totalorder %v527, %v1988
        %vm2213 = vcmp.eq.s32.totalorder %v527, %v1989
        %vm2214 = vcmp.eq.s32.totalorder %v527, %v1990
        %vm2215 = vcmp.eq.s32.totalorder %v527, %v1991
        %vm2216 = vcmp.eq.s32.totalorder %v527, %v1992
        %vm2217 = vcmp.eq.s32.totalorder %v527, %v1993
        %vm2218 = vcmp.eq.s32.totalorder %v527, %v1994
        %vm2219 = vcmp.eq.s32.totalorder %v527, %v1995
        %vm2220 = vcmp.eq.s32.totalorder %v527, %v1996
        %vm2221 = vcmp.eq.s32.totalorder %v527, %v1997
        %vm2222 = vcmp.eq.s32.totalorder %v527, %v1998
        %vm2223 = vcmp.eq.s32.totalorder %v527, %v1999
        %vm2224 = vcmp.eq.s32.totalorder %v527, %v2000
        %vm2225 = vcmp.eq.s32.totalorder %v527, %v2001
        %vm2226 = vcmp.eq.s32.totalorder %v528, %v1986
        %vm2227 = vcmp.eq.s32.totalorder %v528, %v1987
        %vm2228 = vcmp.eq.s32.totalorder %v528, %v1988
        %vm2229 = vcmp.eq.s32.totalorder %v528, %v1989
        %vm2230 = vcmp.eq.s32.totalorder %v528, %v1990
        %vm2231 = vcmp.eq.s32.totalorder %v528, %v1991
        %vm2232 = vcmp.eq.s32.totalorder %v528, %v1992
        %vm2233 = vcmp.eq.s32.totalorder %v528, %v1993
        %vm2234 = vcmp.eq.s32.totalorder %v528, %v1994
        %vm2235 = vcmp.eq.s32.totalorder %v528, %v1995
        %vm2236 = vcmp.eq.s32.totalorder %v528, %v1996
        %vm2237 = vcmp.eq.s32.totalorder %v528, %v1997
        %vm2238 = vcmp.eq.s32.totalorder %v528, %v1998
        %vm2239 = vcmp.eq.s32.totalorder %v528, %v1999
        %vm2240 = vcmp.eq.s32.totalorder %v528, %v2000
        %vm2241 = vcmp.eq.s32.totalorder %v528, %v2001
        %vm2242 = vcmp.eq.s32.totalorder %v529, %v1986
        %vm2243 = vcmp.eq.s32.totalorder %v529, %v1987
        %vm2244 = vcmp.eq.s32.totalorder %v529, %v1988
        %vm2245 = vcmp.eq.s32.totalorder %v529, %v1989
        %vm2246 = vcmp.eq.s32.totalorder %v529, %v1990
        %vm2247 = vcmp.eq.s32.totalorder %v529, %v1991
        %vm2248 = vcmp.eq.s32.totalorder %v529, %v1992
        %vm2249 = vcmp.eq.s32.totalorder %v529, %v1993
        %vm2250 = vcmp.eq.s32.totalorder %v529, %v1994
        %vm2251 = vcmp.eq.s32.totalorder %v529, %v1995
        %vm2252 = vcmp.eq.s32.totalorder %v529, %v1996
        %vm2253 = vcmp.eq.s32.totalorder %v529, %v1997
        %vm2254 = vcmp.eq.s32.totalorder %v529, %v1998
        %vm2255 = vcmp.eq.s32.totalorder %v529, %v1999
        %vm2256 = vcmp.eq.s32.totalorder %v529, %v2000
        %vm2257 = vcmp.eq.s32.totalorder %v529, %v2001
        %v2258 = vsel %vm2002, 1, 0
        %v2259 = vsel %vm2003, 1, 0
        %v2260 = vsel %vm2004, 1, 0
        %v2261 = vsel %vm2005, 1, 0
        %v2262 = vsel %vm2006, 1, 0
        %v2263 = vsel %vm2007, 1, 0
        %v2264 = vsel %vm2008, 1, 0
        %v2265 = vsel %vm2009, 1, 0
        %v2266 = vsel %vm2010, 1, 0
        %v2267 = vsel %vm2011, 1, 0
        %v2268 = vsel %vm2012, 1, 0
        %v2269 = vsel %vm2013, 1, 0
        %v2270 = vsel %vm2014, 1, 0
        %v2271 = vsel %vm2015, 1, 0
        %v2272 = vsel %vm2016, 1, 0
        %v2273 = vsel %vm2017, 1, 0
        %v2274 = vsel %vm2018, 1, 0
        %v2275 = vsel %vm2019, 1, 0
        %v2276 = vsel %vm2020, 1, 0
        %v2277 = vsel %vm2021, 1, 0
        %v2278 = vsel %vm2022, 1, 0
        %v2279 = vsel %vm2023, 1, 0
        %v2280 = vsel %vm2024, 1, 0
        %v2281 = vsel %vm2025, 1, 0
        %v2282 = vsel %vm2026, 1, 0
        %v2283 = vsel %vm2027, 1, 0
        %v2284 = vsel %vm2028, 1, 0
        %v2285 = vsel %vm2029, 1, 0
        %v2286 = vsel %vm2030, 1, 0
        %v2287 = vsel %vm2031, 1, 0
        %v2288 = vsel %vm2032, 1, 0
        %v2289 = vsel %vm2033, 1, 0
        %v2290 = vsel %vm2034, 1, 0
        %v2291 = vsel %vm2035, 1, 0
        %v2292 = vsel %vm2036, 1, 0
        %v2293 = vsel %vm2037, 1, 0
        %v2294 = vsel %vm2038, 1, 0
        %v2295 = vsel %vm2039, 1, 0
        %v2296 = vsel %vm2040, 1, 0
        %v2297 = vsel %vm2041, 1, 0
        %v2298 = vsel %vm2042, 1, 0
        %v2299 = vsel %vm2043, 1, 0
        %v2300 = vsel %vm2044, 1, 0
        %v2301 = vsel %vm2045, 1, 0
        %v2302 = vsel %vm2046, 1, 0
        %v2303 = vsel %vm2047, 1, 0
        %v2304 = vsel %vm2048, 1, 0
        %v2305 = vsel %vm2049, 1, 0
        %v2306 = vsel %vm2050, 1, 0
        %v2307 = vsel %vm2051, 1, 0
        %v2308 = vsel %vm2052, 1, 0
        %v2309 = vsel %vm2053, 1, 0
        %v2310 = vsel %vm2054, 1, 0
        %v2311 = vsel %vm2055, 1, 0
        %v2312 = vsel %vm2056, 1, 0
        %v2313 = vsel %vm2057, 1, 0
        %v2314 = vsel %vm2058, 1, 0
        %v2315 = vsel %vm2059, 1, 0
        %v2316 = vsel %vm2060, 1, 0
        %v2317 = vsel %vm2061, 1, 0
        %v2318 = vsel %vm2062, 1, 0
        %v2319 = vsel %vm2063, 1, 0
        %v2320 = vsel %vm2064, 1, 0
        %v2321 = vsel %vm2065, 1, 0
        %v2322 = vsel %vm2066, 1, 0
        %v2323 = vsel %vm2067, 1, 0
        %v2324 = vsel %vm2068, 1, 0
        %v2325 = vsel %vm2069, 1, 0
        %v2326 = vsel %vm2070, 1, 0
        %v2327 = vsel %vm2071, 1, 0
        %v2328 = vsel %vm2072, 1, 0
        %v2329 = vsel %vm2073, 1, 0
        %v2330 = vsel %vm2074, 1, 0
        %v2331 = vsel %vm2075, 1, 0
        %v2332 = vsel %vm2076, 1, 0
        %v2333 = vsel %vm2077, 1, 0
        %v2334 = vsel %vm2078, 1, 0
        %v2335 = vsel %vm2079, 1, 0
        %v2336 = vsel %vm2080, 1, 0
        %v2337 = vsel %vm2081, 1, 0
        %v2338 = vsel %vm2082, 1, 0
        %v2339 = vsel %vm2083, 1, 0
        %v2340 = vsel %vm2084, 1, 0
        %v2341 = vsel %vm2085, 1, 0
        %v2342 = vsel %vm2086, 1, 0
        %v2343 = vsel %vm2087, 1, 0
        %v2344 = vsel %vm2088, 1, 0
        %v2345 = vsel %vm2089, 1, 0
        %v2346 = vsel %vm2090, 1, 0
        %v2347 = vsel %vm2091, 1, 0
        %v2348 = vsel %vm2092, 1, 0
        %v2349 = vsel %vm2093, 1, 0
        %v2350 = vsel %vm2094, 1, 0
        %v2351 = vsel %vm2095, 1, 0
        %v2352 = vsel %vm2096, 1, 0
        %v2353 = vsel %vm2097, 1, 0
        %v2354 = vsel %vm2098, 1, 0
        %v2355 = vsel %vm2099, 1, 0
        %v2356 = vsel %vm2100, 1, 0
        %v2357 = vsel %vm2101, 1, 0
        %v2358 = vsel %vm2102, 1, 0
        %v2359 = vsel %vm2103, 1, 0
        %v2360 = vsel %vm2104, 1, 0
        %v2361 = vsel %vm2105, 1, 0
        %v2362 = vsel %vm2106, 1, 0
        %v2363 = vsel %vm2107, 1, 0
        %v2364 = vsel %vm2108, 1, 0
        %v2365 = vsel %vm2109, 1, 0
        %v2366 = vsel %vm2110, 1, 0
        %v2367 = vsel %vm2111, 1, 0
        %v2368 = vsel %vm2112, 1, 0
        %v2369 = vsel %vm2113, 1, 0
        %v2370 = vsel %vm2114, 1, 0
        %v2371 = vsel %vm2115, 1, 0
        %v2372 = vsel %vm2116, 1, 0
        %v2373 = vsel %vm2117, 1, 0
        %v2374 = vsel %vm2118, 1, 0
        %v2375 = vsel %vm2119, 1, 0
        %v2376 = vsel %vm2120, 1, 0
        %v2377 = vsel %vm2121, 1, 0
        %v2378 = vsel %vm2122, 1, 0
        %v2379 = vsel %vm2123, 1, 0
        %v2380 = vsel %vm2124, 1, 0
        %v2381 = vsel %vm2125, 1, 0
        %v2382 = vsel %vm2126, 1, 0
        %v2383 = vsel %vm2127, 1, 0
        %v2384 = vsel %vm2128, 1, 0
        %v2385 = vsel %vm2129, 1, 0
        %v2386 = vsel %vm2130, 1, 0
        %v2387 = vsel %vm2131, 1, 0
        %v2388 = vsel %vm2132, 1, 0
        %v2389 = vsel %vm2133, 1, 0
        %v2390 = vsel %vm2134, 1, 0
        %v2391 = vsel %vm2135, 1, 0
        %v2392 = vsel %vm2136, 1, 0
        %v2393 = vsel %vm2137, 1, 0
        %v2394 = vsel %vm2138, 1, 0
        %v2395 = vsel %vm2139, 1, 0
        %v2396 = vsel %vm2140, 1, 0
        %v2397 = vsel %vm2141, 1, 0
        %v2398 = vsel %vm2142, 1, 0
        %v2399 = vsel %vm2143, 1, 0
        %v2400 = vsel %vm2144, 1, 0
        %v2401 = vsel %vm2145, 1, 0
        %v2402 = vsel %vm2146, 1, 0
        %v2403 = vsel %vm2147, 1, 0
        %v2404 = vsel %vm2148, 1, 0
        %v2405 = vsel %vm2149, 1, 0
        %v2406 = vsel %vm2150, 1, 0
        %v2407 = vsel %vm2151, 1, 0
        %v2408 = vsel %vm2152, 1, 0
        %v2409 = vsel %vm2153, 1, 0
        %v2410 = vsel %vm2154, 1, 0
        %v2411 = vsel %vm2155, 1, 0
        %v2412 = vsel %vm2156, 1, 0
        %v2413 = vsel %vm2157, 1, 0
        %v2414 = vsel %vm2158, 1, 0
        %v2415 = vsel %vm2159, 1, 0
        %v2416 = vsel %vm2160, 1, 0
        %v2417 = vsel %vm2161, 1, 0
        %v2418 = vsel %vm2162, 1, 0
        %v2419 = vsel %vm2163, 1, 0
        %v2420 = vsel %vm2164, 1, 0
        %v2421 = vsel %vm2165, 1, 0
        %v2422 = vsel %vm2166, 1, 0
        %v2423 = vsel %vm2167, 1, 0
        %v2424 = vsel %vm2168, 1, 0
        %v2425 = vsel %vm2169, 1, 0
        %v2426 = vsel %vm2170, 1, 0
        %v2427 = vsel %vm2171, 1, 0
        %v2428 = vsel %vm2172, 1, 0
        %v2429 = vsel %vm2173, 1, 0
        %v2430 = vsel %vm2174, 1, 0
        %v2431 = vsel %vm2175, 1, 0
        %v2432 = vsel %vm2176, 1, 0
        %v2433 = vsel %vm2177, 1, 0
        %v2434 = vsel %vm2178, 1, 0
        %v2435 = vsel %vm2179, 1, 0
        %v2436 = vsel %vm2180, 1, 0
        %v2437 = vsel %vm2181, 1, 0
        %v2438 = vsel %vm2182, 1, 0
        %v2439 = vsel %vm2183, 1, 0
        %v2440 = vsel %vm2184, 1, 0
        %v2441 = vsel %vm2185, 1, 0
        %v2442 = vsel %vm2186, 1, 0
        %v2443 = vsel %vm2187, 1, 0
        %v2444 = vsel %vm2188, 1, 0
        %v2445 = vsel %vm2189, 1, 0
        %v2446 = vsel %vm2190, 1, 0
        %v2447 = vsel %vm2191, 1, 0
        %v2448 = vsel %vm2192, 1, 0
        %v2449 = vsel %vm2193, 1, 0
        %v2450 = vsel %vm2194, 1, 0
        %v2451 = vsel %vm2195, 1, 0
        %v2452 = vsel %vm2196, 1, 0
        %v2453 = vsel %vm2197, 1, 0
        %v2454 = vsel %vm2198, 1, 0
        %v2455 = vsel %vm2199, 1, 0
        %v2456 = vsel %vm2200, 1, 0
        %v2457 = vsel %vm2201, 1, 0
        %v2458 = vsel %vm2202, 1, 0
        %v2459 = vsel %vm2203, 1, 0
        %v2460 = vsel %vm2204, 1, 0
        %v2461 = vsel %vm2205, 1, 0
        %v2462 = vsel %vm2206, 1, 0
        %v2463 = vsel %vm2207, 1, 0
        %v2464 = vsel %vm2208, 1, 0
        %v2465 = vsel %vm2209, 1, 0
        %v2466 = vsel %vm2210, 1, 0
        %v2467 = vsel %vm2211, 1, 0
        %v2468 = vsel %vm2212, 1, 0
        %v2469 = vsel %vm2213, 1, 0
        %v2470 = vsel %vm2214, 1, 0
        %v2471 = vsel %vm2215, 1, 0
        %v2472 = vsel %vm2216, 1, 0
        %v2473 = vsel %vm2217, 1, 0
        %v2474 = vsel %vm2218, 1, 0
        %v2475 = vsel %vm2219, 1, 0
        %v2476 = vsel %vm2220, 1, 0
        %v2477 = vsel %vm2221, 1, 0
        %v2478 = vsel %vm2222, 1, 0
        %v2479 = vsel %vm2223, 1, 0
        %v2480 = vsel %vm2224, 1, 0
        %v2481 = vsel %vm2225, 1, 0
        %v2482 = vsel %vm2226, 1, 0
        %v2483 = vsel %vm2227, 1, 0
        %v2484 = vsel %vm2228, 1, 0
        %v2485 = vsel %vm2229, 1, 0
        %v2486 = vsel %vm2230, 1, 0
        %v2487 = vsel %vm2231, 1, 0
        %v2488 = vsel %vm2232, 1, 0
        %v2489 = vsel %vm2233, 1, 0
        %v2490 = vsel %vm2234, 1, 0
        %v2491 = vsel %vm2235, 1, 0
        %v2492 = vsel %vm2236, 1, 0
        %v2493 = vsel %vm2237, 1, 0
        %v2494 = vsel %vm2238, 1, 0
        %v2495 = vsel %vm2239, 1, 0
        %v2496 = vsel %vm2240, 1, 0
        %v2497 = vsel %vm2241, 1, 0
        %v2498 = vsel %vm2242, 1, 0
        %v2499 = vsel %vm2243, 1, 0
        %v2500 = vsel %vm2244, 1, 0
        %v2501 = vsel %vm2245, 1, 0
        %v2502 = vsel %vm2246, 1, 0
        %v2503 = vsel %vm2247, 1, 0
        %v2504 = vsel %vm2248, 1, 0
        %v2505 = vsel %vm2249, 1, 0
        %v2506 = vsel %vm2250, 1, 0
        %v2507 = vsel %vm2251, 1, 0
        %v2508 = vsel %vm2252, 1, 0
        %v2509 = vsel %vm2253, 1, 0
        %v2510 = vsel %vm2254, 1, 0
        %v2511 = vsel %vm2255, 1, 0
        %v2512 = vsel %vm2256, 1, 0
        %v2513 = vsel %vm2257, 1, 0
        %v2514 = vcvt.s32.f32 %v2258
        %v2515 = vcvt.s32.f32 %v2259
        %v2516 = vcvt.s32.f32 %v2260
        %v2517 = vcvt.s32.f32 %v2261
        %v2518 = vcvt.s32.f32 %v2262
        %v2519 = vcvt.s32.f32 %v2263
        %v2520 = vcvt.s32.f32 %v2264
        %v2521 = vcvt.s32.f32 %v2265
        %v2522 = vcvt.s32.f32 %v2266
        %v2523 = vcvt.s32.f32 %v2267
        %v2524 = vcvt.s32.f32 %v2268
        %v2525 = vcvt.s32.f32 %v2269
        %v2526 = vcvt.s32.f32 %v2270
        %v2527 = vcvt.s32.f32 %v2271
        %v2528 = vcvt.s32.f32 %v2272
        %v2529 = vcvt.s32.f32 %v2273
        %v2530 = vcvt.s32.f32 %v2274
        %v2531 = vcvt.s32.f32 %v2275
        %v2532 = vcvt.s32.f32 %v2276
        %v2533 = vcvt.s32.f32 %v2277
        %v2534 = vcvt.s32.f32 %v2278
        %v2535 = vcvt.s32.f32 %v2279
        %v2536 = vcvt.s32.f32 %v2280
        %v2537 = vcvt.s32.f32 %v2281
        %v2538 = vcvt.s32.f32 %v2282
        %v2539 = vcvt.s32.f32 %v2283
        %v2540 = vcvt.s32.f32 %v2284
        %v2541 = vcvt.s32.f32 %v2285
        %v2542 = vcvt.s32.f32 %v2286
        %v2543 = vcvt.s32.f32 %v2287
        %v2544 = vcvt.s32.f32 %v2288
        %v2545 = vcvt.s32.f32 %v2289
        %v2546 = vcvt.s32.f32 %v2290
        %v2547 = vcvt.s32.f32 %v2291
        %v2548 = vcvt.s32.f32 %v2292
        %v2549 = vcvt.s32.f32 %v2293
        %v2550 = vcvt.s32.f32 %v2294
        %v2551 = vcvt.s32.f32 %v2295
        %v2552 = vcvt.s32.f32 %v2296
        %v2553 = vcvt.s32.f32 %v2297
        %v2554 = vcvt.s32.f32 %v2298
        %v2555 = vcvt.s32.f32 %v2299
        %v2556 = vcvt.s32.f32 %v2300
        %v2557 = vcvt.s32.f32 %v2301
        %v2558 = vcvt.s32.f32 %v2302
        %v2559 = vcvt.s32.f32 %v2303
        %v2560 = vcvt.s32.f32 %v2304
        %v2561 = vcvt.s32.f32 %v2305
        %v2562 = vcvt.s32.f32 %v2306
        %v2563 = vcvt.s32.f32 %v2307
        %v2564 = vcvt.s32.f32 %v2308
        %v2565 = vcvt.s32.f32 %v2309
        %v2566 = vcvt.s32.f32 %v2310
        %v2567 = vcvt.s32.f32 %v2311
        %v2568 = vcvt.s32.f32 %v2312
        %v2569 = vcvt.s32.f32 %v2313
        %v2570 = vcvt.s32.f32 %v2314
        %v2571 = vcvt.s32.f32 %v2315
        %v2572 = vcvt.s32.f32 %v2316
        %v2573 = vcvt.s32.f32 %v2317
        %v2574 = vcvt.s32.f32 %v2318
        %v2575 = vcvt.s32.f32 %v2319
        %v2576 = vcvt.s32.f32 %v2320
        %v2577 = vcvt.s32.f32 %v2321
        %v2578 = vcvt.s32.f32 %v2322
        %v2579 = vcvt.s32.f32 %v2323
        %v2580 = vcvt.s32.f32 %v2324
        %v2581 = vcvt.s32.f32 %v2325
        %v2582 = vcvt.s32.f32 %v2326
        %v2583 = vcvt.s32.f32 %v2327
        %v2584 = vcvt.s32.f32 %v2328
        %v2585 = vcvt.s32.f32 %v2329
        %v2586 = vcvt.s32.f32 %v2330
        %v2587 = vcvt.s32.f32 %v2331
        %v2588 = vcvt.s32.f32 %v2332
        %v2589 = vcvt.s32.f32 %v2333
        %v2590 = vcvt.s32.f32 %v2334
        %v2591 = vcvt.s32.f32 %v2335
        %v2592 = vcvt.s32.f32 %v2336
        %v2593 = vcvt.s32.f32 %v2337
        %v2594 = vcvt.s32.f32 %v2338
        %v2595 = vcvt.s32.f32 %v2339
        %v2596 = vcvt.s32.f32 %v2340
        %v2597 = vcvt.s32.f32 %v2341
        %v2598 = vcvt.s32.f32 %v2342
        %v2599 = vcvt.s32.f32 %v2343
        %v2600 = vcvt.s32.f32 %v2344
        %v2601 = vcvt.s32.f32 %v2345
        %v2602 = vcvt.s32.f32 %v2346
        %v2603 = vcvt.s32.f32 %v2347
        %v2604 = vcvt.s32.f32 %v2348
        %v2605 = vcvt.s32.f32 %v2349
        %v2606 = vcvt.s32.f32 %v2350
        %v2607 = vcvt.s32.f32 %v2351
        %v2608 = vcvt.s32.f32 %v2352
        %v2609 = vcvt.s32.f32 %v2353
        %v2610 = vcvt.s32.f32 %v2354
        %v2611 = vcvt.s32.f32 %v2355
        %v2612 = vcvt.s32.f32 %v2356
        %v2613 = vcvt.s32.f32 %v2357
        %v2614 = vcvt.s32.f32 %v2358
        %v2615 = vcvt.s32.f32 %v2359
        %v2616 = vcvt.s32.f32 %v2360
        %v2617 = vcvt.s32.f32 %v2361
        %v2618 = vcvt.s32.f32 %v2362
        %v2619 = vcvt.s32.f32 %v2363
        %v2620 = vcvt.s32.f32 %v2364
        %v2621 = vcvt.s32.f32 %v2365
        %v2622 = vcvt.s32.f32 %v2366
        %v2623 = vcvt.s32.f32 %v2367
        %v2624 = vcvt.s32.f32 %v2368
        %v2625 = vcvt.s32.f32 %v2369
        %v2626 = vcvt.s32.f32 %v2370
        %v2627 = vcvt.s32.f32 %v2371
        %v2628 = vcvt.s32.f32 %v2372
        %v2629 = vcvt.s32.f32 %v2373
        %v2630 = vcvt.s32.f32 %v2374
        %v2631 = vcvt.s32.f32 %v2375
        %v2632 = vcvt.s32.f32 %v2376
        %v2633 = vcvt.s32.f32 %v2377
        %v2634 = vcvt.s32.f32 %v2378
        %v2635 = vcvt.s32.f32 %v2379
        %v2636 = vcvt.s32.f32 %v2380
        %v2637 = vcvt.s32.f32 %v2381
        %v2638 = vcvt.s32.f32 %v2382
        %v2639 = vcvt.s32.f32 %v2383
        %v2640 = vcvt.s32.f32 %v2384
        %v2641 = vcvt.s32.f32 %v2385
        %v2642 = vcvt.s32.f32 %v2386
        %v2643 = vcvt.s32.f32 %v2387
        %v2644 = vcvt.s32.f32 %v2388
        %v2645 = vcvt.s32.f32 %v2389
        %v2646 = vcvt.s32.f32 %v2390
        %v2647 = vcvt.s32.f32 %v2391
        %v2648 = vcvt.s32.f32 %v2392
        %v2649 = vcvt.s32.f32 %v2393
        %v2650 = vcvt.s32.f32 %v2394
        %v2651 = vcvt.s32.f32 %v2395
        %v2652 = vcvt.s32.f32 %v2396
        %v2653 = vcvt.s32.f32 %v2397
        %v2654 = vcvt.s32.f32 %v2398
        %v2655 = vcvt.s32.f32 %v2399
        %v2656 = vcvt.s32.f32 %v2400
        %v2657 = vcvt.s32.f32 %v2401
        %v2658 = vcvt.s32.f32 %v2402
        %v2659 = vcvt.s32.f32 %v2403
        %v2660 = vcvt.s32.f32 %v2404
        %v2661 = vcvt.s32.f32 %v2405
        %v2662 = vcvt.s32.f32 %v2406
        %v2663 = vcvt.s32.f32 %v2407
        %v2664 = vcvt.s32.f32 %v2408
        %v2665 = vcvt.s32.f32 %v2409
        %v2666 = vcvt.s32.f32 %v2410
        %v2667 = vcvt.s32.f32 %v2411
        %v2668 = vcvt.s32.f32 %v2412
        %v2669 = vcvt.s32.f32 %v2413
        %v2670 = vcvt.s32.f32 %v2414
        %v2671 = vcvt.s32.f32 %v2415
        %v2672 = vcvt.s32.f32 %v2416
        %v2673 = vcvt.s32.f32 %v2417
        %v2674 = vcvt.s32.f32 %v2418
        %v2675 = vcvt.s32.f32 %v2419
        %v2676 = vcvt.s32.f32 %v2420
        %v2677 = vcvt.s32.f32 %v2421
        %v2678 = vcvt.s32.f32 %v2422
        %v2679 = vcvt.s32.f32 %v2423
        %v2680 = vcvt.s32.f32 %v2424
        %v2681 = vcvt.s32.f32 %v2425
        %v2682 = vcvt.s32.f32 %v2426
        %v2683 = vcvt.s32.f32 %v2427
        %v2684 = vcvt.s32.f32 %v2428
        %v2685 = vcvt.s32.f32 %v2429
        %v2686 = vcvt.s32.f32 %v2430
        %v2687 = vcvt.s32.f32 %v2431
        %v2688 = vcvt.s32.f32 %v2432
        %v2689 = vcvt.s32.f32 %v2433
        %v2690 = vcvt.s32.f32 %v2434
        %v2691 = vcvt.s32.f32 %v2435
        %v2692 = vcvt.s32.f32 %v2436
        %v2693 = vcvt.s32.f32 %v2437
        %v2694 = vcvt.s32.f32 %v2438
        %v2695 = vcvt.s32.f32 %v2439
        %v2696 = vcvt.s32.f32 %v2440
        %v2697 = vcvt.s32.f32 %v2441
        %v2698 = vcvt.s32.f32 %v2442
        %v2699 = vcvt.s32.f32 %v2443
        %v2700 = vcvt.s32.f32 %v2444
        %v2701 = vcvt.s32.f32 %v2445
        %v2702 = vcvt.s32.f32 %v2446
        %v2703 = vcvt.s32.f32 %v2447
        %v2704 = vcvt.s32.f32 %v2448
        %v2705 = vcvt.s32.f32 %v2449
        %v2706 = vcvt.s32.f32 %v2450
        %v2707 = vcvt.s32.f32 %v2451
        %v2708 = vcvt.s32.f32 %v2452
        %v2709 = vcvt.s32.f32 %v2453
        %v2710 = vcvt.s32.f32 %v2454
        %v2711 = vcvt.s32.f32 %v2455
        %v2712 = vcvt.s32.f32 %v2456
        %v2713 = vcvt.s32.f32 %v2457
        %v2714 = vcvt.s32.f32 %v2458
        %v2715 = vcvt.s32.f32 %v2459
        %v2716 = vcvt.s32.f32 %v2460
        %v2717 = vcvt.s32.f32 %v2461
        %v2718 = vcvt.s32.f32 %v2462
        %v2719 = vcvt.s32.f32 %v2463
        %v2720 = vcvt.s32.f32 %v2464
        %v2721 = vcvt.s32.f32 %v2465
        %v2722 = vcvt.s32.f32 %v2466
        %v2723 = vcvt.s32.f32 %v2467
        %v2724 = vcvt.s32.f32 %v2468
        %v2725 = vcvt.s32.f32 %v2469
        %v2726 = vcvt.s32.f32 %v2470
        %v2727 = vcvt.s32.f32 %v2471
        %v2728 = vcvt.s32.f32 %v2472
        %v2729 = vcvt.s32.f32 %v2473
        %v2730 = vcvt.s32.f32 %v2474
        %v2731 = vcvt.s32.f32 %v2475
        %v2732 = vcvt.s32.f32 %v2476
        %v2733 = vcvt.s32.f32 %v2477
        %v2734 = vcvt.s32.f32 %v2478
        %v2735 = vcvt.s32.f32 %v2479
        %v2736 = vcvt.s32.f32 %v2480
        %v2737 = vcvt.s32.f32 %v2481
        %v2738 = vcvt.s32.f32 %v2482
        %v2739 = vcvt.s32.f32 %v2483
        %v2740 = vcvt.s32.f32 %v2484
        %v2741 = vcvt.s32.f32 %v2485
        %v2742 = vcvt.s32.f32 %v2486
        %v2743 = vcvt.s32.f32 %v2487
        %v2744 = vcvt.s32.f32 %v2488
        %v2745 = vcvt.s32.f32 %v2489
        %v2746 = vcvt.s32.f32 %v2490
        %v2747 = vcvt.s32.f32 %v2491
        %v2748 = vcvt.s32.f32 %v2492
        %v2749 = vcvt.s32.f32 %v2493
        %v2750 = vcvt.s32.f32 %v2494
        %v2751 = vcvt.s32.f32 %v2495
        %v2752 = vcvt.s32.f32 %v2496
        %v2753 = vcvt.s32.f32 %v2497
        %v2754 = vcvt.s32.f32 %v2498
        %v2755 = vcvt.s32.f32 %v2499
        %v2756 = vcvt.s32.f32 %v2500
        %v2757 = vcvt.s32.f32 %v2501
        %v2758 = vcvt.s32.f32 %v2502
        %v2759 = vcvt.s32.f32 %v2503
        %v2760 = vcvt.s32.f32 %v2504
        %v2761 = vcvt.s32.f32 %v2505
        %v2762 = vcvt.s32.f32 %v2506
        %v2763 = vcvt.s32.f32 %v2507
        %v2764 = vcvt.s32.f32 %v2508
        %v2765 = vcvt.s32.f32 %v2509
        %v2766 = vcvt.s32.f32 %v2510
        %v2767 = vcvt.s32.f32 %v2511
        %v2768 = vcvt.s32.f32 %v2512
        %v2769 = vcvt.s32.f32 %v2513
        %v2770 = vpack.c.bf16 %v2530, %v2514
        %v2771 = vpack.c.bf16 %v2531, %v2515
        %v2772 = vpack.c.bf16 %v2532, %v2516
        %v2773 = vpack.c.bf16 %v2533, %v2517
        %v2774 = vpack.c.bf16 %v2534, %v2518
        %v2775 = vpack.c.bf16 %v2535, %v2519
        %v2776 = vpack.c.bf16 %v2536, %v2520
        %v2777 = vpack.c.bf16 %v2537, %v2521
        %v2778 = vpack.c.bf16 %v2538, %v2522
        %v2779 = vpack.c.bf16 %v2539, %v2523
        %v2780 = vpack.c.bf16 %v2540, %v2524
        %v2781 = vpack.c.bf16 %v2541, %v2525
        %v2782 = vpack.c.bf16 %v2542, %v2526
        %v2783 = vpack.c.bf16 %v2543, %v2527
        %v2784 = vpack.c.bf16 %v2544, %v2528
        %v2785 = vpack.c.bf16 %v2545, %v2529
        %v2786 = vpack.c.bf16 %v2562, %v2546
        %v2787 = vpack.c.bf16 %v2563, %v2547
        %v2788 = vpack.c.bf16 %v2564, %v2548
        %v2789 = vpack.c.bf16 %v2565, %v2549
        %v2790 = vpack.c.bf16 %v2566, %v2550
        %v2791 = vpack.c.bf16 %v2567, %v2551
        %v2792 = vpack.c.bf16 %v2568, %v2552
        %v2793 = vpack.c.bf16 %v2569, %v2553
        %v2794 = vpack.c.bf16 %v2570, %v2554
        %v2795 = vpack.c.bf16 %v2571, %v2555
        %v2796 = vpack.c.bf16 %v2572, %v2556
        %v2797 = vpack.c.bf16 %v2573, %v2557
        %v2798 = vpack.c.bf16 %v2574, %v2558
        %v2799 = vpack.c.bf16 %v2575, %v2559
        %v2800 = vpack.c.bf16 %v2576, %v2560
        %v2801 = vpack.c.bf16 %v2577, %v2561
        %v2802 = vpack.c.bf16 %v2594, %v2578
        %v2803 = vpack.c.bf16 %v2595, %v2579
        %v2804 = vpack.c.bf16 %v2596, %v2580
        %v2805 = vpack.c.bf16 %v2597, %v2581
        %v2806 = vpack.c.bf16 %v2598, %v2582
        %v2807 = vpack.c.bf16 %v2599, %v2583
        %v2808 = vpack.c.bf16 %v2600, %v2584
        %v2809 = vpack.c.bf16 %v2601, %v2585
        %v2810 = vpack.c.bf16 %v2602, %v2586
        %v2811 = vpack.c.bf16 %v2603, %v2587
        %v2812 = vpack.c.bf16 %v2604, %v2588
        %v2813 = vpack.c.bf16 %v2605, %v2589
        %v2814 = vpack.c.bf16 %v2606, %v2590
        %v2815 = vpack.c.bf16 %v2607, %v2591
        %v2816 = vpack.c.bf16 %v2608, %v2592
        %v2817 = vpack.c.bf16 %v2609, %v2593
        %v2818 = vpack.c.bf16 %v2626, %v2610
        %v2819 = vpack.c.bf16 %v2627, %v2611
        %v2820 = vpack.c.bf16 %v2628, %v2612
        %v2821 = vpack.c.bf16 %v2629, %v2613
        %v2822 = vpack.c.bf16 %v2630, %v2614
        %v2823 = vpack.c.bf16 %v2631, %v2615
        %v2824 = vpack.c.bf16 %v2632, %v2616
        %v2825 = vpack.c.bf16 %v2633, %v2617
        %v2826 = vpack.c.bf16 %v2634, %v2618
        %v2827 = vpack.c.bf16 %v2635, %v2619
        %v2828 = vpack.c.bf16 %v2636, %v2620
        %v2829 = vpack.c.bf16 %v2637, %v2621
        %v2830 = vpack.c.bf16 %v2638, %v2622
        %v2831 = vpack.c.bf16 %v2639, %v2623
        %v2832 = vpack.c.bf16 %v2640, %v2624
        %v2833 = vpack.c.bf16 %v2641, %v2625
        %v2834 = vpack.c.bf16 %v2658, %v2642
        %v2835 = vpack.c.bf16 %v2659, %v2643
        %v2836 = vpack.c.bf16 %v2660, %v2644
        %v2837 = vpack.c.bf16 %v2661, %v2645
        %v2838 = vpack.c.bf16 %v2662, %v2646
        %v2839 = vpack.c.bf16 %v2663, %v2647
        %v2840 = vpack.c.bf16 %v2664, %v2648
        %v2841 = vpack.c.bf16 %v2665, %v2649
        %v2842 = vpack.c.bf16 %v2666, %v2650
        %v2843 = vpack.c.bf16 %v2667, %v2651
        %v2844 = vpack.c.bf16 %v2668, %v2652
        %v2845 = vpack.c.bf16 %v2669, %v2653
        %v2846 = vpack.c.bf16 %v2670, %v2654
        %v2847 = vpack.c.bf16 %v2671, %v2655
        %v2848 = vpack.c.bf16 %v2672, %v2656
        %v2849 = vpack.c.bf16 %v2673, %v2657
        %v2850 = vpack.c.bf16 %v2690, %v2674
        %v2851 = vpack.c.bf16 %v2691, %v2675
        %v2852 = vpack.c.bf16 %v2692, %v2676
        %v2853 = vpack.c.bf16 %v2693, %v2677
        %v2854 = vpack.c.bf16 %v2694, %v2678
        %v2855 = vpack.c.bf16 %v2695, %v2679
        %v2856 = vpack.c.bf16 %v2696, %v2680
        %v2857 = vpack.c.bf16 %v2697, %v2681
        %v2858 = vpack.c.bf16 %v2698, %v2682
        %v2859 = vpack.c.bf16 %v2699, %v2683
        %v2860 = vpack.c.bf16 %v2700, %v2684
        %v2861 = vpack.c.bf16 %v2701, %v2685
        %v2862 = vpack.c.bf16 %v2702, %v2686
        %v2863 = vpack.c.bf16 %v2703, %v2687
        %v2864 = vpack.c.bf16 %v2704, %v2688
        %v2865 = vpack.c.bf16 %v2705, %v2689
        %v2866 = vpack.c.bf16 %v2722, %v2706
        %v2867 = vpack.c.bf16 %v2723, %v2707
        %v2868 = vpack.c.bf16 %v2724, %v2708
        %v2869 = vpack.c.bf16 %v2725, %v2709
        %v2870 = vpack.c.bf16 %v2726, %v2710
        %v2871 = vpack.c.bf16 %v2727, %v2711
        %v2872 = vpack.c.bf16 %v2728, %v2712
        %v2873 = vpack.c.bf16 %v2729, %v2713
        %v2874 = vpack.c.bf16 %v2730, %v2714
        %v2875 = vpack.c.bf16 %v2731, %v2715
        %v2876 = vpack.c.bf16 %v2732, %v2716
        %v2877 = vpack.c.bf16 %v2733, %v2717
        %v2878 = vpack.c.bf16 %v2734, %v2718
        %v2879 = vpack.c.bf16 %v2735, %v2719
        %v2880 = vpack.c.bf16 %v2736, %v2720
        %v2881 = vpack.c.bf16 %v2737, %v2721
        %v2882 = vpack.c.bf16 %v2754, %v2738
        %v2883 = vpack.c.bf16 %v2755, %v2739
        %v2884 = vpack.c.bf16 %v2756, %v2740
        %v2885 = vpack.c.bf16 %v2757, %v2741
        %v2886 = vpack.c.bf16 %v2758, %v2742
        %v2887 = vpack.c.bf16 %v2759, %v2743
        %v2888 = vpack.c.bf16 %v2760, %v2744
        %v2889 = vpack.c.bf16 %v2761, %v2745
        %v2890 = vpack.c.bf16 %v2762, %v2746
        %v2891 = vpack.c.bf16 %v2763, %v2747
        %v2892 = vpack.c.bf16 %v2764, %v2748
        %v2893 = vpack.c.bf16 %v2765, %v2749
        %v2894 = vpack.c.bf16 %v2766, %v2750
        %v2895 = vpack.c.bf16 %v2767, %v2751
        %v2896 = vpack.c.bf16 %v2768, %v2752
        %v2897 = vpack.c.bf16 %v2769, %v2753
        %v2898 = vld [vmem:[%s1] sm:$0xf]
        %v2899 = vld [vmem:[%s1 + $0x4] sm:$0xf]
        %v2900 = vld [vmem:[%s1 + $0x8] sm:$0xf]
        %v2901 = vld [vmem:[%s1 + $0xc] sm:$0xf]
        %v2902 = vld [vmem:[%s1 + $0x10] sm:$0xf]
        %v2903 = vld [vmem:[%s1 + $0x14] sm:$0xf]
        %v2904 = vld [vmem:[%s1 + $0x18] sm:$0xf]
        %v2905 = vld [vmem:[%s1 + $0x1c] sm:$0xf]
        %v2906 = vld [vmem:[%s1 + $0x20] sm:$0xf]
        %v2907 = vld [vmem:[%s1 + $0x24] sm:$0xf]
        %v2908 = vld [vmem:[%s1 + $0x28] sm:$0xf]
        %v2909 = vld [vmem:[%s1 + $0x2c] sm:$0xf]
        %v2910 = vld [vmem:[%s1 + $0x30] sm:$0xf]
        %v2911 = vld [vmem:[%s1 + $0x34] sm:$0xf]
        %v2912 = vld [vmem:[%s1 + $0x38] sm:$0xf]
        %v2913 = vld [vmem:[%s1 + $0x3c] sm:$0xf]
        %v2914 = vld [vmem:[%s2] sm:$0xf]
        %v2915 = vld [vmem:[%s2 + $0x4] sm:$0xf]
        %v2916 = vld [vmem:[%s2 + $0x8] sm:$0xf]
        %v2917 = vld [vmem:[%s2 + $0xc] sm:$0xf]
        %v2918 = vld [vmem:[%s2 + $0x10] sm:$0xf]
        %v2919 = vld [vmem:[%s2 + $0x14] sm:$0xf]
        %v2920 = vld [vmem:[%s2 + $0x18] sm:$0xf]
        %v2921 = vld [vmem:[%s2 + $0x1c] sm:$0xf]
        %v2922 = vld [vmem:[%s2 + $0x20] sm:$0xf]
        %v2923 = vld [vmem:[%s2 + $0x24] sm:$0xf]
        %v2924 = vld [vmem:[%s2 + $0x28] sm:$0xf]
        %v2925 = vld [vmem:[%s2 + $0x2c] sm:$0xf]
        %v2926 = vld [vmem:[%s2 + $0x30] sm:$0xf]
        %v2927 = vld [vmem:[%s2 + $0x34] sm:$0xf]
        %v2928 = vld [vmem:[%s2 + $0x38] sm:$0xf]
        %v2929 = vld [vmem:[%s2 + $0x3c] sm:$0xf]
        %v2946 = vunpack.c.l.b16 %v2914
        %v2947 = vunpack.c.l.b16 %v2915
        %v2948 = vunpack.c.l.b16 %v2916
        %v2949 = vunpack.c.l.b16 %v2917
        %v2950 = vunpack.c.l.b16 %v2918
        %v2951 = vunpack.c.l.b16 %v2919
        %v2952 = vunpack.c.l.b16 %v2920
        %v2953 = vunpack.c.l.b16 %v2921
        %v2954 = vunpack.c.l.b16 %v2922
        %v2955 = vunpack.c.l.b16 %v2923
        %v2956 = vunpack.c.l.b16 %v2924
        %v2957 = vunpack.c.l.b16 %v2925
        %v2958 = vunpack.c.l.b16 %v2926
        %v2959 = vunpack.c.l.b16 %v2927
        %v2960 = vunpack.c.l.b16 %v2928
        %v2961 = vunpack.c.l.b16 %v2929
        %v2962 = vpack.c.b16 %v2947, %v2946
        %v2963 = vpack.c.b16 %v2949, %v2948
        %v2964 = vpack.c.b16 %v2951, %v2950
        %v2965 = vpack.c.b16 %v2953, %v2952
        %v2966 = vpack.c.b16 %v2955, %v2954
        %v2967 = vpack.c.b16 %v2957, %v2956
        %v2968 = vpack.c.b16 %v2959, %v2958
        %v2969 = vpack.c.b16 %v2961, %v2960
        %2978 = vmatpush.bf16.msra.mxu0 %v2882
        %2979 = vmatpush.bf16.msra.mxu0 %v2866
        %2980 = vmatpush.bf16.msra.mxu0 %v2850
        %2981 = vmatpush.bf16.msra.mxu0 %v2834
        %2982 = vmatpush.bf16.msra.mxu0 %v2818
        %2983 = vmatpush.bf16.msra.mxu0 %v2802
        %2984 = vmatpush.bf16.msra.mxu0 %v2786
        %2985 = vmatpush.bf16.msra.mxu0 %v2770
        %2986 = vmatmul.bf16.gmra.mxu0 %v2962
        %v2987 = vpop.f32.mrf.mxu0
        %v2988 = vadd.f32 0.0, %v2987
        %v2989 = vpop.f32.mrf.mxu0
        %v2990 = vadd.f32 0.0, %v2989
        %2991 = vmatmul.bf16.gmra.mxu0 %v2963
        %v2992 = vpop.f32.mrf.mxu0
        %v2993 = vadd.f32 0.0, %v2992
        %v2994 = vpop.f32.mrf.mxu0
        %v2995 = vadd.f32 0.0, %v2994
        %2996 = vmatmul.bf16.gmra.mxu0 %v2964
        %v2997 = vpop.f32.mrf.mxu0
        %v2998 = vadd.f32 0.0, %v2997
        %v2999 = vpop.f32.mrf.mxu0
        %v3000 = vadd.f32 0.0, %v2999
        %3001 = vmatmul.bf16.gmra.mxu0 %v2965
        %v3002 = vpop.f32.mrf.mxu0
        %v3003 = vadd.f32 0.0, %v3002
        %v3004 = vpop.f32.mrf.mxu0
        %v3005 = vadd.f32 0.0, %v3004
        %3006 = vmatmul.bf16.gmra.mxu0 %v2966
        %v3007 = vpop.f32.mrf.mxu0
        %v3008 = vadd.f32 0.0, %v3007
        %v3009 = vpop.f32.mrf.mxu0
        %v3010 = vadd.f32 0.0, %v3009
        %3011 = vmatmul.bf16.gmra.mxu0 %v2967
        %v3012 = vpop.f32.mrf.mxu0
        %v3013 = vadd.f32 0.0, %v3012
        %v3014 = vpop.f32.mrf.mxu0
        %v3015 = vadd.f32 0.0, %v3014
        %3016 = vmatmul.bf16.gmra.mxu0 %v2968
        %v3017 = vpop.f32.mrf.mxu0
        %v3018 = vadd.f32 0.0, %v3017
        %v3019 = vpop.f32.mrf.mxu0
        %v3020 = vadd.f32 0.0, %v3019
        %3021 = vmatmul.bf16.gmra.mxu0 %v2969
        %v3022 = vpop.f32.mrf.mxu0
        %v3023 = vadd.f32 0.0, %v3022
        %v3024 = vpop.f32.mrf.mxu0
        %v3025 = vadd.f32 0.0, %v3024
        %3026 = vdwg.mxu0
        %3027 = vmatpush.bf16.msra.mxu0 %v2883
        %3028 = vmatpush.bf16.msra.mxu0 %v2867
        %3029 = vmatpush.bf16.msra.mxu0 %v2851
        %3030 = vmatpush.bf16.msra.mxu0 %v2835
        %3031 = vmatpush.bf16.msra.mxu0 %v2819
        %3032 = vmatpush.bf16.msra.mxu0 %v2803
        %3033 = vmatpush.bf16.msra.mxu0 %v2787
        %3034 = vmatpush.bf16.msra.mxu0 %v2771
        %3035 = vmatmul.bf16.gmra.mxu0 %v2962
        %v3036 = vpop.f32.mrf.mxu0
        %v3037 = vadd.f32 0.0, %v3036
        %v3038 = vpop.f32.mrf.mxu0
        %v3039 = vadd.f32 0.0, %v3038
        %3040 = vmatmul.bf16.gmra.mxu0 %v2963
        %v3041 = vpop.f32.mrf.mxu0
        %v3042 = vadd.f32 0.0, %v3041
        %v3043 = vpop.f32.mrf.mxu0
        %v3044 = vadd.f32 0.0, %v3043
        %3045 = vmatmul.bf16.gmra.mxu0 %v2964
        %v3046 = vpop.f32.mrf.mxu0
        %v3047 = vadd.f32 0.0, %v3046
        %v3048 = vpop.f32.mrf.mxu0
        %v3049 = vadd.f32 0.0, %v3048
        %3050 = vmatmul.bf16.gmra.mxu0 %v2965
        %v3051 = vpop.f32.mrf.mxu0
        %v3052 = vadd.f32 0.0, %v3051
        %v3053 = vpop.f32.mrf.mxu0
        %v3054 = vadd.f32 0.0, %v3053
        %3055 = vmatmul.bf16.gmra.mxu0 %v2966
        %v3056 = vpop.f32.mrf.mxu0
        %v3057 = vadd.f32 0.0, %v3056
        %v3058 = vpop.f32.mrf.mxu0
        %v3059 = vadd.f32 0.0, %v3058
        %3060 = vmatmul.bf16.gmra.mxu0 %v2967
        %v3061 = vpop.f32.mrf.mxu0
        %v3062 = vadd.f32 0.0, %v3061
        %v3063 = vpop.f32.mrf.mxu0
        %v3064 = vadd.f32 0.0, %v3063
        %3065 = vmatmul.bf16.gmra.mxu0 %v2968
        %v3066 = vpop.f32.mrf.mxu0
        %v3067 = vadd.f32 0.0, %v3066
        %v3068 = vpop.f32.mrf.mxu0
        %v3069 = vadd.f32 0.0, %v3068
        %3070 = vmatmul.bf16.gmra.mxu0 %v2969
        %v3071 = vpop.f32.mrf.mxu0
        %v3072 = vadd.f32 0.0, %v3071
        %v3073 = vpop.f32.mrf.mxu0
        %v3074 = vadd.f32 0.0, %v3073
        %3075 = vdwg.mxu0
        %3076 = vmatpush.bf16.msra.mxu0 %v2884
        %3077 = vmatpush.bf16.msra.mxu0 %v2868
        %3078 = vmatpush.bf16.msra.mxu0 %v2852
        %3079 = vmatpush.bf16.msra.mxu0 %v2836
        %3080 = vmatpush.bf16.msra.mxu0 %v2820
        %3081 = vmatpush.bf16.msra.mxu0 %v2804
        %3082 = vmatpush.bf16.msra.mxu0 %v2788
        %3083 = vmatpush.bf16.msra.mxu0 %v2772
        %3084 = vmatmul.bf16.gmra.mxu0 %v2962
        %v3085 = vpop.f32.mrf.mxu0
        %v3086 = vadd.f32 0.0, %v3085
        %v3087 = vpop.f32.mrf.mxu0
        %v3088 = vadd.f32 0.0, %v3087
        %3089 = vmatmul.bf16.gmra.mxu0 %v2963
        %v3090 = vpop.f32.mrf.mxu0
        %v3091 = vadd.f32 0.0, %v3090
        %v3092 = vpop.f32.mrf.mxu0
        %v3093 = vadd.f32 0.0, %v3092
        %3094 = vmatmul.bf16.gmra.mxu0 %v2964
        %v3095 = vpop.f32.mrf.mxu0
        %v3096 = vadd.f32 0.0, %v3095
        %v3097 = vpop.f32.mrf.mxu0
        %v3098 = vadd.f32 0.0, %v3097
        %3099 = vmatmul.bf16.gmra.mxu0 %v2965
        %v3100 = vpop.f32.mrf.mxu0
        %v3101 = vadd.f32 0.0, %v3100
        %v3102 = vpop.f32.mrf.mxu0
        %v3103 = vadd.f32 0.0, %v3102
        %3104 = vmatmul.bf16.gmra.mxu0 %v2966
        %v3105 = vpop.f32.mrf.mxu0
        %v3106 = vadd.f32 0.0, %v3105
        %v3107 = vpop.f32.mrf.mxu0
        %v3108 = vadd.f32 0.0, %v3107
        %3109 = vmatmul.bf16.gmra.mxu0 %v2967
        %v3110 = vpop.f32.mrf.mxu0
        %v3111 = vadd.f32 0.0, %v3110
        %v3112 = vpop.f32.mrf.mxu0
        %v3113 = vadd.f32 0.0, %v3112
        %3114 = vmatmul.bf16.gmra.mxu0 %v2968
        %v3115 = vpop.f32.mrf.mxu0
        %v3116 = vadd.f32 0.0, %v3115
        %v3117 = vpop.f32.mrf.mxu0
        %v3118 = vadd.f32 0.0, %v3117
        %3119 = vmatmul.bf16.gmra.mxu0 %v2969
        %v3120 = vpop.f32.mrf.mxu0
        %v3121 = vadd.f32 0.0, %v3120
        %v3122 = vpop.f32.mrf.mxu0
        %v3123 = vadd.f32 0.0, %v3122
        %3124 = vdwg.mxu0
        %3125 = vmatpush.bf16.msra.mxu0 %v2885
        %3126 = vmatpush.bf16.msra.mxu0 %v2869
        %3127 = vmatpush.bf16.msra.mxu0 %v2853
        %3128 = vmatpush.bf16.msra.mxu0 %v2837
        %3129 = vmatpush.bf16.msra.mxu0 %v2821
        %3130 = vmatpush.bf16.msra.mxu0 %v2805
        %3131 = vmatpush.bf16.msra.mxu0 %v2789
        %3132 = vmatpush.bf16.msra.mxu0 %v2773
        %3133 = vmatmul.bf16.gmra.mxu0 %v2962
        %v3134 = vpop.f32.mrf.mxu0
        %v3135 = vadd.f32 0.0, %v3134
        %v3136 = vpop.f32.mrf.mxu0
        %v3137 = vadd.f32 0.0, %v3136
        %3138 = vmatmul.bf16.gmra.mxu0 %v2963
        %v3139 = vpop.f32.mrf.mxu0
        %v3140 = vadd.f32 0.0, %v3139
        %v3141 = vpop.f32.mrf.mxu0
        %v3142 = vadd.f32 0.0, %v3141
        %3143 = vmatmul.bf16.gmra.mxu0 %v2964
        %v3144 = vpop.f32.mrf.mxu0
        %v3145 = vadd.f32 0.0, %v3144
        %v3146 = vpop.f32.mrf.mxu0
        %v3147 = vadd.f32 0.0, %v3146
        %3148 = vmatmul.bf16.gmra.mxu0 %v2965
        %v3149 = vpop.f32.mrf.mxu0
        %v3150 = vadd.f32 0.0, %v3149
        %v3151 = vpop.f32.mrf.mxu0
        %v3152 = vadd.f32 0.0, %v3151
        %3153 = vmatmul.bf16.gmra.mxu0 %v2966
        %v3154 = vpop.f32.mrf.mxu0
        %v3155 = vadd.f32 0.0, %v3154
        %v3156 = vpop.f32.mrf.mxu0
        %v3157 = vadd.f32 0.0, %v3156
        %3158 = vmatmul.bf16.gmra.mxu0 %v2967
        %v3159 = vpop.f32.mrf.mxu0
        %v3160 = vadd.f32 0.0, %v3159
        %v3161 = vpop.f32.mrf.mxu0
        %v3162 = vadd.f32 0.0, %v3161
        %3163 = vmatmul.bf16.gmra.mxu0 %v2968
        %v3164 = vpop.f32.mrf.mxu0
        %v3165 = vadd.f32 0.0, %v3164
        %v3166 = vpop.f32.mrf.mxu0
        %v3167 = vadd.f32 0.0, %v3166
        %3168 = vmatmul.bf16.gmra.mxu0 %v2969
        %v3169 = vpop.f32.mrf.mxu0
        %v3170 = vadd.f32 0.0, %v3169
        %v3171 = vpop.f32.mrf.mxu0
        %v3172 = vadd.f32 0.0, %v3171
        %3173 = vdwg.mxu0
        %3174 = vmatpush.bf16.msra.mxu0 %v2886
        %3175 = vmatpush.bf16.msra.mxu0 %v2870
        %3176 = vmatpush.bf16.msra.mxu0 %v2854
        %3177 = vmatpush.bf16.msra.mxu0 %v2838
        %3178 = vmatpush.bf16.msra.mxu0 %v2822
        %3179 = vmatpush.bf16.msra.mxu0 %v2806
        %3180 = vmatpush.bf16.msra.mxu0 %v2790
        %3181 = vmatpush.bf16.msra.mxu0 %v2774
        %3182 = vmatmul.bf16.gmra.mxu0 %v2962
        %v3183 = vpop.f32.mrf.mxu0
        %v3184 = vadd.f32 0.0, %v3183
        %v3185 = vpop.f32.mrf.mxu0
        %v3186 = vadd.f32 0.0, %v3185
        %3187 = vmatmul.bf16.gmra.mxu0 %v2963
        %v3188 = vpop.f32.mrf.mxu0
        %v3189 = vadd.f32 0.0, %v3188
        %v3190 = vpop.f32.mrf.mxu0
        %v3191 = vadd.f32 0.0, %v3190
        %3192 = vmatmul.bf16.gmra.mxu0 %v2964
        %v3193 = vpop.f32.mrf.mxu0
        %v3194 = vadd.f32 0.0, %v3193
        %v3195 = vpop.f32.mrf.mxu0
        %v3196 = vadd.f32 0.0, %v3195
        %3197 = vmatmul.bf16.gmra.mxu0 %v2965
        %v3198 = vpop.f32.mrf.mxu0
        %v3199 = vadd.f32 0.0, %v3198
        %v3200 = vpop.f32.mrf.mxu0
        %v3201 = vadd.f32 0.0, %v3200
        %3202 = vmatmul.bf16.gmra.mxu0 %v2966
        %v3203 = vpop.f32.mrf.mxu0
        %v3204 = vadd.f32 0.0, %v3203
        %v3205 = vpop.f32.mrf.mxu0
        %v3206 = vadd.f32 0.0, %v3205
        %3207 = vmatmul.bf16.gmra.mxu0 %v2967
        %v3208 = vpop.f32.mrf.mxu0
        %v3209 = vadd.f32 0.0, %v3208
        %v3210 = vpop.f32.mrf.mxu0
        %v3211 = vadd.f32 0.0, %v3210
        %3212 = vmatmul.bf16.gmra.mxu0 %v2968
        %v3213 = vpop.f32.mrf.mxu0
        %v3214 = vadd.f32 0.0, %v3213
        %v3215 = vpop.f32.mrf.mxu0
        %v3216 = vadd.f32 0.0, %v3215
        %3217 = vmatmul.bf16.gmra.mxu0 %v2969
        %v3218 = vpop.f32.mrf.mxu0
        %v3219 = vadd.f32 0.0, %v3218
        %v3220 = vpop.f32.mrf.mxu0
        %v3221 = vadd.f32 0.0, %v3220
        %3222 = vdwg.mxu0
        %3223 = vmatpush.bf16.msra.mxu0 %v2887
        %3224 = vmatpush.bf16.msra.mxu0 %v2871
        %3225 = vmatpush.bf16.msra.mxu0 %v2855
        %3226 = vmatpush.bf16.msra.mxu0 %v2839
        %3227 = vmatpush.bf16.msra.mxu0 %v2823
        %3228 = vmatpush.bf16.msra.mxu0 %v2807
        %3229 = vmatpush.bf16.msra.mxu0 %v2791
        %3230 = vmatpush.bf16.msra.mxu0 %v2775
        %3231 = vmatmul.bf16.gmra.mxu0 %v2962
        %v3232 = vpop.f32.mrf.mxu0
        %v3233 = vadd.f32 0.0, %v3232
        %v3234 = vpop.f32.mrf.mxu0
        %v3235 = vadd.f32 0.0, %v3234
        %3236 = vmatmul.bf16.gmra.mxu0 %v2963
        %v3237 = vpop.f32.mrf.mxu0
        %v3238 = vadd.f32 0.0, %v3237
        %v3239 = vpop.f32.mrf.mxu0
        %v3240 = vadd.f32 0.0, %v3239
        %3241 = vmatmul.bf16.gmra.mxu0 %v2964
        %v3242 = vpop.f32.mrf.mxu0
        %v3243 = vadd.f32 0.0, %v3242
        %v3244 = vpop.f32.mrf.mxu0
        %v3245 = vadd.f32 0.0, %v3244
        %3246 = vmatmul.bf16.gmra.mxu0 %v2965
        %v3247 = vpop.f32.mrf.mxu0
        %v3248 = vadd.f32 0.0, %v3247
        %v3249 = vpop.f32.mrf.mxu0
        %v3250 = vadd.f32 0.0, %v3249
        %3251 = vmatmul.bf16.gmra.mxu0 %v2966
        %v3252 = vpop.f32.mrf.mxu0
        %v3253 = vadd.f32 0.0, %v3252
        %v3254 = vpop.f32.mrf.mxu0
        %v3255 = vadd.f32 0.0, %v3254
        %3256 = vmatmul.bf16.gmra.mxu0 %v2967
        %v3257 = vpop.f32.mrf.mxu0
        %v3258 = vadd.f32 0.0, %v3257
        %v3259 = vpop.f32.mrf.mxu0
        %v3260 = vadd.f32 0.0, %v3259
        %3261 = vmatmul.bf16.gmra.mxu0 %v2968
        %v3262 = vpop.f32.mrf.mxu0
        %v3263 = vadd.f32 0.0, %v3262
        %v3264 = vpop.f32.mrf.mxu0
        %v3265 = vadd.f32 0.0, %v3264
        %3266 = vmatmul.bf16.gmra.mxu0 %v2969
        %v3267 = vpop.f32.mrf.mxu0
        %v3268 = vadd.f32 0.0, %v3267
        %v3269 = vpop.f32.mrf.mxu0
        %v3270 = vadd.f32 0.0, %v3269
        %3271 = vdwg.mxu0
        %3272 = vmatpush.bf16.msra.mxu0 %v2888
        %3273 = vmatpush.bf16.msra.mxu0 %v2872
        %3274 = vmatpush.bf16.msra.mxu0 %v2856
        %3275 = vmatpush.bf16.msra.mxu0 %v2840
        %3276 = vmatpush.bf16.msra.mxu0 %v2824
        %3277 = vmatpush.bf16.msra.mxu0 %v2808
        %3278 = vmatpush.bf16.msra.mxu0 %v2792
        %3279 = vmatpush.bf16.msra.mxu0 %v2776
        %3280 = vmatmul.bf16.gmra.mxu0 %v2962
        %v3281 = vpop.f32.mrf.mxu0
        %v3282 = vadd.f32 0.0, %v3281
        %v3283 = vpop.f32.mrf.mxu0
        %v3284 = vadd.f32 0.0, %v3283
        %3285 = vmatmul.bf16.gmra.mxu0 %v2963
        %v3286 = vpop.f32.mrf.mxu0
        %v3287 = vadd.f32 0.0, %v3286
        %v3288 = vpop.f32.mrf.mxu0
        %v3289 = vadd.f32 0.0, %v3288
        %3290 = vmatmul.bf16.gmra.mxu0 %v2964
        %v3291 = vpop.f32.mrf.mxu0
        %v3292 = vadd.f32 0.0, %v3291
        %v3293 = vpop.f32.mrf.mxu0
        %v3294 = vadd.f32 0.0, %v3293
        %3295 = vmatmul.bf16.gmra.mxu0 %v2965
        %v3296 = vpop.f32.mrf.mxu0
        %v3297 = vadd.f32 0.0, %v3296
        %v3298 = vpop.f32.mrf.mxu0
        %v3299 = vadd.f32 0.0, %v3298
        %3300 = vmatmul.bf16.gmra.mxu0 %v2966
        %v3301 = vpop.f32.mrf.mxu0
        %v3302 = vadd.f32 0.0, %v3301
        %v3303 = vpop.f32.mrf.mxu0
        %v3304 = vadd.f32 0.0, %v3303
        %3305 = vmatmul.bf16.gmra.mxu0 %v2967
        %v3306 = vpop.f32.mrf.mxu0
        %v3307 = vadd.f32 0.0, %v3306
        %v3308 = vpop.f32.mrf.mxu0
        %v3309 = vadd.f32 0.0, %v3308
        %3310 = vmatmul.bf16.gmra.mxu0 %v2968
        %v3311 = vpop.f32.mrf.mxu0
        %v3312 = vadd.f32 0.0, %v3311
        %v3313 = vpop.f32.mrf.mxu0
        %v3314 = vadd.f32 0.0, %v3313
        %3315 = vmatmul.bf16.gmra.mxu0 %v2969
        %v3316 = vpop.f32.mrf.mxu0
        %v3317 = vadd.f32 0.0, %v3316
        %v3318 = vpop.f32.mrf.mxu0
        %v3319 = vadd.f32 0.0, %v3318
        %3320 = vdwg.mxu0
        %3321 = vmatpush.bf16.msra.mxu0 %v2889
        %3322 = vmatpush.bf16.msra.mxu0 %v2873
        %3323 = vmatpush.bf16.msra.mxu0 %v2857
        %3324 = vmatpush.bf16.msra.mxu0 %v2841
        %3325 = vmatpush.bf16.msra.mxu0 %v2825
        %3326 = vmatpush.bf16.msra.mxu0 %v2809
        %3327 = vmatpush.bf16.msra.mxu0 %v2793
        %3328 = vmatpush.bf16.msra.mxu0 %v2777
        %3329 = vmatmul.bf16.gmra.mxu0 %v2962
        %v3330 = vpop.f32.mrf.mxu0
        %v3331 = vadd.f32 0.0, %v3330
        %v3332 = vpop.f32.mrf.mxu0
        %v3333 = vadd.f32 0.0, %v3332
        %3334 = vmatmul.bf16.gmra.mxu0 %v2963
        %v3335 = vpop.f32.mrf.mxu0
        %v3336 = vadd.f32 0.0, %v3335
        %v3337 = vpop.f32.mrf.mxu0
        %v3338 = vadd.f32 0.0, %v3337
        %3339 = vmatmul.bf16.gmra.mxu0 %v2964
        %v3340 = vpop.f32.mrf.mxu0
        %v3341 = vadd.f32 0.0, %v3340
        %v3342 = vpop.f32.mrf.mxu0
        %v3343 = vadd.f32 0.0, %v3342
        %3344 = vmatmul.bf16.gmra.mxu0 %v2965
        %v3345 = vpop.f32.mrf.mxu0
        %v3346 = vadd.f32 0.0, %v3345
        %v3347 = vpop.f32.mrf.mxu0
        %v3348 = vadd.f32 0.0, %v3347
        %3349 = vmatmul.bf16.gmra.mxu0 %v2966
        %v3350 = vpop.f32.mrf.mxu0
        %v3351 = vadd.f32 0.0, %v3350
        %v3352 = vpop.f32.mrf.mxu0
        %v3353 = vadd.f32 0.0, %v3352
        %3354 = vmatmul.bf16.gmra.mxu0 %v2967
        %v3355 = vpop.f32.mrf.mxu0
        %v3356 = vadd.f32 0.0, %v3355
        %v3357 = vpop.f32.mrf.mxu0
        %v3358 = vadd.f32 0.0, %v3357
        %3359 = vmatmul.bf16.gmra.mxu0 %v2968
        %v3360 = vpop.f32.mrf.mxu0
        %v3361 = vadd.f32 0.0, %v3360
        %v3362 = vpop.f32.mrf.mxu0
        %v3363 = vadd.f32 0.0, %v3362
        %3364 = vmatmul.bf16.gmra.mxu0 %v2969
        %v3365 = vpop.f32.mrf.mxu0
        %v3366 = vadd.f32 0.0, %v3365
        %v3367 = vpop.f32.mrf.mxu0
        %v3368 = vadd.f32 0.0, %v3367
        %3369 = vdwg.mxu0
        %3370 = vmatpush.bf16.msra.mxu0 %v2890
        %3371 = vmatpush.bf16.msra.mxu0 %v2874
        %3372 = vmatpush.bf16.msra.mxu0 %v2858
        %3373 = vmatpush.bf16.msra.mxu0 %v2842
        %3374 = vmatpush.bf16.msra.mxu0 %v2826
        %3375 = vmatpush.bf16.msra.mxu0 %v2810
        %3376 = vmatpush.bf16.msra.mxu0 %v2794
        %3377 = vmatpush.bf16.msra.mxu0 %v2778
        %3378 = vmatmul.bf16.gmra.mxu0 %v2962
        %v3379 = vpop.f32.mrf.mxu0
        %v3380 = vadd.f32 0.0, %v3379
        %v3381 = vpop.f32.mrf.mxu0
        %v3382 = vadd.f32 0.0, %v3381
        %3383 = vmatmul.bf16.gmra.mxu0 %v2963
        %v3384 = vpop.f32.mrf.mxu0
        %v3385 = vadd.f32 0.0, %v3384
        %v3386 = vpop.f32.mrf.mxu0
        %v3387 = vadd.f32 0.0, %v3386
        %3388 = vmatmul.bf16.gmra.mxu0 %v2964
        %v3389 = vpop.f32.mrf.mxu0
        %v3390 = vadd.f32 0.0, %v3389
        %v3391 = vpop.f32.mrf.mxu0
        %v3392 = vadd.f32 0.0, %v3391
        %3393 = vmatmul.bf16.gmra.mxu0 %v2965
        %v3394 = vpop.f32.mrf.mxu0
        %v3395 = vadd.f32 0.0, %v3394
        %v3396 = vpop.f32.mrf.mxu0
        %v3397 = vadd.f32 0.0, %v3396
        %3398 = vmatmul.bf16.gmra.mxu0 %v2966
        %v3399 = vpop.f32.mrf.mxu0
        %v3400 = vadd.f32 0.0, %v3399
        %v3401 = vpop.f32.mrf.mxu0
        %v3402 = vadd.f32 0.0, %v3401
        %3403 = vmatmul.bf16.gmra.mxu0 %v2967
        %v3404 = vpop.f32.mrf.mxu0
        %v3405 = vadd.f32 0.0, %v3404
        %v3406 = vpop.f32.mrf.mxu0
        %v3407 = vadd.f32 0.0, %v3406
        %3408 = vmatmul.bf16.gmra.mxu0 %v2968
        %v3409 = vpop.f32.mrf.mxu0
        %v3410 = vadd.f32 0.0, %v3409
        %v3411 = vpop.f32.mrf.mxu0
        %v3412 = vadd.f32 0.0, %v3411
        %3413 = vmatmul.bf16.gmra.mxu0 %v2969
        %v3414 = vpop.f32.mrf.mxu0
        %v3415 = vadd.f32 0.0, %v3414
        %v3416 = vpop.f32.mrf.mxu0
        %v3417 = vadd.f32 0.0, %v3416
        %3418 = vdwg.mxu0
        %3419 = vmatpush.bf16.msra.mxu0 %v2891
        %3420 = vmatpush.bf16.msra.mxu0 %v2875
        %3421 = vmatpush.bf16.msra.mxu0 %v2859
        %3422 = vmatpush.bf16.msra.mxu0 %v2843
        %3423 = vmatpush.bf16.msra.mxu0 %v2827
        %3424 = vmatpush.bf16.msra.mxu0 %v2811
        %3425 = vmatpush.bf16.msra.mxu0 %v2795
        %3426 = vmatpush.bf16.msra.mxu0 %v2779
        %3427 = vmatmul.bf16.gmra.mxu0 %v2962
        %v3428 = vpop.f32.mrf.mxu0
        %v3429 = vadd.f32 0.0, %v3428
        %v3430 = vpop.f32.mrf.mxu0
        %v3431 = vadd.f32 0.0, %v3430
        %3432 = vmatmul.bf16.gmra.mxu0 %v2963
        %v3433 = vpop.f32.mrf.mxu0
        %v3434 = vadd.f32 0.0, %v3433
        %v3435 = vpop.f32.mrf.mxu0
        %v3436 = vadd.f32 0.0, %v3435
        %3437 = vmatmul.bf16.gmra.mxu0 %v2964
        %v3438 = vpop.f32.mrf.mxu0
        %v3439 = vadd.f32 0.0, %v3438
        %v3440 = vpop.f32.mrf.mxu0
        %v3441 = vadd.f32 0.0, %v3440
        %3442 = vmatmul.bf16.gmra.mxu0 %v2965
        %v3443 = vpop.f32.mrf.mxu0
        %v3444 = vadd.f32 0.0, %v3443
        %v3445 = vpop.f32.mrf.mxu0
        %v3446 = vadd.f32 0.0, %v3445
        %3447 = vmatmul.bf16.gmra.mxu0 %v2966
        %v3448 = vpop.f32.mrf.mxu0
        %v3449 = vadd.f32 0.0, %v3448
        %v3450 = vpop.f32.mrf.mxu0
        %v3451 = vadd.f32 0.0, %v3450
        %3452 = vmatmul.bf16.gmra.mxu0 %v2967
        %v3453 = vpop.f32.mrf.mxu0
        %v3454 = vadd.f32 0.0, %v3453
        %v3455 = vpop.f32.mrf.mxu0
        %v3456 = vadd.f32 0.0, %v3455
        %3457 = vmatmul.bf16.gmra.mxu0 %v2968
        %v3458 = vpop.f32.mrf.mxu0
        %v3459 = vadd.f32 0.0, %v3458
        %v3460 = vpop.f32.mrf.mxu0
        %v3461 = vadd.f32 0.0, %v3460
        %3462 = vmatmul.bf16.gmra.mxu0 %v2969
        %v3463 = vpop.f32.mrf.mxu0
        %v3464 = vadd.f32 0.0, %v3463
        %v3465 = vpop.f32.mrf.mxu0
        %v3466 = vadd.f32 0.0, %v3465
        %3467 = vdwg.mxu0
        %3468 = vmatpush.bf16.msra.mxu0 %v2892
        %3469 = vmatpush.bf16.msra.mxu0 %v2876
        %3470 = vmatpush.bf16.msra.mxu0 %v2860
        %3471 = vmatpush.bf16.msra.mxu0 %v2844
        %3472 = vmatpush.bf16.msra.mxu0 %v2828
        %3473 = vmatpush.bf16.msra.mxu0 %v2812
        %3474 = vmatpush.bf16.msra.mxu0 %v2796
        %3475 = vmatpush.bf16.msra.mxu0 %v2780
        %3476 = vmatmul.bf16.gmra.mxu0 %v2962
        %v3477 = vpop.f32.mrf.mxu0
        %v3478 = vadd.f32 0.0, %v3477
        %v3479 = vpop.f32.mrf.mxu0
        %v3480 = vadd.f32 0.0, %v3479
        %3481 = vmatmul.bf16.gmra.mxu0 %v2963
        %v3482 = vpop.f32.mrf.mxu0
        %v3483 = vadd.f32 0.0, %v3482
        %v3484 = vpop.f32.mrf.mxu0
        %v3485 = vadd.f32 0.0, %v3484
        %3486 = vmatmul.bf16.gmra.mxu0 %v2964
        %v3487 = vpop.f32.mrf.mxu0
        %v3488 = vadd.f32 0.0, %v3487
        %v3489 = vpop.f32.mrf.mxu0
        %v3490 = vadd.f32 0.0, %v3489
        %3491 = vmatmul.bf16.gmra.mxu0 %v2965
        %v3492 = vpop.f32.mrf.mxu0
        %v3493 = vadd.f32 0.0, %v3492
        %v3494 = vpop.f32.mrf.mxu0
        %v3495 = vadd.f32 0.0, %v3494
        %3496 = vmatmul.bf16.gmra.mxu0 %v2966
        %v3497 = vpop.f32.mrf.mxu0
        %v3498 = vadd.f32 0.0, %v3497
        %v3499 = vpop.f32.mrf.mxu0
        %v3500 = vadd.f32 0.0, %v3499
        %3501 = vmatmul.bf16.gmra.mxu0 %v2967
        %v3502 = vpop.f32.mrf.mxu0
        %v3503 = vadd.f32 0.0, %v3502
        %v3504 = vpop.f32.mrf.mxu0
        %v3505 = vadd.f32 0.0, %v3504
        %3506 = vmatmul.bf16.gmra.mxu0 %v2968
        %v3507 = vpop.f32.mrf.mxu0
        %v3508 = vadd.f32 0.0, %v3507
        %v3509 = vpop.f32.mrf.mxu0
        %v3510 = vadd.f32 0.0, %v3509
        %3511 = vmatmul.bf16.gmra.mxu0 %v2969
        %v3512 = vpop.f32.mrf.mxu0
        %v3513 = vadd.f32 0.0, %v3512
        %v3514 = vpop.f32.mrf.mxu0
        %v3515 = vadd.f32 0.0, %v3514
        %3516 = vdwg.mxu0
        %3517 = vmatpush.bf16.msra.mxu0 %v2893
        %3518 = vmatpush.bf16.msra.mxu0 %v2877
        %3519 = vmatpush.bf16.msra.mxu0 %v2861
        %3520 = vmatpush.bf16.msra.mxu0 %v2845
        %3521 = vmatpush.bf16.msra.mxu0 %v2829
        %3522 = vmatpush.bf16.msra.mxu0 %v2813
        %3523 = vmatpush.bf16.msra.mxu0 %v2797
        %3524 = vmatpush.bf16.msra.mxu0 %v2781
        %3525 = vmatmul.bf16.gmra.mxu0 %v2962
        %v3526 = vpop.f32.mrf.mxu0
        %v3527 = vadd.f32 0.0, %v3526
        %v3528 = vpop.f32.mrf.mxu0
        %v3529 = vadd.f32 0.0, %v3528
        %3530 = vmatmul.bf16.gmra.mxu0 %v2963
        %v3531 = vpop.f32.mrf.mxu0
        %v3532 = vadd.f32 0.0, %v3531
        %v3533 = vpop.f32.mrf.mxu0
        %v3534 = vadd.f32 0.0, %v3533
        %3535 = vmatmul.bf16.gmra.mxu0 %v2964
        %v3536 = vpop.f32.mrf.mxu0
        %v3537 = vadd.f32 0.0, %v3536
        %v3538 = vpop.f32.mrf.mxu0
        %v3539 = vadd.f32 0.0, %v3538
        %3540 = vmatmul.bf16.gmra.mxu0 %v2965
        %v3541 = vpop.f32.mrf.mxu0
        %v3542 = vadd.f32 0.0, %v3541
        %v3543 = vpop.f32.mrf.mxu0
        %v3544 = vadd.f32 0.0, %v3543
        %3545 = vmatmul.bf16.gmra.mxu0 %v2966
        %v3546 = vpop.f32.mrf.mxu0
        %v3547 = vadd.f32 0.0, %v3546
        %v3548 = vpop.f32.mrf.mxu0
        %v3549 = vadd.f32 0.0, %v3548
        %3550 = vmatmul.bf16.gmra.mxu0 %v2967
        %v3551 = vpop.f32.mrf.mxu0
        %v3552 = vadd.f32 0.0, %v3551
        %v3553 = vpop.f32.mrf.mxu0
        %v3554 = vadd.f32 0.0, %v3553
        %3555 = vmatmul.bf16.gmra.mxu0 %v2968
        %v3556 = vpop.f32.mrf.mxu0
        %v3557 = vadd.f32 0.0, %v3556
        %v3558 = vpop.f32.mrf.mxu0
        %v3559 = vadd.f32 0.0, %v3558
        %3560 = vmatmul.bf16.gmra.mxu0 %v2969
        %v3561 = vpop.f32.mrf.mxu0
        %v3562 = vadd.f32 0.0, %v3561
        %v3563 = vpop.f32.mrf.mxu0
        %v3564 = vadd.f32 0.0, %v3563
        %3565 = vdwg.mxu0
        %3566 = vmatpush.bf16.msra.mxu0 %v2894
        %3567 = vmatpush.bf16.msra.mxu0 %v2878
        %3568 = vmatpush.bf16.msra.mxu0 %v2862
        %3569 = vmatpush.bf16.msra.mxu0 %v2846
        %3570 = vmatpush.bf16.msra.mxu0 %v2830
        %3571 = vmatpush.bf16.msra.mxu0 %v2814
        %3572 = vmatpush.bf16.msra.mxu0 %v2798
        %3573 = vmatpush.bf16.msra.mxu0 %v2782
        %3574 = vmatmul.bf16.gmra.mxu0 %v2962
        %v3575 = vpop.f32.mrf.mxu0
        %v3576 = vadd.f32 0.0, %v3575
        %v3577 = vpop.f32.mrf.mxu0
        %v3578 = vadd.f32 0.0, %v3577
        %3579 = vmatmul.bf16.gmra.mxu0 %v2963
        %v3580 = vpop.f32.mrf.mxu0
        %v3581 = vadd.f32 0.0, %v3580
        %v3582 = vpop.f32.mrf.mxu0
        %v3583 = vadd.f32 0.0, %v3582
        %3584 = vmatmul.bf16.gmra.mxu0 %v2964
        %v3585 = vpop.f32.mrf.mxu0
        %v3586 = vadd.f32 0.0, %v3585
        %v3587 = vpop.f32.mrf.mxu0
        %v3588 = vadd.f32 0.0, %v3587
        %3589 = vmatmul.bf16.gmra.mxu0 %v2965
        %v3590 = vpop.f32.mrf.mxu0
        %v3591 = vadd.f32 0.0, %v3590
        %v3592 = vpop.f32.mrf.mxu0
        %v3593 = vadd.f32 0.0, %v3592
        %3594 = vmatmul.bf16.gmra.mxu0 %v2966
        %v3595 = vpop.f32.mrf.mxu0
        %v3596 = vadd.f32 0.0, %v3595
        %v3597 = vpop.f32.mrf.mxu0
        %v3598 = vadd.f32 0.0, %v3597
        %3599 = vmatmul.bf16.gmra.mxu0 %v2967
        %v3600 = vpop.f32.mrf.mxu0
        %v3601 = vadd.f32 0.0, %v3600
        %v3602 = vpop.f32.mrf.mxu0
        %v3603 = vadd.f32 0.0, %v3602
        %3604 = vmatmul.bf16.gmra.mxu0 %v2968
        %v3605 = vpop.f32.mrf.mxu0
        %v3606 = vadd.f32 0.0, %v3605
        %v3607 = vpop.f32.mrf.mxu0
        %v3608 = vadd.f32 0.0, %v3607
        %3609 = vmatmul.bf16.gmra.mxu0 %v2969
        %v3610 = vpop.f32.mrf.mxu0
        %v3611 = vadd.f32 0.0, %v3610
        %v3612 = vpop.f32.mrf.mxu0
        %v3613 = vadd.f32 0.0, %v3612
        %3614 = vdwg.mxu0
        %3615 = vmatpush.bf16.msra.mxu0 %v2895
        %3616 = vmatpush.bf16.msra.mxu0 %v2879
        %3617 = vmatpush.bf16.msra.mxu0 %v2863
        %3618 = vmatpush.bf16.msra.mxu0 %v2847
        %3619 = vmatpush.bf16.msra.mxu0 %v2831
        %3620 = vmatpush.bf16.msra.mxu0 %v2815
        %3621 = vmatpush.bf16.msra.mxu0 %v2799
        %3622 = vmatpush.bf16.msra.mxu0 %v2783
        %3623 = vmatmul.bf16.gmra.mxu0 %v2962
        %v3624 = vpop.f32.mrf.mxu0
        %v3625 = vadd.f32 0.0, %v3624
        %v3626 = vpop.f32.mrf.mxu0
        %v3627 = vadd.f32 0.0, %v3626
        %3628 = vmatmul.bf16.gmra.mxu0 %v2963
        %v3629 = vpop.f32.mrf.mxu0
        %v3630 = vadd.f32 0.0, %v3629
        %v3631 = vpop.f32.mrf.mxu0
        %v3632 = vadd.f32 0.0, %v3631
        %3633 = vmatmul.bf16.gmra.mxu0 %v2964
        %v3634 = vpop.f32.mrf.mxu0
        %v3635 = vadd.f32 0.0, %v3634
        %v3636 = vpop.f32.mrf.mxu0
        %v3637 = vadd.f32 0.0, %v3636
        %3638 = vmatmul.bf16.gmra.mxu0 %v2965
        %v3639 = vpop.f32.mrf.mxu0
        %v3640 = vadd.f32 0.0, %v3639
        %v3641 = vpop.f32.mrf.mxu0
        %v3642 = vadd.f32 0.0, %v3641
        %3643 = vmatmul.bf16.gmra.mxu0 %v2966
        %v3644 = vpop.f32.mrf.mxu0
        %v3645 = vadd.f32 0.0, %v3644
        %v3646 = vpop.f32.mrf.mxu0
        %v3647 = vadd.f32 0.0, %v3646
        %3648 = vmatmul.bf16.gmra.mxu0 %v2967
        %v3649 = vpop.f32.mrf.mxu0
        %v3650 = vadd.f32 0.0, %v3649
        %v3651 = vpop.f32.mrf.mxu0
        %v3652 = vadd.f32 0.0, %v3651
        %3653 = vmatmul.bf16.gmra.mxu0 %v2968
        %v3654 = vpop.f32.mrf.mxu0
        %v3655 = vadd.f32 0.0, %v3654
        %v3656 = vpop.f32.mrf.mxu0
        %v3657 = vadd.f32 0.0, %v3656
        %3658 = vmatmul.bf16.gmra.mxu0 %v2969
        %v3659 = vpop.f32.mrf.mxu0
        %v3660 = vadd.f32 0.0, %v3659
        %v3661 = vpop.f32.mrf.mxu0
        %v3662 = vadd.f32 0.0, %v3661
        %3663 = vdwg.mxu0
        %3664 = vmatpush.bf16.msra.mxu0 %v2896
        %3665 = vmatpush.bf16.msra.mxu0 %v2880
        %3666 = vmatpush.bf16.msra.mxu0 %v2864
        %3667 = vmatpush.bf16.msra.mxu0 %v2848
        %3668 = vmatpush.bf16.msra.mxu0 %v2832
        %3669 = vmatpush.bf16.msra.mxu0 %v2816
        %3670 = vmatpush.bf16.msra.mxu0 %v2800
        %3671 = vmatpush.bf16.msra.mxu0 %v2784
        %3672 = vmatmul.bf16.gmra.mxu0 %v2962
        %v3673 = vpop.f32.mrf.mxu0
        %v3674 = vadd.f32 0.0, %v3673
        %v3675 = vpop.f32.mrf.mxu0
        %v3676 = vadd.f32 0.0, %v3675
        %3677 = vmatmul.bf16.gmra.mxu0 %v2963
        %v3678 = vpop.f32.mrf.mxu0
        %v3679 = vadd.f32 0.0, %v3678
        %v3680 = vpop.f32.mrf.mxu0
        %v3681 = vadd.f32 0.0, %v3680
        %3682 = vmatmul.bf16.gmra.mxu0 %v2964
        %v3683 = vpop.f32.mrf.mxu0
        %v3684 = vadd.f32 0.0, %v3683
        %v3685 = vpop.f32.mrf.mxu0
        %v3686 = vadd.f32 0.0, %v3685
        %3687 = vmatmul.bf16.gmra.mxu0 %v2965
        %v3688 = vpop.f32.mrf.mxu0
        %v3689 = vadd.f32 0.0, %v3688
        %v3690 = vpop.f32.mrf.mxu0
        %v3691 = vadd.f32 0.0, %v3690
        %3692 = vmatmul.bf16.gmra.mxu0 %v2966
        %v3693 = vpop.f32.mrf.mxu0
        %v3694 = vadd.f32 0.0, %v3693
        %v3695 = vpop.f32.mrf.mxu0
        %v3696 = vadd.f32 0.0, %v3695
        %3697 = vmatmul.bf16.gmra.mxu0 %v2967
        %v3698 = vpop.f32.mrf.mxu0
        %v3699 = vadd.f32 0.0, %v3698
        %v3700 = vpop.f32.mrf.mxu0
        %v3701 = vadd.f32 0.0, %v3700
        %3702 = vmatmul.bf16.gmra.mxu0 %v2968
        %v3703 = vpop.f32.mrf.mxu0
        %v3704 = vadd.f32 0.0, %v3703
        %v3705 = vpop.f32.mrf.mxu0
        %v3706 = vadd.f32 0.0, %v3705
        %3707 = vmatmul.bf16.gmra.mxu0 %v2969
        %v3708 = vpop.f32.mrf.mxu0
        %v3709 = vadd.f32 0.0, %v3708
        %v3710 = vpop.f32.mrf.mxu0
        %v3711 = vadd.f32 0.0, %v3710
        %3712 = vdwg.mxu0
        %3713 = vmatpush.bf16.msra.mxu0 %v2897
        %3714 = vmatpush.bf16.msra.mxu0 %v2881
        %3715 = vmatpush.bf16.msra.mxu0 %v2865
        %3716 = vmatpush.bf16.msra.mxu0 %v2849
        %3717 = vmatpush.bf16.msra.mxu0 %v2833
        %3718 = vmatpush.bf16.msra.mxu0 %v2817
        %3719 = vmatpush.bf16.msra.mxu0 %v2801
        %3720 = vmatpush.bf16.msra.mxu0 %v2785
        %3721 = vmatmul.bf16.gmra.mxu0 %v2962
        %v3722 = vpop.f32.mrf.mxu0
        %v3723 = vadd.f32 0.0, %v3722
        %v3724 = vpop.f32.mrf.mxu0
        %v3725 = vadd.f32 0.0, %v3724
        %3726 = vmatmul.bf16.gmra.mxu0 %v2963
        %v3727 = vpop.f32.mrf.mxu0
        %v3728 = vadd.f32 0.0, %v3727
        %v3729 = vpop.f32.mrf.mxu0
        %v3730 = vadd.f32 0.0, %v3729
        %3731 = vmatmul.bf16.gmra.mxu0 %v2964
        %v3732 = vpop.f32.mrf.mxu0
        %v3733 = vadd.f32 0.0, %v3732
        %v3734 = vpop.f32.mrf.mxu0
        %v3735 = vadd.f32 0.0, %v3734
        %3736 = vmatmul.bf16.gmra.mxu0 %v2965
        %v3737 = vpop.f32.mrf.mxu0
        %v3738 = vadd.f32 0.0, %v3737
        %v3739 = vpop.f32.mrf.mxu0
        %v3740 = vadd.f32 0.0, %v3739
        %3741 = vmatmul.bf16.gmra.mxu0 %v2966
        %v3742 = vpop.f32.mrf.mxu0
        %v3743 = vadd.f32 0.0, %v3742
        %v3744 = vpop.f32.mrf.mxu0
        %v3745 = vadd.f32 0.0, %v3744
        %3746 = vmatmul.bf16.gmra.mxu0 %v2967
        %v3747 = vpop.f32.mrf.mxu0
        %v3748 = vadd.f32 0.0, %v3747
        %v3749 = vpop.f32.mrf.mxu0
        %v3750 = vadd.f32 0.0, %v3749
        %3751 = vmatmul.bf16.gmra.mxu0 %v2968
        %v3752 = vpop.f32.mrf.mxu0
        %v3753 = vadd.f32 0.0, %v3752
        %v3754 = vpop.f32.mrf.mxu0
        %v3755 = vadd.f32 0.0, %v3754
        %3756 = vmatmul.bf16.gmra.mxu0 %v2969
        %v3757 = vpop.f32.mrf.mxu0
        %v3758 = vadd.f32 0.0, %v3757
        %v3759 = vpop.f32.mrf.mxu0
        %v3760 = vadd.f32 0.0, %v3759
        %3761 = vdwg.mxu0
        %v3778 = vunpack.c.l.b16 %v2898
        %v3779 = vunpack.c.l.b16 %v2899
        %v3780 = vunpack.c.l.b16 %v2900
        %v3781 = vunpack.c.l.b16 %v2901
        %v3782 = vunpack.c.l.b16 %v2902
        %v3783 = vunpack.c.l.b16 %v2903
        %v3784 = vunpack.c.l.b16 %v2904
        %v3785 = vunpack.c.l.b16 %v2905
        %v3786 = vunpack.c.l.b16 %v2906
        %v3787 = vunpack.c.l.b16 %v2907
        %v3788 = vunpack.c.l.b16 %v2908
        %v3789 = vunpack.c.l.b16 %v2909
        %v3790 = vunpack.c.l.b16 %v2910
        %v3791 = vunpack.c.l.b16 %v2911
        %v3792 = vunpack.c.l.b16 %v2912
        %v3793 = vunpack.c.l.b16 %v2913
        %v3794 = vpack.c.b16 %v3779, %v3778
        %v3795 = vpack.c.b16 %v3781, %v3780
        %v3796 = vpack.c.b16 %v3783, %v3782
        %v3797 = vpack.c.b16 %v3785, %v3784
        %v3798 = vpack.c.b16 %v3787, %v3786
        %v3799 = vpack.c.b16 %v3789, %v3788
        %v3800 = vpack.c.b16 %v3791, %v3790
        %v3801 = vpack.c.b16 %v3793, %v3792
        %3810 = vmatpush.bf16.msra.mxu0 %v1970
        %3811 = vmatpush.bf16.msra.mxu0 %v1954
        %3812 = vmatpush.bf16.msra.mxu0 %v1938
        %3813 = vmatpush.bf16.msra.mxu0 %v1922
        %3814 = vmatpush.bf16.msra.mxu0 %v1906
        %3815 = vmatpush.bf16.msra.mxu0 %v1890
        %3816 = vmatpush.bf16.msra.mxu0 %v1874
        %3817 = vmatpush.bf16.msra.mxu0 %v1858
        %3818 = vmatmul.bf16.gmra.mxu0 %v3794
        %v3819 = vpop.f32.mrf.mxu0
        %v3820 = vadd.f32 %v2988, %v3819
        %v3821 = vpop.f32.mrf.mxu0
        %v3822 = vadd.f32 %v2990, %v3821
        %3823 = vmatmul.bf16.gmra.mxu0 %v3795
        %v3824 = vpop.f32.mrf.mxu0
        %v3825 = vadd.f32 %v2993, %v3824
        %v3826 = vpop.f32.mrf.mxu0
        %v3827 = vadd.f32 %v2995, %v3826
        %3828 = vmatmul.bf16.gmra.mxu0 %v3796
        %v3829 = vpop.f32.mrf.mxu0
        %v3830 = vadd.f32 %v2998, %v3829
        %v3831 = vpop.f32.mrf.mxu0
        %v3832 = vadd.f32 %v3000, %v3831
        %3833 = vmatmul.bf16.gmra.mxu0 %v3797
        %v3834 = vpop.f32.mrf.mxu0
        %v3835 = vadd.f32 %v3003, %v3834
        %v3836 = vpop.f32.mrf.mxu0
        %v3837 = vadd.f32 %v3005, %v3836
        %3838 = vmatmul.bf16.gmra.mxu0 %v3798
        %v3839 = vpop.f32.mrf.mxu0
        %v3840 = vadd.f32 %v3008, %v3839
        %v3841 = vpop.f32.mrf.mxu0
        %v3842 = vadd.f32 %v3010, %v3841
        %3843 = vmatmul.bf16.gmra.mxu0 %v3799
        %v3844 = vpop.f32.mrf.mxu0
        %v3845 = vadd.f32 %v3013, %v3844
        %v3846 = vpop.f32.mrf.mxu0
        %v3847 = vadd.f32 %v3015, %v3846
        %3848 = vmatmul.bf16.gmra.mxu0 %v3800
        %v3849 = vpop.f32.mrf.mxu0
        %v3850 = vadd.f32 %v3018, %v3849
        %v3851 = vpop.f32.mrf.mxu0
        %v3852 = vadd.f32 %v3020, %v3851
        %3853 = vmatmul.bf16.gmra.mxu0 %v3801
        %v3854 = vpop.f32.mrf.mxu0
        %v3855 = vadd.f32 %v3023, %v3854
        %v3856 = vpop.f32.mrf.mxu0
        %v3857 = vadd.f32 %v3025, %v3856
        %3858 = vdwg.mxu0
        %3859 = vmatpush.bf16.msra.mxu0 %v1971
        %3860 = vmatpush.bf16.msra.mxu0 %v1955
        %3861 = vmatpush.bf16.msra.mxu0 %v1939
        %3862 = vmatpush.bf16.msra.mxu0 %v1923
        %3863 = vmatpush.bf16.msra.mxu0 %v1907
        %3864 = vmatpush.bf16.msra.mxu0 %v1891
        %3865 = vmatpush.bf16.msra.mxu0 %v1875
        %3866 = vmatpush.bf16.msra.mxu0 %v1859
        %3867 = vmatmul.bf16.gmra.mxu0 %v3794
        %v3868 = vpop.f32.mrf.mxu0
        %v3869 = vadd.f32 %v3037, %v3868
        %v3870 = vpop.f32.mrf.mxu0
        %v3871 = vadd.f32 %v3039, %v3870
        %3872 = vmatmul.bf16.gmra.mxu0 %v3795
        %v3873 = vpop.f32.mrf.mxu0
        %v3874 = vadd.f32 %v3042, %v3873
        %v3875 = vpop.f32.mrf.mxu0
        %v3876 = vadd.f32 %v3044, %v3875
        %3877 = vmatmul.bf16.gmra.mxu0 %v3796
        %v3878 = vpop.f32.mrf.mxu0
        %v3879 = vadd.f32 %v3047, %v3878
        %v3880 = vpop.f32.mrf.mxu0
        %v3881 = vadd.f32 %v3049, %v3880
        %3882 = vmatmul.bf16.gmra.mxu0 %v3797
        %v3883 = vpop.f32.mrf.mxu0
        %v3884 = vadd.f32 %v3052, %v3883
        %v3885 = vpop.f32.mrf.mxu0
        %v3886 = vadd.f32 %v3054, %v3885
        %3887 = vmatmul.bf16.gmra.mxu0 %v3798
        %v3888 = vpop.f32.mrf.mxu0
        %v3889 = vadd.f32 %v3057, %v3888
        %v3890 = vpop.f32.mrf.mxu0
        %v3891 = vadd.f32 %v3059, %v3890
        %3892 = vmatmul.bf16.gmra.mxu0 %v3799
        %v3893 = vpop.f32.mrf.mxu0
        %v3894 = vadd.f32 %v3062, %v3893
        %v3895 = vpop.f32.mrf.mxu0
        %v3896 = vadd.f32 %v3064, %v3895
        %3897 = vmatmul.bf16.gmra.mxu0 %v3800
        %v3898 = vpop.f32.mrf.mxu0
        %v3899 = vadd.f32 %v3067, %v3898
        %v3900 = vpop.f32.mrf.mxu0
        %v3901 = vadd.f32 %v3069, %v3900
        %3902 = vmatmul.bf16.gmra.mxu0 %v3801
        %v3903 = vpop.f32.mrf.mxu0
        %v3904 = vadd.f32 %v3072, %v3903
        %v3905 = vpop.f32.mrf.mxu0
        %v3906 = vadd.f32 %v3074, %v3905
        %3907 = vdwg.mxu0
        %3908 = vmatpush.bf16.msra.mxu0 %v1972
        %3909 = vmatpush.bf16.msra.mxu0 %v1956
        %3910 = vmatpush.bf16.msra.mxu0 %v1940
        %3911 = vmatpush.bf16.msra.mxu0 %v1924
        %3912 = vmatpush.bf16.msra.mxu0 %v1908
        %3913 = vmatpush.bf16.msra.mxu0 %v1892
        %3914 = vmatpush.bf16.msra.mxu0 %v1876
        %3915 = vmatpush.bf16.msra.mxu0 %v1860
        %3916 = vmatmul.bf16.gmra.mxu0 %v3794
        %v3917 = vpop.f32.mrf.mxu0
        %v3918 = vadd.f32 %v3086, %v3917
        %v3919 = vpop.f32.mrf.mxu0
        %v3920 = vadd.f32 %v3088, %v3919
        %3921 = vmatmul.bf16.gmra.mxu0 %v3795
        %v3922 = vpop.f32.mrf.mxu0
        %v3923 = vadd.f32 %v3091, %v3922
        %v3924 = vpop.f32.mrf.mxu0
        %v3925 = vadd.f32 %v3093, %v3924
        %3926 = vmatmul.bf16.gmra.mxu0 %v3796
        %v3927 = vpop.f32.mrf.mxu0
        %v3928 = vadd.f32 %v3096, %v3927
        %v3929 = vpop.f32.mrf.mxu0
        %v3930 = vadd.f32 %v3098, %v3929
        %3931 = vmatmul.bf16.gmra.mxu0 %v3797
        %v3932 = vpop.f32.mrf.mxu0
        %v3933 = vadd.f32 %v3101, %v3932
        %v3934 = vpop.f32.mrf.mxu0
        %v3935 = vadd.f32 %v3103, %v3934
        %3936 = vmatmul.bf16.gmra.mxu0 %v3798
        %v3937 = vpop.f32.mrf.mxu0
        %v3938 = vadd.f32 %v3106, %v3937
        %v3939 = vpop.f32.mrf.mxu0
        %v3940 = vadd.f32 %v3108, %v3939
        %3941 = vmatmul.bf16.gmra.mxu0 %v3799
        %v3942 = vpop.f32.mrf.mxu0
        %v3943 = vadd.f32 %v3111, %v3942
        %v3944 = vpop.f32.mrf.mxu0
        %v3945 = vadd.f32 %v3113, %v3944
        %3946 = vmatmul.bf16.gmra.mxu0 %v3800
        %v3947 = vpop.f32.mrf.mxu0
        %v3948 = vadd.f32 %v3116, %v3947
        %v3949 = vpop.f32.mrf.mxu0
        %v3950 = vadd.f32 %v3118, %v3949
        %3951 = vmatmul.bf16.gmra.mxu0 %v3801
        %v3952 = vpop.f32.mrf.mxu0
        %v3953 = vadd.f32 %v3121, %v3952
        %v3954 = vpop.f32.mrf.mxu0
        %v3955 = vadd.f32 %v3123, %v3954
        %3956 = vdwg.mxu0
        %3957 = vmatpush.bf16.msra.mxu0 %v1973
        %3958 = vmatpush.bf16.msra.mxu0 %v1957
        %3959 = vmatpush.bf16.msra.mxu0 %v1941
        %3960 = vmatpush.bf16.msra.mxu0 %v1925
        %3961 = vmatpush.bf16.msra.mxu0 %v1909
        %3962 = vmatpush.bf16.msra.mxu0 %v1893
        %3963 = vmatpush.bf16.msra.mxu0 %v1877
        %3964 = vmatpush.bf16.msra.mxu0 %v1861
        %3965 = vmatmul.bf16.gmra.mxu0 %v3794
        %v3966 = vpop.f32.mrf.mxu0
        %v3967 = vadd.f32 %v3135, %v3966
        %v3968 = vpop.f32.mrf.mxu0
        %v3969 = vadd.f32 %v3137, %v3968
        %3970 = vmatmul.bf16.gmra.mxu0 %v3795
        %v3971 = vpop.f32.mrf.mxu0
        %v3972 = vadd.f32 %v3140, %v3971
        %v3973 = vpop.f32.mrf.mxu0
        %v3974 = vadd.f32 %v3142, %v3973
        %3975 = vmatmul.bf16.gmra.mxu0 %v3796
        %v3976 = vpop.f32.mrf.mxu0
        %v3977 = vadd.f32 %v3145, %v3976
        %v3978 = vpop.f32.mrf.mxu0
        %v3979 = vadd.f32 %v3147, %v3978
        %3980 = vmatmul.bf16.gmra.mxu0 %v3797
        %v3981 = vpop.f32.mrf.mxu0
        %v3982 = vadd.f32 %v3150, %v3981
        %v3983 = vpop.f32.mrf.mxu0
        %v3984 = vadd.f32 %v3152, %v3983
        %3985 = vmatmul.bf16.gmra.mxu0 %v3798
        %v3986 = vpop.f32.mrf.mxu0
        %v3987 = vadd.f32 %v3155, %v3986
        %v3988 = vpop.f32.mrf.mxu0
        %v3989 = vadd.f32 %v3157, %v3988
        %3990 = vmatmul.bf16.gmra.mxu0 %v3799
        %v3991 = vpop.f32.mrf.mxu0
        %v3992 = vadd.f32 %v3160, %v3991
        %v3993 = vpop.f32.mrf.mxu0
        %v3994 = vadd.f32 %v3162, %v3993
        %3995 = vmatmul.bf16.gmra.mxu0 %v3800
        %v3996 = vpop.f32.mrf.mxu0
        %v3997 = vadd.f32 %v3165, %v3996
        %v3998 = vpop.f32.mrf.mxu0
        %v3999 = vadd.f32 %v3167, %v3998
        %4000 = vmatmul.bf16.gmra.mxu0 %v3801
        %v4001 = vpop.f32.mrf.mxu0
        %v4002 = vadd.f32 %v3170, %v4001
        %v4003 = vpop.f32.mrf.mxu0
        %v4004 = vadd.f32 %v3172, %v4003
        %4005 = vdwg.mxu0
        %4006 = vmatpush.bf16.msra.mxu0 %v1974
        %4007 = vmatpush.bf16.msra.mxu0 %v1958
        %4008 = vmatpush.bf16.msra.mxu0 %v1942
        %4009 = vmatpush.bf16.msra.mxu0 %v1926
        %4010 = vmatpush.bf16.msra.mxu0 %v1910
        %4011 = vmatpush.bf16.msra.mxu0 %v1894
        %4012 = vmatpush.bf16.msra.mxu0 %v1878
        %4013 = vmatpush.bf16.msra.mxu0 %v1862
        %4014 = vmatmul.bf16.gmra.mxu0 %v3794
        %v4015 = vpop.f32.mrf.mxu0
        %v4016 = vadd.f32 %v3184, %v4015
        %v4017 = vpop.f32.mrf.mxu0
        %v4018 = vadd.f32 %v3186, %v4017
        %4019 = vmatmul.bf16.gmra.mxu0 %v3795
        %v4020 = vpop.f32.mrf.mxu0
        %v4021 = vadd.f32 %v3189, %v4020
        %v4022 = vpop.f32.mrf.mxu0
        %v4023 = vadd.f32 %v3191, %v4022
        %4024 = vmatmul.bf16.gmra.mxu0 %v3796
        %v4025 = vpop.f32.mrf.mxu0
        %v4026 = vadd.f32 %v3194, %v4025
        %v4027 = vpop.f32.mrf.mxu0
        %v4028 = vadd.f32 %v3196, %v4027
        %4029 = vmatmul.bf16.gmra.mxu0 %v3797
        %v4030 = vpop.f32.mrf.mxu0
        %v4031 = vadd.f32 %v3199, %v4030
        %v4032 = vpop.f32.mrf.mxu0
        %v4033 = vadd.f32 %v3201, %v4032
        %4034 = vmatmul.bf16.gmra.mxu0 %v3798
        %v4035 = vpop.f32.mrf.mxu0
        %v4036 = vadd.f32 %v3204, %v4035
        %v4037 = vpop.f32.mrf.mxu0
        %v4038 = vadd.f32 %v3206, %v4037
        %4039 = vmatmul.bf16.gmra.mxu0 %v3799
        %v4040 = vpop.f32.mrf.mxu0
        %v4041 = vadd.f32 %v3209, %v4040
        %v4042 = vpop.f32.mrf.mxu0
        %v4043 = vadd.f32 %v3211, %v4042
        %4044 = vmatmul.bf16.gmra.mxu0 %v3800
        %v4045 = vpop.f32.mrf.mxu0
        %v4046 = vadd.f32 %v3214, %v4045
        %v4047 = vpop.f32.mrf.mxu0
        %v4048 = vadd.f32 %v3216, %v4047
        %4049 = vmatmul.bf16.gmra.mxu0 %v3801
        %v4050 = vpop.f32.mrf.mxu0
        %v4051 = vadd.f32 %v3219, %v4050
        %v4052 = vpop.f32.mrf.mxu0
        %v4053 = vadd.f32 %v3221, %v4052
        %4054 = vdwg.mxu0
        %4055 = vmatpush.bf16.msra.mxu0 %v1975
        %4056 = vmatpush.bf16.msra.mxu0 %v1959
        %4057 = vmatpush.bf16.msra.mxu0 %v1943
        %4058 = vmatpush.bf16.msra.mxu0 %v1927
        %4059 = vmatpush.bf16.msra.mxu0 %v1911
        %4060 = vmatpush.bf16.msra.mxu0 %v1895
        %4061 = vmatpush.bf16.msra.mxu0 %v1879
        %4062 = vmatpush.bf16.msra.mxu0 %v1863
        %4063 = vmatmul.bf16.gmra.mxu0 %v3794
        %v4064 = vpop.f32.mrf.mxu0
        %v4065 = vadd.f32 %v3233, %v4064
        %v4066 = vpop.f32.mrf.mxu0
        %v4067 = vadd.f32 %v3235, %v4066
        %4068 = vmatmul.bf16.gmra.mxu0 %v3795
        %v4069 = vpop.f32.mrf.mxu0
        %v4070 = vadd.f32 %v3238, %v4069
        %v4071 = vpop.f32.mrf.mxu0
        %v4072 = vadd.f32 %v3240, %v4071
        %4073 = vmatmul.bf16.gmra.mxu0 %v3796
        %v4074 = vpop.f32.mrf.mxu0
        %v4075 = vadd.f32 %v3243, %v4074
        %v4076 = vpop.f32.mrf.mxu0
        %v4077 = vadd.f32 %v3245, %v4076
        %4078 = vmatmul.bf16.gmra.mxu0 %v3797
        %v4079 = vpop.f32.mrf.mxu0
        %v4080 = vadd.f32 %v3248, %v4079
        %v4081 = vpop.f32.mrf.mxu0
        %v4082 = vadd.f32 %v3250, %v4081
        %4083 = vmatmul.bf16.gmra.mxu0 %v3798
        %v4084 = vpop.f32.mrf.mxu0
        %v4085 = vadd.f32 %v3253, %v4084
        %v4086 = vpop.f32.mrf.mxu0
        %v4087 = vadd.f32 %v3255, %v4086
        %4088 = vmatmul.bf16.gmra.mxu0 %v3799
        %v4089 = vpop.f32.mrf.mxu0
        %v4090 = vadd.f32 %v3258, %v4089
        %v4091 = vpop.f32.mrf.mxu0
        %v4092 = vadd.f32 %v3260, %v4091
        %4093 = vmatmul.bf16.gmra.mxu0 %v3800
        %v4094 = vpop.f32.mrf.mxu0
        %v4095 = vadd.f32 %v3263, %v4094
        %v4096 = vpop.f32.mrf.mxu0
        %v4097 = vadd.f32 %v3265, %v4096
        %4098 = vmatmul.bf16.gmra.mxu0 %v3801
        %v4099 = vpop.f32.mrf.mxu0
        %v4100 = vadd.f32 %v3268, %v4099
        %v4101 = vpop.f32.mrf.mxu0
        %v4102 = vadd.f32 %v3270, %v4101
        %4103 = vdwg.mxu0
        %4104 = vmatpush.bf16.msra.mxu0 %v1976
        %4105 = vmatpush.bf16.msra.mxu0 %v1960
        %4106 = vmatpush.bf16.msra.mxu0 %v1944
        %4107 = vmatpush.bf16.msra.mxu0 %v1928
        %4108 = vmatpush.bf16.msra.mxu0 %v1912
        %4109 = vmatpush.bf16.msra.mxu0 %v1896
        %4110 = vmatpush.bf16.msra.mxu0 %v1880
        %4111 = vmatpush.bf16.msra.mxu0 %v1864
        %4112 = vmatmul.bf16.gmra.mxu0 %v3794
        %v4113 = vpop.f32.mrf.mxu0
        %v4114 = vadd.f32 %v3282, %v4113
        %v4115 = vpop.f32.mrf.mxu0
        %v4116 = vadd.f32 %v3284, %v4115
        %4117 = vmatmul.bf16.gmra.mxu0 %v3795
        %v4118 = vpop.f32.mrf.mxu0
        %v4119 = vadd.f32 %v3287, %v4118
        %v4120 = vpop.f32.mrf.mxu0
        %v4121 = vadd.f32 %v3289, %v4120
        %4122 = vmatmul.bf16.gmra.mxu0 %v3796
        %v4123 = vpop.f32.mrf.mxu0
        %v4124 = vadd.f32 %v3292, %v4123
        %v4125 = vpop.f32.mrf.mxu0
        %v4126 = vadd.f32 %v3294, %v4125
        %4127 = vmatmul.bf16.gmra.mxu0 %v3797
        %v4128 = vpop.f32.mrf.mxu0
        %v4129 = vadd.f32 %v3297, %v4128
        %v4130 = vpop.f32.mrf.mxu0
        %v4131 = vadd.f32 %v3299, %v4130
        %4132 = vmatmul.bf16.gmra.mxu0 %v3798
        %v4133 = vpop.f32.mrf.mxu0
        %v4134 = vadd.f32 %v3302, %v4133
        %v4135 = vpop.f32.mrf.mxu0
        %v4136 = vadd.f32 %v3304, %v4135
        %4137 = vmatmul.bf16.gmra.mxu0 %v3799
        %v4138 = vpop.f32.mrf.mxu0
        %v4139 = vadd.f32 %v3307, %v4138
        %v4140 = vpop.f32.mrf.mxu0
        %v4141 = vadd.f32 %v3309, %v4140
        %4142 = vmatmul.bf16.gmra.mxu0 %v3800
        %v4143 = vpop.f32.mrf.mxu0
        %v4144 = vadd.f32 %v3312, %v4143
        %v4145 = vpop.f32.mrf.mxu0
        %v4146 = vadd.f32 %v3314, %v4145
        %4147 = vmatmul.bf16.gmra.mxu0 %v3801
        %v4148 = vpop.f32.mrf.mxu0
        %v4149 = vadd.f32 %v3317, %v4148
        %v4150 = vpop.f32.mrf.mxu0
        %v4151 = vadd.f32 %v3319, %v4150
        %4152 = vdwg.mxu0
        %4153 = vmatpush.bf16.msra.mxu0 %v1977
        %4154 = vmatpush.bf16.msra.mxu0 %v1961
        %4155 = vmatpush.bf16.msra.mxu0 %v1945
        %4156 = vmatpush.bf16.msra.mxu0 %v1929
        %4157 = vmatpush.bf16.msra.mxu0 %v1913
        %4158 = vmatpush.bf16.msra.mxu0 %v1897
        %4159 = vmatpush.bf16.msra.mxu0 %v1881
        %4160 = vmatpush.bf16.msra.mxu0 %v1865
        %4161 = vmatmul.bf16.gmra.mxu0 %v3794
        %v4162 = vpop.f32.mrf.mxu0
        %v4163 = vadd.f32 %v3331, %v4162
        %v4164 = vpop.f32.mrf.mxu0
        %v4165 = vadd.f32 %v3333, %v4164
        %4166 = vmatmul.bf16.gmra.mxu0 %v3795
        %v4167 = vpop.f32.mrf.mxu0
        %v4168 = vadd.f32 %v3336, %v4167
        %v4169 = vpop.f32.mrf.mxu0
        %v4170 = vadd.f32 %v3338, %v4169
        %4171 = vmatmul.bf16.gmra.mxu0 %v3796
        %v4172 = vpop.f32.mrf.mxu0
        %v4173 = vadd.f32 %v3341, %v4172
        %v4174 = vpop.f32.mrf.mxu0
        %v4175 = vadd.f32 %v3343, %v4174
        %4176 = vmatmul.bf16.gmra.mxu0 %v3797
        %v4177 = vpop.f32.mrf.mxu0
        %v4178 = vadd.f32 %v3346, %v4177
        %v4179 = vpop.f32.mrf.mxu0
        %v4180 = vadd.f32 %v3348, %v4179
        %4181 = vmatmul.bf16.gmra.mxu0 %v3798
        %v4182 = vpop.f32.mrf.mxu0
        %v4183 = vadd.f32 %v3351, %v4182
        %v4184 = vpop.f32.mrf.mxu0
        %v4185 = vadd.f32 %v3353, %v4184
        %4186 = vmatmul.bf16.gmra.mxu0 %v3799
        %v4187 = vpop.f32.mrf.mxu0
        %v4188 = vadd.f32 %v3356, %v4187
        %v4189 = vpop.f32.mrf.mxu0
        %v4190 = vadd.f32 %v3358, %v4189
        %4191 = vmatmul.bf16.gmra.mxu0 %v3800
        %v4192 = vpop.f32.mrf.mxu0
        %v4193 = vadd.f32 %v3361, %v4192
        %v4194 = vpop.f32.mrf.mxu0
        %v4195 = vadd.f32 %v3363, %v4194
        %4196 = vmatmul.bf16.gmra.mxu0 %v3801
        %v4197 = vpop.f32.mrf.mxu0
        %v4198 = vadd.f32 %v3366, %v4197
        %v4199 = vpop.f32.mrf.mxu0
        %v4200 = vadd.f32 %v3368, %v4199
        %4201 = vdwg.mxu0
        %4202 = vmatpush.bf16.msra.mxu0 %v1978
        %4203 = vmatpush.bf16.msra.mxu0 %v1962
        %4204 = vmatpush.bf16.msra.mxu0 %v1946
        %4205 = vmatpush.bf16.msra.mxu0 %v1930
        %4206 = vmatpush.bf16.msra.mxu0 %v1914
        %4207 = vmatpush.bf16.msra.mxu0 %v1898
        %4208 = vmatpush.bf16.msra.mxu0 %v1882
        %4209 = vmatpush.bf16.msra.mxu0 %v1866
        %4210 = vmatmul.bf16.gmra.mxu0 %v3794
        %v4211 = vpop.f32.mrf.mxu0
        %v4212 = vadd.f32 %v3380, %v4211
        %v4213 = vpop.f32.mrf.mxu0
        %v4214 = vadd.f32 %v3382, %v4213
        %4215 = vmatmul.bf16.gmra.mxu0 %v3795
        %v4216 = vpop.f32.mrf.mxu0
        %v4217 = vadd.f32 %v3385, %v4216
        %v4218 = vpop.f32.mrf.mxu0
        %v4219 = vadd.f32 %v3387, %v4218
        %4220 = vmatmul.bf16.gmra.mxu0 %v3796
        %v4221 = vpop.f32.mrf.mxu0
        %v4222 = vadd.f32 %v3390, %v4221
        %v4223 = vpop.f32.mrf.mxu0
        %v4224 = vadd.f32 %v3392, %v4223
        %4225 = vmatmul.bf16.gmra.mxu0 %v3797
        %v4226 = vpop.f32.mrf.mxu0
        %v4227 = vadd.f32 %v3395, %v4226
        %v4228 = vpop.f32.mrf.mxu0
        %v4229 = vadd.f32 %v3397, %v4228
        %4230 = vmatmul.bf16.gmra.mxu0 %v3798
        %v4231 = vpop.f32.mrf.mxu0
        %v4232 = vadd.f32 %v3400, %v4231
        %v4233 = vpop.f32.mrf.mxu0
        %v4234 = vadd.f32 %v3402, %v4233
        %4235 = vmatmul.bf16.gmra.mxu0 %v3799
        %v4236 = vpop.f32.mrf.mxu0
        %v4237 = vadd.f32 %v3405, %v4236
        %v4238 = vpop.f32.mrf.mxu0
        %v4239 = vadd.f32 %v3407, %v4238
        %4240 = vmatmul.bf16.gmra.mxu0 %v3800
        %v4241 = vpop.f32.mrf.mxu0
        %v4242 = vadd.f32 %v3410, %v4241
        %v4243 = vpop.f32.mrf.mxu0
        %v4244 = vadd.f32 %v3412, %v4243
        %4245 = vmatmul.bf16.gmra.mxu0 %v3801
        %v4246 = vpop.f32.mrf.mxu0
        %v4247 = vadd.f32 %v3415, %v4246
        %v4248 = vpop.f32.mrf.mxu0
        %v4249 = vadd.f32 %v3417, %v4248
        %4250 = vdwg.mxu0
        %4251 = vmatpush.bf16.msra.mxu0 %v1979
        %4252 = vmatpush.bf16.msra.mxu0 %v1963
        %4253 = vmatpush.bf16.msra.mxu0 %v1947
        %4254 = vmatpush.bf16.msra.mxu0 %v1931
        %4255 = vmatpush.bf16.msra.mxu0 %v1915
        %4256 = vmatpush.bf16.msra.mxu0 %v1899
        %4257 = vmatpush.bf16.msra.mxu0 %v1883
        %4258 = vmatpush.bf16.msra.mxu0 %v1867
        %4259 = vmatmul.bf16.gmra.mxu0 %v3794
        %v4260 = vpop.f32.mrf.mxu0
        %v4261 = vadd.f32 %v3429, %v4260
        %v4262 = vpop.f32.mrf.mxu0
        %v4263 = vadd.f32 %v3431, %v4262
        %4264 = vmatmul.bf16.gmra.mxu0 %v3795
        %v4265 = vpop.f32.mrf.mxu0
        %v4266 = vadd.f32 %v3434, %v4265
        %v4267 = vpop.f32.mrf.mxu0
        %v4268 = vadd.f32 %v3436, %v4267
        %4269 = vmatmul.bf16.gmra.mxu0 %v3796
        %v4270 = vpop.f32.mrf.mxu0
        %v4271 = vadd.f32 %v3439, %v4270
        %v4272 = vpop.f32.mrf.mxu0
        %v4273 = vadd.f32 %v3441, %v4272
        %4274 = vmatmul.bf16.gmra.mxu0 %v3797
        %v4275 = vpop.f32.mrf.mxu0
        %v4276 = vadd.f32 %v3444, %v4275
        %v4277 = vpop.f32.mrf.mxu0
        %v4278 = vadd.f32 %v3446, %v4277
        %4279 = vmatmul.bf16.gmra.mxu0 %v3798
        %v4280 = vpop.f32.mrf.mxu0
        %v4281 = vadd.f32 %v3449, %v4280
        %v4282 = vpop.f32.mrf.mxu0
        %v4283 = vadd.f32 %v3451, %v4282
        %4284 = vmatmul.bf16.gmra.mxu0 %v3799
        %v4285 = vpop.f32.mrf.mxu0
        %v4286 = vadd.f32 %v3454, %v4285
        %v4287 = vpop.f32.mrf.mxu0
        %v4288 = vadd.f32 %v3456, %v4287
        %4289 = vmatmul.bf16.gmra.mxu0 %v3800
        %v4290 = vpop.f32.mrf.mxu0
        %v4291 = vadd.f32 %v3459, %v4290
        %v4292 = vpop.f32.mrf.mxu0
        %v4293 = vadd.f32 %v3461, %v4292
        %4294 = vmatmul.bf16.gmra.mxu0 %v3801
        %v4295 = vpop.f32.mrf.mxu0
        %v4296 = vadd.f32 %v3464, %v4295
        %v4297 = vpop.f32.mrf.mxu0
        %v4298 = vadd.f32 %v3466, %v4297
        %4299 = vdwg.mxu0
        %4300 = vmatpush.bf16.msra.mxu0 %v1980
        %4301 = vmatpush.bf16.msra.mxu0 %v1964
        %4302 = vmatpush.bf16.msra.mxu0 %v1948
        %4303 = vmatpush.bf16.msra.mxu0 %v1932
        %4304 = vmatpush.bf16.msra.mxu0 %v1916
        %4305 = vmatpush.bf16.msra.mxu0 %v1900
        %4306 = vmatpush.bf16.msra.mxu0 %v1884
        %4307 = vmatpush.bf16.msra.mxu0 %v1868
        %4308 = vmatmul.bf16.gmra.mxu0 %v3794
        %v4309 = vpop.f32.mrf.mxu0
        %v4310 = vadd.f32 %v3478, %v4309
        %v4311 = vpop.f32.mrf.mxu0
        %v4312 = vadd.f32 %v3480, %v4311
        %4313 = vmatmul.bf16.gmra.mxu0 %v3795
        %v4314 = vpop.f32.mrf.mxu0
        %v4315 = vadd.f32 %v3483, %v4314
        %v4316 = vpop.f32.mrf.mxu0
        %v4317 = vadd.f32 %v3485, %v4316
        %4318 = vmatmul.bf16.gmra.mxu0 %v3796
        %v4319 = vpop.f32.mrf.mxu0
        %v4320 = vadd.f32 %v3488, %v4319
        %v4321 = vpop.f32.mrf.mxu0
        %v4322 = vadd.f32 %v3490, %v4321
        %4323 = vmatmul.bf16.gmra.mxu0 %v3797
        %v4324 = vpop.f32.mrf.mxu0
        %v4325 = vadd.f32 %v3493, %v4324
        %v4326 = vpop.f32.mrf.mxu0
        %v4327 = vadd.f32 %v3495, %v4326
        %4328 = vmatmul.bf16.gmra.mxu0 %v3798
        %v4329 = vpop.f32.mrf.mxu0
        %v4330 = vadd.f32 %v3498, %v4329
        %v4331 = vpop.f32.mrf.mxu0
        %v4332 = vadd.f32 %v3500, %v4331
        %4333 = vmatmul.bf16.gmra.mxu0 %v3799
        %v4334 = vpop.f32.mrf.mxu0
        %v4335 = vadd.f32 %v3503, %v4334
        %v4336 = vpop.f32.mrf.mxu0
        %v4337 = vadd.f32 %v3505, %v4336
        %4338 = vmatmul.bf16.gmra.mxu0 %v3800
        %v4339 = vpop.f32.mrf.mxu0
        %v4340 = vadd.f32 %v3508, %v4339
        %v4341 = vpop.f32.mrf.mxu0
        %v4342 = vadd.f32 %v3510, %v4341
        %4343 = vmatmul.bf16.gmra.mxu0 %v3801
        %v4344 = vpop.f32.mrf.mxu0
        %v4345 = vadd.f32 %v3513, %v4344
        %v4346 = vpop.f32.mrf.mxu0
        %v4347 = vadd.f32 %v3515, %v4346
        %4348 = vdwg.mxu0
        %4349 = vmatpush.bf16.msra.mxu0 %v1981
        %4350 = vmatpush.bf16.msra.mxu0 %v1965
        %4351 = vmatpush.bf16.msra.mxu0 %v1949
        %4352 = vmatpush.bf16.msra.mxu0 %v1933
        %4353 = vmatpush.bf16.msra.mxu0 %v1917
        %4354 = vmatpush.bf16.msra.mxu0 %v1901
        %4355 = vmatpush.bf16.msra.mxu0 %v1885
        %4356 = vmatpush.bf16.msra.mxu0 %v1869
        %4357 = vmatmul.bf16.gmra.mxu0 %v3794
        %v4358 = vpop.f32.mrf.mxu0
        %v4359 = vadd.f32 %v3527, %v4358
        %v4360 = vpop.f32.mrf.mxu0
        %v4361 = vadd.f32 %v3529, %v4360
        %4362 = vmatmul.bf16.gmra.mxu0 %v3795
        %v4363 = vpop.f32.mrf.mxu0
        %v4364 = vadd.f32 %v3532, %v4363
        %v4365 = vpop.f32.mrf.mxu0
        %v4366 = vadd.f32 %v3534, %v4365
        %4367 = vmatmul.bf16.gmra.mxu0 %v3796
        %v4368 = vpop.f32.mrf.mxu0
        %v4369 = vadd.f32 %v3537, %v4368
        %v4370 = vpop.f32.mrf.mxu0
        %v4371 = vadd.f32 %v3539, %v4370
        %4372 = vmatmul.bf16.gmra.mxu0 %v3797
        %v4373 = vpop.f32.mrf.mxu0
        %v4374 = vadd.f32 %v3542, %v4373
        %v4375 = vpop.f32.mrf.mxu0
        %v4376 = vadd.f32 %v3544, %v4375
        %4377 = vmatmul.bf16.gmra.mxu0 %v3798
        %v4378 = vpop.f32.mrf.mxu0
        %v4379 = vadd.f32 %v3547, %v4378
        %v4380 = vpop.f32.mrf.mxu0
        %v4381 = vadd.f32 %v3549, %v4380
        %4382 = vmatmul.bf16.gmra.mxu0 %v3799
        %v4383 = vpop.f32.mrf.mxu0
        %v4384 = vadd.f32 %v3552, %v4383
        %v4385 = vpop.f32.mrf.mxu0
        %v4386 = vadd.f32 %v3554, %v4385
        %4387 = vmatmul.bf16.gmra.mxu0 %v3800
        %v4388 = vpop.f32.mrf.mxu0
        %v4389 = vadd.f32 %v3557, %v4388
        %v4390 = vpop.f32.mrf.mxu0
        %v4391 = vadd.f32 %v3559, %v4390
        %4392 = vmatmul.bf16.gmra.mxu0 %v3801
        %v4393 = vpop.f32.mrf.mxu0
        %v4394 = vadd.f32 %v3562, %v4393
        %v4395 = vpop.f32.mrf.mxu0
        %v4396 = vadd.f32 %v3564, %v4395
        %4397 = vdwg.mxu0
        %4398 = vmatpush.bf16.msra.mxu0 %v1982
        %4399 = vmatpush.bf16.msra.mxu0 %v1966
        %4400 = vmatpush.bf16.msra.mxu0 %v1950
        %4401 = vmatpush.bf16.msra.mxu0 %v1934
        %4402 = vmatpush.bf16.msra.mxu0 %v1918
        %4403 = vmatpush.bf16.msra.mxu0 %v1902
        %4404 = vmatpush.bf16.msra.mxu0 %v1886
        %4405 = vmatpush.bf16.msra.mxu0 %v1870
        %4406 = vmatmul.bf16.gmra.mxu0 %v3794
        %v4407 = vpop.f32.mrf.mxu0
        %v4408 = vadd.f32 %v3576, %v4407
        %v4409 = vpop.f32.mrf.mxu0
        %v4410 = vadd.f32 %v3578, %v4409
        %4411 = vmatmul.bf16.gmra.mxu0 %v3795
        %v4412 = vpop.f32.mrf.mxu0
        %v4413 = vadd.f32 %v3581, %v4412
        %v4414 = vpop.f32.mrf.mxu0
        %v4415 = vadd.f32 %v3583, %v4414
        %4416 = vmatmul.bf16.gmra.mxu0 %v3796
        %v4417 = vpop.f32.mrf.mxu0
        %v4418 = vadd.f32 %v3586, %v4417
        %v4419 = vpop.f32.mrf.mxu0
        %v4420 = vadd.f32 %v3588, %v4419
        %4421 = vmatmul.bf16.gmra.mxu0 %v3797
        %v4422 = vpop.f32.mrf.mxu0
        %v4423 = vadd.f32 %v3591, %v4422
        %v4424 = vpop.f32.mrf.mxu0
        %v4425 = vadd.f32 %v3593, %v4424
        %4426 = vmatmul.bf16.gmra.mxu0 %v3798
        %v4427 = vpop.f32.mrf.mxu0
        %v4428 = vadd.f32 %v3596, %v4427
        %v4429 = vpop.f32.mrf.mxu0
        %v4430 = vadd.f32 %v3598, %v4429
        %4431 = vmatmul.bf16.gmra.mxu0 %v3799
        %v4432 = vpop.f32.mrf.mxu0
        %v4433 = vadd.f32 %v3601, %v4432
        %v4434 = vpop.f32.mrf.mxu0
        %v4435 = vadd.f32 %v3603, %v4434
        %4436 = vmatmul.bf16.gmra.mxu0 %v3800
        %v4437 = vpop.f32.mrf.mxu0
        %v4438 = vadd.f32 %v3606, %v4437
        %v4439 = vpop.f32.mrf.mxu0
        %v4440 = vadd.f32 %v3608, %v4439
        %4441 = vmatmul.bf16.gmra.mxu0 %v3801
        %v4442 = vpop.f32.mrf.mxu0
        %v4443 = vadd.f32 %v3611, %v4442
        %v4444 = vpop.f32.mrf.mxu0
        %v4445 = vadd.f32 %v3613, %v4444
        %4446 = vdwg.mxu0
        %4447 = vmatpush.bf16.msra.mxu0 %v1983
        %4448 = vmatpush.bf16.msra.mxu0 %v1967
        %4449 = vmatpush.bf16.msra.mxu0 %v1951
        %4450 = vmatpush.bf16.msra.mxu0 %v1935
        %4451 = vmatpush.bf16.msra.mxu0 %v1919
        %4452 = vmatpush.bf16.msra.mxu0 %v1903
        %4453 = vmatpush.bf16.msra.mxu0 %v1887
        %4454 = vmatpush.bf16.msra.mxu0 %v1871
        %4455 = vmatmul.bf16.gmra.mxu0 %v3794
        %v4456 = vpop.f32.mrf.mxu0
        %v4457 = vadd.f32 %v3625, %v4456
        %v4458 = vpop.f32.mrf.mxu0
        %v4459 = vadd.f32 %v3627, %v4458
        %4460 = vmatmul.bf16.gmra.mxu0 %v3795
        %v4461 = vpop.f32.mrf.mxu0
        %v4462 = vadd.f32 %v3630, %v4461
        %v4463 = vpop.f32.mrf.mxu0
        %v4464 = vadd.f32 %v3632, %v4463
        %4465 = vmatmul.bf16.gmra.mxu0 %v3796
        %v4466 = vpop.f32.mrf.mxu0
        %v4467 = vadd.f32 %v3635, %v4466
        %v4468 = vpop.f32.mrf.mxu0
        %v4469 = vadd.f32 %v3637, %v4468
        %4470 = vmatmul.bf16.gmra.mxu0 %v3797
        %v4471 = vpop.f32.mrf.mxu0
        %v4472 = vadd.f32 %v3640, %v4471
        %v4473 = vpop.f32.mrf.mxu0
        %v4474 = vadd.f32 %v3642, %v4473
        %4475 = vmatmul.bf16.gmra.mxu0 %v3798
        %v4476 = vpop.f32.mrf.mxu0
        %v4477 = vadd.f32 %v3645, %v4476
        %v4478 = vpop.f32.mrf.mxu0
        %v4479 = vadd.f32 %v3647, %v4478
        %4480 = vmatmul.bf16.gmra.mxu0 %v3799
        %v4481 = vpop.f32.mrf.mxu0
        %v4482 = vadd.f32 %v3650, %v4481
        %v4483 = vpop.f32.mrf.mxu0
        %v4484 = vadd.f32 %v3652, %v4483
        %4485 = vmatmul.bf16.gmra.mxu0 %v3800
        %v4486 = vpop.f32.mrf.mxu0
        %v4487 = vadd.f32 %v3655, %v4486
        %v4488 = vpop.f32.mrf.mxu0
        %v4489 = vadd.f32 %v3657, %v4488
        %4490 = vmatmul.bf16.gmra.mxu0 %v3801
        %v4491 = vpop.f32.mrf.mxu0
        %v4492 = vadd.f32 %v3660, %v4491
        %v4493 = vpop.f32.mrf.mxu0
        %v4494 = vadd.f32 %v3662, %v4493
        %4495 = vdwg.mxu0
        %4496 = vmatpush.bf16.msra.mxu0 %v1984
        %4497 = vmatpush.bf16.msra.mxu0 %v1968
        %4498 = vmatpush.bf16.msra.mxu0 %v1952
        %4499 = vmatpush.bf16.msra.mxu0 %v1936
        %4500 = vmatpush.bf16.msra.mxu0 %v1920
        %4501 = vmatpush.bf16.msra.mxu0 %v1904
        %4502 = vmatpush.bf16.msra.mxu0 %v1888
        %4503 = vmatpush.bf16.msra.mxu0 %v1872
        %4504 = vmatmul.bf16.gmra.mxu0 %v3794
        %v4505 = vpop.f32.mrf.mxu0
        %v4506 = vadd.f32 %v3674, %v4505
        %v4507 = vpop.f32.mrf.mxu0
        %v4508 = vadd.f32 %v3676, %v4507
        %4509 = vmatmul.bf16.gmra.mxu0 %v3795
        %v4510 = vpop.f32.mrf.mxu0
        %v4511 = vadd.f32 %v3679, %v4510
        %v4512 = vpop.f32.mrf.mxu0
        %v4513 = vadd.f32 %v3681, %v4512
        %4514 = vmatmul.bf16.gmra.mxu0 %v3796
        %v4515 = vpop.f32.mrf.mxu0
        %v4516 = vadd.f32 %v3684, %v4515
        %v4517 = vpop.f32.mrf.mxu0
        %v4518 = vadd.f32 %v3686, %v4517
        %4519 = vmatmul.bf16.gmra.mxu0 %v3797
        %v4520 = vpop.f32.mrf.mxu0
        %v4521 = vadd.f32 %v3689, %v4520
        %v4522 = vpop.f32.mrf.mxu0
        %v4523 = vadd.f32 %v3691, %v4522
        %4524 = vmatmul.bf16.gmra.mxu0 %v3798
        %v4525 = vpop.f32.mrf.mxu0
        %v4526 = vadd.f32 %v3694, %v4525
        %v4527 = vpop.f32.mrf.mxu0
        %v4528 = vadd.f32 %v3696, %v4527
        %4529 = vmatmul.bf16.gmra.mxu0 %v3799
        %v4530 = vpop.f32.mrf.mxu0
        %v4531 = vadd.f32 %v3699, %v4530
        %v4532 = vpop.f32.mrf.mxu0
        %v4533 = vadd.f32 %v3701, %v4532
        %4534 = vmatmul.bf16.gmra.mxu0 %v3800
        %v4535 = vpop.f32.mrf.mxu0
        %v4536 = vadd.f32 %v3704, %v4535
        %v4537 = vpop.f32.mrf.mxu0
        %v4538 = vadd.f32 %v3706, %v4537
        %4539 = vmatmul.bf16.gmra.mxu0 %v3801
        %v4540 = vpop.f32.mrf.mxu0
        %v4541 = vadd.f32 %v3709, %v4540
        %v4542 = vpop.f32.mrf.mxu0
        %v4543 = vadd.f32 %v3711, %v4542
        %4544 = vdwg.mxu0
        %4545 = vmatpush.bf16.msra.mxu0 %v1985
        %4546 = vmatpush.bf16.msra.mxu0 %v1969
        %4547 = vmatpush.bf16.msra.mxu0 %v1953
        %4548 = vmatpush.bf16.msra.mxu0 %v1937
        %4549 = vmatpush.bf16.msra.mxu0 %v1921
        %4550 = vmatpush.bf16.msra.mxu0 %v1905
        %4551 = vmatpush.bf16.msra.mxu0 %v1889
        %4552 = vmatpush.bf16.msra.mxu0 %v1873
        %4553 = vmatmul.bf16.gmra.mxu0 %v3794
        %v4554 = vpop.f32.mrf.mxu0
        %v4555 = vadd.f32 %v3723, %v4554
        %v4556 = vpop.f32.mrf.mxu0
        %v4557 = vadd.f32 %v3725, %v4556
        %4558 = vmatmul.bf16.gmra.mxu0 %v3795
        %v4559 = vpop.f32.mrf.mxu0
        %v4560 = vadd.f32 %v3728, %v4559
        %v4561 = vpop.f32.mrf.mxu0
        %v4562 = vadd.f32 %v3730, %v4561
        %4563 = vmatmul.bf16.gmra.mxu0 %v3796
        %v4564 = vpop.f32.mrf.mxu0
        %v4565 = vadd.f32 %v3733, %v4564
        %v4566 = vpop.f32.mrf.mxu0
        %v4567 = vadd.f32 %v3735, %v4566
        %4568 = vmatmul.bf16.gmra.mxu0 %v3797
        %v4569 = vpop.f32.mrf.mxu0
        %v4570 = vadd.f32 %v3738, %v4569
        %v4571 = vpop.f32.mrf.mxu0
        %v4572 = vadd.f32 %v3740, %v4571
        %4573 = vmatmul.bf16.gmra.mxu0 %v3798
        %v4574 = vpop.f32.mrf.mxu0
        %v4575 = vadd.f32 %v3743, %v4574
        %v4576 = vpop.f32.mrf.mxu0
        %v4577 = vadd.f32 %v3745, %v4576
        %4578 = vmatmul.bf16.gmra.mxu0 %v3799
        %v4579 = vpop.f32.mrf.mxu0
        %v4580 = vadd.f32 %v3748, %v4579
        %v4581 = vpop.f32.mrf.mxu0
        %v4582 = vadd.f32 %v3750, %v4581
        %4583 = vmatmul.bf16.gmra.mxu0 %v3800
        %v4584 = vpop.f32.mrf.mxu0
        %v4585 = vadd.f32 %v3753, %v4584
        %v4586 = vpop.f32.mrf.mxu0
        %v4587 = vadd.f32 %v3755, %v4586
        %4588 = vmatmul.bf16.gmra.mxu0 %v3801
        %v4589 = vpop.f32.mrf.mxu0
        %v4590 = vadd.f32 %v3758, %v4589
        %v4591 = vpop.f32.mrf.mxu0
        %v4592 = vadd.f32 %v3760, %v4591
        %4593 = vdwg.mxu0
        %v4594 = vld [vmem:[%s3] sm:$0xf]
        %v4595 = vld [vmem:[%s3 + $0x4] sm:$0xf]
        %v4596 = vld [vmem:[%s3 + $0x8] sm:$0xf]
        %v4597 = vld [vmem:[%s3 + $0xc] sm:$0xf]
        %v4598 = vld [vmem:[%s3 + $0x10] sm:$0xf]
        %v4599 = vld [vmem:[%s3 + $0x14] sm:$0xf]
        %v4600 = vld [vmem:[%s3 + $0x18] sm:$0xf]
        %v4601 = vld [vmem:[%s3 + $0x1c] sm:$0xf]
        %v4602 = vld [vmem:[%s3 + $0x20] sm:$0xf]
        %v4603 = vld [vmem:[%s3 + $0x24] sm:$0xf]
        %v4604 = vld [vmem:[%s3 + $0x28] sm:$0xf]
        %v4605 = vld [vmem:[%s3 + $0x2c] sm:$0xf]
        %v4606 = vld [vmem:[%s3 + $0x30] sm:$0xf]
        %v4607 = vld [vmem:[%s3 + $0x34] sm:$0xf]
        %v4608 = vld [vmem:[%s3 + $0x38] sm:$0xf]
        %v4609 = vld [vmem:[%s3 + $0x3c] sm:$0xf]
        %v4610 = vpack.c.bf16 %v465, %v449
        %v4611 = vpack.c.bf16 %v466, %v450
        %v4612 = vpack.c.bf16 %v467, %v451
        %v4613 = vpack.c.bf16 %v468, %v452
        %v4614 = vpack.c.bf16 %v469, %v453
        %v4615 = vpack.c.bf16 %v470, %v454
        %v4616 = vpack.c.bf16 %v471, %v455
        %v4617 = vpack.c.bf16 %v472, %v456
        %v4618 = vpack.c.bf16 %v473, %v457
        %v4619 = vpack.c.bf16 %v474, %v458
        %v4620 = vpack.c.bf16 %v475, %v459
        %v4621 = vpack.c.bf16 %v476, %v460
        %v4622 = vpack.c.bf16 %v477, %v461
        %v4623 = vpack.c.bf16 %v478, %v462
        %v4624 = vpack.c.bf16 %v479, %v463
        %v4625 = vpack.c.bf16 %v480, %v464
        %v4626 = vpack.c.bf16 %v481, %v481
        %v4627 = vpack.c.bf16 %v482, %v482
        %v4628 = vpack.c.bf16 %v483, %v483
        %v4629 = vpack.c.bf16 %v484, %v484
        %v4630 = vpack.c.bf16 %v485, %v485
        %v4631 = vpack.c.bf16 %v486, %v486
        %v4632 = vpack.c.bf16 %v487, %v487
        %v4633 = vpack.c.bf16 %v488, %v488
        %v4634 = vpack.c.bf16 %v489, %v489
        %v4635 = vpack.c.bf16 %v490, %v490
        %v4636 = vpack.c.bf16 %v491, %v491
        %v4637 = vpack.c.bf16 %v492, %v492
        %v4638 = vpack.c.bf16 %v493, %v493
        %v4639 = vpack.c.bf16 %v494, %v494
        %v4640 = vpack.c.bf16 %v495, %v495
        %v4641 = vpack.c.bf16 %v496, %v496
        %v4658 = vunpack.c.l.b16 %v4594
        %v4659 = vunpack.c.l.b16 %v4595
        %v4660 = vunpack.c.l.b16 %v4596
        %v4661 = vunpack.c.l.b16 %v4597
        %v4662 = vunpack.c.l.b16 %v4598
        %v4663 = vunpack.c.l.b16 %v4599
        %v4664 = vunpack.c.l.b16 %v4600
        %v4665 = vunpack.c.l.b16 %v4601
        %v4666 = vunpack.c.l.b16 %v4602
        %v4667 = vunpack.c.l.b16 %v4603
        %v4668 = vunpack.c.l.b16 %v4604
        %v4669 = vunpack.c.l.b16 %v4605
        %v4670 = vunpack.c.l.b16 %v4606
        %v4671 = vunpack.c.l.b16 %v4607
        %v4672 = vunpack.c.l.b16 %v4608
        %v4673 = vunpack.c.l.b16 %v4609
        %v4674 = vpack.c.b16 %v4659, %v4658
        %v4675 = vpack.c.b16 %v4661, %v4660
        %v4676 = vpack.c.b16 %v4663, %v4662
        %v4677 = vpack.c.b16 %v4665, %v4664
        %v4678 = vpack.c.b16 %v4667, %v4666
        %v4679 = vpack.c.b16 %v4669, %v4668
        %v4680 = vpack.c.b16 %v4671, %v4670
        %v4681 = vpack.c.b16 %v4673, %v4672
        %vm4682 = vcmask 138240
        %v4684 = vsel %vm4682, %v4674, 0
        %v4687 = vsel %vm4682, %v4675, 0
        %v4690 = vsel %vm4682, %v4676, 0
        %v4693 = vsel %vm4682, %v4677, 0
        %v4696 = vsel %vm4682, %v4678, 0
        %v4699 = vsel %vm4682, %v4679, 0
        %v4702 = vsel %vm4682, %v4680, 0
        %v4705 = vsel %vm4682, %v4681, 0
        %vm4707 = vcmask 1040384
        %v4708 = vsel 0, 4294967295, 65535
        %v4709 = vsel %vm4707, %v4708, 0
        %v4711 = vand.u32 %v4626, %v4709
        %v4714 = vand.u32 %v4627, %v4709
        %v4717 = vand.u32 %v4628, %v4709
        %v4720 = vand.u32 %v4629, %v4709
        %v4723 = vand.u32 %v4630, %v4709
        %v4726 = vand.u32 %v4631, %v4709
        %v4729 = vand.u32 %v4632, %v4709
        %v4732 = vand.u32 %v4633, %v4709
        %v4735 = vand.u32 %v4634, %v4709
        %v4738 = vand.u32 %v4635, %v4709
        %v4741 = vand.u32 %v4636, %v4709
        %v4744 = vand.u32 %v4637, %v4709
        %v4747 = vand.u32 %v4638, %v4709
        %v4750 = vand.u32 %v4639, %v4709
        %v4753 = vand.u32 %v4640, %v4709
        %v4756 = vand.u32 %v4641, %v4709
        %4758 = vmatpush.bf16.msra.mxu0 0
        %4759 = vmatpush.bf16.msra.mxu0 0
        %4760 = vmatpush.bf16.msra.mxu0 0
        %4761 = vmatpush.bf16.msra.mxu0 0
        %4762 = vmatpush.bf16.msra.mxu0 0
        %4763 = vmatpush.bf16.msra.mxu0 0
        %4764 = vmatpush.bf16.msra.mxu0 %v4711
        %4765 = vmatpush.bf16.msra.mxu0 %v4610
        %4766 = vmatmul.bf16.gmra.mxu0 %v4684
        %v4767 = vpop.f32.mrf.mxu0
        %v4768 = vadd.f32 0.0, %v4767
        %v4769 = vpop.f32.mrf.mxu0
        %v4770 = vadd.f32 0.0, %v4769
        %4771 = vmatmul.bf16.gmra.mxu0 %v4687
        %v4772 = vpop.f32.mrf.mxu0
        %v4773 = vadd.f32 0.0, %v4772
        %v4774 = vpop.f32.mrf.mxu0
        %v4775 = vadd.f32 0.0, %v4774
        %4776 = vmatmul.bf16.gmra.mxu0 %v4690
        %v4777 = vpop.f32.mrf.mxu0
        %v4778 = vadd.f32 0.0, %v4777
        %v4779 = vpop.f32.mrf.mxu0
        %v4780 = vadd.f32 0.0, %v4779
        %4781 = vmatmul.bf16.gmra.mxu0 %v4693
        %v4782 = vpop.f32.mrf.mxu0
        %v4783 = vadd.f32 0.0, %v4782
        %v4784 = vpop.f32.mrf.mxu0
        %v4785 = vadd.f32 0.0, %v4784
        %4786 = vmatmul.bf16.gmra.mxu0 %v4696
        %v4787 = vpop.f32.mrf.mxu0
        %v4788 = vadd.f32 0.0, %v4787
        %v4789 = vpop.f32.mrf.mxu0
        %v4790 = vadd.f32 0.0, %v4789
        %4791 = vmatmul.bf16.gmra.mxu0 %v4699
        %v4792 = vpop.f32.mrf.mxu0
        %v4793 = vadd.f32 0.0, %v4792
        %v4794 = vpop.f32.mrf.mxu0
        %v4795 = vadd.f32 0.0, %v4794
        %4796 = vmatmul.bf16.gmra.mxu0 %v4702
        %v4797 = vpop.f32.mrf.mxu0
        %v4798 = vadd.f32 0.0, %v4797
        %v4799 = vpop.f32.mrf.mxu0
        %v4800 = vadd.f32 0.0, %v4799
        %4801 = vmatmul.bf16.gmra.mxu0 %v4705
        %v4802 = vpop.f32.mrf.mxu0
        %v4803 = vadd.f32 0.0, %v4802
        %v4804 = vpop.f32.mrf.mxu0
        %v4805 = vadd.f32 0.0, %v4804
        %4806 = vdwg.mxu0
        %4807 = vmatpush.bf16.msra.mxu0 0
        %4808 = vmatpush.bf16.msra.mxu0 0
        %4809 = vmatpush.bf16.msra.mxu0 0
        %4810 = vmatpush.bf16.msra.mxu0 0
        %4811 = vmatpush.bf16.msra.mxu0 0
        %4812 = vmatpush.bf16.msra.mxu0 0
        %4813 = vmatpush.bf16.msra.mxu0 %v4714
        %4814 = vmatpush.bf16.msra.mxu0 %v4611
        %4815 = vmatmul.bf16.gmra.mxu0 %v4684
        %v4816 = vpop.f32.mrf.mxu0
        %v4817 = vadd.f32 0.0, %v4816
        %v4818 = vpop.f32.mrf.mxu0
        %v4819 = vadd.f32 0.0, %v4818
        %4820 = vmatmul.bf16.gmra.mxu0 %v4687
        %v4821 = vpop.f32.mrf.mxu0
        %v4822 = vadd.f32 0.0, %v4821
        %v4823 = vpop.f32.mrf.mxu0
        %v4824 = vadd.f32 0.0, %v4823
        %4825 = vmatmul.bf16.gmra.mxu0 %v4690
        %v4826 = vpop.f32.mrf.mxu0
        %v4827 = vadd.f32 0.0, %v4826
        %v4828 = vpop.f32.mrf.mxu0
        %v4829 = vadd.f32 0.0, %v4828
        %4830 = vmatmul.bf16.gmra.mxu0 %v4693
        %v4831 = vpop.f32.mrf.mxu0
        %v4832 = vadd.f32 0.0, %v4831
        %v4833 = vpop.f32.mrf.mxu0
        %v4834 = vadd.f32 0.0, %v4833
        %4835 = vmatmul.bf16.gmra.mxu0 %v4696
        %v4836 = vpop.f32.mrf.mxu0
        %v4837 = vadd.f32 0.0, %v4836
        %v4838 = vpop.f32.mrf.mxu0
        %v4839 = vadd.f32 0.0, %v4838
        %4840 = vmatmul.bf16.gmra.mxu0 %v4699
        %v4841 = vpop.f32.mrf.mxu0
        %v4842 = vadd.f32 0.0, %v4841
        %v4843 = vpop.f32.mrf.mxu0
        %v4844 = vadd.f32 0.0, %v4843
        %4845 = vmatmul.bf16.gmra.mxu0 %v4702
        %v4846 = vpop.f32.mrf.mxu0
        %v4847 = vadd.f32 0.0, %v4846
        %v4848 = vpop.f32.mrf.mxu0
        %v4849 = vadd.f32 0.0, %v4848
        %4850 = vmatmul.bf16.gmra.mxu0 %v4705
        %v4851 = vpop.f32.mrf.mxu0
        %v4852 = vadd.f32 0.0, %v4851
        %v4853 = vpop.f32.mrf.mxu0
        %v4854 = vadd.f32 0.0, %v4853
        %4855 = vdwg.mxu0
        %4856 = vmatpush.bf16.msra.mxu0 0
        %4857 = vmatpush.bf16.msra.mxu0 0
        %4858 = vmatpush.bf16.msra.mxu0 0
        %4859 = vmatpush.bf16.msra.mxu0 0
        %4860 = vmatpush.bf16.msra.mxu0 0
        %4861 = vmatpush.bf16.msra.mxu0 0
        %4862 = vmatpush.bf16.msra.mxu0 %v4717
        %4863 = vmatpush.bf16.msra.mxu0 %v4612
        %4864 = vmatmul.bf16.gmra.mxu0 %v4684
        %v4865 = vpop.f32.mrf.mxu0
        %v4866 = vadd.f32 0.0, %v4865
        %v4867 = vpop.f32.mrf.mxu0
        %v4868 = vadd.f32 0.0, %v4867
        %4869 = vmatmul.bf16.gmra.mxu0 %v4687
        %v4870 = vpop.f32.mrf.mxu0
        %v4871 = vadd.f32 0.0, %v4870
        %v4872 = vpop.f32.mrf.mxu0
        %v4873 = vadd.f32 0.0, %v4872
        %4874 = vmatmul.bf16.gmra.mxu0 %v4690
        %v4875 = vpop.f32.mrf.mxu0
        %v4876 = vadd.f32 0.0, %v4875
        %v4877 = vpop.f32.mrf.mxu0
        %v4878 = vadd.f32 0.0, %v4877
        %4879 = vmatmul.bf16.gmra.mxu0 %v4693
        %v4880 = vpop.f32.mrf.mxu0
        %v4881 = vadd.f32 0.0, %v4880
        %v4882 = vpop.f32.mrf.mxu0
        %v4883 = vadd.f32 0.0, %v4882
        %4884 = vmatmul.bf16.gmra.mxu0 %v4696
        %v4885 = vpop.f32.mrf.mxu0
        %v4886 = vadd.f32 0.0, %v4885
        %v4887 = vpop.f32.mrf.mxu0
        %v4888 = vadd.f32 0.0, %v4887
        %4889 = vmatmul.bf16.gmra.mxu0 %v4699
        %v4890 = vpop.f32.mrf.mxu0
        %v4891 = vadd.f32 0.0, %v4890
        %v4892 = vpop.f32.mrf.mxu0
        %v4893 = vadd.f32 0.0, %v4892
        %4894 = vmatmul.bf16.gmra.mxu0 %v4702
        %v4895 = vpop.f32.mrf.mxu0
        %v4896 = vadd.f32 0.0, %v4895
        %v4897 = vpop.f32.mrf.mxu0
        %v4898 = vadd.f32 0.0, %v4897
        %4899 = vmatmul.bf16.gmra.mxu0 %v4705
        %v4900 = vpop.f32.mrf.mxu0
        %v4901 = vadd.f32 0.0, %v4900
        %v4902 = vpop.f32.mrf.mxu0
        %v4903 = vadd.f32 0.0, %v4902
        %4904 = vdwg.mxu0
        %4905 = vmatpush.bf16.msra.mxu0 0
        %4906 = vmatpush.bf16.msra.mxu0 0
        %4907 = vmatpush.bf16.msra.mxu0 0
        %4908 = vmatpush.bf16.msra.mxu0 0
        %4909 = vmatpush.bf16.msra.mxu0 0
        %4910 = vmatpush.bf16.msra.mxu0 0
        %4911 = vmatpush.bf16.msra.mxu0 %v4720
        %4912 = vmatpush.bf16.msra.mxu0 %v4613
        %4913 = vmatmul.bf16.gmra.mxu0 %v4684
        %v4914 = vpop.f32.mrf.mxu0
        %v4915 = vadd.f32 0.0, %v4914
        %v4916 = vpop.f32.mrf.mxu0
        %v4917 = vadd.f32 0.0, %v4916
        %4918 = vmatmul.bf16.gmra.mxu0 %v4687
        %v4919 = vpop.f32.mrf.mxu0
        %v4920 = vadd.f32 0.0, %v4919
        %v4921 = vpop.f32.mrf.mxu0
        %v4922 = vadd.f32 0.0, %v4921
        %4923 = vmatmul.bf16.gmra.mxu0 %v4690
        %v4924 = vpop.f32.mrf.mxu0
        %v4925 = vadd.f32 0.0, %v4924
        %v4926 = vpop.f32.mrf.mxu0
        %v4927 = vadd.f32 0.0, %v4926
        %4928 = vmatmul.bf16.gmra.mxu0 %v4693
        %v4929 = vpop.f32.mrf.mxu0
        %v4930 = vadd.f32 0.0, %v4929
        %v4931 = vpop.f32.mrf.mxu0
        %v4932 = vadd.f32 0.0, %v4931
        %4933 = vmatmul.bf16.gmra.mxu0 %v4696
        %v4934 = vpop.f32.mrf.mxu0
        %v4935 = vadd.f32 0.0, %v4934
        %v4936 = vpop.f32.mrf.mxu0
        %v4937 = vadd.f32 0.0, %v4936
        %4938 = vmatmul.bf16.gmra.mxu0 %v4699
        %v4939 = vpop.f32.mrf.mxu0
        %v4940 = vadd.f32 0.0, %v4939
        %v4941 = vpop.f32.mrf.mxu0
        %v4942 = vadd.f32 0.0, %v4941
        %4943 = vmatmul.bf16.gmra.mxu0 %v4702
        %v4944 = vpop.f32.mrf.mxu0
        %v4945 = vadd.f32 0.0, %v4944
        %v4946 = vpop.f32.mrf.mxu0
        %v4947 = vadd.f32 0.0, %v4946
        %4948 = vmatmul.bf16.gmra.mxu0 %v4705
        %v4949 = vpop.f32.mrf.mxu0
        %v4950 = vadd.f32 0.0, %v4949
        %v4951 = vpop.f32.mrf.mxu0
        %v4952 = vadd.f32 0.0, %v4951
        %4953 = vdwg.mxu0
        %4954 = vmatpush.bf16.msra.mxu0 0
        %4955 = vmatpush.bf16.msra.mxu0 0
        %4956 = vmatpush.bf16.msra.mxu0 0
        %4957 = vmatpush.bf16.msra.mxu0 0
        %4958 = vmatpush.bf16.msra.mxu0 0
        %4959 = vmatpush.bf16.msra.mxu0 0
        %4960 = vmatpush.bf16.msra.mxu0 %v4723
        %4961 = vmatpush.bf16.msra.mxu0 %v4614
        %4962 = vmatmul.bf16.gmra.mxu0 %v4684
        %v4963 = vpop.f32.mrf.mxu0
        %v4964 = vadd.f32 0.0, %v4963
        %v4965 = vpop.f32.mrf.mxu0
        %v4966 = vadd.f32 0.0, %v4965
        %4967 = vmatmul.bf16.gmra.mxu0 %v4687
        %v4968 = vpop.f32.mrf.mxu0
        %v4969 = vadd.f32 0.0, %v4968
        %v4970 = vpop.f32.mrf.mxu0
        %v4971 = vadd.f32 0.0, %v4970
        %4972 = vmatmul.bf16.gmra.mxu0 %v4690
        %v4973 = vpop.f32.mrf.mxu0
        %v4974 = vadd.f32 0.0, %v4973
        %v4975 = vpop.f32.mrf.mxu0
        %v4976 = vadd.f32 0.0, %v4975
        %4977 = vmatmul.bf16.gmra.mxu0 %v4693
        %v4978 = vpop.f32.mrf.mxu0
        %v4979 = vadd.f32 0.0, %v4978
        %v4980 = vpop.f32.mrf.mxu0
        %v4981 = vadd.f32 0.0, %v4980
        %4982 = vmatmul.bf16.gmra.mxu0 %v4696
        %v4983 = vpop.f32.mrf.mxu0
        %v4984 = vadd.f32 0.0, %v4983
        %v4985 = vpop.f32.mrf.mxu0
        %v4986 = vadd.f32 0.0, %v4985
        %4987 = vmatmul.bf16.gmra.mxu0 %v4699
        %v4988 = vpop.f32.mrf.mxu0
        %v4989 = vadd.f32 0.0, %v4988
        %v4990 = vpop.f32.mrf.mxu0
        %v4991 = vadd.f32 0.0, %v4990
        %4992 = vmatmul.bf16.gmra.mxu0 %v4702
        %v4993 = vpop.f32.mrf.mxu0
        %v4994 = vadd.f32 0.0, %v4993
        %v4995 = vpop.f32.mrf.mxu0
        %v4996 = vadd.f32 0.0, %v4995
        %4997 = vmatmul.bf16.gmra.mxu0 %v4705
        %v4998 = vpop.f32.mrf.mxu0
        %v4999 = vadd.f32 0.0, %v4998
        %v5000 = vpop.f32.mrf.mxu0
        %v5001 = vadd.f32 0.0, %v5000
        %5002 = vdwg.mxu0
        %5003 = vmatpush.bf16.msra.mxu0 0
        %5004 = vmatpush.bf16.msra.mxu0 0
        %5005 = vmatpush.bf16.msra.mxu0 0
        %5006 = vmatpush.bf16.msra.mxu0 0
        %5007 = vmatpush.bf16.msra.mxu0 0
        %5008 = vmatpush.bf16.msra.mxu0 0
        %5009 = vmatpush.bf16.msra.mxu0 %v4726
        %5010 = vmatpush.bf16.msra.mxu0 %v4615
        %5011 = vmatmul.bf16.gmra.mxu0 %v4684
        %v5012 = vpop.f32.mrf.mxu0
        %v5013 = vadd.f32 0.0, %v5012
        %v5014 = vpop.f32.mrf.mxu0
        %v5015 = vadd.f32 0.0, %v5014
        %5016 = vmatmul.bf16.gmra.mxu0 %v4687
        %v5017 = vpop.f32.mrf.mxu0
        %v5018 = vadd.f32 0.0, %v5017
        %v5019 = vpop.f32.mrf.mxu0
        %v5020 = vadd.f32 0.0, %v5019
        %5021 = vmatmul.bf16.gmra.mxu0 %v4690
        %v5022 = vpop.f32.mrf.mxu0
        %v5023 = vadd.f32 0.0, %v5022
        %v5024 = vpop.f32.mrf.mxu0
        %v5025 = vadd.f32 0.0, %v5024
        %5026 = vmatmul.bf16.gmra.mxu0 %v4693
        %v5027 = vpop.f32.mrf.mxu0
        %v5028 = vadd.f32 0.0, %v5027
        %v5029 = vpop.f32.mrf.mxu0
        %v5030 = vadd.f32 0.0, %v5029
        %5031 = vmatmul.bf16.gmra.mxu0 %v4696
        %v5032 = vpop.f32.mrf.mxu0
        %v5033 = vadd.f32 0.0, %v5032
        %v5034 = vpop.f32.mrf.mxu0
        %v5035 = vadd.f32 0.0, %v5034
        %5036 = vmatmul.bf16.gmra.mxu0 %v4699
        %v5037 = vpop.f32.mrf.mxu0
        %v5038 = vadd.f32 0.0, %v5037
        %v5039 = vpop.f32.mrf.mxu0
        %v5040 = vadd.f32 0.0, %v5039
        %5041 = vmatmul.bf16.gmra.mxu0 %v4702
        %v5042 = vpop.f32.mrf.mxu0
        %v5043 = vadd.f32 0.0, %v5042
        %v5044 = vpop.f32.mrf.mxu0
        %v5045 = vadd.f32 0.0, %v5044
        %5046 = vmatmul.bf16.gmra.mxu0 %v4705
        %v5047 = vpop.f32.mrf.mxu0
        %v5048 = vadd.f32 0.0, %v5047
        %v5049 = vpop.f32.mrf.mxu0
        %v5050 = vadd.f32 0.0, %v5049
        %5051 = vdwg.mxu0
        %5052 = vmatpush.bf16.msra.mxu0 0
        %5053 = vmatpush.bf16.msra.mxu0 0
        %5054 = vmatpush.bf16.msra.mxu0 0
        %5055 = vmatpush.bf16.msra.mxu0 0
        %5056 = vmatpush.bf16.msra.mxu0 0
        %5057 = vmatpush.bf16.msra.mxu0 0
        %5058 = vmatpush.bf16.msra.mxu0 %v4729
        %5059 = vmatpush.bf16.msra.mxu0 %v4616
        %5060 = vmatmul.bf16.gmra.mxu0 %v4684
        %v5061 = vpop.f32.mrf.mxu0
        %v5062 = vadd.f32 0.0, %v5061
        %v5063 = vpop.f32.mrf.mxu0
        %v5064 = vadd.f32 0.0, %v5063
        %5065 = vmatmul.bf16.gmra.mxu0 %v4687
        %v5066 = vpop.f32.mrf.mxu0
        %v5067 = vadd.f32 0.0, %v5066
        %v5068 = vpop.f32.mrf.mxu0
        %v5069 = vadd.f32 0.0, %v5068
        %5070 = vmatmul.bf16.gmra.mxu0 %v4690
        %v5071 = vpop.f32.mrf.mxu0
        %v5072 = vadd.f32 0.0, %v5071
        %v5073 = vpop.f32.mrf.mxu0
        %v5074 = vadd.f32 0.0, %v5073
        %5075 = vmatmul.bf16.gmra.mxu0 %v4693
        %v5076 = vpop.f32.mrf.mxu0
        %v5077 = vadd.f32 0.0, %v5076
        %v5078 = vpop.f32.mrf.mxu0
        %v5079 = vadd.f32 0.0, %v5078
        %5080 = vmatmul.bf16.gmra.mxu0 %v4696
        %v5081 = vpop.f32.mrf.mxu0
        %v5082 = vadd.f32 0.0, %v5081
        %v5083 = vpop.f32.mrf.mxu0
        %v5084 = vadd.f32 0.0, %v5083
        %5085 = vmatmul.bf16.gmra.mxu0 %v4699
        %v5086 = vpop.f32.mrf.mxu0
        %v5087 = vadd.f32 0.0, %v5086
        %v5088 = vpop.f32.mrf.mxu0
        %v5089 = vadd.f32 0.0, %v5088
        %5090 = vmatmul.bf16.gmra.mxu0 %v4702
        %v5091 = vpop.f32.mrf.mxu0
        %v5092 = vadd.f32 0.0, %v5091
        %v5093 = vpop.f32.mrf.mxu0
        %v5094 = vadd.f32 0.0, %v5093
        %5095 = vmatmul.bf16.gmra.mxu0 %v4705
        %v5096 = vpop.f32.mrf.mxu0
        %v5097 = vadd.f32 0.0, %v5096
        %v5098 = vpop.f32.mrf.mxu0
        %v5099 = vadd.f32 0.0, %v5098
        %5100 = vdwg.mxu0
        %5101 = vmatpush.bf16.msra.mxu0 0
        %5102 = vmatpush.bf16.msra.mxu0 0
        %5103 = vmatpush.bf16.msra.mxu0 0
        %5104 = vmatpush.bf16.msra.mxu0 0
        %5105 = vmatpush.bf16.msra.mxu0 0
        %5106 = vmatpush.bf16.msra.mxu0 0
        %5107 = vmatpush.bf16.msra.mxu0 %v4732
        %5108 = vmatpush.bf16.msra.mxu0 %v4617
        %5109 = vmatmul.bf16.gmra.mxu0 %v4684
        %v5110 = vpop.f32.mrf.mxu0
        %v5111 = vadd.f32 0.0, %v5110
        %v5112 = vpop.f32.mrf.mxu0
        %v5113 = vadd.f32 0.0, %v5112
        %5114 = vmatmul.bf16.gmra.mxu0 %v4687
        %v5115 = vpop.f32.mrf.mxu0
        %v5116 = vadd.f32 0.0, %v5115
        %v5117 = vpop.f32.mrf.mxu0
        %v5118 = vadd.f32 0.0, %v5117
        %5119 = vmatmul.bf16.gmra.mxu0 %v4690
        %v5120 = vpop.f32.mrf.mxu0
        %v5121 = vadd.f32 0.0, %v5120
        %v5122 = vpop.f32.mrf.mxu0
        %v5123 = vadd.f32 0.0, %v5122
        %5124 = vmatmul.bf16.gmra.mxu0 %v4693
        %v5125 = vpop.f32.mrf.mxu0
        %v5126 = vadd.f32 0.0, %v5125
        %v5127 = vpop.f32.mrf.mxu0
        %v5128 = vadd.f32 0.0, %v5127
        %5129 = vmatmul.bf16.gmra.mxu0 %v4696
        %v5130 = vpop.f32.mrf.mxu0
        %v5131 = vadd.f32 0.0, %v5130
        %v5132 = vpop.f32.mrf.mxu0
        %v5133 = vadd.f32 0.0, %v5132
        %5134 = vmatmul.bf16.gmra.mxu0 %v4699
        %v5135 = vpop.f32.mrf.mxu0
        %v5136 = vadd.f32 0.0, %v5135
        %v5137 = vpop.f32.mrf.mxu0
        %v5138 = vadd.f32 0.0, %v5137
        %5139 = vmatmul.bf16.gmra.mxu0 %v4702
        %v5140 = vpop.f32.mrf.mxu0
        %v5141 = vadd.f32 0.0, %v5140
        %v5142 = vpop.f32.mrf.mxu0
        %v5143 = vadd.f32 0.0, %v5142
        %5144 = vmatmul.bf16.gmra.mxu0 %v4705
        %v5145 = vpop.f32.mrf.mxu0
        %v5146 = vadd.f32 0.0, %v5145
        %v5147 = vpop.f32.mrf.mxu0
        %v5148 = vadd.f32 0.0, %v5147
        %5149 = vdwg.mxu0
        %5150 = vmatpush.bf16.msra.mxu0 0
        %5151 = vmatpush.bf16.msra.mxu0 0
        %5152 = vmatpush.bf16.msra.mxu0 0
        %5153 = vmatpush.bf16.msra.mxu0 0
        %5154 = vmatpush.bf16.msra.mxu0 0
        %5155 = vmatpush.bf16.msra.mxu0 0
        %5156 = vmatpush.bf16.msra.mxu0 %v4735
        %5157 = vmatpush.bf16.msra.mxu0 %v4618
        %5158 = vmatmul.bf16.gmra.mxu0 %v4684
        %v5159 = vpop.f32.mrf.mxu0
        %v5160 = vadd.f32 0.0, %v5159
        %v5161 = vpop.f32.mrf.mxu0
        %v5162 = vadd.f32 0.0, %v5161
        %5163 = vmatmul.bf16.gmra.mxu0 %v4687
        %v5164 = vpop.f32.mrf.mxu0
        %v5165 = vadd.f32 0.0, %v5164
        %v5166 = vpop.f32.mrf.mxu0
        %v5167 = vadd.f32 0.0, %v5166
        %5168 = vmatmul.bf16.gmra.mxu0 %v4690
        %v5169 = vpop.f32.mrf.mxu0
        %v5170 = vadd.f32 0.0, %v5169
        %v5171 = vpop.f32.mrf.mxu0
        %v5172 = vadd.f32 0.0, %v5171
        %5173 = vmatmul.bf16.gmra.mxu0 %v4693
        %v5174 = vpop.f32.mrf.mxu0
        %v5175 = vadd.f32 0.0, %v5174
        %v5176 = vpop.f32.mrf.mxu0
        %v5177 = vadd.f32 0.0, %v5176
        %5178 = vmatmul.bf16.gmra.mxu0 %v4696
        %v5179 = vpop.f32.mrf.mxu0
        %v5180 = vadd.f32 0.0, %v5179
        %v5181 = vpop.f32.mrf.mxu0
        %v5182 = vadd.f32 0.0, %v5181
        %5183 = vmatmul.bf16.gmra.mxu0 %v4699
        %v5184 = vpop.f32.mrf.mxu0
        %v5185 = vadd.f32 0.0, %v5184
        %v5186 = vpop.f32.mrf.mxu0
        %v5187 = vadd.f32 0.0, %v5186
        %5188 = vmatmul.bf16.gmra.mxu0 %v4702
        %v5189 = vpop.f32.mrf.mxu0
        %v5190 = vadd.f32 0.0, %v5189
        %v5191 = vpop.f32.mrf.mxu0
        %v5192 = vadd.f32 0.0, %v5191
        %5193 = vmatmul.bf16.gmra.mxu0 %v4705
        %v5194 = vpop.f32.mrf.mxu0
        %v5195 = vadd.f32 0.0, %v5194
        %v5196 = vpop.f32.mrf.mxu0
        %v5197 = vadd.f32 0.0, %v5196
        %5198 = vdwg.mxu0
        %5199 = vmatpush.bf16.msra.mxu0 0
        %5200 = vmatpush.bf16.msra.mxu0 0
        %5201 = vmatpush.bf16.msra.mxu0 0
        %5202 = vmatpush.bf16.msra.mxu0 0
        %5203 = vmatpush.bf16.msra.mxu0 0
        %5204 = vmatpush.bf16.msra.mxu0 0
        %5205 = vmatpush.bf16.msra.mxu0 %v4738
        %5206 = vmatpush.bf16.msra.mxu0 %v4619
        %5207 = vmatmul.bf16.gmra.mxu0 %v4684
        %v5208 = vpop.f32.mrf.mxu0
        %v5209 = vadd.f32 0.0, %v5208
        %v5210 = vpop.f32.mrf.mxu0
        %v5211 = vadd.f32 0.0, %v5210
        %5212 = vmatmul.bf16.gmra.mxu0 %v4687
        %v5213 = vpop.f32.mrf.mxu0
        %v5214 = vadd.f32 0.0, %v5213
        %v5215 = vpop.f32.mrf.mxu0
        %v5216 = vadd.f32 0.0, %v5215
        %5217 = vmatmul.bf16.gmra.mxu0 %v4690
        %v5218 = vpop.f32.mrf.mxu0
        %v5219 = vadd.f32 0.0, %v5218
        %v5220 = vpop.f32.mrf.mxu0
        %v5221 = vadd.f32 0.0, %v5220
        %5222 = vmatmul.bf16.gmra.mxu0 %v4693
        %v5223 = vpop.f32.mrf.mxu0
        %v5224 = vadd.f32 0.0, %v5223
        %v5225 = vpop.f32.mrf.mxu0
        %v5226 = vadd.f32 0.0, %v5225
        %5227 = vmatmul.bf16.gmra.mxu0 %v4696
        %v5228 = vpop.f32.mrf.mxu0
        %v5229 = vadd.f32 0.0, %v5228
        %v5230 = vpop.f32.mrf.mxu0
        %v5231 = vadd.f32 0.0, %v5230
        %5232 = vmatmul.bf16.gmra.mxu0 %v4699
        %v5233 = vpop.f32.mrf.mxu0
        %v5234 = vadd.f32 0.0, %v5233
        %v5235 = vpop.f32.mrf.mxu0
        %v5236 = vadd.f32 0.0, %v5235
        %5237 = vmatmul.bf16.gmra.mxu0 %v4702
        %v5238 = vpop.f32.mrf.mxu0
        %v5239 = vadd.f32 0.0, %v5238
        %v5240 = vpop.f32.mrf.mxu0
        %v5241 = vadd.f32 0.0, %v5240
        %5242 = vmatmul.bf16.gmra.mxu0 %v4705
        %v5243 = vpop.f32.mrf.mxu0
        %v5244 = vadd.f32 0.0, %v5243
        %v5245 = vpop.f32.mrf.mxu0
        %v5246 = vadd.f32 0.0, %v5245
        %5247 = vdwg.mxu0
        %5248 = vmatpush.bf16.msra.mxu0 0
        %5249 = vmatpush.bf16.msra.mxu0 0
        %5250 = vmatpush.bf16.msra.mxu0 0
        %5251 = vmatpush.bf16.msra.mxu0 0
        %5252 = vmatpush.bf16.msra.mxu0 0
        %5253 = vmatpush.bf16.msra.mxu0 0
        %5254 = vmatpush.bf16.msra.mxu0 %v4741
        %5255 = vmatpush.bf16.msra.mxu0 %v4620
        %5256 = vmatmul.bf16.gmra.mxu0 %v4684
        %v5257 = vpop.f32.mrf.mxu0
        %v5258 = vadd.f32 0.0, %v5257
        %v5259 = vpop.f32.mrf.mxu0
        %v5260 = vadd.f32 0.0, %v5259
        %5261 = vmatmul.bf16.gmra.mxu0 %v4687
        %v5262 = vpop.f32.mrf.mxu0
        %v5263 = vadd.f32 0.0, %v5262
        %v5264 = vpop.f32.mrf.mxu0
        %v5265 = vadd.f32 0.0, %v5264
        %5266 = vmatmul.bf16.gmra.mxu0 %v4690
        %v5267 = vpop.f32.mrf.mxu0
        %v5268 = vadd.f32 0.0, %v5267
        %v5269 = vpop.f32.mrf.mxu0
        %v5270 = vadd.f32 0.0, %v5269
        %5271 = vmatmul.bf16.gmra.mxu0 %v4693
        %v5272 = vpop.f32.mrf.mxu0
        %v5273 = vadd.f32 0.0, %v5272
        %v5274 = vpop.f32.mrf.mxu0
        %v5275 = vadd.f32 0.0, %v5274
        %5276 = vmatmul.bf16.gmra.mxu0 %v4696
        %v5277 = vpop.f32.mrf.mxu0
        %v5278 = vadd.f32 0.0, %v5277
        %v5279 = vpop.f32.mrf.mxu0
        %v5280 = vadd.f32 0.0, %v5279
        %5281 = vmatmul.bf16.gmra.mxu0 %v4699
        %v5282 = vpop.f32.mrf.mxu0
        %v5283 = vadd.f32 0.0, %v5282
        %v5284 = vpop.f32.mrf.mxu0
        %v5285 = vadd.f32 0.0, %v5284
        %5286 = vmatmul.bf16.gmra.mxu0 %v4702
        %v5287 = vpop.f32.mrf.mxu0
        %v5288 = vadd.f32 0.0, %v5287
        %v5289 = vpop.f32.mrf.mxu0
        %v5290 = vadd.f32 0.0, %v5289
        %5291 = vmatmul.bf16.gmra.mxu0 %v4705
        %v5292 = vpop.f32.mrf.mxu0
        %v5293 = vadd.f32 0.0, %v5292
        %v5294 = vpop.f32.mrf.mxu0
        %v5295 = vadd.f32 0.0, %v5294
        %5296 = vdwg.mxu0
        %5297 = vmatpush.bf16.msra.mxu0 0
        %5298 = vmatpush.bf16.msra.mxu0 0
        %5299 = vmatpush.bf16.msra.mxu0 0
        %5300 = vmatpush.bf16.msra.mxu0 0
        %5301 = vmatpush.bf16.msra.mxu0 0
        %5302 = vmatpush.bf16.msra.mxu0 0
        %5303 = vmatpush.bf16.msra.mxu0 %v4744
        %5304 = vmatpush.bf16.msra.mxu0 %v4621
        %5305 = vmatmul.bf16.gmra.mxu0 %v4684
        %v5306 = vpop.f32.mrf.mxu0
        %v5307 = vadd.f32 0.0, %v5306
        %v5308 = vpop.f32.mrf.mxu0
        %v5309 = vadd.f32 0.0, %v5308
        %5310 = vmatmul.bf16.gmra.mxu0 %v4687
        %v5311 = vpop.f32.mrf.mxu0
        %v5312 = vadd.f32 0.0, %v5311
        %v5313 = vpop.f32.mrf.mxu0
        %v5314 = vadd.f32 0.0, %v5313
        %5315 = vmatmul.bf16.gmra.mxu0 %v4690
        %v5316 = vpop.f32.mrf.mxu0
        %v5317 = vadd.f32 0.0, %v5316
        %v5318 = vpop.f32.mrf.mxu0
        %v5319 = vadd.f32 0.0, %v5318
        %5320 = vmatmul.bf16.gmra.mxu0 %v4693
        %v5321 = vpop.f32.mrf.mxu0
        %v5322 = vadd.f32 0.0, %v5321
        %v5323 = vpop.f32.mrf.mxu0
        %v5324 = vadd.f32 0.0, %v5323
        %5325 = vmatmul.bf16.gmra.mxu0 %v4696
        %v5326 = vpop.f32.mrf.mxu0
        %v5327 = vadd.f32 0.0, %v5326
        %v5328 = vpop.f32.mrf.mxu0
        %v5329 = vadd.f32 0.0, %v5328
        %5330 = vmatmul.bf16.gmra.mxu0 %v4699
        %v5331 = vpop.f32.mrf.mxu0
        %v5332 = vadd.f32 0.0, %v5331
        %v5333 = vpop.f32.mrf.mxu0
        %v5334 = vadd.f32 0.0, %v5333
        %5335 = vmatmul.bf16.gmra.mxu0 %v4702
        %v5336 = vpop.f32.mrf.mxu0
        %v5337 = vadd.f32 0.0, %v5336
        %v5338 = vpop.f32.mrf.mxu0
        %v5339 = vadd.f32 0.0, %v5338
        %5340 = vmatmul.bf16.gmra.mxu0 %v4705
        %v5341 = vpop.f32.mrf.mxu0
        %v5342 = vadd.f32 0.0, %v5341
        %v5343 = vpop.f32.mrf.mxu0
        %v5344 = vadd.f32 0.0, %v5343
        %5345 = vdwg.mxu0
        %5346 = vmatpush.bf16.msra.mxu0 0
        %5347 = vmatpush.bf16.msra.mxu0 0
        %5348 = vmatpush.bf16.msra.mxu0 0
        %5349 = vmatpush.bf16.msra.mxu0 0
        %5350 = vmatpush.bf16.msra.mxu0 0
        %5351 = vmatpush.bf16.msra.mxu0 0
        %5352 = vmatpush.bf16.msra.mxu0 %v4747
        %5353 = vmatpush.bf16.msra.mxu0 %v4622
        %5354 = vmatmul.bf16.gmra.mxu0 %v4684
        %v5355 = vpop.f32.mrf.mxu0
        %v5356 = vadd.f32 0.0, %v5355
        %v5357 = vpop.f32.mrf.mxu0
        %v5358 = vadd.f32 0.0, %v5357
        %5359 = vmatmul.bf16.gmra.mxu0 %v4687
        %v5360 = vpop.f32.mrf.mxu0
        %v5361 = vadd.f32 0.0, %v5360
        %v5362 = vpop.f32.mrf.mxu0
        %v5363 = vadd.f32 0.0, %v5362
        %5364 = vmatmul.bf16.gmra.mxu0 %v4690
        %v5365 = vpop.f32.mrf.mxu0
        %v5366 = vadd.f32 0.0, %v5365
        %v5367 = vpop.f32.mrf.mxu0
        %v5368 = vadd.f32 0.0, %v5367
        %5369 = vmatmul.bf16.gmra.mxu0 %v4693
        %v5370 = vpop.f32.mrf.mxu0
        %v5371 = vadd.f32 0.0, %v5370
        %v5372 = vpop.f32.mrf.mxu0
        %v5373 = vadd.f32 0.0, %v5372
        %5374 = vmatmul.bf16.gmra.mxu0 %v4696
        %v5375 = vpop.f32.mrf.mxu0
        %v5376 = vadd.f32 0.0, %v5375
        %v5377 = vpop.f32.mrf.mxu0
        %v5378 = vadd.f32 0.0, %v5377
        %5379 = vmatmul.bf16.gmra.mxu0 %v4699
        %v5380 = vpop.f32.mrf.mxu0
        %v5381 = vadd.f32 0.0, %v5380
        %v5382 = vpop.f32.mrf.mxu0
        %v5383 = vadd.f32 0.0, %v5382
        %5384 = vmatmul.bf16.gmra.mxu0 %v4702
        %v5385 = vpop.f32.mrf.mxu0
        %v5386 = vadd.f32 0.0, %v5385
        %v5387 = vpop.f32.mrf.mxu0
        %v5388 = vadd.f32 0.0, %v5387
        %5389 = vmatmul.bf16.gmra.mxu0 %v4705
        %v5390 = vpop.f32.mrf.mxu0
        %v5391 = vadd.f32 0.0, %v5390
        %v5392 = vpop.f32.mrf.mxu0
        %v5393 = vadd.f32 0.0, %v5392
        %5394 = vdwg.mxu0
        %5395 = vmatpush.bf16.msra.mxu0 0
        %5396 = vmatpush.bf16.msra.mxu0 0
        %5397 = vmatpush.bf16.msra.mxu0 0
        %5398 = vmatpush.bf16.msra.mxu0 0
        %5399 = vmatpush.bf16.msra.mxu0 0
        %5400 = vmatpush.bf16.msra.mxu0 0
        %5401 = vmatpush.bf16.msra.mxu0 %v4750
        %5402 = vmatpush.bf16.msra.mxu0 %v4623
        %5403 = vmatmul.bf16.gmra.mxu0 %v4684
        %v5404 = vpop.f32.mrf.mxu0
        %v5405 = vadd.f32 0.0, %v5404
        %v5406 = vpop.f32.mrf.mxu0
        %v5407 = vadd.f32 0.0, %v5406
        %5408 = vmatmul.bf16.gmra.mxu0 %v4687
        %v5409 = vpop.f32.mrf.mxu0
        %v5410 = vadd.f32 0.0, %v5409
        %v5411 = vpop.f32.mrf.mxu0
        %v5412 = vadd.f32 0.0, %v5411
        %5413 = vmatmul.bf16.gmra.mxu0 %v4690
        %v5414 = vpop.f32.mrf.mxu0
        %v5415 = vadd.f32 0.0, %v5414
        %v5416 = vpop.f32.mrf.mxu0
        %v5417 = vadd.f32 0.0, %v5416
        %5418 = vmatmul.bf16.gmra.mxu0 %v4693
        %v5419 = vpop.f32.mrf.mxu0
        %v5420 = vadd.f32 0.0, %v5419
        %v5421 = vpop.f32.mrf.mxu0
        %v5422 = vadd.f32 0.0, %v5421
        %5423 = vmatmul.bf16.gmra.mxu0 %v4696
        %v5424 = vpop.f32.mrf.mxu0
        %v5425 = vadd.f32 0.0, %v5424
        %v5426 = vpop.f32.mrf.mxu0
        %v5427 = vadd.f32 0.0, %v5426
        %5428 = vmatmul.bf16.gmra.mxu0 %v4699
        %v5429 = vpop.f32.mrf.mxu0
        %v5430 = vadd.f32 0.0, %v5429
        %v5431 = vpop.f32.mrf.mxu0
        %v5432 = vadd.f32 0.0, %v5431
        %5433 = vmatmul.bf16.gmra.mxu0 %v4702
        %v5434 = vpop.f32.mrf.mxu0
        %v5435 = vadd.f32 0.0, %v5434
        %v5436 = vpop.f32.mrf.mxu0
        %v5437 = vadd.f32 0.0, %v5436
        %5438 = vmatmul.bf16.gmra.mxu0 %v4705
        %v5439 = vpop.f32.mrf.mxu0
        %v5440 = vadd.f32 0.0, %v5439
        %v5441 = vpop.f32.mrf.mxu0
        %v5442 = vadd.f32 0.0, %v5441
        %5443 = vdwg.mxu0
        %5444 = vmatpush.bf16.msra.mxu0 0
        %5445 = vmatpush.bf16.msra.mxu0 0
        %5446 = vmatpush.bf16.msra.mxu0 0
        %5447 = vmatpush.bf16.msra.mxu0 0
        %5448 = vmatpush.bf16.msra.mxu0 0
        %5449 = vmatpush.bf16.msra.mxu0 0
        %5450 = vmatpush.bf16.msra.mxu0 %v4753
        %5451 = vmatpush.bf16.msra.mxu0 %v4624
        %5452 = vmatmul.bf16.gmra.mxu0 %v4684
        %v5453 = vpop.f32.mrf.mxu0
        %v5454 = vadd.f32 0.0, %v5453
        %v5455 = vpop.f32.mrf.mxu0
        %v5456 = vadd.f32 0.0, %v5455
        %5457 = vmatmul.bf16.gmra.mxu0 %v4687
        %v5458 = vpop.f32.mrf.mxu0
        %v5459 = vadd.f32 0.0, %v5458
        %v5460 = vpop.f32.mrf.mxu0
        %v5461 = vadd.f32 0.0, %v5460
        %5462 = vmatmul.bf16.gmra.mxu0 %v4690
        %v5463 = vpop.f32.mrf.mxu0
        %v5464 = vadd.f32 0.0, %v5463
        %v5465 = vpop.f32.mrf.mxu0
        %v5466 = vadd.f32 0.0, %v5465
        %5467 = vmatmul.bf16.gmra.mxu0 %v4693
        %v5468 = vpop.f32.mrf.mxu0
        %v5469 = vadd.f32 0.0, %v5468
        %v5470 = vpop.f32.mrf.mxu0
        %v5471 = vadd.f32 0.0, %v5470
        %5472 = vmatmul.bf16.gmra.mxu0 %v4696
        %v5473 = vpop.f32.mrf.mxu0
        %v5474 = vadd.f32 0.0, %v5473
        %v5475 = vpop.f32.mrf.mxu0
        %v5476 = vadd.f32 0.0, %v5475
        %5477 = vmatmul.bf16.gmra.mxu0 %v4699
        %v5478 = vpop.f32.mrf.mxu0
        %v5479 = vadd.f32 0.0, %v5478
        %v5480 = vpop.f32.mrf.mxu0
        %v5481 = vadd.f32 0.0, %v5480
        %5482 = vmatmul.bf16.gmra.mxu0 %v4702
        %v5483 = vpop.f32.mrf.mxu0
        %v5484 = vadd.f32 0.0, %v5483
        %v5485 = vpop.f32.mrf.mxu0
        %v5486 = vadd.f32 0.0, %v5485
        %5487 = vmatmul.bf16.gmra.mxu0 %v4705
        %v5488 = vpop.f32.mrf.mxu0
        %v5489 = vadd.f32 0.0, %v5488
        %v5490 = vpop.f32.mrf.mxu0
        %v5491 = vadd.f32 0.0, %v5490
        %5492 = vdwg.mxu0
        %5493 = vmatpush.bf16.msra.mxu0 0
        %5494 = vmatpush.bf16.msra.mxu0 0
        %5495 = vmatpush.bf16.msra.mxu0 0
        %5496 = vmatpush.bf16.msra.mxu0 0
        %5497 = vmatpush.bf16.msra.mxu0 0
        %5498 = vmatpush.bf16.msra.mxu0 0
        %5499 = vmatpush.bf16.msra.mxu0 %v4756
        %5500 = vmatpush.bf16.msra.mxu0 %v4625
        %5501 = vmatmul.bf16.gmra.mxu0 %v4684
        %v5502 = vpop.f32.mrf.mxu0
        %v5503 = vadd.f32 0.0, %v5502
        %v5504 = vpop.f32.mrf.mxu0
        %v5505 = vadd.f32 0.0, %v5504
        %5506 = vmatmul.bf16.gmra.mxu0 %v4687
        %v5507 = vpop.f32.mrf.mxu0
        %v5508 = vadd.f32 0.0, %v5507
        %v5509 = vpop.f32.mrf.mxu0
        %v5510 = vadd.f32 0.0, %v5509
        %5511 = vmatmul.bf16.gmra.mxu0 %v4690
        %v5512 = vpop.f32.mrf.mxu0
        %v5513 = vadd.f32 0.0, %v5512
        %v5514 = vpop.f32.mrf.mxu0
        %v5515 = vadd.f32 0.0, %v5514
        %5516 = vmatmul.bf16.gmra.mxu0 %v4693
        %v5517 = vpop.f32.mrf.mxu0
        %v5518 = vadd.f32 0.0, %v5517
        %v5519 = vpop.f32.mrf.mxu0
        %v5520 = vadd.f32 0.0, %v5519
        %5521 = vmatmul.bf16.gmra.mxu0 %v4696
        %v5522 = vpop.f32.mrf.mxu0
        %v5523 = vadd.f32 0.0, %v5522
        %v5524 = vpop.f32.mrf.mxu0
        %v5525 = vadd.f32 0.0, %v5524
        %5526 = vmatmul.bf16.gmra.mxu0 %v4699
        %v5527 = vpop.f32.mrf.mxu0
        %v5528 = vadd.f32 0.0, %v5527
        %v5529 = vpop.f32.mrf.mxu0
        %v5530 = vadd.f32 0.0, %v5529
        %5531 = vmatmul.bf16.gmra.mxu0 %v4702
        %v5532 = vpop.f32.mrf.mxu0
        %v5533 = vadd.f32 0.0, %v5532
        %v5534 = vpop.f32.mrf.mxu0
        %v5535 = vadd.f32 0.0, %v5534
        %5536 = vmatmul.bf16.gmra.mxu0 %v4705
        %v5537 = vpop.f32.mrf.mxu0
        %v5538 = vadd.f32 0.0, %v5537
        %v5539 = vpop.f32.mrf.mxu0
        %v5540 = vadd.f32 0.0, %v5539
        %5541 = vdwg.mxu0
        %v5542 = vadd.f32 %v3820, %v4768
        %v5543 = vadd.f32 %v3869, %v4817
        %v5544 = vadd.f32 %v3918, %v4866
        %v5545 = vadd.f32 %v3967, %v4915
        %v5546 = vadd.f32 %v4016, %v4964
        %v5547 = vadd.f32 %v4065, %v5013
        %v5548 = vadd.f32 %v4114, %v5062
        %v5549 = vadd.f32 %v4163, %v5111
        %v5550 = vadd.f32 %v4212, %v5160
        %v5551 = vadd.f32 %v4261, %v5209
        %v5552 = vadd.f32 %v4310, %v5258
        %v5553 = vadd.f32 %v4359, %v5307
        %v5554 = vadd.f32 %v4408, %v5356
        %v5555 = vadd.f32 %v4457, %v5405
        %v5556 = vadd.f32 %v4506, %v5454
        %v5557 = vadd.f32 %v4555, %v5503
        %v5558 = vadd.f32 %v3822, %v4770
        %v5559 = vadd.f32 %v3871, %v4819
        %v5560 = vadd.f32 %v3920, %v4868
        %v5561 = vadd.f32 %v3969, %v4917
        %v5562 = vadd.f32 %v4018, %v4966
        %v5563 = vadd.f32 %v4067, %v5015
        %v5564 = vadd.f32 %v4116, %v5064
        %v5565 = vadd.f32 %v4165, %v5113
        %v5566 = vadd.f32 %v4214, %v5162
        %v5567 = vadd.f32 %v4263, %v5211
        %v5568 = vadd.f32 %v4312, %v5260
        %v5569 = vadd.f32 %v4361, %v5309
        %v5570 = vadd.f32 %v4410, %v5358
        %v5571 = vadd.f32 %v4459, %v5407
        %v5572 = vadd.f32 %v4508, %v5456
        %v5573 = vadd.f32 %v4557, %v5505
        %v5574 = vadd.f32 %v3825, %v4773
        %v5575 = vadd.f32 %v3874, %v4822
        %v5576 = vadd.f32 %v3923, %v4871
        %v5577 = vadd.f32 %v3972, %v4920
        %v5578 = vadd.f32 %v4021, %v4969
        %v5579 = vadd.f32 %v4070, %v5018
        %v5580 = vadd.f32 %v4119, %v5067
        %v5581 = vadd.f32 %v4168, %v5116
        %v5582 = vadd.f32 %v4217, %v5165
        %v5583 = vadd.f32 %v4266, %v5214
        %v5584 = vadd.f32 %v4315, %v5263
        %v5585 = vadd.f32 %v4364, %v5312
        %v5586 = vadd.f32 %v4413, %v5361
        %v5587 = vadd.f32 %v4462, %v5410
        %v5588 = vadd.f32 %v4511, %v5459
        %v5589 = vadd.f32 %v4560, %v5508
        %v5590 = vadd.f32 %v3827, %v4775
        %v5591 = vadd.f32 %v3876, %v4824
        %v5592 = vadd.f32 %v3925, %v4873
        %v5593 = vadd.f32 %v3974, %v4922
        %v5594 = vadd.f32 %v4023, %v4971
        %v5595 = vadd.f32 %v4072, %v5020
        %v5596 = vadd.f32 %v4121, %v5069
        %v5597 = vadd.f32 %v4170, %v5118
        %v5598 = vadd.f32 %v4219, %v5167
        %v5599 = vadd.f32 %v4268, %v5216
        %v5600 = vadd.f32 %v4317, %v5265
        %v5601 = vadd.f32 %v4366, %v5314
        %v5602 = vadd.f32 %v4415, %v5363
        %v5603 = vadd.f32 %v4464, %v5412
        %v5604 = vadd.f32 %v4513, %v5461
        %v5605 = vadd.f32 %v4562, %v5510
        %v5606 = vadd.f32 %v3830, %v4778
        %v5607 = vadd.f32 %v3879, %v4827
        %v5608 = vadd.f32 %v3928, %v4876
        %v5609 = vadd.f32 %v3977, %v4925
        %v5610 = vadd.f32 %v4026, %v4974
        %v5611 = vadd.f32 %v4075, %v5023
        %v5612 = vadd.f32 %v4124, %v5072
        %v5613 = vadd.f32 %v4173, %v5121
        %v5614 = vadd.f32 %v4222, %v5170
        %v5615 = vadd.f32 %v4271, %v5219
        %v5616 = vadd.f32 %v4320, %v5268
        %v5617 = vadd.f32 %v4369, %v5317
        %v5618 = vadd.f32 %v4418, %v5366
        %v5619 = vadd.f32 %v4467, %v5415
        %v5620 = vadd.f32 %v4516, %v5464
        %v5621 = vadd.f32 %v4565, %v5513
        %v5622 = vadd.f32 %v3832, %v4780
        %v5623 = vadd.f32 %v3881, %v4829
        %v5624 = vadd.f32 %v3930, %v4878
        %v5625 = vadd.f32 %v3979, %v4927
        %v5626 = vadd.f32 %v4028, %v4976
        %v5627 = vadd.f32 %v4077, %v5025
        %v5628 = vadd.f32 %v4126, %v5074
        %v5629 = vadd.f32 %v4175, %v5123
        %v5630 = vadd.f32 %v4224, %v5172
        %v5631 = vadd.f32 %v4273, %v5221
        %v5632 = vadd.f32 %v4322, %v5270
        %v5633 = vadd.f32 %v4371, %v5319
        %v5634 = vadd.f32 %v4420, %v5368
        %v5635 = vadd.f32 %v4469, %v5417
        %v5636 = vadd.f32 %v4518, %v5466
        %v5637 = vadd.f32 %v4567, %v5515
        %v5638 = vadd.f32 %v3835, %v4783
        %v5639 = vadd.f32 %v3884, %v4832
        %v5640 = vadd.f32 %v3933, %v4881
        %v5641 = vadd.f32 %v3982, %v4930
        %v5642 = vadd.f32 %v4031, %v4979
        %v5643 = vadd.f32 %v4080, %v5028
        %v5644 = vadd.f32 %v4129, %v5077
        %v5645 = vadd.f32 %v4178, %v5126
        %v5646 = vadd.f32 %v4227, %v5175
        %v5647 = vadd.f32 %v4276, %v5224
        %v5648 = vadd.f32 %v4325, %v5273
        %v5649 = vadd.f32 %v4374, %v5322
        %v5650 = vadd.f32 %v4423, %v5371
        %v5651 = vadd.f32 %v4472, %v5420
        %v5652 = vadd.f32 %v4521, %v5469
        %v5653 = vadd.f32 %v4570, %v5518
        %v5654 = vadd.f32 %v3837, %v4785
        %v5655 = vadd.f32 %v3886, %v4834
        %v5656 = vadd.f32 %v3935, %v4883
        %v5657 = vadd.f32 %v3984, %v4932
        %v5658 = vadd.f32 %v4033, %v4981
        %v5659 = vadd.f32 %v4082, %v5030
        %v5660 = vadd.f32 %v4131, %v5079
        %v5661 = vadd.f32 %v4180, %v5128
        %v5662 = vadd.f32 %v4229, %v5177
        %v5663 = vadd.f32 %v4278, %v5226
        %v5664 = vadd.f32 %v4327, %v5275
        %v5665 = vadd.f32 %v4376, %v5324
        %v5666 = vadd.f32 %v4425, %v5373
        %v5667 = vadd.f32 %v4474, %v5422
        %v5668 = vadd.f32 %v4523, %v5471
        %v5669 = vadd.f32 %v4572, %v5520
        %v5670 = vadd.f32 %v3840, %v4788
        %v5671 = vadd.f32 %v3889, %v4837
        %v5672 = vadd.f32 %v3938, %v4886
        %v5673 = vadd.f32 %v3987, %v4935
        %v5674 = vadd.f32 %v4036, %v4984
        %v5675 = vadd.f32 %v4085, %v5033
        %v5676 = vadd.f32 %v4134, %v5082
        %v5677 = vadd.f32 %v4183, %v5131
        %v5678 = vadd.f32 %v4232, %v5180
        %v5679 = vadd.f32 %v4281, %v5229
        %v5680 = vadd.f32 %v4330, %v5278
        %v5681 = vadd.f32 %v4379, %v5327
        %v5682 = vadd.f32 %v4428, %v5376
        %v5683 = vadd.f32 %v4477, %v5425
        %v5684 = vadd.f32 %v4526, %v5474
        %v5685 = vadd.f32 %v4575, %v5523
        %v5686 = vadd.f32 %v3842, %v4790
        %v5687 = vadd.f32 %v3891, %v4839
        %v5688 = vadd.f32 %v3940, %v4888
        %v5689 = vadd.f32 %v3989, %v4937
        %v5690 = vadd.f32 %v4038, %v4986
        %v5691 = vadd.f32 %v4087, %v5035
        %v5692 = vadd.f32 %v4136, %v5084
        %v5693 = vadd.f32 %v4185, %v5133
        %v5694 = vadd.f32 %v4234, %v5182
        %v5695 = vadd.f32 %v4283, %v5231
        %v5696 = vadd.f32 %v4332, %v5280
        %v5697 = vadd.f32 %v4381, %v5329
        %v5698 = vadd.f32 %v4430, %v5378
        %v5699 = vadd.f32 %v4479, %v5427
        %v5700 = vadd.f32 %v4528, %v5476
        %v5701 = vadd.f32 %v4577, %v5525
        %v5702 = vadd.f32 %v3845, %v4793
        %v5703 = vadd.f32 %v3894, %v4842
        %v5704 = vadd.f32 %v3943, %v4891
        %v5705 = vadd.f32 %v3992, %v4940
        %v5706 = vadd.f32 %v4041, %v4989
        %v5707 = vadd.f32 %v4090, %v5038
        %v5708 = vadd.f32 %v4139, %v5087
        %v5709 = vadd.f32 %v4188, %v5136
        %v5710 = vadd.f32 %v4237, %v5185
        %v5711 = vadd.f32 %v4286, %v5234
        %v5712 = vadd.f32 %v4335, %v5283
        %v5713 = vadd.f32 %v4384, %v5332
        %v5714 = vadd.f32 %v4433, %v5381
        %v5715 = vadd.f32 %v4482, %v5430
        %v5716 = vadd.f32 %v4531, %v5479
        %v5717 = vadd.f32 %v4580, %v5528
        %v5718 = vadd.f32 %v3847, %v4795
        %v5719 = vadd.f32 %v3896, %v4844
        %v5720 = vadd.f32 %v3945, %v4893
        %v5721 = vadd.f32 %v3994, %v4942
        %v5722 = vadd.f32 %v4043, %v4991
        %v5723 = vadd.f32 %v4092, %v5040
        %v5724 = vadd.f32 %v4141, %v5089
        %v5725 = vadd.f32 %v4190, %v5138
        %v5726 = vadd.f32 %v4239, %v5187
        %v5727 = vadd.f32 %v4288, %v5236
        %v5728 = vadd.f32 %v4337, %v5285
        %v5729 = vadd.f32 %v4386, %v5334
        %v5730 = vadd.f32 %v4435, %v5383
        %v5731 = vadd.f32 %v4484, %v5432
        %v5732 = vadd.f32 %v4533, %v5481
        %v5733 = vadd.f32 %v4582, %v5530
        %v5734 = vadd.f32 %v3850, %v4798
        %v5735 = vadd.f32 %v3899, %v4847
        %v5736 = vadd.f32 %v3948, %v4896
        %v5737 = vadd.f32 %v3997, %v4945
        %v5738 = vadd.f32 %v4046, %v4994
        %v5739 = vadd.f32 %v4095, %v5043
        %v5740 = vadd.f32 %v4144, %v5092
        %v5741 = vadd.f32 %v4193, %v5141
        %v5742 = vadd.f32 %v4242, %v5190
        %v5743 = vadd.f32 %v4291, %v5239
        %v5744 = vadd.f32 %v4340, %v5288
        %v5745 = vadd.f32 %v4389, %v5337
        %v5746 = vadd.f32 %v4438, %v5386
        %v5747 = vadd.f32 %v4487, %v5435
        %v5748 = vadd.f32 %v4536, %v5484
        %v5749 = vadd.f32 %v4585, %v5533
        %v5750 = vadd.f32 %v3852, %v4800
        %v5751 = vadd.f32 %v3901, %v4849
        %v5752 = vadd.f32 %v3950, %v4898
        %v5753 = vadd.f32 %v3999, %v4947
        %v5754 = vadd.f32 %v4048, %v4996
        %v5755 = vadd.f32 %v4097, %v5045
        %v5756 = vadd.f32 %v4146, %v5094
        %v5757 = vadd.f32 %v4195, %v5143
        %v5758 = vadd.f32 %v4244, %v5192
        %v5759 = vadd.f32 %v4293, %v5241
        %v5760 = vadd.f32 %v4342, %v5290
        %v5761 = vadd.f32 %v4391, %v5339
        %v5762 = vadd.f32 %v4440, %v5388
        %v5763 = vadd.f32 %v4489, %v5437
        %v5764 = vadd.f32 %v4538, %v5486
        %v5765 = vadd.f32 %v4587, %v5535
        %v5766 = vadd.f32 %v3855, %v4803
        %v5767 = vadd.f32 %v3904, %v4852
        %v5768 = vadd.f32 %v3953, %v4901
        %v5769 = vadd.f32 %v4002, %v4950
        %v5770 = vadd.f32 %v4051, %v4999
        %v5771 = vadd.f32 %v4100, %v5048
        %v5772 = vadd.f32 %v4149, %v5097
        %v5773 = vadd.f32 %v4198, %v5146
        %v5774 = vadd.f32 %v4247, %v5195
        %v5775 = vadd.f32 %v4296, %v5244
        %v5776 = vadd.f32 %v4345, %v5293
        %v5777 = vadd.f32 %v4394, %v5342
        %v5778 = vadd.f32 %v4443, %v5391
        %v5779 = vadd.f32 %v4492, %v5440
        %v5780 = vadd.f32 %v4541, %v5489
        %v5781 = vadd.f32 %v4590, %v5538
        %v5782 = vadd.f32 %v3857, %v4805
        %v5783 = vadd.f32 %v3906, %v4854
        %v5784 = vadd.f32 %v3955, %v4903
        %v5785 = vadd.f32 %v4004, %v4952
        %v5786 = vadd.f32 %v4053, %v5001
        %v5787 = vadd.f32 %v4102, %v5050
        %v5788 = vadd.f32 %v4151, %v5099
        %v5789 = vadd.f32 %v4200, %v5148
        %v5790 = vadd.f32 %v4249, %v5197
        %v5791 = vadd.f32 %v4298, %v5246
        %v5792 = vadd.f32 %v4347, %v5295
        %v5793 = vadd.f32 %v4396, %v5344
        %v5794 = vadd.f32 %v4445, %v5393
        %v5795 = vadd.f32 %v4494, %v5442
        %v5796 = vadd.f32 %v4543, %v5491
        %v5797 = vadd.f32 %v4592, %v5540
        %v5798 = vld [vmem:[%s4] sm:$0xff]
        %v5799 = vld [vmem:[%s4 + $0x8] sm:$0xff]
        %v5800 = vld [vmem:[%s4 + $0x10] sm:$0xff]
        %v5801 = vld [vmem:[%s4 + $0x18] sm:$0xff]
        %v5802 = vld [vmem:[%s4 + $0x20] sm:$0xff]
        %v5803 = vld [vmem:[%s4 + $0x28] sm:$0xff]
        %v5804 = vld [vmem:[%s4 + $0x30] sm:$0xff]
        %v5805 = vld [vmem:[%s4 + $0x38] sm:$0xff]
        %v5806 = vld [vmem:[%s4 + $0x40] sm:$0xff]
        %v5807 = vld [vmem:[%s4 + $0x48] sm:$0xff]
        %v5808 = vld [vmem:[%s4 + $0x50] sm:$0xff]
        %v5809 = vld [vmem:[%s4 + $0x58] sm:$0xff]
        %v5810 = vld [vmem:[%s4 + $0x60] sm:$0xff]
        %v5811 = vld [vmem:[%s4 + $0x68] sm:$0xff]
        %v5812 = vld [vmem:[%s4 + $0x70] sm:$0xff]
        %v5813 = vld [vmem:[%s4 + $0x78] sm:$0xff]
        %5815 = vset.pattern.permute.xlu0 0
        %5816 = vperm.xlu0 %5815, %v5798
        %v5817 = vpop.permute.xlu0 %5816
        %5820 = vset.pattern.permute.xlu0 0
        %5821 = vperm.xlu0 %5820, %v5799
        %v5822 = vpop.permute.xlu0 %5821
        %5825 = vset.pattern.permute.xlu0 0
        %5826 = vperm.xlu0 %5825, %v5800
        %v5827 = vpop.permute.xlu0 %5826
        %5830 = vset.pattern.permute.xlu0 0
        %5831 = vperm.xlu0 %5830, %v5801
        %v5832 = vpop.permute.xlu0 %5831
        %5835 = vset.pattern.permute.xlu0 0
        %5836 = vperm.xlu0 %5835, %v5802
        %v5837 = vpop.permute.xlu0 %5836
        %5840 = vset.pattern.permute.xlu0 0
        %5841 = vperm.xlu0 %5840, %v5803
        %v5842 = vpop.permute.xlu0 %5841
        %5845 = vset.pattern.permute.xlu0 0
        %5846 = vperm.xlu0 %5845, %v5804
        %v5847 = vpop.permute.xlu0 %5846
        %5850 = vset.pattern.permute.xlu0 0
        %5851 = vperm.xlu0 %5850, %v5805
        %v5852 = vpop.permute.xlu0 %5851
        %5855 = vset.pattern.permute.xlu0 0
        %5856 = vperm.xlu0 %5855, %v5806
        %v5857 = vpop.permute.xlu0 %5856
        %5860 = vset.pattern.permute.xlu0 0
        %5861 = vperm.xlu0 %5860, %v5807
        %v5862 = vpop.permute.xlu0 %5861
        %5865 = vset.pattern.permute.xlu0 0
        %5866 = vperm.xlu0 %5865, %v5808
        %v5867 = vpop.permute.xlu0 %5866
        %5870 = vset.pattern.permute.xlu0 0
        %5871 = vperm.xlu0 %5870, %v5809
        %v5872 = vpop.permute.xlu0 %5871
        %5875 = vset.pattern.permute.xlu0 0
        %5876 = vperm.xlu0 %5875, %v5810
        %v5877 = vpop.permute.xlu0 %5876
        %5880 = vset.pattern.permute.xlu0 0
        %5881 = vperm.xlu0 %5880, %v5811
        %v5882 = vpop.permute.xlu0 %5881
        %5885 = vset.pattern.permute.xlu0 0
        %5886 = vperm.xlu0 %5885, %v5812
        %v5887 = vpop.permute.xlu0 %5886
        %5890 = vset.pattern.permute.xlu0 0
        %5891 = vperm.xlu0 %5890, %v5813
        %v5892 = vpop.permute.xlu0 %5891
        %v5894 = vadd.f32 %v5542, %v5817
        %v5895 = vadd.f32 %v5543, %v5817
        %v5896 = vadd.f32 %v5544, %v5817
        %v5897 = vadd.f32 %v5545, %v5817
        %v5898 = vadd.f32 %v5546, %v5817
        %v5899 = vadd.f32 %v5547, %v5817
        %v5900 = vadd.f32 %v5548, %v5817
        %v5901 = vadd.f32 %v5549, %v5817
        %v5902 = vadd.f32 %v5550, %v5817
        %v5903 = vadd.f32 %v5551, %v5817
        %v5904 = vadd.f32 %v5552, %v5817
        %v5905 = vadd.f32 %v5553, %v5817
        %v5906 = vadd.f32 %v5554, %v5817
        %v5907 = vadd.f32 %v5555, %v5817
        %v5908 = vadd.f32 %v5556, %v5817
        %v5909 = vadd.f32 %v5557, %v5817
        %v5910 = vadd.f32 %v5558, %v5822
        %v5911 = vadd.f32 %v5559, %v5822
        %v5912 = vadd.f32 %v5560, %v5822
        %v5913 = vadd.f32 %v5561, %v5822
        %v5914 = vadd.f32 %v5562, %v5822
        %v5915 = vadd.f32 %v5563, %v5822
        %v5916 = vadd.f32 %v5564, %v5822
        %v5917 = vadd.f32 %v5565, %v5822
        %v5918 = vadd.f32 %v5566, %v5822
        %v5919 = vadd.f32 %v5567, %v5822
        %v5920 = vadd.f32 %v5568, %v5822
        %v5921 = vadd.f32 %v5569, %v5822
        %v5922 = vadd.f32 %v5570, %v5822
        %v5923 = vadd.f32 %v5571, %v5822
        %v5924 = vadd.f32 %v5572, %v5822
        %v5925 = vadd.f32 %v5573, %v5822
        %v5926 = vadd.f32 %v5574, %v5827
        %v5927 = vadd.f32 %v5575, %v5827
        %v5928 = vadd.f32 %v5576, %v5827
        %v5929 = vadd.f32 %v5577, %v5827
        %v5930 = vadd.f32 %v5578, %v5827
        %v5931 = vadd.f32 %v5579, %v5827
        %v5932 = vadd.f32 %v5580, %v5827
        %v5933 = vadd.f32 %v5581, %v5827
        %v5934 = vadd.f32 %v5582, %v5827
        %v5935 = vadd.f32 %v5583, %v5827
        %v5936 = vadd.f32 %v5584, %v5827
        %v5937 = vadd.f32 %v5585, %v5827
        %v5938 = vadd.f32 %v5586, %v5827
        %v5939 = vadd.f32 %v5587, %v5827
        %v5940 = vadd.f32 %v5588, %v5827
        %v5941 = vadd.f32 %v5589, %v5827
        %v5942 = vadd.f32 %v5590, %v5832
        %v5943 = vadd.f32 %v5591, %v5832
        %v5944 = vadd.f32 %v5592, %v5832
        %v5945 = vadd.f32 %v5593, %v5832
        %v5946 = vadd.f32 %v5594, %v5832
        %v5947 = vadd.f32 %v5595, %v5832
        %v5948 = vadd.f32 %v5596, %v5832
        %v5949 = vadd.f32 %v5597, %v5832
        %v5950 = vadd.f32 %v5598, %v5832
        %v5951 = vadd.f32 %v5599, %v5832
        %v5952 = vadd.f32 %v5600, %v5832
        %v5953 = vadd.f32 %v5601, %v5832
        %v5954 = vadd.f32 %v5602, %v5832
        %v5955 = vadd.f32 %v5603, %v5832
        %v5956 = vadd.f32 %v5604, %v5832
        %v5957 = vadd.f32 %v5605, %v5832
        %v5958 = vadd.f32 %v5606, %v5837
        %v5959 = vadd.f32 %v5607, %v5837
        %v5960 = vadd.f32 %v5608, %v5837
        %v5961 = vadd.f32 %v5609, %v5837
        %v5962 = vadd.f32 %v5610, %v5837
        %v5963 = vadd.f32 %v5611, %v5837
        %v5964 = vadd.f32 %v5612, %v5837
        %v5965 = vadd.f32 %v5613, %v5837
        %v5966 = vadd.f32 %v5614, %v5837
        %v5967 = vadd.f32 %v5615, %v5837
        %v5968 = vadd.f32 %v5616, %v5837
        %v5969 = vadd.f32 %v5617, %v5837
        %v5970 = vadd.f32 %v5618, %v5837
        %v5971 = vadd.f32 %v5619, %v5837
        %v5972 = vadd.f32 %v5620, %v5837
        %v5973 = vadd.f32 %v5621, %v5837
        %v5974 = vadd.f32 %v5622, %v5842
        %v5975 = vadd.f32 %v5623, %v5842
        %v5976 = vadd.f32 %v5624, %v5842
        %v5977 = vadd.f32 %v5625, %v5842
        %v5978 = vadd.f32 %v5626, %v5842
        %v5979 = vadd.f32 %v5627, %v5842
        %v5980 = vadd.f32 %v5628, %v5842
        %v5981 = vadd.f32 %v5629, %v5842
        %v5982 = vadd.f32 %v5630, %v5842
        %v5983 = vadd.f32 %v5631, %v5842
        %v5984 = vadd.f32 %v5632, %v5842
        %v5985 = vadd.f32 %v5633, %v5842
        %v5986 = vadd.f32 %v5634, %v5842
        %v5987 = vadd.f32 %v5635, %v5842
        %v5988 = vadd.f32 %v5636, %v5842
        %v5989 = vadd.f32 %v5637, %v5842
        %v5990 = vadd.f32 %v5638, %v5847
        %v5991 = vadd.f32 %v5639, %v5847
        %v5992 = vadd.f32 %v5640, %v5847
        %v5993 = vadd.f32 %v5641, %v5847
        %v5994 = vadd.f32 %v5642, %v5847
        %v5995 = vadd.f32 %v5643, %v5847
        %v5996 = vadd.f32 %v5644, %v5847
        %v5997 = vadd.f32 %v5645, %v5847
        %v5998 = vadd.f32 %v5646, %v5847
        %v5999 = vadd.f32 %v5647, %v5847
        %v6000 = vadd.f32 %v5648, %v5847
        %v6001 = vadd.f32 %v5649, %v5847
        %v6002 = vadd.f32 %v5650, %v5847
        %v6003 = vadd.f32 %v5651, %v5847
        %v6004 = vadd.f32 %v5652, %v5847
        %v6005 = vadd.f32 %v5653, %v5847
        %v6006 = vadd.f32 %v5654, %v5852
        %v6007 = vadd.f32 %v5655, %v5852
        %v6008 = vadd.f32 %v5656, %v5852
        %v6009 = vadd.f32 %v5657, %v5852
        %v6010 = vadd.f32 %v5658, %v5852
        %v6011 = vadd.f32 %v5659, %v5852
        %v6012 = vadd.f32 %v5660, %v5852
        %v6013 = vadd.f32 %v5661, %v5852
        %v6014 = vadd.f32 %v5662, %v5852
        %v6015 = vadd.f32 %v5663, %v5852
        %v6016 = vadd.f32 %v5664, %v5852
        %v6017 = vadd.f32 %v5665, %v5852
        %v6018 = vadd.f32 %v5666, %v5852
        %v6019 = vadd.f32 %v5667, %v5852
        %v6020 = vadd.f32 %v5668, %v5852
        %v6021 = vadd.f32 %v5669, %v5852
        %v6022 = vadd.f32 %v5670, %v5857
        %v6023 = vadd.f32 %v5671, %v5857
        %v6024 = vadd.f32 %v5672, %v5857
        %v6025 = vadd.f32 %v5673, %v5857
        %v6026 = vadd.f32 %v5674, %v5857
        %v6027 = vadd.f32 %v5675, %v5857
        %v6028 = vadd.f32 %v5676, %v5857
        %v6029 = vadd.f32 %v5677, %v5857
        %v6030 = vadd.f32 %v5678, %v5857
        %v6031 = vadd.f32 %v5679, %v5857
        %v6032 = vadd.f32 %v5680, %v5857
        %v6033 = vadd.f32 %v5681, %v5857
        %v6034 = vadd.f32 %v5682, %v5857
        %v6035 = vadd.f32 %v5683, %v5857
        %v6036 = vadd.f32 %v5684, %v5857
        %v6037 = vadd.f32 %v5685, %v5857
        %v6038 = vadd.f32 %v5686, %v5862
        %v6039 = vadd.f32 %v5687, %v5862
        %v6040 = vadd.f32 %v5688, %v5862
        %v6041 = vadd.f32 %v5689, %v5862
        %v6042 = vadd.f32 %v5690, %v5862
        %v6043 = vadd.f32 %v5691, %v5862
        %v6044 = vadd.f32 %v5692, %v5862
        %v6045 = vadd.f32 %v5693, %v5862
        %v6046 = vadd.f32 %v5694, %v5862
        %v6047 = vadd.f32 %v5695, %v5862
        %v6048 = vadd.f32 %v5696, %v5862
        %v6049 = vadd.f32 %v5697, %v5862
        %v6050 = vadd.f32 %v5698, %v5862
        %v6051 = vadd.f32 %v5699, %v5862
        %v6052 = vadd.f32 %v5700, %v5862
        %v6053 = vadd.f32 %v5701, %v5862
        %v6054 = vadd.f32 %v5702, %v5867
        %v6055 = vadd.f32 %v5703, %v5867
        %v6056 = vadd.f32 %v5704, %v5867
        %v6057 = vadd.f32 %v5705, %v5867
        %v6058 = vadd.f32 %v5706, %v5867
        %v6059 = vadd.f32 %v5707, %v5867
        %v6060 = vadd.f32 %v5708, %v5867
        %v6061 = vadd.f32 %v5709, %v5867
        %v6062 = vadd.f32 %v5710, %v5867
        %v6063 = vadd.f32 %v5711, %v5867
        %v6064 = vadd.f32 %v5712, %v5867
        %v6065 = vadd.f32 %v5713, %v5867
        %v6066 = vadd.f32 %v5714, %v5867
        %v6067 = vadd.f32 %v5715, %v5867
        %v6068 = vadd.f32 %v5716, %v5867
        %v6069 = vadd.f32 %v5717, %v5867
        %v6070 = vadd.f32 %v5718, %v5872
        %v6071 = vadd.f32 %v5719, %v5872
        %v6072 = vadd.f32 %v5720, %v5872
        %v6073 = vadd.f32 %v5721, %v5872
        %v6074 = vadd.f32 %v5722, %v5872
        %v6075 = vadd.f32 %v5723, %v5872
        %v6076 = vadd.f32 %v5724, %v5872
        %v6077 = vadd.f32 %v5725, %v5872
        %v6078 = vadd.f32 %v5726, %v5872
        %v6079 = vadd.f32 %v5727, %v5872
        %v6080 = vadd.f32 %v5728, %v5872
        %v6081 = vadd.f32 %v5729, %v5872
        %v6082 = vadd.f32 %v5730, %v5872
        %v6083 = vadd.f32 %v5731, %v5872
        %v6084 = vadd.f32 %v5732, %v5872
        %v6085 = vadd.f32 %v5733, %v5872
        %v6086 = vadd.f32 %v5734, %v5877
        %v6087 = vadd.f32 %v5735, %v5877
        %v6088 = vadd.f32 %v5736, %v5877
        %v6089 = vadd.f32 %v5737, %v5877
        %v6090 = vadd.f32 %v5738, %v5877
        %v6091 = vadd.f32 %v5739, %v5877
        %v6092 = vadd.f32 %v5740, %v5877
        %v6093 = vadd.f32 %v5741, %v5877
        %v6094 = vadd.f32 %v5742, %v5877
        %v6095 = vadd.f32 %v5743, %v5877
        %v6096 = vadd.f32 %v5744, %v5877
        %v6097 = vadd.f32 %v5745, %v5877
        %v6098 = vadd.f32 %v5746, %v5877
        %v6099 = vadd.f32 %v5747, %v5877
        %v6100 = vadd.f32 %v5748, %v5877
        %v6101 = vadd.f32 %v5749, %v5877
        %v6102 = vadd.f32 %v5750, %v5882
        %v6103 = vadd.f32 %v5751, %v5882
        %v6104 = vadd.f32 %v5752, %v5882
        %v6105 = vadd.f32 %v5753, %v5882
        %v6106 = vadd.f32 %v5754, %v5882
        %v6107 = vadd.f32 %v5755, %v5882
        %v6108 = vadd.f32 %v5756, %v5882
        %v6109 = vadd.f32 %v5757, %v5882
        %v6110 = vadd.f32 %v5758, %v5882
        %v6111 = vadd.f32 %v5759, %v5882
        %v6112 = vadd.f32 %v5760, %v5882
        %v6113 = vadd.f32 %v5761, %v5882
        %v6114 = vadd.f32 %v5762, %v5882
        %v6115 = vadd.f32 %v5763, %v5882
        %v6116 = vadd.f32 %v5764, %v5882
        %v6117 = vadd.f32 %v5765, %v5882
        %v6118 = vadd.f32 %v5766, %v5887
        %v6119 = vadd.f32 %v5767, %v5887
        %v6120 = vadd.f32 %v5768, %v5887
        %v6121 = vadd.f32 %v5769, %v5887
        %v6122 = vadd.f32 %v5770, %v5887
        %v6123 = vadd.f32 %v5771, %v5887
        %v6124 = vadd.f32 %v5772, %v5887
        %v6125 = vadd.f32 %v5773, %v5887
        %v6126 = vadd.f32 %v5774, %v5887
        %v6127 = vadd.f32 %v5775, %v5887
        %v6128 = vadd.f32 %v5776, %v5887
        %v6129 = vadd.f32 %v5777, %v5887
        %v6130 = vadd.f32 %v5778, %v5887
        %v6131 = vadd.f32 %v5779, %v5887
        %v6132 = vadd.f32 %v5780, %v5887
        %v6133 = vadd.f32 %v5781, %v5887
        %v6134 = vadd.f32 %v5782, %v5892
        %v6135 = vadd.f32 %v5783, %v5892
        %v6136 = vadd.f32 %v5784, %v5892
        %v6137 = vadd.f32 %v5785, %v5892
        %v6138 = vadd.f32 %v5786, %v5892
        %v6139 = vadd.f32 %v5787, %v5892
        %v6140 = vadd.f32 %v5788, %v5892
        %v6141 = vadd.f32 %v5789, %v5892
        %v6142 = vadd.f32 %v5790, %v5892
        %v6143 = vadd.f32 %v5791, %v5892
        %v6144 = vadd.f32 %v5792, %v5892
        %v6145 = vadd.f32 %v5793, %v5892
        %v6146 = vadd.f32 %v5794, %v5892
        %v6147 = vadd.f32 %v5795, %v5892
        %v6148 = vadd.f32 %v5796, %v5892
        %v6149 = vadd.f32 %v5797, %v5892
        %v6150 = vmax.f32 %v5894, 0.0
        %v6151 = vmax.f32 %v5895, 0.0
        %v6152 = vmax.f32 %v5896, 0.0
        %v6153 = vmax.f32 %v5897, 0.0
        %v6154 = vmax.f32 %v5898, 0.0
        %v6155 = vmax.f32 %v5899, 0.0
        %v6156 = vmax.f32 %v5900, 0.0
        %v6157 = vmax.f32 %v5901, 0.0
        %v6158 = vmax.f32 %v5902, 0.0
        %v6159 = vmax.f32 %v5903, 0.0
        %v6160 = vmax.f32 %v5904, 0.0
        %v6161 = vmax.f32 %v5905, 0.0
        %v6162 = vmax.f32 %v5906, 0.0
        %v6163 = vmax.f32 %v5907, 0.0
        %v6164 = vmax.f32 %v5908, 0.0
        %v6165 = vmax.f32 %v5909, 0.0
        %v6166 = vmax.f32 %v5910, 0.0
        %v6167 = vmax.f32 %v5911, 0.0
        %v6168 = vmax.f32 %v5912, 0.0
        %v6169 = vmax.f32 %v5913, 0.0
        %v6170 = vmax.f32 %v5914, 0.0
        %v6171 = vmax.f32 %v5915, 0.0
        %v6172 = vmax.f32 %v5916, 0.0
        %v6173 = vmax.f32 %v5917, 0.0
        %v6174 = vmax.f32 %v5918, 0.0
        %v6175 = vmax.f32 %v5919, 0.0
        %v6176 = vmax.f32 %v5920, 0.0
        %v6177 = vmax.f32 %v5921, 0.0
        %v6178 = vmax.f32 %v5922, 0.0
        %v6179 = vmax.f32 %v5923, 0.0
        %v6180 = vmax.f32 %v5924, 0.0
        %v6181 = vmax.f32 %v5925, 0.0
        %v6182 = vmax.f32 %v5926, 0.0
        %v6183 = vmax.f32 %v5927, 0.0
        %v6184 = vmax.f32 %v5928, 0.0
        %v6185 = vmax.f32 %v5929, 0.0
        %v6186 = vmax.f32 %v5930, 0.0
        %v6187 = vmax.f32 %v5931, 0.0
        %v6188 = vmax.f32 %v5932, 0.0
        %v6189 = vmax.f32 %v5933, 0.0
        %v6190 = vmax.f32 %v5934, 0.0
        %v6191 = vmax.f32 %v5935, 0.0
        %v6192 = vmax.f32 %v5936, 0.0
        %v6193 = vmax.f32 %v5937, 0.0
        %v6194 = vmax.f32 %v5938, 0.0
        %v6195 = vmax.f32 %v5939, 0.0
        %v6196 = vmax.f32 %v5940, 0.0
        %v6197 = vmax.f32 %v5941, 0.0
        %v6198 = vmax.f32 %v5942, 0.0
        %v6199 = vmax.f32 %v5943, 0.0
        %v6200 = vmax.f32 %v5944, 0.0
        %v6201 = vmax.f32 %v5945, 0.0
        %v6202 = vmax.f32 %v5946, 0.0
        %v6203 = vmax.f32 %v5947, 0.0
        %v6204 = vmax.f32 %v5948, 0.0
        %v6205 = vmax.f32 %v5949, 0.0
        %v6206 = vmax.f32 %v5950, 0.0
        %v6207 = vmax.f32 %v5951, 0.0
        %v6208 = vmax.f32 %v5952, 0.0
        %v6209 = vmax.f32 %v5953, 0.0
        %v6210 = vmax.f32 %v5954, 0.0
        %v6211 = vmax.f32 %v5955, 0.0
        %v6212 = vmax.f32 %v5956, 0.0
        %v6213 = vmax.f32 %v5957, 0.0
        %v6214 = vmax.f32 %v5958, 0.0
        %v6215 = vmax.f32 %v5959, 0.0
        %v6216 = vmax.f32 %v5960, 0.0
        %v6217 = vmax.f32 %v5961, 0.0
        %v6218 = vmax.f32 %v5962, 0.0
        %v6219 = vmax.f32 %v5963, 0.0
        %v6220 = vmax.f32 %v5964, 0.0
        %v6221 = vmax.f32 %v5965, 0.0
        %v6222 = vmax.f32 %v5966, 0.0
        %v6223 = vmax.f32 %v5967, 0.0
        %v6224 = vmax.f32 %v5968, 0.0
        %v6225 = vmax.f32 %v5969, 0.0
        %v6226 = vmax.f32 %v5970, 0.0
        %v6227 = vmax.f32 %v5971, 0.0
        %v6228 = vmax.f32 %v5972, 0.0
        %v6229 = vmax.f32 %v5973, 0.0
        %v6230 = vmax.f32 %v5974, 0.0
        %v6231 = vmax.f32 %v5975, 0.0
        %v6232 = vmax.f32 %v5976, 0.0
        %v6233 = vmax.f32 %v5977, 0.0
        %v6234 = vmax.f32 %v5978, 0.0
        %v6235 = vmax.f32 %v5979, 0.0
        %v6236 = vmax.f32 %v5980, 0.0
        %v6237 = vmax.f32 %v5981, 0.0
        %v6238 = vmax.f32 %v5982, 0.0
        %v6239 = vmax.f32 %v5983, 0.0
        %v6240 = vmax.f32 %v5984, 0.0
        %v6241 = vmax.f32 %v5985, 0.0
        %v6242 = vmax.f32 %v5986, 0.0
        %v6243 = vmax.f32 %v5987, 0.0
        %v6244 = vmax.f32 %v5988, 0.0
        %v6245 = vmax.f32 %v5989, 0.0
        %v6246 = vmax.f32 %v5990, 0.0
        %v6247 = vmax.f32 %v5991, 0.0
        %v6248 = vmax.f32 %v5992, 0.0
        %v6249 = vmax.f32 %v5993, 0.0
        %v6250 = vmax.f32 %v5994, 0.0
        %v6251 = vmax.f32 %v5995, 0.0
        %v6252 = vmax.f32 %v5996, 0.0
        %v6253 = vmax.f32 %v5997, 0.0
        %v6254 = vmax.f32 %v5998, 0.0
        %v6255 = vmax.f32 %v5999, 0.0
        %v6256 = vmax.f32 %v6000, 0.0
        %v6257 = vmax.f32 %v6001, 0.0
        %v6258 = vmax.f32 %v6002, 0.0
        %v6259 = vmax.f32 %v6003, 0.0
        %v6260 = vmax.f32 %v6004, 0.0
        %v6261 = vmax.f32 %v6005, 0.0
        %v6262 = vmax.f32 %v6006, 0.0
        %v6263 = vmax.f32 %v6007, 0.0
        %v6264 = vmax.f32 %v6008, 0.0
        %v6265 = vmax.f32 %v6009, 0.0
        %v6266 = vmax.f32 %v6010, 0.0
        %v6267 = vmax.f32 %v6011, 0.0
        %v6268 = vmax.f32 %v6012, 0.0
        %v6269 = vmax.f32 %v6013, 0.0
        %v6270 = vmax.f32 %v6014, 0.0
        %v6271 = vmax.f32 %v6015, 0.0
        %v6272 = vmax.f32 %v6016, 0.0
        %v6273 = vmax.f32 %v6017, 0.0
        %v6274 = vmax.f32 %v6018, 0.0
        %v6275 = vmax.f32 %v6019, 0.0
        %v6276 = vmax.f32 %v6020, 0.0
        %v6277 = vmax.f32 %v6021, 0.0
        %v6278 = vmax.f32 %v6022, 0.0
        %v6279 = vmax.f32 %v6023, 0.0
        %v6280 = vmax.f32 %v6024, 0.0
        %v6281 = vmax.f32 %v6025, 0.0
        %v6282 = vmax.f32 %v6026, 0.0
        %v6283 = vmax.f32 %v6027, 0.0
        %v6284 = vmax.f32 %v6028, 0.0
        %v6285 = vmax.f32 %v6029, 0.0
        %v6286 = vmax.f32 %v6030, 0.0
        %v6287 = vmax.f32 %v6031, 0.0
        %v6288 = vmax.f32 %v6032, 0.0
        %v6289 = vmax.f32 %v6033, 0.0
        %v6290 = vmax.f32 %v6034, 0.0
        %v6291 = vmax.f32 %v6035, 0.0
        %v6292 = vmax.f32 %v6036, 0.0
        %v6293 = vmax.f32 %v6037, 0.0
        %v6294 = vmax.f32 %v6038, 0.0
        %v6295 = vmax.f32 %v6039, 0.0
        %v6296 = vmax.f32 %v6040, 0.0
        %v6297 = vmax.f32 %v6041, 0.0
        %v6298 = vmax.f32 %v6042, 0.0
        %v6299 = vmax.f32 %v6043, 0.0
        %v6300 = vmax.f32 %v6044, 0.0
        %v6301 = vmax.f32 %v6045, 0.0
        %v6302 = vmax.f32 %v6046, 0.0
        %v6303 = vmax.f32 %v6047, 0.0
        %v6304 = vmax.f32 %v6048, 0.0
        %v6305 = vmax.f32 %v6049, 0.0
        %v6306 = vmax.f32 %v6050, 0.0
        %v6307 = vmax.f32 %v6051, 0.0
        %v6308 = vmax.f32 %v6052, 0.0
        %v6309 = vmax.f32 %v6053, 0.0
        %v6310 = vmax.f32 %v6054, 0.0
        %v6311 = vmax.f32 %v6055, 0.0
        %v6312 = vmax.f32 %v6056, 0.0
        %v6313 = vmax.f32 %v6057, 0.0
        %v6314 = vmax.f32 %v6058, 0.0
        %v6315 = vmax.f32 %v6059, 0.0
        %v6316 = vmax.f32 %v6060, 0.0
        %v6317 = vmax.f32 %v6061, 0.0
        %v6318 = vmax.f32 %v6062, 0.0
        %v6319 = vmax.f32 %v6063, 0.0
        %v6320 = vmax.f32 %v6064, 0.0
        %v6321 = vmax.f32 %v6065, 0.0
        %v6322 = vmax.f32 %v6066, 0.0
        %v6323 = vmax.f32 %v6067, 0.0
        %v6324 = vmax.f32 %v6068, 0.0
        %v6325 = vmax.f32 %v6069, 0.0
        %v6326 = vmax.f32 %v6070, 0.0
        %v6327 = vmax.f32 %v6071, 0.0
        %v6328 = vmax.f32 %v6072, 0.0
        %v6329 = vmax.f32 %v6073, 0.0
        %v6330 = vmax.f32 %v6074, 0.0
        %v6331 = vmax.f32 %v6075, 0.0
        %v6332 = vmax.f32 %v6076, 0.0
        %v6333 = vmax.f32 %v6077, 0.0
        %v6334 = vmax.f32 %v6078, 0.0
        %v6335 = vmax.f32 %v6079, 0.0
        %v6336 = vmax.f32 %v6080, 0.0
        %v6337 = vmax.f32 %v6081, 0.0
        %v6338 = vmax.f32 %v6082, 0.0
        %v6339 = vmax.f32 %v6083, 0.0
        %v6340 = vmax.f32 %v6084, 0.0
        %v6341 = vmax.f32 %v6085, 0.0
        %v6342 = vmax.f32 %v6086, 0.0
        %v6343 = vmax.f32 %v6087, 0.0
        %v6344 = vmax.f32 %v6088, 0.0
        %v6345 = vmax.f32 %v6089, 0.0
        %v6346 = vmax.f32 %v6090, 0.0
        %v6347 = vmax.f32 %v6091, 0.0
        %v6348 = vmax.f32 %v6092, 0.0
        %v6349 = vmax.f32 %v6093, 0.0
        %v6350 = vmax.f32 %v6094, 0.0
        %v6351 = vmax.f32 %v6095, 0.0
        %v6352 = vmax.f32 %v6096, 0.0
        %v6353 = vmax.f32 %v6097, 0.0
        %v6354 = vmax.f32 %v6098, 0.0
        %v6355 = vmax.f32 %v6099, 0.0
        %v6356 = vmax.f32 %v6100, 0.0
        %v6357 = vmax.f32 %v6101, 0.0
        %v6358 = vmax.f32 %v6102, 0.0
        %v6359 = vmax.f32 %v6103, 0.0
        %v6360 = vmax.f32 %v6104, 0.0
        %v6361 = vmax.f32 %v6105, 0.0
        %v6362 = vmax.f32 %v6106, 0.0
        %v6363 = vmax.f32 %v6107, 0.0
        %v6364 = vmax.f32 %v6108, 0.0
        %v6365 = vmax.f32 %v6109, 0.0
        %v6366 = vmax.f32 %v6110, 0.0
        %v6367 = vmax.f32 %v6111, 0.0
        %v6368 = vmax.f32 %v6112, 0.0
        %v6369 = vmax.f32 %v6113, 0.0
        %v6370 = vmax.f32 %v6114, 0.0
        %v6371 = vmax.f32 %v6115, 0.0
        %v6372 = vmax.f32 %v6116, 0.0
        %v6373 = vmax.f32 %v6117, 0.0
        %v6374 = vmax.f32 %v6118, 0.0
        %v6375 = vmax.f32 %v6119, 0.0
        %v6376 = vmax.f32 %v6120, 0.0
        %v6377 = vmax.f32 %v6121, 0.0
        %v6378 = vmax.f32 %v6122, 0.0
        %v6379 = vmax.f32 %v6123, 0.0
        %v6380 = vmax.f32 %v6124, 0.0
        %v6381 = vmax.f32 %v6125, 0.0
        %v6382 = vmax.f32 %v6126, 0.0
        %v6383 = vmax.f32 %v6127, 0.0
        %v6384 = vmax.f32 %v6128, 0.0
        %v6385 = vmax.f32 %v6129, 0.0
        %v6386 = vmax.f32 %v6130, 0.0
        %v6387 = vmax.f32 %v6131, 0.0
        %v6388 = vmax.f32 %v6132, 0.0
        %v6389 = vmax.f32 %v6133, 0.0
        %v6390 = vmax.f32 %v6134, 0.0
        %v6391 = vmax.f32 %v6135, 0.0
        %v6392 = vmax.f32 %v6136, 0.0
        %v6393 = vmax.f32 %v6137, 0.0
        %v6394 = vmax.f32 %v6138, 0.0
        %v6395 = vmax.f32 %v6139, 0.0
        %v6396 = vmax.f32 %v6140, 0.0
        %v6397 = vmax.f32 %v6141, 0.0
        %v6398 = vmax.f32 %v6142, 0.0
        %v6399 = vmax.f32 %v6143, 0.0
        %v6400 = vmax.f32 %v6144, 0.0
        %v6401 = vmax.f32 %v6145, 0.0
        %v6402 = vmax.f32 %v6146, 0.0
        %v6403 = vmax.f32 %v6147, 0.0
        %v6404 = vmax.f32 %v6148, 0.0
        %v6405 = vmax.f32 %v6149, 0.0
        %v6406 = vld [vmem:[%s5] sm:$0xf]
        %v6407 = vld [vmem:[%s5 + $0x4] sm:$0xf]
        %v6408 = vld [vmem:[%s5 + $0x8] sm:$0xf]
        %v6409 = vld [vmem:[%s5 + $0xc] sm:$0xf]
        %v6410 = vld [vmem:[%s5 + $0x10] sm:$0xf]
        %v6411 = vld [vmem:[%s5 + $0x14] sm:$0xf]
        %v6412 = vld [vmem:[%s5 + $0x18] sm:$0xf]
        %v6413 = vld [vmem:[%s5 + $0x1c] sm:$0xf]
        %v6414 = vld [vmem:[%s5 + $0x20] sm:$0xf]
        %v6415 = vld [vmem:[%s5 + $0x24] sm:$0xf]
        %v6416 = vld [vmem:[%s5 + $0x28] sm:$0xf]
        %v6417 = vld [vmem:[%s5 + $0x2c] sm:$0xf]
        %v6418 = vld [vmem:[%s5 + $0x30] sm:$0xf]
        %v6419 = vld [vmem:[%s5 + $0x34] sm:$0xf]
        %v6420 = vld [vmem:[%s5 + $0x38] sm:$0xf]
        %v6421 = vld [vmem:[%s5 + $0x3c] sm:$0xf]
        %v6422 = vpack.c.bf16 %v6166, %v6150
        %v6423 = vpack.c.bf16 %v6167, %v6151
        %v6424 = vpack.c.bf16 %v6168, %v6152
        %v6425 = vpack.c.bf16 %v6169, %v6153
        %v6426 = vpack.c.bf16 %v6170, %v6154
        %v6427 = vpack.c.bf16 %v6171, %v6155
        %v6428 = vpack.c.bf16 %v6172, %v6156
        %v6429 = vpack.c.bf16 %v6173, %v6157
        %v6430 = vpack.c.bf16 %v6174, %v6158
        %v6431 = vpack.c.bf16 %v6175, %v6159
        %v6432 = vpack.c.bf16 %v6176, %v6160
        %v6433 = vpack.c.bf16 %v6177, %v6161
        %v6434 = vpack.c.bf16 %v6178, %v6162
        %v6435 = vpack.c.bf16 %v6179, %v6163
        %v6436 = vpack.c.bf16 %v6180, %v6164
        %v6437 = vpack.c.bf16 %v6181, %v6165
        %v6438 = vpack.c.bf16 %v6198, %v6182
        %v6439 = vpack.c.bf16 %v6199, %v6183
        %v6440 = vpack.c.bf16 %v6200, %v6184
        %v6441 = vpack.c.bf16 %v6201, %v6185
        %v6442 = vpack.c.bf16 %v6202, %v6186
        %v6443 = vpack.c.bf16 %v6203, %v6187
        %v6444 = vpack.c.bf16 %v6204, %v6188
        %v6445 = vpack.c.bf16 %v6205, %v6189
        %v6446 = vpack.c.bf16 %v6206, %v6190
        %v6447 = vpack.c.bf16 %v6207, %v6191
        %v6448 = vpack.c.bf16 %v6208, %v6192
        %v6449 = vpack.c.bf16 %v6209, %v6193
        %v6450 = vpack.c.bf16 %v6210, %v6194
        %v6451 = vpack.c.bf16 %v6211, %v6195
        %v6452 = vpack.c.bf16 %v6212, %v6196
        %v6453 = vpack.c.bf16 %v6213, %v6197
        %v6454 = vpack.c.bf16 %v6230, %v6214
        %v6455 = vpack.c.bf16 %v6231, %v6215
        %v6456 = vpack.c.bf16 %v6232, %v6216
        %v6457 = vpack.c.bf16 %v6233, %v6217
        %v6458 = vpack.c.bf16 %v6234, %v6218
        %v6459 = vpack.c.bf16 %v6235, %v6219
        %v6460 = vpack.c.bf16 %v6236, %v6220
        %v6461 = vpack.c.bf16 %v6237, %v6221
        %v6462 = vpack.c.bf16 %v6238, %v6222
        %v6463 = vpack.c.bf16 %v6239, %v6223
        %v6464 = vpack.c.bf16 %v6240, %v6224
        %v6465 = vpack.c.bf16 %v6241, %v6225
        %v6466 = vpack.c.bf16 %v6242, %v6226
        %v6467 = vpack.c.bf16 %v6243, %v6227
        %v6468 = vpack.c.bf16 %v6244, %v6228
        %v6469 = vpack.c.bf16 %v6245, %v6229
        %v6470 = vpack.c.bf16 %v6262, %v6246
        %v6471 = vpack.c.bf16 %v6263, %v6247
        %v6472 = vpack.c.bf16 %v6264, %v6248
        %v6473 = vpack.c.bf16 %v6265, %v6249
        %v6474 = vpack.c.bf16 %v6266, %v6250
        %v6475 = vpack.c.bf16 %v6267, %v6251
        %v6476 = vpack.c.bf16 %v6268, %v6252
        %v6477 = vpack.c.bf16 %v6269, %v6253
        %v6478 = vpack.c.bf16 %v6270, %v6254
        %v6479 = vpack.c.bf16 %v6271, %v6255
        %v6480 = vpack.c.bf16 %v6272, %v6256
        %v6481 = vpack.c.bf16 %v6273, %v6257
        %v6482 = vpack.c.bf16 %v6274, %v6258
        %v6483 = vpack.c.bf16 %v6275, %v6259
        %v6484 = vpack.c.bf16 %v6276, %v6260
        %v6485 = vpack.c.bf16 %v6277, %v6261
        %v6486 = vpack.c.bf16 %v6294, %v6278
        %v6487 = vpack.c.bf16 %v6295, %v6279
        %v6488 = vpack.c.bf16 %v6296, %v6280
        %v6489 = vpack.c.bf16 %v6297, %v6281
        %v6490 = vpack.c.bf16 %v6298, %v6282
        %v6491 = vpack.c.bf16 %v6299, %v6283
        %v6492 = vpack.c.bf16 %v6300, %v6284
        %v6493 = vpack.c.bf16 %v6301, %v6285
        %v6494 = vpack.c.bf16 %v6302, %v6286
        %v6495 = vpack.c.bf16 %v6303, %v6287
        %v6496 = vpack.c.bf16 %v6304, %v6288
        %v6497 = vpack.c.bf16 %v6305, %v6289
        %v6498 = vpack.c.bf16 %v6306, %v6290
        %v6499 = vpack.c.bf16 %v6307, %v6291
        %v6500 = vpack.c.bf16 %v6308, %v6292
        %v6501 = vpack.c.bf16 %v6309, %v6293
        %v6502 = vpack.c.bf16 %v6326, %v6310
        %v6503 = vpack.c.bf16 %v6327, %v6311
        %v6504 = vpack.c.bf16 %v6328, %v6312
        %v6505 = vpack.c.bf16 %v6329, %v6313
        %v6506 = vpack.c.bf16 %v6330, %v6314
        %v6507 = vpack.c.bf16 %v6331, %v6315
        %v6508 = vpack.c.bf16 %v6332, %v6316
        %v6509 = vpack.c.bf16 %v6333, %v6317
        %v6510 = vpack.c.bf16 %v6334, %v6318
        %v6511 = vpack.c.bf16 %v6335, %v6319
        %v6512 = vpack.c.bf16 %v6336, %v6320
        %v6513 = vpack.c.bf16 %v6337, %v6321
        %v6514 = vpack.c.bf16 %v6338, %v6322
        %v6515 = vpack.c.bf16 %v6339, %v6323
        %v6516 = vpack.c.bf16 %v6340, %v6324
        %v6517 = vpack.c.bf16 %v6341, %v6325
        %v6518 = vpack.c.bf16 %v6358, %v6342
        %v6519 = vpack.c.bf16 %v6359, %v6343
        %v6520 = vpack.c.bf16 %v6360, %v6344
        %v6521 = vpack.c.bf16 %v6361, %v6345
        %v6522 = vpack.c.bf16 %v6362, %v6346
        %v6523 = vpack.c.bf16 %v6363, %v6347
        %v6524 = vpack.c.bf16 %v6364, %v6348
        %v6525 = vpack.c.bf16 %v6365, %v6349
        %v6526 = vpack.c.bf16 %v6366, %v6350
        %v6527 = vpack.c.bf16 %v6367, %v6351
        %v6528 = vpack.c.bf16 %v6368, %v6352
        %v6529 = vpack.c.bf16 %v6369, %v6353
        %v6530 = vpack.c.bf16 %v6370, %v6354
        %v6531 = vpack.c.bf16 %v6371, %v6355
        %v6532 = vpack.c.bf16 %v6372, %v6356
        %v6533 = vpack.c.bf16 %v6373, %v6357
        %v6534 = vpack.c.bf16 %v6390, %v6374
        %v6535 = vpack.c.bf16 %v6391, %v6375
        %v6536 = vpack.c.bf16 %v6392, %v6376
        %v6537 = vpack.c.bf16 %v6393, %v6377
        %v6538 = vpack.c.bf16 %v6394, %v6378
        %v6539 = vpack.c.bf16 %v6395, %v6379
        %v6540 = vpack.c.bf16 %v6396, %v6380
        %v6541 = vpack.c.bf16 %v6397, %v6381
        %v6542 = vpack.c.bf16 %v6398, %v6382
        %v6543 = vpack.c.bf16 %v6399, %v6383
        %v6544 = vpack.c.bf16 %v6400, %v6384
        %v6545 = vpack.c.bf16 %v6401, %v6385
        %v6546 = vpack.c.bf16 %v6402, %v6386
        %v6547 = vpack.c.bf16 %v6403, %v6387
        %v6548 = vpack.c.bf16 %v6404, %v6388
        %v6549 = vpack.c.bf16 %v6405, %v6389
        %v6550 = vld [vmem:[%s6] sm:$0xff]
        %v6551 = vld [vmem:[%s6 + $0x8] sm:$0xff]
        %v6552 = vld [vmem:[%s6 + $0x10] sm:$0xff]
        %v6553 = vld [vmem:[%s6 + $0x18] sm:$0xff]
        %v6554 = vld [vmem:[%s6 + $0x20] sm:$0xff]
        %v6555 = vld [vmem:[%s6 + $0x28] sm:$0xff]
        %v6556 = vld [vmem:[%s6 + $0x30] sm:$0xff]
        %v6557 = vld [vmem:[%s6 + $0x38] sm:$0xff]
        %v6558 = vld [vmem:[%s6 + $0x40] sm:$0xff]
        %v6559 = vld [vmem:[%s6 + $0x48] sm:$0xff]
        %v6560 = vld [vmem:[%s6 + $0x50] sm:$0xff]
        %v6561 = vld [vmem:[%s6 + $0x58] sm:$0xff]
        %v6562 = vld [vmem:[%s6 + $0x60] sm:$0xff]
        %v6563 = vld [vmem:[%s6 + $0x68] sm:$0xff]
        %v6564 = vld [vmem:[%s6 + $0x70] sm:$0xff]
        %v6565 = vld [vmem:[%s6 + $0x78] sm:$0xff]
        %6567 = vset.pattern.permute.xlu0 0
        %6568 = vperm.xlu0 %6567, %v6550
        %v6569 = vpop.permute.xlu0 %6568
        %6572 = vset.pattern.permute.xlu0 0
        %6573 = vperm.xlu0 %6572, %v6551
        %v6574 = vpop.permute.xlu0 %6573
        %6577 = vset.pattern.permute.xlu0 0
        %6578 = vperm.xlu0 %6577, %v6552
        %v6579 = vpop.permute.xlu0 %6578
        %6582 = vset.pattern.permute.xlu0 0
        %6583 = vperm.xlu0 %6582, %v6553
        %v6584 = vpop.permute.xlu0 %6583
        %6587 = vset.pattern.permute.xlu0 0
        %6588 = vperm.xlu0 %6587, %v6554
        %v6589 = vpop.permute.xlu0 %6588
        %6592 = vset.pattern.permute.xlu0 0
        %6593 = vperm.xlu0 %6592, %v6555
        %v6594 = vpop.permute.xlu0 %6593
        %6597 = vset.pattern.permute.xlu0 0
        %6598 = vperm.xlu0 %6597, %v6556
        %v6599 = vpop.permute.xlu0 %6598
        %6602 = vset.pattern.permute.xlu0 0
        %6603 = vperm.xlu0 %6602, %v6557
        %v6604 = vpop.permute.xlu0 %6603
        %6607 = vset.pattern.permute.xlu0 0
        %6608 = vperm.xlu0 %6607, %v6558
        %v6609 = vpop.permute.xlu0 %6608
        %6612 = vset.pattern.permute.xlu0 0
        %6613 = vperm.xlu0 %6612, %v6559
        %v6614 = vpop.permute.xlu0 %6613
        %6617 = vset.pattern.permute.xlu0 0
        %6618 = vperm.xlu0 %6617, %v6560
        %v6619 = vpop.permute.xlu0 %6618
        %6622 = vset.pattern.permute.xlu0 0
        %6623 = vperm.xlu0 %6622, %v6561
        %v6624 = vpop.permute.xlu0 %6623
        %6627 = vset.pattern.permute.xlu0 0
        %6628 = vperm.xlu0 %6627, %v6562
        %v6629 = vpop.permute.xlu0 %6628
        %6632 = vset.pattern.permute.xlu0 0
        %6633 = vperm.xlu0 %6632, %v6563
        %v6634 = vpop.permute.xlu0 %6633
        %6637 = vset.pattern.permute.xlu0 0
        %6638 = vperm.xlu0 %6637, %v6564
        %v6639 = vpop.permute.xlu0 %6638
        %6642 = vset.pattern.permute.xlu0 0
        %6643 = vperm.xlu0 %6642, %v6565
        %v6644 = vpop.permute.xlu0 %6643
        %v6662 = vunpack.c.l.b16 %v6406
        %v6663 = vunpack.c.l.b16 %v6407
        %v6664 = vunpack.c.l.b16 %v6408
        %v6665 = vunpack.c.l.b16 %v6409
        %v6666 = vunpack.c.l.b16 %v6410
        %v6667 = vunpack.c.l.b16 %v6411
        %v6668 = vunpack.c.l.b16 %v6412
        %v6669 = vunpack.c.l.b16 %v6413
        %v6670 = vunpack.c.l.b16 %v6414
        %v6671 = vunpack.c.l.b16 %v6415
        %v6672 = vunpack.c.l.b16 %v6416
        %v6673 = vunpack.c.l.b16 %v6417
        %v6674 = vunpack.c.l.b16 %v6418
        %v6675 = vunpack.c.l.b16 %v6419
        %v6676 = vunpack.c.l.b16 %v6420
        %v6677 = vunpack.c.l.b16 %v6421
        %v6678 = vpack.c.b16 %v6663, %v6662
        %v6679 = vpack.c.b16 %v6665, %v6664
        %v6680 = vpack.c.b16 %v6667, %v6666
        %v6681 = vpack.c.b16 %v6669, %v6668
        %v6682 = vpack.c.b16 %v6671, %v6670
        %v6683 = vpack.c.b16 %v6673, %v6672
        %v6684 = vpack.c.b16 %v6675, %v6674
        %v6685 = vpack.c.b16 %v6677, %v6676
        %6694 = vmatpush.bf16.msra.mxu0 %v6534
        %6695 = vmatpush.bf16.msra.mxu0 %v6518
        %6696 = vmatpush.bf16.msra.mxu0 %v6502
        %6697 = vmatpush.bf16.msra.mxu0 %v6486
        %6698 = vmatpush.bf16.msra.mxu0 %v6470
        %6699 = vmatpush.bf16.msra.mxu0 %v6454
        %6700 = vmatpush.bf16.msra.mxu0 %v6438
        %6701 = vmatpush.bf16.msra.mxu0 %v6422
        %6702 = vmatmul.bf16.gmra.mxu0 %v6678
        %v6703 = vpop.f32.mrf.mxu0
        %v6704 = vadd.f32 %v6569, %v6703
        %v6705 = vpop.f32.mrf.mxu0
        %v6706 = vadd.f32 %v6574, %v6705
        %6707 = vmatmul.bf16.gmra.mxu0 %v6679
        %v6708 = vpop.f32.mrf.mxu0
        %v6709 = vadd.f32 %v6579, %v6708
        %v6710 = vpop.f32.mrf.mxu0
        %v6711 = vadd.f32 %v6584, %v6710
        %6712 = vmatmul.bf16.gmra.mxu0 %v6680
        %v6713 = vpop.f32.mrf.mxu0
        %v6714 = vadd.f32 %v6589, %v6713
        %v6715 = vpop.f32.mrf.mxu0
        %v6716 = vadd.f32 %v6594, %v6715
        %6717 = vmatmul.bf16.gmra.mxu0 %v6681
        %v6718 = vpop.f32.mrf.mxu0
        %v6719 = vadd.f32 %v6599, %v6718
        %v6720 = vpop.f32.mrf.mxu0
        %v6721 = vadd.f32 %v6604, %v6720
        %6722 = vmatmul.bf16.gmra.mxu0 %v6682
        %v6723 = vpop.f32.mrf.mxu0
        %v6724 = vadd.f32 %v6609, %v6723
        %v6725 = vpop.f32.mrf.mxu0
        %v6726 = vadd.f32 %v6614, %v6725
        %6727 = vmatmul.bf16.gmra.mxu0 %v6683
        %v6728 = vpop.f32.mrf.mxu0
        %v6729 = vadd.f32 %v6619, %v6728
        %v6730 = vpop.f32.mrf.mxu0
        %v6731 = vadd.f32 %v6624, %v6730
        %6732 = vmatmul.bf16.gmra.mxu0 %v6684
        %v6733 = vpop.f32.mrf.mxu0
        %v6734 = vadd.f32 %v6629, %v6733
        %v6735 = vpop.f32.mrf.mxu0
        %v6736 = vadd.f32 %v6634, %v6735
        %6737 = vmatmul.bf16.gmra.mxu0 %v6685
        %v6738 = vpop.f32.mrf.mxu0
        %v6739 = vadd.f32 %v6639, %v6738
        %v6740 = vpop.f32.mrf.mxu0
        %v6741 = vadd.f32 %v6644, %v6740
        %6742 = vdwg.mxu0
        %6743 = vmatpush.bf16.msra.mxu0 %v6535
        %6744 = vmatpush.bf16.msra.mxu0 %v6519
        %6745 = vmatpush.bf16.msra.mxu0 %v6503
        %6746 = vmatpush.bf16.msra.mxu0 %v6487
        %6747 = vmatpush.bf16.msra.mxu0 %v6471
        %6748 = vmatpush.bf16.msra.mxu0 %v6455
        %6749 = vmatpush.bf16.msra.mxu0 %v6439
        %6750 = vmatpush.bf16.msra.mxu0 %v6423
        %6751 = vmatmul.bf16.gmra.mxu0 %v6678
        %v6752 = vpop.f32.mrf.mxu0
        %v6753 = vadd.f32 %v6569, %v6752
        %v6754 = vpop.f32.mrf.mxu0
        %v6755 = vadd.f32 %v6574, %v6754
        %6756 = vmatmul.bf16.gmra.mxu0 %v6679
        %v6757 = vpop.f32.mrf.mxu0
        %v6758 = vadd.f32 %v6579, %v6757
        %v6759 = vpop.f32.mrf.mxu0
        %v6760 = vadd.f32 %v6584, %v6759
        %6761 = vmatmul.bf16.gmra.mxu0 %v6680
        %v6762 = vpop.f32.mrf.mxu0
        %v6763 = vadd.f32 %v6589, %v6762
        %v6764 = vpop.f32.mrf.mxu0
        %v6765 = vadd.f32 %v6594, %v6764
        %6766 = vmatmul.bf16.gmra.mxu0 %v6681
        %v6767 = vpop.f32.mrf.mxu0
        %v6768 = vadd.f32 %v6599, %v6767
        %v6769 = vpop.f32.mrf.mxu0
        %v6770 = vadd.f32 %v6604, %v6769
        %6771 = vmatmul.bf16.gmra.mxu0 %v6682
        %v6772 = vpop.f32.mrf.mxu0
        %v6773 = vadd.f32 %v6609, %v6772
        %v6774 = vpop.f32.mrf.mxu0
        %v6775 = vadd.f32 %v6614, %v6774
        %6776 = vmatmul.bf16.gmra.mxu0 %v6683
        %v6777 = vpop.f32.mrf.mxu0
        %v6778 = vadd.f32 %v6619, %v6777
        %v6779 = vpop.f32.mrf.mxu0
        %v6780 = vadd.f32 %v6624, %v6779
        %6781 = vmatmul.bf16.gmra.mxu0 %v6684
        %v6782 = vpop.f32.mrf.mxu0
        %v6783 = vadd.f32 %v6629, %v6782
        %v6784 = vpop.f32.mrf.mxu0
        %v6785 = vadd.f32 %v6634, %v6784
        %6786 = vmatmul.bf16.gmra.mxu0 %v6685
        %v6787 = vpop.f32.mrf.mxu0
        %v6788 = vadd.f32 %v6639, %v6787
        %v6789 = vpop.f32.mrf.mxu0
        %v6790 = vadd.f32 %v6644, %v6789
        %6791 = vdwg.mxu0
        %6792 = vmatpush.bf16.msra.mxu0 %v6536
        %6793 = vmatpush.bf16.msra.mxu0 %v6520
        %6794 = vmatpush.bf16.msra.mxu0 %v6504
        %6795 = vmatpush.bf16.msra.mxu0 %v6488
        %6796 = vmatpush.bf16.msra.mxu0 %v6472
        %6797 = vmatpush.bf16.msra.mxu0 %v6456
        %6798 = vmatpush.bf16.msra.mxu0 %v6440
        %6799 = vmatpush.bf16.msra.mxu0 %v6424
        %6800 = vmatmul.bf16.gmra.mxu0 %v6678
        %v6801 = vpop.f32.mrf.mxu0
        %v6802 = vadd.f32 %v6569, %v6801
        %v6803 = vpop.f32.mrf.mxu0
        %v6804 = vadd.f32 %v6574, %v6803
        %6805 = vmatmul.bf16.gmra.mxu0 %v6679
        %v6806 = vpop.f32.mrf.mxu0
        %v6807 = vadd.f32 %v6579, %v6806
        %v6808 = vpop.f32.mrf.mxu0
        %v6809 = vadd.f32 %v6584, %v6808
        %6810 = vmatmul.bf16.gmra.mxu0 %v6680
        %v6811 = vpop.f32.mrf.mxu0
        %v6812 = vadd.f32 %v6589, %v6811
        %v6813 = vpop.f32.mrf.mxu0
        %v6814 = vadd.f32 %v6594, %v6813
        %6815 = vmatmul.bf16.gmra.mxu0 %v6681
        %v6816 = vpop.f32.mrf.mxu0
        %v6817 = vadd.f32 %v6599, %v6816
        %v6818 = vpop.f32.mrf.mxu0
        %v6819 = vadd.f32 %v6604, %v6818
        %6820 = vmatmul.bf16.gmra.mxu0 %v6682
        %v6821 = vpop.f32.mrf.mxu0
        %v6822 = vadd.f32 %v6609, %v6821
        %v6823 = vpop.f32.mrf.mxu0
        %v6824 = vadd.f32 %v6614, %v6823
        %6825 = vmatmul.bf16.gmra.mxu0 %v6683
        %v6826 = vpop.f32.mrf.mxu0
        %v6827 = vadd.f32 %v6619, %v6826
        %v6828 = vpop.f32.mrf.mxu0
        %v6829 = vadd.f32 %v6624, %v6828
        %6830 = vmatmul.bf16.gmra.mxu0 %v6684
        %v6831 = vpop.f32.mrf.mxu0
        %v6832 = vadd.f32 %v6629, %v6831
        %v6833 = vpop.f32.mrf.mxu0
        %v6834 = vadd.f32 %v6634, %v6833
        %6835 = vmatmul.bf16.gmra.mxu0 %v6685
        %v6836 = vpop.f32.mrf.mxu0
        %v6837 = vadd.f32 %v6639, %v6836
        %v6838 = vpop.f32.mrf.mxu0
        %v6839 = vadd.f32 %v6644, %v6838
        %6840 = vdwg.mxu0
        %6841 = vmatpush.bf16.msra.mxu0 %v6537
        %6842 = vmatpush.bf16.msra.mxu0 %v6521
        %6843 = vmatpush.bf16.msra.mxu0 %v6505
        %6844 = vmatpush.bf16.msra.mxu0 %v6489
        %6845 = vmatpush.bf16.msra.mxu0 %v6473
        %6846 = vmatpush.bf16.msra.mxu0 %v6457
        %6847 = vmatpush.bf16.msra.mxu0 %v6441
        %6848 = vmatpush.bf16.msra.mxu0 %v6425
        %6849 = vmatmul.bf16.gmra.mxu0 %v6678
        %v6850 = vpop.f32.mrf.mxu0
        %v6851 = vadd.f32 %v6569, %v6850
        %v6852 = vpop.f32.mrf.mxu0
        %v6853 = vadd.f32 %v6574, %v6852
        %6854 = vmatmul.bf16.gmra.mxu0 %v6679
        %v6855 = vpop.f32.mrf.mxu0
        %v6856 = vadd.f32 %v6579, %v6855
        %v6857 = vpop.f32.mrf.mxu0
        %v6858 = vadd.f32 %v6584, %v6857
        %6859 = vmatmul.bf16.gmra.mxu0 %v6680
        %v6860 = vpop.f32.mrf.mxu0
        %v6861 = vadd.f32 %v6589, %v6860
        %v6862 = vpop.f32.mrf.mxu0
        %v6863 = vadd.f32 %v6594, %v6862
        %6864 = vmatmul.bf16.gmra.mxu0 %v6681
        %v6865 = vpop.f32.mrf.mxu0
        %v6866 = vadd.f32 %v6599, %v6865
        %v6867 = vpop.f32.mrf.mxu0
        %v6868 = vadd.f32 %v6604, %v6867
        %6869 = vmatmul.bf16.gmra.mxu0 %v6682
        %v6870 = vpop.f32.mrf.mxu0
        %v6871 = vadd.f32 %v6609, %v6870
        %v6872 = vpop.f32.mrf.mxu0
        %v6873 = vadd.f32 %v6614, %v6872
        %6874 = vmatmul.bf16.gmra.mxu0 %v6683
        %v6875 = vpop.f32.mrf.mxu0
        %v6876 = vadd.f32 %v6619, %v6875
        %v6877 = vpop.f32.mrf.mxu0
        %v6878 = vadd.f32 %v6624, %v6877
        %6879 = vmatmul.bf16.gmra.mxu0 %v6684
        %v6880 = vpop.f32.mrf.mxu0
        %v6881 = vadd.f32 %v6629, %v6880
        %v6882 = vpop.f32.mrf.mxu0
        %v6883 = vadd.f32 %v6634, %v6882
        %6884 = vmatmul.bf16.gmra.mxu0 %v6685
        %v6885 = vpop.f32.mrf.mxu0
        %v6886 = vadd.f32 %v6639, %v6885
        %v6887 = vpop.f32.mrf.mxu0
        %v6888 = vadd.f32 %v6644, %v6887
        %6889 = vdwg.mxu0
        %6890 = vmatpush.bf16.msra.mxu0 %v6538
        %6891 = vmatpush.bf16.msra.mxu0 %v6522
        %6892 = vmatpush.bf16.msra.mxu0 %v6506
        %6893 = vmatpush.bf16.msra.mxu0 %v6490
        %6894 = vmatpush.bf16.msra.mxu0 %v6474
        %6895 = vmatpush.bf16.msra.mxu0 %v6458
        %6896 = vmatpush.bf16.msra.mxu0 %v6442
        %6897 = vmatpush.bf16.msra.mxu0 %v6426
        %6898 = vmatmul.bf16.gmra.mxu0 %v6678
        %v6899 = vpop.f32.mrf.mxu0
        %v6900 = vadd.f32 %v6569, %v6899
        %v6901 = vpop.f32.mrf.mxu0
        %v6902 = vadd.f32 %v6574, %v6901
        %6903 = vmatmul.bf16.gmra.mxu0 %v6679
        %v6904 = vpop.f32.mrf.mxu0
        %v6905 = vadd.f32 %v6579, %v6904
        %v6906 = vpop.f32.mrf.mxu0
        %v6907 = vadd.f32 %v6584, %v6906
        %6908 = vmatmul.bf16.gmra.mxu0 %v6680
        %v6909 = vpop.f32.mrf.mxu0
        %v6910 = vadd.f32 %v6589, %v6909
        %v6911 = vpop.f32.mrf.mxu0
        %v6912 = vadd.f32 %v6594, %v6911
        %6913 = vmatmul.bf16.gmra.mxu0 %v6681
        %v6914 = vpop.f32.mrf.mxu0
        %v6915 = vadd.f32 %v6599, %v6914
        %v6916 = vpop.f32.mrf.mxu0
        %v6917 = vadd.f32 %v6604, %v6916
        %6918 = vmatmul.bf16.gmra.mxu0 %v6682
        %v6919 = vpop.f32.mrf.mxu0
        %v6920 = vadd.f32 %v6609, %v6919
        %v6921 = vpop.f32.mrf.mxu0
        %v6922 = vadd.f32 %v6614, %v6921
        %6923 = vmatmul.bf16.gmra.mxu0 %v6683
        %v6924 = vpop.f32.mrf.mxu0
        %v6925 = vadd.f32 %v6619, %v6924
        %v6926 = vpop.f32.mrf.mxu0
        %v6927 = vadd.f32 %v6624, %v6926
        %6928 = vmatmul.bf16.gmra.mxu0 %v6684
        %v6929 = vpop.f32.mrf.mxu0
        %v6930 = vadd.f32 %v6629, %v6929
        %v6931 = vpop.f32.mrf.mxu0
        %v6932 = vadd.f32 %v6634, %v6931
        %6933 = vmatmul.bf16.gmra.mxu0 %v6685
        %v6934 = vpop.f32.mrf.mxu0
        %v6935 = vadd.f32 %v6639, %v6934
        %v6936 = vpop.f32.mrf.mxu0
        %v6937 = vadd.f32 %v6644, %v6936
        %6938 = vdwg.mxu0
        %6939 = vmatpush.bf16.msra.mxu0 %v6539
        %6940 = vmatpush.bf16.msra.mxu0 %v6523
        %6941 = vmatpush.bf16.msra.mxu0 %v6507
        %6942 = vmatpush.bf16.msra.mxu0 %v6491
        %6943 = vmatpush.bf16.msra.mxu0 %v6475
        %6944 = vmatpush.bf16.msra.mxu0 %v6459
        %6945 = vmatpush.bf16.msra.mxu0 %v6443
        %6946 = vmatpush.bf16.msra.mxu0 %v6427
        %6947 = vmatmul.bf16.gmra.mxu0 %v6678
        %v6948 = vpop.f32.mrf.mxu0
        %v6949 = vadd.f32 %v6569, %v6948
        %v6950 = vpop.f32.mrf.mxu0
        %v6951 = vadd.f32 %v6574, %v6950
        %6952 = vmatmul.bf16.gmra.mxu0 %v6679
        %v6953 = vpop.f32.mrf.mxu0
        %v6954 = vadd.f32 %v6579, %v6953
        %v6955 = vpop.f32.mrf.mxu0
        %v6956 = vadd.f32 %v6584, %v6955
        %6957 = vmatmul.bf16.gmra.mxu0 %v6680
        %v6958 = vpop.f32.mrf.mxu0
        %v6959 = vadd.f32 %v6589, %v6958
        %v6960 = vpop.f32.mrf.mxu0
        %v6961 = vadd.f32 %v6594, %v6960
        %6962 = vmatmul.bf16.gmra.mxu0 %v6681
        %v6963 = vpop.f32.mrf.mxu0
        %v6964 = vadd.f32 %v6599, %v6963
        %v6965 = vpop.f32.mrf.mxu0
        %v6966 = vadd.f32 %v6604, %v6965
        %6967 = vmatmul.bf16.gmra.mxu0 %v6682
        %v6968 = vpop.f32.mrf.mxu0
        %v6969 = vadd.f32 %v6609, %v6968
        %v6970 = vpop.f32.mrf.mxu0
        %v6971 = vadd.f32 %v6614, %v6970
        %6972 = vmatmul.bf16.gmra.mxu0 %v6683
        %v6973 = vpop.f32.mrf.mxu0
        %v6974 = vadd.f32 %v6619, %v6973
        %v6975 = vpop.f32.mrf.mxu0
        %v6976 = vadd.f32 %v6624, %v6975
        %6977 = vmatmul.bf16.gmra.mxu0 %v6684
        %v6978 = vpop.f32.mrf.mxu0
        %v6979 = vadd.f32 %v6629, %v6978
        %v6980 = vpop.f32.mrf.mxu0
        %v6981 = vadd.f32 %v6634, %v6980
        %6982 = vmatmul.bf16.gmra.mxu0 %v6685
        %v6983 = vpop.f32.mrf.mxu0
        %v6984 = vadd.f32 %v6639, %v6983
        %v6985 = vpop.f32.mrf.mxu0
        %v6986 = vadd.f32 %v6644, %v6985
        %6987 = vdwg.mxu0
        %6988 = vmatpush.bf16.msra.mxu0 %v6540
        %6989 = vmatpush.bf16.msra.mxu0 %v6524
        %6990 = vmatpush.bf16.msra.mxu0 %v6508
        %6991 = vmatpush.bf16.msra.mxu0 %v6492
        %6992 = vmatpush.bf16.msra.mxu0 %v6476
        %6993 = vmatpush.bf16.msra.mxu0 %v6460
        %6994 = vmatpush.bf16.msra.mxu0 %v6444
        %6995 = vmatpush.bf16.msra.mxu0 %v6428
        %6996 = vmatmul.bf16.gmra.mxu0 %v6678
        %v6997 = vpop.f32.mrf.mxu0
        %v6998 = vadd.f32 %v6569, %v6997
        %v6999 = vpop.f32.mrf.mxu0
        %v7000 = vadd.f32 %v6574, %v6999
        %7001 = vmatmul.bf16.gmra.mxu0 %v6679
        %v7002 = vpop.f32.mrf.mxu0
        %v7003 = vadd.f32 %v6579, %v7002
        %v7004 = vpop.f32.mrf.mxu0
        %v7005 = vadd.f32 %v6584, %v7004
        %7006 = vmatmul.bf16.gmra.mxu0 %v6680
        %v7007 = vpop.f32.mrf.mxu0
        %v7008 = vadd.f32 %v6589, %v7007
        %v7009 = vpop.f32.mrf.mxu0
        %v7010 = vadd.f32 %v6594, %v7009
        %7011 = vmatmul.bf16.gmra.mxu0 %v6681
        %v7012 = vpop.f32.mrf.mxu0
        %v7013 = vadd.f32 %v6599, %v7012
        %v7014 = vpop.f32.mrf.mxu0
        %v7015 = vadd.f32 %v6604, %v7014
        %7016 = vmatmul.bf16.gmra.mxu0 %v6682
        %v7017 = vpop.f32.mrf.mxu0
        %v7018 = vadd.f32 %v6609, %v7017
        %v7019 = vpop.f32.mrf.mxu0
        %v7020 = vadd.f32 %v6614, %v7019
        %7021 = vmatmul.bf16.gmra.mxu0 %v6683
        %v7022 = vpop.f32.mrf.mxu0
        %v7023 = vadd.f32 %v6619, %v7022
        %v7024 = vpop.f32.mrf.mxu0
        %v7025 = vadd.f32 %v6624, %v7024
        %7026 = vmatmul.bf16.gmra.mxu0 %v6684
        %v7027 = vpop.f32.mrf.mxu0
        %v7028 = vadd.f32 %v6629, %v7027
        %v7029 = vpop.f32.mrf.mxu0
        %v7030 = vadd.f32 %v6634, %v7029
        %7031 = vmatmul.bf16.gmra.mxu0 %v6685
        %v7032 = vpop.f32.mrf.mxu0
        %v7033 = vadd.f32 %v6639, %v7032
        %v7034 = vpop.f32.mrf.mxu0
        %v7035 = vadd.f32 %v6644, %v7034
        %7036 = vdwg.mxu0
        %7037 = vmatpush.bf16.msra.mxu0 %v6541
        %7038 = vmatpush.bf16.msra.mxu0 %v6525
        %7039 = vmatpush.bf16.msra.mxu0 %v6509
        %7040 = vmatpush.bf16.msra.mxu0 %v6493
        %7041 = vmatpush.bf16.msra.mxu0 %v6477
        %7042 = vmatpush.bf16.msra.mxu0 %v6461
        %7043 = vmatpush.bf16.msra.mxu0 %v6445
        %7044 = vmatpush.bf16.msra.mxu0 %v6429
        %7045 = vmatmul.bf16.gmra.mxu0 %v6678
        %v7046 = vpop.f32.mrf.mxu0
        %v7047 = vadd.f32 %v6569, %v7046
        %v7048 = vpop.f32.mrf.mxu0
        %v7049 = vadd.f32 %v6574, %v7048
        %7050 = vmatmul.bf16.gmra.mxu0 %v6679
        %v7051 = vpop.f32.mrf.mxu0
        %v7052 = vadd.f32 %v6579, %v7051
        %v7053 = vpop.f32.mrf.mxu0
        %v7054 = vadd.f32 %v6584, %v7053
        %7055 = vmatmul.bf16.gmra.mxu0 %v6680
        %v7056 = vpop.f32.mrf.mxu0
        %v7057 = vadd.f32 %v6589, %v7056
        %v7058 = vpop.f32.mrf.mxu0
        %v7059 = vadd.f32 %v6594, %v7058
        %7060 = vmatmul.bf16.gmra.mxu0 %v6681
        %v7061 = vpop.f32.mrf.mxu0
        %v7062 = vadd.f32 %v6599, %v7061
        %v7063 = vpop.f32.mrf.mxu0
        %v7064 = vadd.f32 %v6604, %v7063
        %7065 = vmatmul.bf16.gmra.mxu0 %v6682
        %v7066 = vpop.f32.mrf.mxu0
        %v7067 = vadd.f32 %v6609, %v7066
        %v7068 = vpop.f32.mrf.mxu0
        %v7069 = vadd.f32 %v6614, %v7068
        %7070 = vmatmul.bf16.gmra.mxu0 %v6683
        %v7071 = vpop.f32.mrf.mxu0
        %v7072 = vadd.f32 %v6619, %v7071
        %v7073 = vpop.f32.mrf.mxu0
        %v7074 = vadd.f32 %v6624, %v7073
        %7075 = vmatmul.bf16.gmra.mxu0 %v6684
        %v7076 = vpop.f32.mrf.mxu0
        %v7077 = vadd.f32 %v6629, %v7076
        %v7078 = vpop.f32.mrf.mxu0
        %v7079 = vadd.f32 %v6634, %v7078
        %7080 = vmatmul.bf16.gmra.mxu0 %v6685
        %v7081 = vpop.f32.mrf.mxu0
        %v7082 = vadd.f32 %v6639, %v7081
        %v7083 = vpop.f32.mrf.mxu0
        %v7084 = vadd.f32 %v6644, %v7083
        %7085 = vdwg.mxu0
        %7086 = vmatpush.bf16.msra.mxu0 %v6542
        %7087 = vmatpush.bf16.msra.mxu0 %v6526
        %7088 = vmatpush.bf16.msra.mxu0 %v6510
        %7089 = vmatpush.bf16.msra.mxu0 %v6494
        %7090 = vmatpush.bf16.msra.mxu0 %v6478
        %7091 = vmatpush.bf16.msra.mxu0 %v6462
        %7092 = vmatpush.bf16.msra.mxu0 %v6446
        %7093 = vmatpush.bf16.msra.mxu0 %v6430
        %7094 = vmatmul.bf16.gmra.mxu0 %v6678
        %v7095 = vpop.f32.mrf.mxu0
        %v7096 = vadd.f32 %v6569, %v7095
        %v7097 = vpop.f32.mrf.mxu0
        %v7098 = vadd.f32 %v6574, %v7097
        %7099 = vmatmul.bf16.gmra.mxu0 %v6679
        %v7100 = vpop.f32.mrf.mxu0
        %v7101 = vadd.f32 %v6579, %v7100
        %v7102 = vpop.f32.mrf.mxu0
        %v7103 = vadd.f32 %v6584, %v7102
        %7104 = vmatmul.bf16.gmra.mxu0 %v6680
        %v7105 = vpop.f32.mrf.mxu0
        %v7106 = vadd.f32 %v6589, %v7105
        %v7107 = vpop.f32.mrf.mxu0
        %v7108 = vadd.f32 %v6594, %v7107
        %7109 = vmatmul.bf16.gmra.mxu0 %v6681
        %v7110 = vpop.f32.mrf.mxu0
        %v7111 = vadd.f32 %v6599, %v7110
        %v7112 = vpop.f32.mrf.mxu0
        %v7113 = vadd.f32 %v6604, %v7112
        %7114 = vmatmul.bf16.gmra.mxu0 %v6682
        %v7115 = vpop.f32.mrf.mxu0
        %v7116 = vadd.f32 %v6609, %v7115
        %v7117 = vpop.f32.mrf.mxu0
        %v7118 = vadd.f32 %v6614, %v7117
        %7119 = vmatmul.bf16.gmra.mxu0 %v6683
        %v7120 = vpop.f32.mrf.mxu0
        %v7121 = vadd.f32 %v6619, %v7120
        %v7122 = vpop.f32.mrf.mxu0
        %v7123 = vadd.f32 %v6624, %v7122
        %7124 = vmatmul.bf16.gmra.mxu0 %v6684
        %v7125 = vpop.f32.mrf.mxu0
        %v7126 = vadd.f32 %v6629, %v7125
        %v7127 = vpop.f32.mrf.mxu0
        %v7128 = vadd.f32 %v6634, %v7127
        %7129 = vmatmul.bf16.gmra.mxu0 %v6685
        %v7130 = vpop.f32.mrf.mxu0
        %v7131 = vadd.f32 %v6639, %v7130
        %v7132 = vpop.f32.mrf.mxu0
        %v7133 = vadd.f32 %v6644, %v7132
        %7134 = vdwg.mxu0
        %7135 = vmatpush.bf16.msra.mxu0 %v6543
        %7136 = vmatpush.bf16.msra.mxu0 %v6527
        %7137 = vmatpush.bf16.msra.mxu0 %v6511
        %7138 = vmatpush.bf16.msra.mxu0 %v6495
        %7139 = vmatpush.bf16.msra.mxu0 %v6479
        %7140 = vmatpush.bf16.msra.mxu0 %v6463
        %7141 = vmatpush.bf16.msra.mxu0 %v6447
        %7142 = vmatpush.bf16.msra.mxu0 %v6431
        %7143 = vmatmul.bf16.gmra.mxu0 %v6678
        %v7144 = vpop.f32.mrf.mxu0
        %v7145 = vadd.f32 %v6569, %v7144
        %v7146 = vpop.f32.mrf.mxu0
        %v7147 = vadd.f32 %v6574, %v7146
        %7148 = vmatmul.bf16.gmra.mxu0 %v6679
        %v7149 = vpop.f32.mrf.mxu0
        %v7150 = vadd.f32 %v6579, %v7149
        %v7151 = vpop.f32.mrf.mxu0
        %v7152 = vadd.f32 %v6584, %v7151
        %7153 = vmatmul.bf16.gmra.mxu0 %v6680
        %v7154 = vpop.f32.mrf.mxu0
        %v7155 = vadd.f32 %v6589, %v7154
        %v7156 = vpop.f32.mrf.mxu0
        %v7157 = vadd.f32 %v6594, %v7156
        %7158 = vmatmul.bf16.gmra.mxu0 %v6681
        %v7159 = vpop.f32.mrf.mxu0
        %v7160 = vadd.f32 %v6599, %v7159
        %v7161 = vpop.f32.mrf.mxu0
        %v7162 = vadd.f32 %v6604, %v7161
        %7163 = vmatmul.bf16.gmra.mxu0 %v6682
        %v7164 = vpop.f32.mrf.mxu0
        %v7165 = vadd.f32 %v6609, %v7164
        %v7166 = vpop.f32.mrf.mxu0
        %v7167 = vadd.f32 %v6614, %v7166
        %7168 = vmatmul.bf16.gmra.mxu0 %v6683
        %v7169 = vpop.f32.mrf.mxu0
        %v7170 = vadd.f32 %v6619, %v7169
        %v7171 = vpop.f32.mrf.mxu0
        %v7172 = vadd.f32 %v6624, %v7171
        %7173 = vmatmul.bf16.gmra.mxu0 %v6684
        %v7174 = vpop.f32.mrf.mxu0
        %v7175 = vadd.f32 %v6629, %v7174
        %v7176 = vpop.f32.mrf.mxu0
        %v7177 = vadd.f32 %v6634, %v7176
        %7178 = vmatmul.bf16.gmra.mxu0 %v6685
        %v7179 = vpop.f32.mrf.mxu0
        %v7180 = vadd.f32 %v6639, %v7179
        %v7181 = vpop.f32.mrf.mxu0
        %v7182 = vadd.f32 %v6644, %v7181
        %7183 = vdwg.mxu0
        %7184 = vmatpush.bf16.msra.mxu0 %v6544
        %7185 = vmatpush.bf16.msra.mxu0 %v6528
        %7186 = vmatpush.bf16.msra.mxu0 %v6512
        %7187 = vmatpush.bf16.msra.mxu0 %v6496
        %7188 = vmatpush.bf16.msra.mxu0 %v6480
        %7189 = vmatpush.bf16.msra.mxu0 %v6464
        %7190 = vmatpush.bf16.msra.mxu0 %v6448
        %7191 = vmatpush.bf16.msra.mxu0 %v6432
        %7192 = vmatmul.bf16.gmra.mxu0 %v6678
        %v7193 = vpop.f32.mrf.mxu0
        %v7194 = vadd.f32 %v6569, %v7193
        %v7195 = vpop.f32.mrf.mxu0
        %v7196 = vadd.f32 %v6574, %v7195
        %7197 = vmatmul.bf16.gmra.mxu0 %v6679
        %v7198 = vpop.f32.mrf.mxu0
        %v7199 = vadd.f32 %v6579, %v7198
        %v7200 = vpop.f32.mrf.mxu0
        %v7201 = vadd.f32 %v6584, %v7200
        %7202 = vmatmul.bf16.gmra.mxu0 %v6680
        %v7203 = vpop.f32.mrf.mxu0
        %v7204 = vadd.f32 %v6589, %v7203
        %v7205 = vpop.f32.mrf.mxu0
        %v7206 = vadd.f32 %v6594, %v7205
        %7207 = vmatmul.bf16.gmra.mxu0 %v6681
        %v7208 = vpop.f32.mrf.mxu0
        %v7209 = vadd.f32 %v6599, %v7208
        %v7210 = vpop.f32.mrf.mxu0
        %v7211 = vadd.f32 %v6604, %v7210
        %7212 = vmatmul.bf16.gmra.mxu0 %v6682
        %v7213 = vpop.f32.mrf.mxu0
        %v7214 = vadd.f32 %v6609, %v7213
        %v7215 = vpop.f32.mrf.mxu0
        %v7216 = vadd.f32 %v6614, %v7215
        %7217 = vmatmul.bf16.gmra.mxu0 %v6683
        %v7218 = vpop.f32.mrf.mxu0
        %v7219 = vadd.f32 %v6619, %v7218
        %v7220 = vpop.f32.mrf.mxu0
        %v7221 = vadd.f32 %v6624, %v7220
        %7222 = vmatmul.bf16.gmra.mxu0 %v6684
        %v7223 = vpop.f32.mrf.mxu0
        %v7224 = vadd.f32 %v6629, %v7223
        %v7225 = vpop.f32.mrf.mxu0
        %v7226 = vadd.f32 %v6634, %v7225
        %7227 = vmatmul.bf16.gmra.mxu0 %v6685
        %v7228 = vpop.f32.mrf.mxu0
        %v7229 = vadd.f32 %v6639, %v7228
        %v7230 = vpop.f32.mrf.mxu0
        %v7231 = vadd.f32 %v6644, %v7230
        %7232 = vdwg.mxu0
        %7233 = vmatpush.bf16.msra.mxu0 %v6545
        %7234 = vmatpush.bf16.msra.mxu0 %v6529
        %7235 = vmatpush.bf16.msra.mxu0 %v6513
        %7236 = vmatpush.bf16.msra.mxu0 %v6497
        %7237 = vmatpush.bf16.msra.mxu0 %v6481
        %7238 = vmatpush.bf16.msra.mxu0 %v6465
        %7239 = vmatpush.bf16.msra.mxu0 %v6449
        %7240 = vmatpush.bf16.msra.mxu0 %v6433
        %7241 = vmatmul.bf16.gmra.mxu0 %v6678
        %v7242 = vpop.f32.mrf.mxu0
        %v7243 = vadd.f32 %v6569, %v7242
        %v7244 = vpop.f32.mrf.mxu0
        %v7245 = vadd.f32 %v6574, %v7244
        %7246 = vmatmul.bf16.gmra.mxu0 %v6679
        %v7247 = vpop.f32.mrf.mxu0
        %v7248 = vadd.f32 %v6579, %v7247
        %v7249 = vpop.f32.mrf.mxu0
        %v7250 = vadd.f32 %v6584, %v7249
        %7251 = vmatmul.bf16.gmra.mxu0 %v6680
        %v7252 = vpop.f32.mrf.mxu0
        %v7253 = vadd.f32 %v6589, %v7252
        %v7254 = vpop.f32.mrf.mxu0
        %v7255 = vadd.f32 %v6594, %v7254
        %7256 = vmatmul.bf16.gmra.mxu0 %v6681
        %v7257 = vpop.f32.mrf.mxu0
        %v7258 = vadd.f32 %v6599, %v7257
        %v7259 = vpop.f32.mrf.mxu0
        %v7260 = vadd.f32 %v6604, %v7259
        %7261 = vmatmul.bf16.gmra.mxu0 %v6682
        %v7262 = vpop.f32.mrf.mxu0
        %v7263 = vadd.f32 %v6609, %v7262
        %v7264 = vpop.f32.mrf.mxu0
        %v7265 = vadd.f32 %v6614, %v7264
        %7266 = vmatmul.bf16.gmra.mxu0 %v6683
        %v7267 = vpop.f32.mrf.mxu0
        %v7268 = vadd.f32 %v6619, %v7267
        %v7269 = vpop.f32.mrf.mxu0
        %v7270 = vadd.f32 %v6624, %v7269
        %7271 = vmatmul.bf16.gmra.mxu0 %v6684
        %v7272 = vpop.f32.mrf.mxu0
        %v7273 = vadd.f32 %v6629, %v7272
        %v7274 = vpop.f32.mrf.mxu0
        %v7275 = vadd.f32 %v6634, %v7274
        %7276 = vmatmul.bf16.gmra.mxu0 %v6685
        %v7277 = vpop.f32.mrf.mxu0
        %v7278 = vadd.f32 %v6639, %v7277
        %v7279 = vpop.f32.mrf.mxu0
        %v7280 = vadd.f32 %v6644, %v7279
        %7281 = vdwg.mxu0
        %7282 = vmatpush.bf16.msra.mxu0 %v6546
        %7283 = vmatpush.bf16.msra.mxu0 %v6530
        %7284 = vmatpush.bf16.msra.mxu0 %v6514
        %7285 = vmatpush.bf16.msra.mxu0 %v6498
        %7286 = vmatpush.bf16.msra.mxu0 %v6482
        %7287 = vmatpush.bf16.msra.mxu0 %v6466
        %7288 = vmatpush.bf16.msra.mxu0 %v6450
        %7289 = vmatpush.bf16.msra.mxu0 %v6434
        %7290 = vmatmul.bf16.gmra.mxu0 %v6678
        %v7291 = vpop.f32.mrf.mxu0
        %v7292 = vadd.f32 %v6569, %v7291
        %v7293 = vpop.f32.mrf.mxu0
        %v7294 = vadd.f32 %v6574, %v7293
        %7295 = vmatmul.bf16.gmra.mxu0 %v6679
        %v7296 = vpop.f32.mrf.mxu0
        %v7297 = vadd.f32 %v6579, %v7296
        %v7298 = vpop.f32.mrf.mxu0
        %v7299 = vadd.f32 %v6584, %v7298
        %7300 = vmatmul.bf16.gmra.mxu0 %v6680
        %v7301 = vpop.f32.mrf.mxu0
        %v7302 = vadd.f32 %v6589, %v7301
        %v7303 = vpop.f32.mrf.mxu0
        %v7304 = vadd.f32 %v6594, %v7303
        %7305 = vmatmul.bf16.gmra.mxu0 %v6681
        %v7306 = vpop.f32.mrf.mxu0
        %v7307 = vadd.f32 %v6599, %v7306
        %v7308 = vpop.f32.mrf.mxu0
        %v7309 = vadd.f32 %v6604, %v7308
        %7310 = vmatmul.bf16.gmra.mxu0 %v6682
        %v7311 = vpop.f32.mrf.mxu0
        %v7312 = vadd.f32 %v6609, %v7311
        %v7313 = vpop.f32.mrf.mxu0
        %v7314 = vadd.f32 %v6614, %v7313
        %7315 = vmatmul.bf16.gmra.mxu0 %v6683
        %v7316 = vpop.f32.mrf.mxu0
        %v7317 = vadd.f32 %v6619, %v7316
        %v7318 = vpop.f32.mrf.mxu0
        %v7319 = vadd.f32 %v6624, %v7318
        %7320 = vmatmul.bf16.gmra.mxu0 %v6684
        %v7321 = vpop.f32.mrf.mxu0
        %v7322 = vadd.f32 %v6629, %v7321
        %v7323 = vpop.f32.mrf.mxu0
        %v7324 = vadd.f32 %v6634, %v7323
        %7325 = vmatmul.bf16.gmra.mxu0 %v6685
        %v7326 = vpop.f32.mrf.mxu0
        %v7327 = vadd.f32 %v6639, %v7326
        %v7328 = vpop.f32.mrf.mxu0
        %v7329 = vadd.f32 %v6644, %v7328
        %7330 = vdwg.mxu0
        %7331 = vmatpush.bf16.msra.mxu0 %v6547
        %7332 = vmatpush.bf16.msra.mxu0 %v6531
        %7333 = vmatpush.bf16.msra.mxu0 %v6515
        %7334 = vmatpush.bf16.msra.mxu0 %v6499
        %7335 = vmatpush.bf16.msra.mxu0 %v6483
        %7336 = vmatpush.bf16.msra.mxu0 %v6467
        %7337 = vmatpush.bf16.msra.mxu0 %v6451
        %7338 = vmatpush.bf16.msra.mxu0 %v6435
        %7339 = vmatmul.bf16.gmra.mxu0 %v6678
        %v7340 = vpop.f32.mrf.mxu0
        %v7341 = vadd.f32 %v6569, %v7340
        %v7342 = vpop.f32.mrf.mxu0
        %v7343 = vadd.f32 %v6574, %v7342
        %7344 = vmatmul.bf16.gmra.mxu0 %v6679
        %v7345 = vpop.f32.mrf.mxu0
        %v7346 = vadd.f32 %v6579, %v7345
        %v7347 = vpop.f32.mrf.mxu0
        %v7348 = vadd.f32 %v6584, %v7347
        %7349 = vmatmul.bf16.gmra.mxu0 %v6680
        %v7350 = vpop.f32.mrf.mxu0
        %v7351 = vadd.f32 %v6589, %v7350
        %v7352 = vpop.f32.mrf.mxu0
        %v7353 = vadd.f32 %v6594, %v7352
        %7354 = vmatmul.bf16.gmra.mxu0 %v6681
        %v7355 = vpop.f32.mrf.mxu0
        %v7356 = vadd.f32 %v6599, %v7355
        %v7357 = vpop.f32.mrf.mxu0
        %v7358 = vadd.f32 %v6604, %v7357
        %7359 = vmatmul.bf16.gmra.mxu0 %v6682
        %v7360 = vpop.f32.mrf.mxu0
        %v7361 = vadd.f32 %v6609, %v7360
        %v7362 = vpop.f32.mrf.mxu0
        %v7363 = vadd.f32 %v6614, %v7362
        %7364 = vmatmul.bf16.gmra.mxu0 %v6683
        %v7365 = vpop.f32.mrf.mxu0
        %v7366 = vadd.f32 %v6619, %v7365
        %v7367 = vpop.f32.mrf.mxu0
        %v7368 = vadd.f32 %v6624, %v7367
        %7369 = vmatmul.bf16.gmra.mxu0 %v6684
        %v7370 = vpop.f32.mrf.mxu0
        %v7371 = vadd.f32 %v6629, %v7370
        %v7372 = vpop.f32.mrf.mxu0
        %v7373 = vadd.f32 %v6634, %v7372
        %7374 = vmatmul.bf16.gmra.mxu0 %v6685
        %v7375 = vpop.f32.mrf.mxu0
        %v7376 = vadd.f32 %v6639, %v7375
        %v7377 = vpop.f32.mrf.mxu0
        %v7378 = vadd.f32 %v6644, %v7377
        %7379 = vdwg.mxu0
        %7380 = vmatpush.bf16.msra.mxu0 %v6548
        %7381 = vmatpush.bf16.msra.mxu0 %v6532
        %7382 = vmatpush.bf16.msra.mxu0 %v6516
        %7383 = vmatpush.bf16.msra.mxu0 %v6500
        %7384 = vmatpush.bf16.msra.mxu0 %v6484
        %7385 = vmatpush.bf16.msra.mxu0 %v6468
        %7386 = vmatpush.bf16.msra.mxu0 %v6452
        %7387 = vmatpush.bf16.msra.mxu0 %v6436
        %7388 = vmatmul.bf16.gmra.mxu0 %v6678
        %v7389 = vpop.f32.mrf.mxu0
        %v7390 = vadd.f32 %v6569, %v7389
        %v7391 = vpop.f32.mrf.mxu0
        %v7392 = vadd.f32 %v6574, %v7391
        %7393 = vmatmul.bf16.gmra.mxu0 %v6679
        %v7394 = vpop.f32.mrf.mxu0
        %v7395 = vadd.f32 %v6579, %v7394
        %v7396 = vpop.f32.mrf.mxu0
        %v7397 = vadd.f32 %v6584, %v7396
        %7398 = vmatmul.bf16.gmra.mxu0 %v6680
        %v7399 = vpop.f32.mrf.mxu0
        %v7400 = vadd.f32 %v6589, %v7399
        %v7401 = vpop.f32.mrf.mxu0
        %v7402 = vadd.f32 %v6594, %v7401
        %7403 = vmatmul.bf16.gmra.mxu0 %v6681
        %v7404 = vpop.f32.mrf.mxu0
        %v7405 = vadd.f32 %v6599, %v7404
        %v7406 = vpop.f32.mrf.mxu0
        %v7407 = vadd.f32 %v6604, %v7406
        %7408 = vmatmul.bf16.gmra.mxu0 %v6682
        %v7409 = vpop.f32.mrf.mxu0
        %v7410 = vadd.f32 %v6609, %v7409
        %v7411 = vpop.f32.mrf.mxu0
        %v7412 = vadd.f32 %v6614, %v7411
        %7413 = vmatmul.bf16.gmra.mxu0 %v6683
        %v7414 = vpop.f32.mrf.mxu0
        %v7415 = vadd.f32 %v6619, %v7414
        %v7416 = vpop.f32.mrf.mxu0
        %v7417 = vadd.f32 %v6624, %v7416
        %7418 = vmatmul.bf16.gmra.mxu0 %v6684
        %v7419 = vpop.f32.mrf.mxu0
        %v7420 = vadd.f32 %v6629, %v7419
        %v7421 = vpop.f32.mrf.mxu0
        %v7422 = vadd.f32 %v6634, %v7421
        %7423 = vmatmul.bf16.gmra.mxu0 %v6685
        %v7424 = vpop.f32.mrf.mxu0
        %v7425 = vadd.f32 %v6639, %v7424
        %v7426 = vpop.f32.mrf.mxu0
        %v7427 = vadd.f32 %v6644, %v7426
        %7428 = vdwg.mxu0
        %7429 = vmatpush.bf16.msra.mxu0 %v6549
        %7430 = vmatpush.bf16.msra.mxu0 %v6533
        %7431 = vmatpush.bf16.msra.mxu0 %v6517
        %7432 = vmatpush.bf16.msra.mxu0 %v6501
        %7433 = vmatpush.bf16.msra.mxu0 %v6485
        %7434 = vmatpush.bf16.msra.mxu0 %v6469
        %7435 = vmatpush.bf16.msra.mxu0 %v6453
        %7436 = vmatpush.bf16.msra.mxu0 %v6437
        %7437 = vmatmul.bf16.gmra.mxu0 %v6678
        %v7438 = vpop.f32.mrf.mxu0
        %v7439 = vadd.f32 %v6569, %v7438
        %v7440 = vpop.f32.mrf.mxu0
        %v7441 = vadd.f32 %v6574, %v7440
        %7442 = vmatmul.bf16.gmra.mxu0 %v6679
        %v7443 = vpop.f32.mrf.mxu0
        %v7444 = vadd.f32 %v6579, %v7443
        %v7445 = vpop.f32.mrf.mxu0
        %v7446 = vadd.f32 %v6584, %v7445
        %7447 = vmatmul.bf16.gmra.mxu0 %v6680
        %v7448 = vpop.f32.mrf.mxu0
        %v7449 = vadd.f32 %v6589, %v7448
        %v7450 = vpop.f32.mrf.mxu0
        %v7451 = vadd.f32 %v6594, %v7450
        %7452 = vmatmul.bf16.gmra.mxu0 %v6681
        %v7453 = vpop.f32.mrf.mxu0
        %v7454 = vadd.f32 %v6599, %v7453
        %v7455 = vpop.f32.mrf.mxu0
        %v7456 = vadd.f32 %v6604, %v7455
        %7457 = vmatmul.bf16.gmra.mxu0 %v6682
        %v7458 = vpop.f32.mrf.mxu0
        %v7459 = vadd.f32 %v6609, %v7458
        %v7460 = vpop.f32.mrf.mxu0
        %v7461 = vadd.f32 %v6614, %v7460
        %7462 = vmatmul.bf16.gmra.mxu0 %v6683
        %v7463 = vpop.f32.mrf.mxu0
        %v7464 = vadd.f32 %v6619, %v7463
        %v7465 = vpop.f32.mrf.mxu0
        %v7466 = vadd.f32 %v6624, %v7465
        %7467 = vmatmul.bf16.gmra.mxu0 %v6684
        %v7468 = vpop.f32.mrf.mxu0
        %v7469 = vadd.f32 %v6629, %v7468
        %v7470 = vpop.f32.mrf.mxu0
        %v7471 = vadd.f32 %v6634, %v7470
        %7472 = vmatmul.bf16.gmra.mxu0 %v6685
        %v7473 = vpop.f32.mrf.mxu0
        %v7474 = vadd.f32 %v6639, %v7473
        %v7475 = vpop.f32.mrf.mxu0
        %v7476 = vadd.f32 %v6644, %v7475
        %7477 = vdwg.mxu0
        %v7478 = vmax.f32 %v6704, 0.0
        %v7479 = vmax.f32 %v6753, 0.0
        %v7480 = vmax.f32 %v6802, 0.0
        %v7481 = vmax.f32 %v6851, 0.0
        %v7482 = vmax.f32 %v6900, 0.0
        %v7483 = vmax.f32 %v6949, 0.0
        %v7484 = vmax.f32 %v6998, 0.0
        %v7485 = vmax.f32 %v7047, 0.0
        %v7486 = vmax.f32 %v7096, 0.0
        %v7487 = vmax.f32 %v7145, 0.0
        %v7488 = vmax.f32 %v7194, 0.0
        %v7489 = vmax.f32 %v7243, 0.0
        %v7490 = vmax.f32 %v7292, 0.0
        %v7491 = vmax.f32 %v7341, 0.0
        %v7492 = vmax.f32 %v7390, 0.0
        %v7493 = vmax.f32 %v7439, 0.0
        %v7494 = vmax.f32 %v6706, 0.0
        %v7495 = vmax.f32 %v6755, 0.0
        %v7496 = vmax.f32 %v6804, 0.0
        %v7497 = vmax.f32 %v6853, 0.0
        %v7498 = vmax.f32 %v6902, 0.0
        %v7499 = vmax.f32 %v6951, 0.0
        %v7500 = vmax.f32 %v7000, 0.0
        %v7501 = vmax.f32 %v7049, 0.0
        %v7502 = vmax.f32 %v7098, 0.0
        %v7503 = vmax.f32 %v7147, 0.0
        %v7504 = vmax.f32 %v7196, 0.0
        %v7505 = vmax.f32 %v7245, 0.0
        %v7506 = vmax.f32 %v7294, 0.0
        %v7507 = vmax.f32 %v7343, 0.0
        %v7508 = vmax.f32 %v7392, 0.0
        %v7509 = vmax.f32 %v7441, 0.0
        %v7510 = vmax.f32 %v6709, 0.0
        %v7511 = vmax.f32 %v6758, 0.0
        %v7512 = vmax.f32 %v6807, 0.0
        %v7513 = vmax.f32 %v6856, 0.0
        %v7514 = vmax.f32 %v6905, 0.0
        %v7515 = vmax.f32 %v6954, 0.0
        %v7516 = vmax.f32 %v7003, 0.0
        %v7517 = vmax.f32 %v7052, 0.0
        %v7518 = vmax.f32 %v7101, 0.0
        %v7519 = vmax.f32 %v7150, 0.0
        %v7520 = vmax.f32 %v7199, 0.0
        %v7521 = vmax.f32 %v7248, 0.0
        %v7522 = vmax.f32 %v7297, 0.0
        %v7523 = vmax.f32 %v7346, 0.0
        %v7524 = vmax.f32 %v7395, 0.0
        %v7525 = vmax.f32 %v7444, 0.0
        %v7526 = vmax.f32 %v6711, 0.0
        %v7527 = vmax.f32 %v6760, 0.0
        %v7528 = vmax.f32 %v6809, 0.0
        %v7529 = vmax.f32 %v6858, 0.0
        %v7530 = vmax.f32 %v6907, 0.0
        %v7531 = vmax.f32 %v6956, 0.0
        %v7532 = vmax.f32 %v7005, 0.0
        %v7533 = vmax.f32 %v7054, 0.0
        %v7534 = vmax.f32 %v7103, 0.0
        %v7535 = vmax.f32 %v7152, 0.0
        %v7536 = vmax.f32 %v7201, 0.0
        %v7537 = vmax.f32 %v7250, 0.0
        %v7538 = vmax.f32 %v7299, 0.0
        %v7539 = vmax.f32 %v7348, 0.0
        %v7540 = vmax.f32 %v7397, 0.0
        %v7541 = vmax.f32 %v7446, 0.0
        %v7542 = vmax.f32 %v6714, 0.0
        %v7543 = vmax.f32 %v6763, 0.0
        %v7544 = vmax.f32 %v6812, 0.0
        %v7545 = vmax.f32 %v6861, 0.0
        %v7546 = vmax.f32 %v6910, 0.0
        %v7547 = vmax.f32 %v6959, 0.0
        %v7548 = vmax.f32 %v7008, 0.0
        %v7549 = vmax.f32 %v7057, 0.0
        %v7550 = vmax.f32 %v7106, 0.0
        %v7551 = vmax.f32 %v7155, 0.0
        %v7552 = vmax.f32 %v7204, 0.0
        %v7553 = vmax.f32 %v7253, 0.0
        %v7554 = vmax.f32 %v7302, 0.0
        %v7555 = vmax.f32 %v7351, 0.0
        %v7556 = vmax.f32 %v7400, 0.0
        %v7557 = vmax.f32 %v7449, 0.0
        %v7558 = vmax.f32 %v6716, 0.0
        %v7559 = vmax.f32 %v6765, 0.0
        %v7560 = vmax.f32 %v6814, 0.0
        %v7561 = vmax.f32 %v6863, 0.0
        %v7562 = vmax.f32 %v6912, 0.0
        %v7563 = vmax.f32 %v6961, 0.0
        %v7564 = vmax.f32 %v7010, 0.0
        %v7565 = vmax.f32 %v7059, 0.0
        %v7566 = vmax.f32 %v7108, 0.0
        %v7567 = vmax.f32 %v7157, 0.0
        %v7568 = vmax.f32 %v7206, 0.0
        %v7569 = vmax.f32 %v7255, 0.0
        %v7570 = vmax.f32 %v7304, 0.0
        %v7571 = vmax.f32 %v7353, 0.0
        %v7572 = vmax.f32 %v7402, 0.0
        %v7573 = vmax.f32 %v7451, 0.0
        %v7574 = vmax.f32 %v6719, 0.0
        %v7575 = vmax.f32 %v6768, 0.0
        %v7576 = vmax.f32 %v6817, 0.0
        %v7577 = vmax.f32 %v6866, 0.0
        %v7578 = vmax.f32 %v6915, 0.0
        %v7579 = vmax.f32 %v6964, 0.0
        %v7580 = vmax.f32 %v7013, 0.0
        %v7581 = vmax.f32 %v7062, 0.0
        %v7582 = vmax.f32 %v7111, 0.0
        %v7583 = vmax.f32 %v7160, 0.0
        %v7584 = vmax.f32 %v7209, 0.0
        %v7585 = vmax.f32 %v7258, 0.0
        %v7586 = vmax.f32 %v7307, 0.0
        %v7587 = vmax.f32 %v7356, 0.0
        %v7588 = vmax.f32 %v7405, 0.0
        %v7589 = vmax.f32 %v7454, 0.0
        %v7590 = vmax.f32 %v6721, 0.0
        %v7591 = vmax.f32 %v6770, 0.0
        %v7592 = vmax.f32 %v6819, 0.0
        %v7593 = vmax.f32 %v6868, 0.0
        %v7594 = vmax.f32 %v6917, 0.0
        %v7595 = vmax.f32 %v6966, 0.0
        %v7596 = vmax.f32 %v7015, 0.0
        %v7597 = vmax.f32 %v7064, 0.0
        %v7598 = vmax.f32 %v7113, 0.0
        %v7599 = vmax.f32 %v7162, 0.0
        %v7600 = vmax.f32 %v7211, 0.0
        %v7601 = vmax.f32 %v7260, 0.0
        %v7602 = vmax.f32 %v7309, 0.0
        %v7603 = vmax.f32 %v7358, 0.0
        %v7604 = vmax.f32 %v7407, 0.0
        %v7605 = vmax.f32 %v7456, 0.0
        %v7606 = vmax.f32 %v6724, 0.0
        %v7607 = vmax.f32 %v6773, 0.0
        %v7608 = vmax.f32 %v6822, 0.0
        %v7609 = vmax.f32 %v6871, 0.0
        %v7610 = vmax.f32 %v6920, 0.0
        %v7611 = vmax.f32 %v6969, 0.0
        %v7612 = vmax.f32 %v7018, 0.0
        %v7613 = vmax.f32 %v7067, 0.0
        %v7614 = vmax.f32 %v7116, 0.0
        %v7615 = vmax.f32 %v7165, 0.0
        %v7616 = vmax.f32 %v7214, 0.0
        %v7617 = vmax.f32 %v7263, 0.0
        %v7618 = vmax.f32 %v7312, 0.0
        %v7619 = vmax.f32 %v7361, 0.0
        %v7620 = vmax.f32 %v7410, 0.0
        %v7621 = vmax.f32 %v7459, 0.0
        %v7622 = vmax.f32 %v6726, 0.0
        %v7623 = vmax.f32 %v6775, 0.0
        %v7624 = vmax.f32 %v6824, 0.0
        %v7625 = vmax.f32 %v6873, 0.0
        %v7626 = vmax.f32 %v6922, 0.0
        %v7627 = vmax.f32 %v6971, 0.0
        %v7628 = vmax.f32 %v7020, 0.0
        %v7629 = vmax.f32 %v7069, 0.0
        %v7630 = vmax.f32 %v7118, 0.0
        %v7631 = vmax.f32 %v7167, 0.0
        %v7632 = vmax.f32 %v7216, 0.0
        %v7633 = vmax.f32 %v7265, 0.0
        %v7634 = vmax.f32 %v7314, 0.0
        %v7635 = vmax.f32 %v7363, 0.0
        %v7636 = vmax.f32 %v7412, 0.0
        %v7637 = vmax.f32 %v7461, 0.0
        %v7638 = vmax.f32 %v6729, 0.0
        %v7639 = vmax.f32 %v6778, 0.0
        %v7640 = vmax.f32 %v6827, 0.0
        %v7641 = vmax.f32 %v6876, 0.0
        %v7642 = vmax.f32 %v6925, 0.0
        %v7643 = vmax.f32 %v6974, 0.0
        %v7644 = vmax.f32 %v7023, 0.0
        %v7645 = vmax.f32 %v7072, 0.0
        %v7646 = vmax.f32 %v7121, 0.0
        %v7647 = vmax.f32 %v7170, 0.0
        %v7648 = vmax.f32 %v7219, 0.0
        %v7649 = vmax.f32 %v7268, 0.0
        %v7650 = vmax.f32 %v7317, 0.0
        %v7651 = vmax.f32 %v7366, 0.0
        %v7652 = vmax.f32 %v7415, 0.0
        %v7653 = vmax.f32 %v7464, 0.0
        %v7654 = vmax.f32 %v6731, 0.0
        %v7655 = vmax.f32 %v6780, 0.0
        %v7656 = vmax.f32 %v6829, 0.0
        %v7657 = vmax.f32 %v6878, 0.0
        %v7658 = vmax.f32 %v6927, 0.0
        %v7659 = vmax.f32 %v6976, 0.0
        %v7660 = vmax.f32 %v7025, 0.0
        %v7661 = vmax.f32 %v7074, 0.0
        %v7662 = vmax.f32 %v7123, 0.0
        %v7663 = vmax.f32 %v7172, 0.0
        %v7664 = vmax.f32 %v7221, 0.0
        %v7665 = vmax.f32 %v7270, 0.0
        %v7666 = vmax.f32 %v7319, 0.0
        %v7667 = vmax.f32 %v7368, 0.0
        %v7668 = vmax.f32 %v7417, 0.0
        %v7669 = vmax.f32 %v7466, 0.0
        %v7670 = vmax.f32 %v6734, 0.0
        %v7671 = vmax.f32 %v6783, 0.0
        %v7672 = vmax.f32 %v6832, 0.0
        %v7673 = vmax.f32 %v6881, 0.0
        %v7674 = vmax.f32 %v6930, 0.0
        %v7675 = vmax.f32 %v6979, 0.0
        %v7676 = vmax.f32 %v7028, 0.0
        %v7677 = vmax.f32 %v7077, 0.0
        %v7678 = vmax.f32 %v7126, 0.0
        %v7679 = vmax.f32 %v7175, 0.0
        %v7680 = vmax.f32 %v7224, 0.0
        %v7681 = vmax.f32 %v7273, 0.0
        %v7682 = vmax.f32 %v7322, 0.0
        %v7683 = vmax.f32 %v7371, 0.0
        %v7684 = vmax.f32 %v7420, 0.0
        %v7685 = vmax.f32 %v7469, 0.0
        %v7686 = vmax.f32 %v6736, 0.0
        %v7687 = vmax.f32 %v6785, 0.0
        %v7688 = vmax.f32 %v6834, 0.0
        %v7689 = vmax.f32 %v6883, 0.0
        %v7690 = vmax.f32 %v6932, 0.0
        %v7691 = vmax.f32 %v6981, 0.0
        %v7692 = vmax.f32 %v7030, 0.0
        %v7693 = vmax.f32 %v7079, 0.0
        %v7694 = vmax.f32 %v7128, 0.0
        %v7695 = vmax.f32 %v7177, 0.0
        %v7696 = vmax.f32 %v7226, 0.0
        %v7697 = vmax.f32 %v7275, 0.0
        %v7698 = vmax.f32 %v7324, 0.0
        %v7699 = vmax.f32 %v7373, 0.0
        %v7700 = vmax.f32 %v7422, 0.0
        %v7701 = vmax.f32 %v7471, 0.0
        %v7702 = vmax.f32 %v6739, 0.0
        %v7703 = vmax.f32 %v6788, 0.0
        %v7704 = vmax.f32 %v6837, 0.0
        %v7705 = vmax.f32 %v6886, 0.0
        %v7706 = vmax.f32 %v6935, 0.0
        %v7707 = vmax.f32 %v6984, 0.0
        %v7708 = vmax.f32 %v7033, 0.0
        %v7709 = vmax.f32 %v7082, 0.0
        %v7710 = vmax.f32 %v7131, 0.0
        %v7711 = vmax.f32 %v7180, 0.0
        %v7712 = vmax.f32 %v7229, 0.0
        %v7713 = vmax.f32 %v7278, 0.0
        %v7714 = vmax.f32 %v7327, 0.0
        %v7715 = vmax.f32 %v7376, 0.0
        %v7716 = vmax.f32 %v7425, 0.0
        %v7717 = vmax.f32 %v7474, 0.0
        %v7718 = vmax.f32 %v6741, 0.0
        %v7719 = vmax.f32 %v6790, 0.0
        %v7720 = vmax.f32 %v6839, 0.0
        %v7721 = vmax.f32 %v6888, 0.0
        %v7722 = vmax.f32 %v6937, 0.0
        %v7723 = vmax.f32 %v6986, 0.0
        %v7724 = vmax.f32 %v7035, 0.0
        %v7725 = vmax.f32 %v7084, 0.0
        %v7726 = vmax.f32 %v7133, 0.0
        %v7727 = vmax.f32 %v7182, 0.0
        %v7728 = vmax.f32 %v7231, 0.0
        %v7729 = vmax.f32 %v7280, 0.0
        %v7730 = vmax.f32 %v7329, 0.0
        %v7731 = vmax.f32 %v7378, 0.0
        %v7732 = vmax.f32 %v7427, 0.0
        %v7733 = vmax.f32 %v7476, 0.0
        %v7734 = vld [vmem:[%s7] sm:$0xf]
        %v7735 = vpack.c.bf16 %v7494, %v7478
        %v7736 = vpack.c.bf16 %v7495, %v7479
        %v7737 = vpack.c.bf16 %v7496, %v7480
        %v7738 = vpack.c.bf16 %v7497, %v7481
        %v7739 = vpack.c.bf16 %v7498, %v7482
        %v7740 = vpack.c.bf16 %v7499, %v7483
        %v7741 = vpack.c.bf16 %v7500, %v7484
        %v7742 = vpack.c.bf16 %v7501, %v7485
        %v7743 = vpack.c.bf16 %v7502, %v7486
        %v7744 = vpack.c.bf16 %v7503, %v7487
        %v7745 = vpack.c.bf16 %v7504, %v7488
        %v7746 = vpack.c.bf16 %v7505, %v7489
        %v7747 = vpack.c.bf16 %v7506, %v7490
        %v7748 = vpack.c.bf16 %v7507, %v7491
        %v7749 = vpack.c.bf16 %v7508, %v7492
        %v7750 = vpack.c.bf16 %v7509, %v7493
        %v7751 = vpack.c.bf16 %v7526, %v7510
        %v7752 = vpack.c.bf16 %v7527, %v7511
        %v7753 = vpack.c.bf16 %v7528, %v7512
        %v7754 = vpack.c.bf16 %v7529, %v7513
        %v7755 = vpack.c.bf16 %v7530, %v7514
        %v7756 = vpack.c.bf16 %v7531, %v7515
        %v7757 = vpack.c.bf16 %v7532, %v7516
        %v7758 = vpack.c.bf16 %v7533, %v7517
        %v7759 = vpack.c.bf16 %v7534, %v7518
        %v7760 = vpack.c.bf16 %v7535, %v7519
        %v7761 = vpack.c.bf16 %v7536, %v7520
        %v7762 = vpack.c.bf16 %v7537, %v7521
        %v7763 = vpack.c.bf16 %v7538, %v7522
        %v7764 = vpack.c.bf16 %v7539, %v7523
        %v7765 = vpack.c.bf16 %v7540, %v7524
        %v7766 = vpack.c.bf16 %v7541, %v7525
        %v7767 = vpack.c.bf16 %v7558, %v7542
        %v7768 = vpack.c.bf16 %v7559, %v7543
        %v7769 = vpack.c.bf16 %v7560, %v7544
        %v7770 = vpack.c.bf16 %v7561, %v7545
        %v7771 = vpack.c.bf16 %v7562, %v7546
        %v7772 = vpack.c.bf16 %v7563, %v7547
        %v7773 = vpack.c.bf16 %v7564, %v7548
        %v7774 = vpack.c.bf16 %v7565, %v7549
        %v7775 = vpack.c.bf16 %v7566, %v7550
        %v7776 = vpack.c.bf16 %v7567, %v7551
        %v7777 = vpack.c.bf16 %v7568, %v7552
        %v7778 = vpack.c.bf16 %v7569, %v7553
        %v7779 = vpack.c.bf16 %v7570, %v7554
        %v7780 = vpack.c.bf16 %v7571, %v7555
        %v7781 = vpack.c.bf16 %v7572, %v7556
        %v7782 = vpack.c.bf16 %v7573, %v7557
        %v7783 = vpack.c.bf16 %v7590, %v7574
        %v7784 = vpack.c.bf16 %v7591, %v7575
        %v7785 = vpack.c.bf16 %v7592, %v7576
        %v7786 = vpack.c.bf16 %v7593, %v7577
        %v7787 = vpack.c.bf16 %v7594, %v7578
        %v7788 = vpack.c.bf16 %v7595, %v7579
        %v7789 = vpack.c.bf16 %v7596, %v7580
        %v7790 = vpack.c.bf16 %v7597, %v7581
        %v7791 = vpack.c.bf16 %v7598, %v7582
        %v7792 = vpack.c.bf16 %v7599, %v7583
        %v7793 = vpack.c.bf16 %v7600, %v7584
        %v7794 = vpack.c.bf16 %v7601, %v7585
        %v7795 = vpack.c.bf16 %v7602, %v7586
        %v7796 = vpack.c.bf16 %v7603, %v7587
        %v7797 = vpack.c.bf16 %v7604, %v7588
        %v7798 = vpack.c.bf16 %v7605, %v7589
        %v7799 = vpack.c.bf16 %v7622, %v7606
        %v7800 = vpack.c.bf16 %v7623, %v7607
        %v7801 = vpack.c.bf16 %v7624, %v7608
        %v7802 = vpack.c.bf16 %v7625, %v7609
        %v7803 = vpack.c.bf16 %v7626, %v7610
        %v7804 = vpack.c.bf16 %v7627, %v7611
        %v7805 = vpack.c.bf16 %v7628, %v7612
        %v7806 = vpack.c.bf16 %v7629, %v7613
        %v7807 = vpack.c.bf16 %v7630, %v7614
        %v7808 = vpack.c.bf16 %v7631, %v7615
        %v7809 = vpack.c.bf16 %v7632, %v7616
        %v7810 = vpack.c.bf16 %v7633, %v7617
        %v7811 = vpack.c.bf16 %v7634, %v7618
        %v7812 = vpack.c.bf16 %v7635, %v7619
        %v7813 = vpack.c.bf16 %v7636, %v7620
        %v7814 = vpack.c.bf16 %v7637, %v7621
        %v7815 = vpack.c.bf16 %v7654, %v7638
        %v7816 = vpack.c.bf16 %v7655, %v7639
        %v7817 = vpack.c.bf16 %v7656, %v7640
        %v7818 = vpack.c.bf16 %v7657, %v7641
        %v7819 = vpack.c.bf16 %v7658, %v7642
        %v7820 = vpack.c.bf16 %v7659, %v7643
        %v7821 = vpack.c.bf16 %v7660, %v7644
        %v7822 = vpack.c.bf16 %v7661, %v7645
        %v7823 = vpack.c.bf16 %v7662, %v7646
        %v7824 = vpack.c.bf16 %v7663, %v7647
        %v7825 = vpack.c.bf16 %v7664, %v7648
        %v7826 = vpack.c.bf16 %v7665, %v7649
        %v7827 = vpack.c.bf16 %v7666, %v7650
        %v7828 = vpack.c.bf16 %v7667, %v7651
        %v7829 = vpack.c.bf16 %v7668, %v7652
        %v7830 = vpack.c.bf16 %v7669, %v7653
        %v7831 = vpack.c.bf16 %v7686, %v7670
        %v7832 = vpack.c.bf16 %v7687, %v7671
        %v7833 = vpack.c.bf16 %v7688, %v7672
        %v7834 = vpack.c.bf16 %v7689, %v7673
        %v7835 = vpack.c.bf16 %v7690, %v7674
        %v7836 = vpack.c.bf16 %v7691, %v7675
        %v7837 = vpack.c.bf16 %v7692, %v7676
        %v7838 = vpack.c.bf16 %v7693, %v7677
        %v7839 = vpack.c.bf16 %v7694, %v7678
        %v7840 = vpack.c.bf16 %v7695, %v7679
        %v7841 = vpack.c.bf16 %v7696, %v7680
        %v7842 = vpack.c.bf16 %v7697, %v7681
        %v7843 = vpack.c.bf16 %v7698, %v7682
        %v7844 = vpack.c.bf16 %v7699, %v7683
        %v7845 = vpack.c.bf16 %v7700, %v7684
        %v7846 = vpack.c.bf16 %v7701, %v7685
        %v7847 = vpack.c.bf16 %v7718, %v7702
        %v7848 = vpack.c.bf16 %v7719, %v7703
        %v7849 = vpack.c.bf16 %v7720, %v7704
        %v7850 = vpack.c.bf16 %v7721, %v7705
        %v7851 = vpack.c.bf16 %v7722, %v7706
        %v7852 = vpack.c.bf16 %v7723, %v7707
        %v7853 = vpack.c.bf16 %v7724, %v7708
        %v7854 = vpack.c.bf16 %v7725, %v7709
        %v7855 = vpack.c.bf16 %v7726, %v7710
        %v7856 = vpack.c.bf16 %v7727, %v7711
        %v7857 = vpack.c.bf16 %v7728, %v7712
        %v7858 = vpack.c.bf16 %v7729, %v7713
        %v7859 = vpack.c.bf16 %v7730, %v7714
        %v7860 = vpack.c.bf16 %v7731, %v7715
        %v7861 = vpack.c.bf16 %v7732, %v7716
        %v7862 = vpack.c.bf16 %v7733, %v7717
        %7863 = vmatpush.bf16.msra.mxu0 %v7847
        %7864 = vmatpush.bf16.msra.mxu0 %v7831
        %7865 = vmatpush.bf16.msra.mxu0 %v7815
        %7866 = vmatpush.bf16.msra.mxu0 %v7799
        %7867 = vmatpush.bf16.msra.mxu0 %v7783
        %7868 = vmatpush.bf16.msra.mxu0 %v7767
        %7869 = vmatpush.bf16.msra.mxu0 %v7751
        %7870 = vmatpush.bf16.msra.mxu0 %v7735
        %7871 = vmatmul.bf16.gmra.mxu0 %v7734
        %v7872 = vpop.f32.mrf.mxu0
        %v7873 = vadd.f32 0.0, %v7872
        %v7874 = vpop.f32.mrf.mxu0
        %7875 = vdwg.mxu0
        %7876 = vmatpush.bf16.msra.mxu0 %v7848
        %7877 = vmatpush.bf16.msra.mxu0 %v7832
        %7878 = vmatpush.bf16.msra.mxu0 %v7816
        %7879 = vmatpush.bf16.msra.mxu0 %v7800
        %7880 = vmatpush.bf16.msra.mxu0 %v7784
        %7881 = vmatpush.bf16.msra.mxu0 %v7768
        %7882 = vmatpush.bf16.msra.mxu0 %v7752
        %7883 = vmatpush.bf16.msra.mxu0 %v7736
        %7884 = vmatmul.bf16.gmra.mxu0 %v7734
        %v7885 = vpop.f32.mrf.mxu0
        %v7886 = vadd.f32 0.0, %v7885
        %v7887 = vpop.f32.mrf.mxu0
        %7888 = vdwg.mxu0
        %7889 = vmatpush.bf16.msra.mxu0 %v7849
        %7890 = vmatpush.bf16.msra.mxu0 %v7833
        %7891 = vmatpush.bf16.msra.mxu0 %v7817
        %7892 = vmatpush.bf16.msra.mxu0 %v7801
        %7893 = vmatpush.bf16.msra.mxu0 %v7785
        %7894 = vmatpush.bf16.msra.mxu0 %v7769
        %7895 = vmatpush.bf16.msra.mxu0 %v7753
        %7896 = vmatpush.bf16.msra.mxu0 %v7737
        %7897 = vmatmul.bf16.gmra.mxu0 %v7734
        %v7898 = vpop.f32.mrf.mxu0
        %v7899 = vadd.f32 0.0, %v7898
        %v7900 = vpop.f32.mrf.mxu0
        %7901 = vdwg.mxu0
        %7902 = vmatpush.bf16.msra.mxu0 %v7850
        %7903 = vmatpush.bf16.msra.mxu0 %v7834
        %7904 = vmatpush.bf16.msra.mxu0 %v7818
        %7905 = vmatpush.bf16.msra.mxu0 %v7802
        %7906 = vmatpush.bf16.msra.mxu0 %v7786
        %7907 = vmatpush.bf16.msra.mxu0 %v7770
        %7908 = vmatpush.bf16.msra.mxu0 %v7754
        %7909 = vmatpush.bf16.msra.mxu0 %v7738
        %7910 = vmatmul.bf16.gmra.mxu0 %v7734
        %v7911 = vpop.f32.mrf.mxu0
        %v7912 = vadd.f32 0.0, %v7911
        %v7913 = vpop.f32.mrf.mxu0
        %7914 = vdwg.mxu0
        %7915 = vmatpush.bf16.msra.mxu0 %v7851
        %7916 = vmatpush.bf16.msra.mxu0 %v7835
        %7917 = vmatpush.bf16.msra.mxu0 %v7819
        %7918 = vmatpush.bf16.msra.mxu0 %v7803
        %7919 = vmatpush.bf16.msra.mxu0 %v7787
        %7920 = vmatpush.bf16.msra.mxu0 %v7771
        %7921 = vmatpush.bf16.msra.mxu0 %v7755
        %7922 = vmatpush.bf16.msra.mxu0 %v7739
        %7923 = vmatmul.bf16.gmra.mxu0 %v7734
        %v7924 = vpop.f32.mrf.mxu0
        %v7925 = vadd.f32 0.0, %v7924
        %v7926 = vpop.f32.mrf.mxu0
        %7927 = vdwg.mxu0
        %7928 = vmatpush.bf16.msra.mxu0 %v7852
        %7929 = vmatpush.bf16.msra.mxu0 %v7836
        %7930 = vmatpush.bf16.msra.mxu0 %v7820
        %7931 = vmatpush.bf16.msra.mxu0 %v7804
        %7932 = vmatpush.bf16.msra.mxu0 %v7788
        %7933 = vmatpush.bf16.msra.mxu0 %v7772
        %7934 = vmatpush.bf16.msra.mxu0 %v7756
        %7935 = vmatpush.bf16.msra.mxu0 %v7740
        %7936 = vmatmul.bf16.gmra.mxu0 %v7734
        %v7937 = vpop.f32.mrf.mxu0
        %v7938 = vadd.f32 0.0, %v7937
        %v7939 = vpop.f32.mrf.mxu0
        %7940 = vdwg.mxu0
        %7941 = vmatpush.bf16.msra.mxu0 %v7853
        %7942 = vmatpush.bf16.msra.mxu0 %v7837
        %7943 = vmatpush.bf16.msra.mxu0 %v7821
        %7944 = vmatpush.bf16.msra.mxu0 %v7805
        %7945 = vmatpush.bf16.msra.mxu0 %v7789
        %7946 = vmatpush.bf16.msra.mxu0 %v7773
        %7947 = vmatpush.bf16.msra.mxu0 %v7757
        %7948 = vmatpush.bf16.msra.mxu0 %v7741
        %7949 = vmatmul.bf16.gmra.mxu0 %v7734
        %v7950 = vpop.f32.mrf.mxu0
        %v7951 = vadd.f32 0.0, %v7950
        %v7952 = vpop.f32.mrf.mxu0
        %7953 = vdwg.mxu0
        %7954 = vmatpush.bf16.msra.mxu0 %v7854
        %7955 = vmatpush.bf16.msra.mxu0 %v7838
        %7956 = vmatpush.bf16.msra.mxu0 %v7822
        %7957 = vmatpush.bf16.msra.mxu0 %v7806
        %7958 = vmatpush.bf16.msra.mxu0 %v7790
        %7959 = vmatpush.bf16.msra.mxu0 %v7774
        %7960 = vmatpush.bf16.msra.mxu0 %v7758
        %7961 = vmatpush.bf16.msra.mxu0 %v7742
        %7962 = vmatmul.bf16.gmra.mxu0 %v7734
        %v7963 = vpop.f32.mrf.mxu0
        %v7964 = vadd.f32 0.0, %v7963
        %v7965 = vpop.f32.mrf.mxu0
        %7966 = vdwg.mxu0
        %7967 = vmatpush.bf16.msra.mxu0 %v7855
        %7968 = vmatpush.bf16.msra.mxu0 %v7839
        %7969 = vmatpush.bf16.msra.mxu0 %v7823
        %7970 = vmatpush.bf16.msra.mxu0 %v7807
        %7971 = vmatpush.bf16.msra.mxu0 %v7791
        %7972 = vmatpush.bf16.msra.mxu0 %v7775
        %7973 = vmatpush.bf16.msra.mxu0 %v7759
        %7974 = vmatpush.bf16.msra.mxu0 %v7743
        %7975 = vmatmul.bf16.gmra.mxu0 %v7734
        %v7976 = vpop.f32.mrf.mxu0
        %v7977 = vadd.f32 0.0, %v7976
        %v7978 = vpop.f32.mrf.mxu0
        %7979 = vdwg.mxu0
        %7980 = vmatpush.bf16.msra.mxu0 %v7856
        %7981 = vmatpush.bf16.msra.mxu0 %v7840
        %7982 = vmatpush.bf16.msra.mxu0 %v7824
        %7983 = vmatpush.bf16.msra.mxu0 %v7808
        %7984 = vmatpush.bf16.msra.mxu0 %v7792
        %7985 = vmatpush.bf16.msra.mxu0 %v7776
        %7986 = vmatpush.bf16.msra.mxu0 %v7760
        %7987 = vmatpush.bf16.msra.mxu0 %v7744
        %7988 = vmatmul.bf16.gmra.mxu0 %v7734
        %v7989 = vpop.f32.mrf.mxu0
        %v7990 = vadd.f32 0.0, %v7989
        %v7991 = vpop.f32.mrf.mxu0
        %7992 = vdwg.mxu0
        %7993 = vmatpush.bf16.msra.mxu0 %v7857
        %7994 = vmatpush.bf16.msra.mxu0 %v7841
        %7995 = vmatpush.bf16.msra.mxu0 %v7825
        %7996 = vmatpush.bf16.msra.mxu0 %v7809
        %7997 = vmatpush.bf16.msra.mxu0 %v7793
        %7998 = vmatpush.bf16.msra.mxu0 %v7777
        %7999 = vmatpush.bf16.msra.mxu0 %v7761
        %8000 = vmatpush.bf16.msra.mxu0 %v7745
        %8001 = vmatmul.bf16.gmra.mxu0 %v7734
        %v8002 = vpop.f32.mrf.mxu0
        %v8003 = vadd.f32 0.0, %v8002
        %v8004 = vpop.f32.mrf.mxu0
        %8005 = vdwg.mxu0
        %8006 = vmatpush.bf16.msra.mxu0 %v7858
        %8007 = vmatpush.bf16.msra.mxu0 %v7842
        %8008 = vmatpush.bf16.msra.mxu0 %v7826
        %8009 = vmatpush.bf16.msra.mxu0 %v7810
        %8010 = vmatpush.bf16.msra.mxu0 %v7794
        %8011 = vmatpush.bf16.msra.mxu0 %v7778
        %8012 = vmatpush.bf16.msra.mxu0 %v7762
        %8013 = vmatpush.bf16.msra.mxu0 %v7746
        %8014 = vmatmul.bf16.gmra.mxu0 %v7734
        %v8015 = vpop.f32.mrf.mxu0
        %v8016 = vadd.f32 0.0, %v8015
        %v8017 = vpop.f32.mrf.mxu0
        %8018 = vdwg.mxu0
        %8019 = vmatpush.bf16.msra.mxu0 %v7859
        %8020 = vmatpush.bf16.msra.mxu0 %v7843
        %8021 = vmatpush.bf16.msra.mxu0 %v7827
        %8022 = vmatpush.bf16.msra.mxu0 %v7811
        %8023 = vmatpush.bf16.msra.mxu0 %v7795
        %8024 = vmatpush.bf16.msra.mxu0 %v7779
        %8025 = vmatpush.bf16.msra.mxu0 %v7763
        %8026 = vmatpush.bf16.msra.mxu0 %v7747
        %8027 = vmatmul.bf16.gmra.mxu0 %v7734
        %v8028 = vpop.f32.mrf.mxu0
        %v8029 = vadd.f32 0.0, %v8028
        %v8030 = vpop.f32.mrf.mxu0
        %8031 = vdwg.mxu0
        %8032 = vmatpush.bf16.msra.mxu0 %v7860
        %8033 = vmatpush.bf16.msra.mxu0 %v7844
        %8034 = vmatpush.bf16.msra.mxu0 %v7828
        %8035 = vmatpush.bf16.msra.mxu0 %v7812
        %8036 = vmatpush.bf16.msra.mxu0 %v7796
        %8037 = vmatpush.bf16.msra.mxu0 %v7780
        %8038 = vmatpush.bf16.msra.mxu0 %v7764
        %8039 = vmatpush.bf16.msra.mxu0 %v7748
        %8040 = vmatmul.bf16.gmra.mxu0 %v7734
        %v8041 = vpop.f32.mrf.mxu0
        %v8042 = vadd.f32 0.0, %v8041
        %v8043 = vpop.f32.mrf.mxu0
        %8044 = vdwg.mxu0
        %8045 = vmatpush.bf16.msra.mxu0 %v7861
        %8046 = vmatpush.bf16.msra.mxu0 %v7845
        %8047 = vmatpush.bf16.msra.mxu0 %v7829
        %8048 = vmatpush.bf16.msra.mxu0 %v7813
        %8049 = vmatpush.bf16.msra.mxu0 %v7797
        %8050 = vmatpush.bf16.msra.mxu0 %v7781
        %8051 = vmatpush.bf16.msra.mxu0 %v7765
        %8052 = vmatpush.bf16.msra.mxu0 %v7749
        %8053 = vmatmul.bf16.gmra.mxu0 %v7734
        %v8054 = vpop.f32.mrf.mxu0
        %v8055 = vadd.f32 0.0, %v8054
        %v8056 = vpop.f32.mrf.mxu0
        %8057 = vdwg.mxu0
        %8058 = vmatpush.bf16.msra.mxu0 %v7862
        %8059 = vmatpush.bf16.msra.mxu0 %v7846
        %8060 = vmatpush.bf16.msra.mxu0 %v7830
        %8061 = vmatpush.bf16.msra.mxu0 %v7814
        %8062 = vmatpush.bf16.msra.mxu0 %v7798
        %8063 = vmatpush.bf16.msra.mxu0 %v7782
        %8064 = vmatpush.bf16.msra.mxu0 %v7766
        %8065 = vmatpush.bf16.msra.mxu0 %v7750
        %8066 = vmatmul.bf16.gmra.mxu0 %v7734
        %v8067 = vpop.f32.mrf.mxu0
        %v8068 = vadd.f32 0.0, %v8067
        %v8069 = vpop.f32.mrf.mxu0
        %8070 = vdwg.mxu0
        %s8071 = sld [smem:[#allocation2]]
        %v8072 = vstv %s8071
        %v8073 = vadd.f32 %v7873, %v8072
        %v8074 = vadd.f32 %v7886, %v8072
        %v8075 = vadd.f32 %v7899, %v8072
        %v8076 = vadd.f32 %v7912, %v8072
        %v8077 = vadd.f32 %v7925, %v8072
        %v8078 = vadd.f32 %v7938, %v8072
        %v8079 = vadd.f32 %v7951, %v8072
        %v8080 = vadd.f32 %v7964, %v8072
        %v8081 = vadd.f32 %v7977, %v8072
        %v8082 = vadd.f32 %v7990, %v8072
        %v8083 = vadd.f32 %v8003, %v8072
        %v8084 = vadd.f32 %v8016, %v8072
        %v8085 = vadd.f32 %v8029, %v8072
        %v8086 = vadd.f32 %v8042, %v8072
        %v8087 = vadd.f32 %v8055, %v8072
        %v8088 = vadd.f32 %v8068, %v8072
        %v8089 = vxor.u32 %v8073, 2147483648
        %v8090 = vxor.u32 %v8074, 2147483648
        %v8091 = vxor.u32 %v8075, 2147483648
        %v8092 = vxor.u32 %v8076, 2147483648
        %v8093 = vxor.u32 %v8077, 2147483648
        %v8094 = vxor.u32 %v8078, 2147483648
        %v8095 = vxor.u32 %v8079, 2147483648
        %v8096 = vxor.u32 %v8080, 2147483648
        %v8097 = vxor.u32 %v8081, 2147483648
        %v8098 = vxor.u32 %v8082, 2147483648
        %v8099 = vxor.u32 %v8083, 2147483648
        %v8100 = vxor.u32 %v8084, 2147483648
        %v8101 = vxor.u32 %v8085, 2147483648
        %v8102 = vxor.u32 %v8086, 2147483648
        %v8103 = vxor.u32 %v8087, 2147483648
        %v8104 = vxor.u32 %v8088, 2147483648
        %v8105 = vmul.f32 %v8089, 1.442695
        %v8106 = vpow.pop %v8105
        %v8107 = vmul.f32 %v8090, 1.442695
        %v8108 = vpow.pop %v8107
        %v8109 = vmul.f32 %v8091, 1.442695
        %v8110 = vpow.pop %v8109
        %v8111 = vmul.f32 %v8092, 1.442695
        %v8112 = vpow.pop %v8111
        %v8113 = vmul.f32 %v8093, 1.442695
        %v8114 = vpow.pop %v8113
        %v8115 = vmul.f32 %v8094, 1.442695
        %v8116 = vpow.pop %v8115
        %v8117 = vmul.f32 %v8095, 1.442695
        %v8118 = vpow.pop %v8117
        %v8119 = vmul.f32 %v8096, 1.442695
        %v8120 = vpow.pop %v8119
        %v8121 = vmul.f32 %v8097, 1.442695
        %v8122 = vpow.pop %v8121
        %v8123 = vmul.f32 %v8098, 1.442695
        %v8124 = vpow.pop %v8123
        %v8125 = vmul.f32 %v8099, 1.442695
        %v8126 = vpow.pop %v8125
        %v8127 = vmul.f32 %v8100, 1.442695
        %v8128 = vpow.pop %v8127
        %v8129 = vmul.f32 %v8101, 1.442695
        %v8130 = vpow.pop %v8129
        %v8131 = vmul.f32 %v8102, 1.442695
        %v8132 = vpow.pop %v8131
        %v8133 = vmul.f32 %v8103, 1.442695
        %v8134 = vpow.pop %v8133
        %v8135 = vmul.f32 %v8104, 1.442695
        %v8136 = vpow.pop %v8135
        %v8137 = vadd.f32 %v8106, 1.0
        %v8138 = vadd.f32 %v8108, 1.0
        %v8139 = vadd.f32 %v8110, 1.0
        %v8140 = vadd.f32 %v8112, 1.0
        %v8141 = vadd.f32 %v8114, 1.0
        %v8142 = vadd.f32 %v8116, 1.0
        %v8143 = vadd.f32 %v8118, 1.0
        %v8144 = vadd.f32 %v8120, 1.0
        %v8145 = vadd.f32 %v8122, 1.0
        %v8146 = vadd.f32 %v8124, 1.0
        %v8147 = vadd.f32 %v8126, 1.0
        %v8148 = vadd.f32 %v8128, 1.0
        %v8149 = vadd.f32 %v8130, 1.0
        %v8150 = vadd.f32 %v8132, 1.0
        %v8151 = vadd.f32 %v8134, 1.0
        %v8152 = vadd.f32 %v8136, 1.0
        %v8153 = vrcp.pop %v8137
        %v8154 = vmul.f32 %v8137, %v8153
        %v8155 = vsub.f32 1.0, %v8154
        %v8156 = vmul.f32 %v8153, %v8155
        %v8157 = vadd.f32 %v8153, %v8156
        %vm8158 = vweird.f32 %v8137
        %vm8159 = vweird.f32 %v8153
        %vm8160 = vmor %vm8158, %vm8159
        %v8161 = vsel %vm8160, %v8153, %v8157
        %v8162 = vand.u32 2147483647, %v8137
        %vm8163 = vcmp.eq.f32.partialorder %v8162, 8.507059e+37
        %v8164 = vand.u32 %v8137, 2147483648
        %v8165 = vor.u32 1.1754944e-38, %v8164
        %v8166 = vsel %vm8163, %v8165, %v8161
        %v8167 = vmul.f32 1.0, %v8166
        %v8168 = vrcp.pop %v8138
        %v8169 = vmul.f32 %v8138, %v8168
        %v8170 = vsub.f32 1.0, %v8169
        %v8171 = vmul.f32 %v8168, %v8170
        %v8172 = vadd.f32 %v8168, %v8171
        %vm8173 = vweird.f32 %v8138
        %vm8174 = vweird.f32 %v8168
        %vm8175 = vmor %vm8173, %vm8174
        %v8176 = vsel %vm8175, %v8168, %v8172
        %v8177 = vand.u32 2147483647, %v8138
        %vm8178 = vcmp.eq.f32.partialorder %v8177, 8.507059e+37
        %v8179 = vand.u32 %v8138, 2147483648
        %v8180 = vor.u32 1.1754944e-38, %v8179
        %v8181 = vsel %vm8178, %v8180, %v8176
        %v8182 = vmul.f32 1.0, %v8181
        %v8183 = vrcp.pop %v8139
        %v8184 = vmul.f32 %v8139, %v8183
        %v8185 = vsub.f32 1.0, %v8184
        %v8186 = vmul.f32 %v8183, %v8185
        %v8187 = vadd.f32 %v8183, %v8186
        %vm8188 = vweird.f32 %v8139
        %vm8189 = vweird.f32 %v8183
        %vm8190 = vmor %vm8188, %vm8189
        %v8191 = vsel %vm8190, %v8183, %v8187
        %v8192 = vand.u32 2147483647, %v8139
        %vm8193 = vcmp.eq.f32.partialorder %v8192, 8.507059e+37
        %v8194 = vand.u32 %v8139, 2147483648
        %v8195 = vor.u32 1.1754944e-38, %v8194
        %v8196 = vsel %vm8193, %v8195, %v8191
        %v8197 = vmul.f32 1.0, %v8196
        %v8198 = vrcp.pop %v8140
        %v8199 = vmul.f32 %v8140, %v8198
        %v8200 = vsub.f32 1.0, %v8199
        %v8201 = vmul.f32 %v8198, %v8200
        %v8202 = vadd.f32 %v8198, %v8201
        %vm8203 = vweird.f32 %v8140
        %vm8204 = vweird.f32 %v8198
        %vm8205 = vmor %vm8203, %vm8204
        %v8206 = vsel %vm8205, %v8198, %v8202
        %v8207 = vand.u32 2147483647, %v8140
        %vm8208 = vcmp.eq.f32.partialorder %v8207, 8.507059e+37
        %v8209 = vand.u32 %v8140, 2147483648
        %v8210 = vor.u32 1.1754944e-38, %v8209
        %v8211 = vsel %vm8208, %v8210, %v8206
        %v8212 = vmul.f32 1.0, %v8211
        %v8213 = vrcp.pop %v8141
        %v8214 = vmul.f32 %v8141, %v8213
        %v8215 = vsub.f32 1.0, %v8214
        %v8216 = vmul.f32 %v8213, %v8215
        %v8217 = vadd.f32 %v8213, %v8216
        %vm8218 = vweird.f32 %v8141
        %vm8219 = vweird.f32 %v8213
        %vm8220 = vmor %vm8218, %vm8219
        %v8221 = vsel %vm8220, %v8213, %v8217
        %v8222 = vand.u32 2147483647, %v8141
        %vm8223 = vcmp.eq.f32.partialorder %v8222, 8.507059e+37
        %v8224 = vand.u32 %v8141, 2147483648
        %v8225 = vor.u32 1.1754944e-38, %v8224
        %v8226 = vsel %vm8223, %v8225, %v8221
        %v8227 = vmul.f32 1.0, %v8226
        %v8228 = vrcp.pop %v8142
        %v8229 = vmul.f32 %v8142, %v8228
        %v8230 = vsub.f32 1.0, %v8229
        %v8231 = vmul.f32 %v8228, %v8230
        %v8232 = vadd.f32 %v8228, %v8231
        %vm8233 = vweird.f32 %v8142
        %vm8234 = vweird.f32 %v8228
        %vm8235 = vmor %vm8233, %vm8234
        %v8236 = vsel %vm8235, %v8228, %v8232
        %v8237 = vand.u32 2147483647, %v8142
        %vm8238 = vcmp.eq.f32.partialorder %v8237, 8.507059e+37
        %v8239 = vand.u32 %v8142, 2147483648
        %v8240 = vor.u32 1.1754944e-38, %v8239
        %v8241 = vsel %vm8238, %v8240, %v8236
        %v8242 = vmul.f32 1.0, %v8241
        %v8243 = vrcp.pop %v8143
        %v8244 = vmul.f32 %v8143, %v8243
        %v8245 = vsub.f32 1.0, %v8244
        %v8246 = vmul.f32 %v8243, %v8245
        %v8247 = vadd.f32 %v8243, %v8246
        %vm8248 = vweird.f32 %v8143
        %vm8249 = vweird.f32 %v8243
        %vm8250 = vmor %vm8248, %vm8249
        %v8251 = vsel %vm8250, %v8243, %v8247
        %v8252 = vand.u32 2147483647, %v8143
        %vm8253 = vcmp.eq.f32.partialorder %v8252, 8.507059e+37
        %v8254 = vand.u32 %v8143, 2147483648
        %v8255 = vor.u32 1.1754944e-38, %v8254
        %v8256 = vsel %vm8253, %v8255, %v8251
        %v8257 = vmul.f32 1.0, %v8256
        %v8258 = vrcp.pop %v8144
        %v8259 = vmul.f32 %v8144, %v8258
        %v8260 = vsub.f32 1.0, %v8259
        %v8261 = vmul.f32 %v8258, %v8260
        %v8262 = vadd.f32 %v8258, %v8261
        %vm8263 = vweird.f32 %v8144
        %vm8264 = vweird.f32 %v8258
        %vm8265 = vmor %vm8263, %vm8264
        %v8266 = vsel %vm8265, %v8258, %v8262
        %v8267 = vand.u32 2147483647, %v8144
        %vm8268 = vcmp.eq.f32.partialorder %v8267, 8.507059e+37
        %v8269 = vand.u32 %v8144, 2147483648
        %v8270 = vor.u32 1.1754944e-38, %v8269
        %v8271 = vsel %vm8268, %v8270, %v8266
        %v8272 = vmul.f32 1.0, %v8271
        %v8273 = vrcp.pop %v8145
        %v8274 = vmul.f32 %v8145, %v8273
        %v8275 = vsub.f32 1.0, %v8274
        %v8276 = vmul.f32 %v8273, %v8275
        %v8277 = vadd.f32 %v8273, %v8276
        %vm8278 = vweird.f32 %v8145
        %vm8279 = vweird.f32 %v8273
        %vm8280 = vmor %vm8278, %vm8279
        %v8281 = vsel %vm8280, %v8273, %v8277
        %v8282 = vand.u32 2147483647, %v8145
        %vm8283 = vcmp.eq.f32.partialorder %v8282, 8.507059e+37
        %v8284 = vand.u32 %v8145, 2147483648
        %v8285 = vor.u32 1.1754944e-38, %v8284
        %v8286 = vsel %vm8283, %v8285, %v8281
        %v8287 = vmul.f32 1.0, %v8286
        %v8288 = vrcp.pop %v8146
        %v8289 = vmul.f32 %v8146, %v8288
        %v8290 = vsub.f32 1.0, %v8289
        %v8291 = vmul.f32 %v8288, %v8290
        %v8292 = vadd.f32 %v8288, %v8291
        %vm8293 = vweird.f32 %v8146
        %vm8294 = vweird.f32 %v8288
        %vm8295 = vmor %vm8293, %vm8294
        %v8296 = vsel %vm8295, %v8288, %v8292
        %v8297 = vand.u32 2147483647, %v8146
        %vm8298 = vcmp.eq.f32.partialorder %v8297, 8.507059e+37
        %v8299 = vand.u32 %v8146, 2147483648
        %v8300 = vor.u32 1.1754944e-38, %v8299
        %v8301 = vsel %vm8298, %v8300, %v8296
        %v8302 = vmul.f32 1.0, %v8301
        %v8303 = vrcp.pop %v8147
        %v8304 = vmul.f32 %v8147, %v8303
        %v8305 = vsub.f32 1.0, %v8304
        %v8306 = vmul.f32 %v8303, %v8305
        %v8307 = vadd.f32 %v8303, %v8306
        %vm8308 = vweird.f32 %v8147
        %vm8309 = vweird.f32 %v8303
        %vm8310 = vmor %vm8308, %vm8309
        %v8311 = vsel %vm8310, %v8303, %v8307
        %v8312 = vand.u32 2147483647, %v8147
        %vm8313 = vcmp.eq.f32.partialorder %v8312, 8.507059e+37
        %v8314 = vand.u32 %v8147, 2147483648
        %v8315 = vor.u32 1.1754944e-38, %v8314
        %v8316 = vsel %vm8313, %v8315, %v8311
        %v8317 = vmul.f32 1.0, %v8316
        %v8318 = vrcp.pop %v8148
        %v8319 = vmul.f32 %v8148, %v8318
        %v8320 = vsub.f32 1.0, %v8319
        %v8321 = vmul.f32 %v8318, %v8320
        %v8322 = vadd.f32 %v8318, %v8321
        %vm8323 = vweird.f32 %v8148
        %vm8324 = vweird.f32 %v8318
        %vm8325 = vmor %vm8323, %vm8324
        %v8326 = vsel %vm8325, %v8318, %v8322
        %v8327 = vand.u32 2147483647, %v8148
        %vm8328 = vcmp.eq.f32.partialorder %v8327, 8.507059e+37
        %v8329 = vand.u32 %v8148, 2147483648
        %v8330 = vor.u32 1.1754944e-38, %v8329
        %v8331 = vsel %vm8328, %v8330, %v8326
        %v8332 = vmul.f32 1.0, %v8331
        %v8333 = vrcp.pop %v8149
        %v8334 = vmul.f32 %v8149, %v8333
        %v8335 = vsub.f32 1.0, %v8334
        %v8336 = vmul.f32 %v8333, %v8335
        %v8337 = vadd.f32 %v8333, %v8336
        %vm8338 = vweird.f32 %v8149
        %vm8339 = vweird.f32 %v8333
        %vm8340 = vmor %vm8338, %vm8339
        %v8341 = vsel %vm8340, %v8333, %v8337
        %v8342 = vand.u32 2147483647, %v8149
        %vm8343 = vcmp.eq.f32.partialorder %v8342, 8.507059e+37
        %v8344 = vand.u32 %v8149, 2147483648
        %v8345 = vor.u32 1.1754944e-38, %v8344
        %v8346 = vsel %vm8343, %v8345, %v8341
        %v8347 = vmul.f32 1.0, %v8346
        %v8348 = vrcp.pop %v8150
        %v8349 = vmul.f32 %v8150, %v8348
        %v8350 = vsub.f32 1.0, %v8349
        %v8351 = vmul.f32 %v8348, %v8350
        %v8352 = vadd.f32 %v8348, %v8351
        %vm8353 = vweird.f32 %v8150
        %vm8354 = vweird.f32 %v8348
        %vm8355 = vmor %vm8353, %vm8354
        %v8356 = vsel %vm8355, %v8348, %v8352
        %v8357 = vand.u32 2147483647, %v8150
        %vm8358 = vcmp.eq.f32.partialorder %v8357, 8.507059e+37
        %v8359 = vand.u32 %v8150, 2147483648
        %v8360 = vor.u32 1.1754944e-38, %v8359
        %v8361 = vsel %vm8358, %v8360, %v8356
        %v8362 = vmul.f32 1.0, %v8361
        %v8363 = vrcp.pop %v8151
        %v8364 = vmul.f32 %v8151, %v8363
        %v8365 = vsub.f32 1.0, %v8364
        %v8366 = vmul.f32 %v8363, %v8365
        %v8367 = vadd.f32 %v8363, %v8366
        %vm8368 = vweird.f32 %v8151
        %vm8369 = vweird.f32 %v8363
        %vm8370 = vmor %vm8368, %vm8369
        %v8371 = vsel %vm8370, %v8363, %v8367
        %v8372 = vand.u32 2147483647, %v8151
        %vm8373 = vcmp.eq.f32.partialorder %v8372, 8.507059e+37
        %v8374 = vand.u32 %v8151, 2147483648
        %v8375 = vor.u32 1.1754944e-38, %v8374
        %v8376 = vsel %vm8373, %v8375, %v8371
        %v8377 = vmul.f32 1.0, %v8376
        %v8378 = vrcp.pop %v8152
        %v8379 = vmul.f32 %v8152, %v8378
        %v8380 = vsub.f32 1.0, %v8379
        %v8381 = vmul.f32 %v8378, %v8380
        %v8382 = vadd.f32 %v8378, %v8381
        %vm8383 = vweird.f32 %v8152
        %vm8384 = vweird.f32 %v8378
        %vm8385 = vmor %vm8383, %vm8384
        %v8386 = vsel %vm8385, %v8378, %v8382
        %v8387 = vand.u32 2147483647, %v8152
        %vm8388 = vcmp.eq.f32.partialorder %v8387, 8.507059e+37
        %v8389 = vand.u32 %v8152, 2147483648
        %v8390 = vor.u32 1.1754944e-38, %v8389
        %v8391 = vsel %vm8388, %v8390, %v8386
        %v8392 = vmul.f32 1.0, %v8391
        %v8409 = vrot.slane %v8182, 7
        %v8410 = vrot.slane %v8197, 6
        %v8411 = vrot.slane %v8212, 5
        %v8412 = vrot.slane %v8227, 4
        %v8413 = vrot.slane %v8242, 3
        %v8414 = vrot.slane %v8257, 2
        %v8415 = vrot.slane %v8272, 1
        %v8416 = vrot.slane %v8302, 7
        %v8417 = vrot.slane %v8317, 6
        %v8418 = vrot.slane %v8332, 5
        %v8419 = vrot.slane %v8347, 4
        %v8420 = vrot.slane %v8362, 3
        %v8421 = vrot.slane %v8377, 2
        %v8422 = vrot.slane %v8392, 1
        %v8423 = vsel %vm4707, %v8167, %v8409
        %vm8424 = vcmask 1042434
        %v8425 = vsel %vm8424, %v8410, %v8411
        %vm8426 = vcmask 1041408
        %v8427 = vsel %vm8426, %v8423, %v8425
        %vm8428 = vcmask 1044484
        %v8429 = vsel %vm8428, %v8412, %v8413
        %vm8430 = vcmask 1046534
        %v8431 = vsel %vm8430, %v8414, %v8415
        %vm8432 = vcmask 1045508
        %v8433 = vsel %vm8432, %v8429, %v8431
        %vm8434 = vcmask 1043456
        %v8435 = vsel %vm8434, %v8427, %v8433
        %v8436 = vsel %vm4707, %v8287, %v8416
        %v8437 = vsel %vm8424, %v8417, %v8418
        %v8438 = vsel %vm8426, %v8436, %v8437
        %v8439 = vsel %vm8428, %v8419, %v8420
        %v8440 = vsel %vm8430, %v8421, %v8422
        %v8441 = vsel %vm8432, %v8439, %v8440
        %v8442 = vsel %vm8434, %v8438, %v8441
        %8445 = vst [vmem:[%s446] sm:$0xff] %v8435
        %8446 = vst [vmem:[%s446 + $0x8] sm:$0xff] %v8442
        %s8447 = smul.u32 16, %s21
        %p8448 = scmp.lt.s32.totalorder %s8447, 31
        %s8449 = scalar_select %p8448, %s8447, 31
        %s8450 = scalar_lea.vmem %s9, %s8449
        // Predicated region
        $region80: #{mlp_forward.1} parent=74 // pred_check
          %p8451 = pneg %p233
        $region81: #{mlp_forward.1} parent=74 // pred_check_branch
          %8453 = sbr.rel (%p8451) target = $region83
        $region82: #{mlp_forward.1} parent=74 // pred_region
          %s8454 = smul.u32 16, %s21
        $region83: #{mlp_forward.1} parent=74 // pred_fallthru
          _
      $region75: #{mlp_forward.1} parent=5 // pred_fallthru
        _
      %p8455 = scmp.le.s32.totalorder 2, %s16
      // Predicated region
      $region84: #{mlp_forward.1} parent=5 // pred_check
        %p8456 = pneg %p8455
      $region85: #{mlp_forward.1} parent=5 // pred_check_branch
        %8458 = sbr.rel (%p8456) target = $region87
      $region86: #{mlp_forward.1} parent=5 // pred_region
        %s8459 = ssub.s32 %s16, 2
        // Predicated region
        $region88: #{mlp_forward.1} parent=86 // pred_check
          %p8460 = pneg %p239
        $region89: #{mlp_forward.1} parent=86 // pred_check_branch
          %8462 = sbr.rel (%p8460) target = $region91
        $region90: #{mlp_forward.1} parent=86 // pred_region
          %s8463 = smul.u32 16, %s22
          %p8464 = scmp.lt.s32.totalorder %s8463, 31
          %s8465 = scalar_select %p8464, %s8463, 31
          %s8466 = scalar_lea.vmem %s9, %s8465
        $region91: #{mlp_forward.1} parent=86 // pred_fallthru
          _
      $region87: #{mlp_forward.1} parent=5 // pred_fallthru
        _
    $region6: #{mlp_forward.1} parent=1 // loop_footer
      %s20 = sadd.s32 1, %s16
    $region7: #{mlp_forward.1} parent=1 // loop_footer_branch
      %15 = sbr.rel target = $region3
    $region8: #{mlp_forward.1} parent=1 // loop_exit
      _

</llo_original>
